<compile_context>
chip_gen: v7x
topology: tpu7x:2x2x1
jax: 0.10.0
libtpu: 0.0.40
codegen_flags: <defaults>
</compile_context>

<pallas_src>
import functools

import numpy as np

import jax
import jax.numpy as jnp
from jax.experimental import pallas as pl
from jax.experimental.pallas import tpu as pltpu


# ---------------------------------------------------------------------------
# Small helpers
# ---------------------------------------------------------------------------

def _conv_out(n, k, s):
    return (n - k) // s + 1


def im2col_nchw(x, kh, kw, stride):
    """x: (B, C, H, W) -> patches (B*OH*OW, C*KH*KW); rows ordered (b, oh, ow),
    columns ordered (C, KH, KW) to match PyTorch's weight.reshape(OC, -1)."""
    b, c, h, w = x.shape
    oh = _conv_out(h, kh, stride)
    ow = _conv_out(w, kw, stride)
    rows = []
    for i in range(kh):
        cols = []
        for j in range(kw):
            cols.append(x[:, :, i:i + oh * stride:stride, j:j + ow * stride:stride])
        rows.append(jnp.stack(cols, axis=2))            # (B, C, KW, OH, OW)
    patches = jnp.stack(rows, axis=2)                   # (B, C, KH, KW, OH, OW)
    patches = patches.transpose(0, 4, 5, 1, 2, 3)       # (B, OH, OW, C, KH, KW)
    return patches.reshape(b * oh * ow, c * kh * kw), oh, ow


@functools.lru_cache(maxsize=None)
def _dup_index(batch, o1, o2, k2, s2, blk):
    """Row-duplication index so h1 comes out of L1 already in conv2-im2col
    order: row t*blk + (b*o2*o2 + oh*o2 + ow) holds the conv1 patch at conv1
    position (b, s2*oh+i, s2*ow+j) for tap t = i*k2 + j.  Pad rows point at 0."""
    idx = np.zeros((k2 * k2 * blk,), np.int32)
    for t in range(k2 * k2):
        i, j = divmod(t, k2)
        for b in range(batch):
            for oh in range(o2):
                for ow in range(o2):
                    m = (b * o2 + oh) * o2 + ow
                    idx[t * blk + m] = (b * o1 + s2 * oh + i) * o1 + (s2 * ow + j)
    return idx


# ---------------------------------------------------------------------------
# The single fused Pallas kernel
# ---------------------------------------------------------------------------

def _fused_forward_kernel(
        patches_ref, w1_ref, b1_ref,
        w2s_ref, w2c_ref, w2r_ref, b2_ref,
        w3s_ref, w3c_ref, b3e_ref, w3r_ref, b3r_ref,
        w4s_ref, w4c_ref, b4s_ref, b4c_ref,
        w5s_ref, w5c_ref, b5s_ref, b5c_ref, w5r_ref, b5r_ref,
        mask_ref,
        q_ref, pred_ref,
        h1_ref, g_ref, w2stk_ref, h2_ref, h2sc_ref, w3stk_ref,
        *, batch, use_external_mask):
    f32, bf16 = jnp.float32, jnp.bfloat16

    def mm(a, b):                       # bf16 MXU matmul, f32 accumulation
        return jnp.dot(a, b, preferred_element_type=f32)

    def silu(z):                        # f32 epilogue; exp + reciprocal -> EUP slot
        return z * pl.reciprocal(1.0 + jnp.exp(-z), approx=True)

    n_tap = w2stk_ref.shape[0] // 128   # 16 conv2 taps
    n_pos = w3stk_ref.shape[0] // 128   # 9  conv2 output positions (= conv3 taps)
    blk = g_ref.shape[0]                # rows per tap block (B*9 padded to x8)
    ci2 = w2s_ref.shape[0] // n_tap     # 32 conv2 in-channels per network
    co2 = w2s_ref.shape[1]              # 64 conv2 out-channels per network
    co3 = w3s_ref.shape[1]              # 64 conv3 out-channels per expert

    # --- assemble block-diagonal L2/L3 weights in VMEM from dense HBM blocks --
    # (only dense bytes cross HBM; structural zeros are created on-chip)
    w2stk_ref[...] = jnp.zeros(w2stk_ref.shape, bf16)
    for t in range(n_tap):
        r, s = t * 128, t * ci2
        w2stk_ref[r:r + ci2,               0:co2]           = w2s_ref[s:s + ci2, :]
        w2stk_ref[r + ci2:r + 2 * ci2,     co2:2 * co2]     = w2c_ref[s:s + ci2, :]
        w2stk_ref[r + 2 * ci2:r + 3 * ci2, 2 * co2:3 * co2] = w2r_ref[s:s + ci2, :]
    w3stk_ref[...] = jnp.zeros(w3stk_ref.shape, bf16)
    for p in range(n_pos):
        r, s = p * 128, p * co2
        w3stk_ref[r:r + co2,           0:co3]       = w3s_ref[s:s + co2, :]
        w3stk_ref[r + co2:r + 2 * co2, co3:2 * co3] = w3c_ref[s:s + co2, :]

    # --- L1: conv1 of ship|cube|router on tap-duplicated patches (ONE matmul) -
    h1_ref[...] = silu(mm(patches_ref[...], w1_ref[...]) + b1_ref[...])

    # --- conv2 im2col: 16 aligned block copies (tap t -> lane group t of G) ---
    for t in range(n_tap):
        g_ref[:, t * 128:(t + 1) * 128] = h1_ref[t * blk:(t + 1) * blk, :]

    # --- L2: conv2 of ship|cube|router, ONE matmul, K-accumulation in the MXU -
    h2_ref[...] = silu(mm(g_ref[...].astype(bf16), w2stk_ref[...]) + b2_ref[...])

    # --- relayout h2 -> (B, 9*128) lanes for conv3; router mean-pool on VPU ---
    for b in range(batch):
        for p in range(n_pos):
            r = b * n_pos + p
            h2sc_ref[b:b + 1, p * 128:(p + 1) * 128] = h2_ref[r:r + 1, 0:128]
    pooled = jnp.concatenate(
        [jnp.sum(h2_ref[b * n_pos:(b + 1) * n_pos, 2 * co2:3 * co2],
                 axis=0, keepdims=True)
         for b in range(batch)], axis=0)                 # (B, 64); 1/9 folded in w3r

    # --- L3: conv3(ship|cube) in ONE matmul; router FC1 as a dense matmul -----
    h3e = silu(mm(h2sc_ref[...].astype(bf16), w3stk_ref[...]) + b3e_ref[...])  # (B,128)
    h3r = silu(mm(pooled.astype(bf16), w3r_ref[...]) + b3r_ref[...])           # (B,128)

    # --- L4: expert FC1 (two dense matmuls) + router logit as a VPU reduction -
    h4s = silu(mm(h3e[:, 0:co3].astype(bf16), w4s_ref[...]) + b4s_ref[...])        # (B,256)
    h4c = silu(mm(h3e[:, co3:2 * co3].astype(bf16), w4c_ref[...]) + b4c_ref[...])  # (B,256)
    logit = jnp.sum(h3r * w5r_ref[...], axis=-1, keepdims=True) + b5r_ref[...]     # (B,1)
    pred = 1.0 / (1.0 + jnp.exp(-logit))                 # exact sigmoid for the output

    # --- L5: expert FC2 heads + routing select, fused epilogue ----------------
    q_ship = mm(h4s.astype(bf16), w5s_ref[...]) + b5s_ref[...]
    q_cube = mm(h4c.astype(bf16), w5c_ref[...]) + b5c_ref[...]
    if use_external_mask:
        route_ship = mask_ref[...] > 0.5                 # training: ground-truth routing
    else:
        route_ship = pred > 0.5                          # inference: router decision
    q_ref[...] = jnp.where(route_ship, q_ship, q_cube)
    pred_ref[...] = pred


# ---------------------------------------------------------------------------
# Wrapper (trace-time host work only: conv1 im2col + tap duplication)
# ---------------------------------------------------------------------------

def experts_forward(fused, x, is_ship=None, is_train=False):
    """x: (B, T, C, H, W) -> (q_values (B, num_actions), pred_is_ship (B, 1))."""
    b, t, c, h, w = x.shape
    x_flat = x.reshape(b, t * c, h, w)

    patches1, o1, _ = im2col_nchw(x_flat, 8, 8, 4)          # (B*o1*o1, T*C*64)
    o2 = _conv_out(o1, 4, 2)
    n_pos = o2 * o2
    blk = ((b * n_pos + 7) // 8) * 8                        # sublane-tile padded rows/tap

    dup_idx = jnp.asarray(_dup_index(b, o1, o2, 4, 2, blk))
    patches_dup = jnp.take(patches1, dup_idx, axis=0).astype(jnp.bfloat16)

    use_ext = bool(is_train) and (is_ship is not None)
    if use_ext:
        mask_in = is_ship.reshape(b, 1).astype(jnp.float32)
    else:
        mask_in = jnp.zeros((b, 1), jnp.float32)

    num_actions = fused["w5s"].shape[1]
    vmem = pl.BlockSpec(memory_space=pltpu.MemorySpace.VMEM)

    # TODO(synk): for larger batches add an M-tiling grid with
    #   dimension_semantics=("parallel",) (uses the second TensorCore on v7x) and
    #   a 64 MiB-aware vmem_limit_bytes; at B=2 the grid-less form is optimal.
    # TODO(synk): overlap late-layer weight DMA with L1/L2 compute
    #   (memory_space=pl.ANY + pltpu.make_async_copy), and/or keep the ~0.5 MB of
    #   packed weights VMEM-resident across calls in a tight rollout loop.
    q, pred = pl.pallas_call(
        functools.partial(_fused_forward_kernel, batch=b, use_external_mask=use_ext),
        out_shape=(jax.ShapeDtypeStruct((b, num_actions), jnp.float32),
                   jax.ShapeDtypeStruct((b, 1), jnp.float32)),
        in_specs=[vmem] * 23,
        out_specs=(vmem, vmem),
        scratch_shapes=[
            pltpu.VMEM((16 * blk, 128), jnp.float32),       # h1 (tap-duplicated conv1 out)
            pltpu.VMEM((blk, 16 * 128), jnp.float32),       # G: conv2 im2col, lanes=(tap,ch)
            pltpu.VMEM((16 * 128, 192), jnp.bfloat16),      # assembled conv2 block-diag weight
            pltpu.VMEM((blk, 192), jnp.float32),            # h2, rows=(b, spatial pos)
            pltpu.VMEM((b, n_pos * 128), jnp.float32),      # h2 relayout, rows=b, lanes=(p,ch)
            pltpu.VMEM((n_pos * 128, 128), jnp.bfloat16),   # assembled conv3 block-diag weight
        ],
    )(patches_dup,
      fused["w1"], fused["b1"],
      fused["w2s"], fused["w2c"], fused["w2r"], fused["b2"],
      fused["w3s"], fused["w3c"], fused["b3e"], fused["w3r"], fused["b3r"],
      fused["w4s"], fused["w4c"], fused["b4s"], fused["b4c"],
      fused["w5s"], fused["w5c"], fused["b5s"], fused["b5c"],
      fused["w5r"], fused["b5r"],
      mask_in)
    return q, pred


# ---------------------------------------------------------------------------
# Parameters: PyTorch-layout init + one-time fusion into kernel-ready operands
# ---------------------------------------------------------------------------

def init_raw_params(key, in_channels=1, stack_size=4, num_actions=2,
                    height=36, width=36):
    """Random parameters in PyTorch layouts (what a checkpoint would hold)."""
    tc = in_channels * stack_size
    o1 = _conv_out(height, 8, 4)
    o2 = _conv_out(o1, 4, 2)
    o3 = _conv_out(o2, 3, 1)
    flat = 64 * o3 * o3
    keys = iter(jax.random.split(key, 40))
    rnd = lambda shape: 0.05 * jax.random.normal(next(keys), shape, jnp.float32)

    def expert():
        return {"c1w": rnd((32, tc, 8, 8)),      "c1b": rnd((32,)),
                "c2w": rnd((64, 32, 4, 4)),      "c2b": rnd((64,)),
                "c3w": rnd((64, 64, 3, 3)),      "c3b": rnd((64,)),
                "f1w": rnd((256, flat)),         "f1b": rnd((256,)),
                "f2w": rnd((num_actions, 256)),  "f2b": rnd((num_actions,))}

    router = {"c1w": rnd((32, tc, 8, 8)), "c1b": rnd((32,)),
              "c2w": rnd((64, 32, 4, 4)), "c2b": rnd((64,)),
              "f1w": rnd((128, 64)),      "f1b": rnd((128,)),
              "f2w": rnd((1, 128)),       "f2b": rnd((1,))}
    return {"ship": expert(), "cube": expert(), "router": router}


def fuse_params(raw, height, width):
    """One-time fusion into dense, (K, N)-transposed, bf16 matmul operands.
    No block-diagonal zeros are materialized here; the kernel assembles them
    in VMEM so only dense bytes ever cross HBM."""
    o1 = _conv_out(height, 8, 4)
    o2 = _conv_out(o1, 4, 2)
    o3 = _conv_out(o2, 3, 1)
    assert o3 == 1, "fused L3/L4 assume a 1x1 conv3 output (true for 36x36 inputs)"
    npos = o2 * o2

    ship, cube, rtr = raw["ship"], raw["cube"], raw["router"]
    f32, bf16 = jnp.float32, jnp.bfloat16

    def conv_mat(w):    # (OC, IC, KH, KW) -> (KH*KW*IC, OC), rows = (tap, ic)
        return w.transpose(2, 3, 1, 0).reshape(-1, w.shape[0])

    # L1: conv1 of ship|cube|router -> (C*KH*KW, 96), zero-padded to 128 lanes.
    w1 = jnp.concatenate([p["c1w"].reshape(32, -1).T for p in (ship, cube, rtr)], axis=1)
    w1 = jnp.pad(w1, ((0, 0), (0, 32)))
    b1 = jnp.pad(jnp.concatenate([p["c1b"] for p in (ship, cube, rtr)]), (0, 32))[None, :]

    # L2: dense per-network conv2 blocks, rows = (tap, in_channel).
    w2s, w2c, w2r = (conv_mat(p["c2w"]) for p in (ship, cube, rtr))
    b2 = jnp.concatenate([p["c2b"] for p in (ship, cube, rtr)])[None, :]

    # L3: dense per-expert conv3 blocks, rows = (spatial_pos, in_channel);
    #     router FC1 with the 3x3 mean-pool folded in (1/npos).
    w3s, w3c = conv_mat(ship["c3w"]), conv_mat(cube["c3w"])
    b3e = jnp.concatenate([ship["c3b"], cube["c3b"]])[None, :]
    w3r = rtr["f1w"].T / float(npos)
    b3r = rtr["f1b"][None, :]

    # L4 / L5: dense expert FCs; router FC2 kept as a (1,128) f32 row for a VPU dot.
    w4s, b4s = ship["f1w"].T, ship["f1b"][None, :]
    w4c, b4c = cube["f1w"].T, cube["f1b"][None, :]
    w5s, b5s = ship["f2w"].T, ship["f2b"][None, :]
    w5c, b5c = cube["f2w"].T, cube["f2b"][None, :]
    w5r, b5r = rtr["f2w"], rtr["f2b"][None, :]

    cast = lambda a: a.astype(bf16)
    return {"w1": cast(w1), "b1": b1.astype(f32),
            "w2s": cast(w2s), "w2c": cast(w2c), "w2r": cast(w2r), "b2": b2.astype(f32),
            "w3s": cast(w3s), "w3c": cast(w3c), "b3e": b3e.astype(f32),
            "w3r": cast(w3r), "b3r": b3r.astype(f32),
            "w4s": cast(w4s), "b4s": b4s.astype(f32),
            "w4c": cast(w4c), "b4c": b4c.astype(f32),
            "w5s": cast(w5s), "b5s": b5s.astype(f32),
            "w5c": cast(w5c), "b5c": b5c.astype(f32),
            "w5r": w5r.astype(f32), "b5r": b5r.astype(f32)}


# ---------------------------------------------------------------------------
# Pure-JAX f32 reference (slow path) for verification
# ---------------------------------------------------------------------------

def _reference_forward(raw, x):
    def silu(v):
        return v * (1.0 / (1.0 + jnp.exp(-v)))

    def conv(hmap, w, b, stride):
        oc = w.shape[0]
        n = hmap.shape[0]
        patches, oh, ow = im2col_nchw(hmap, w.shape[2], w.shape[3], stride)
        y = patches @ w.reshape(oc, -1).T + b[None, :]
        return y.reshape(n, oh, ow, oc).transpose(0, 3, 1, 2)

    b = x.shape[0]
    xf = x.reshape(b, x.shape[1] * x.shape[2], x.shape[3], x.shape[4])

    def expert(p):
        h = silu(conv(xf, p["c1w"], p["c1b"], 4))
        h = silu(conv(h, p["c2w"], p["c2b"], 2))
        h = silu(conv(h, p["c3w"], p["c3b"], 1))
        h = h.reshape(b, -1)
        h = silu(h @ p["f1w"].T + p["f1b"][None, :])
        return h @ p["f2w"].T + p["f2b"][None, :]

    r = raw["router"]
    h = silu(conv(xf, r["c1w"], r["c1b"], 4))
    h = silu(conv(h, r["c2w"], r["c2b"], 2))
    h = jnp.mean(h, axis=(2, 3))
    h = silu(h @ r["f1w"].T + r["f1b"][None, :])
    pred = 1.0 / (1.0 + jnp.exp(-(h @ r["f2w"].T + r["f2b"][None, :])))
    return expert(raw["ship"]), expert(raw["cube"]), pred


# ---------------------------------------------------------------------------
# Main
# ---------------------------------------------------------------------------

if __name__ == "__main__":
    key = jax.random.PRNGKey(0)
    pkey, xkey = jax.random.split(key)

    in_channels, stack_size, num_actions = 1, 4, 2
    B, H, W = 2, 36, 36                                  # 36x36 -> 8 -> 3 -> 1 spatial

    raw = init_raw_params(pkey, in_channels, stack_size, num_actions, H, W)
    fused = fuse_params(raw, H, W)
    x = jax.random.normal(xkey, (B, stack_size, in_channels, H, W), jnp.float32)

    fwd = jax.jit(functools.partial(experts_forward, is_train=False))
    q_values, pred_is_ship = fwd(fused, x)
    jax.block_until_ready((q_values, pred_is_ship))

    assert q_values.shape == (B, num_actions)
    assert pred_is_ship.shape == (B, 1)
    assert bool(jnp.all((pred_is_ship >= 0.0) & (pred_is_ship <= 1.0)))

    # Cross-check the fused bf16 kernel against a pure-JAX f32 reference.  The
    # routing decision is taken from the kernel's own pred so a borderline
    # pred ~ 0.5 cannot flip the comparison.
    q_ship_ref, q_cube_ref, pred_ref = jax.jit(_reference_forward)(raw, x)
    q_ref = jnp.where(pred_is_ship > 0.5, q_ship_ref, q_cube_ref)
    np.testing.assert_allclose(np.asarray(pred_is_ship), np.asarray(pred_ref),
                               rtol=5e-2, atol=1.5e-2)
    np.testing.assert_allclose(np.asarray(q_values), np.asarray(q_ref),
                               rtol=6e-2, atol=3e-2)

    print("KERNEL_OK")
</pallas_src>

<mosaic_0001>
module attributes {stable_mosaic.version = 11 : i64} {
  func.func @_fused_forward_kernel(%arg0: memref<384x256xbf16, #tpu.memory_space<vmem>>, %arg1: memref<256x128xbf16, #tpu.memory_space<vmem>>, %arg2: memref<1x128xf32, #tpu.memory_space<vmem>>, %arg3: memref<512x64xbf16, #tpu.memory_space<vmem>>, %arg4: memref<512x64xbf16, #tpu.memory_space<vmem>>, %arg5: memref<512x64xbf16, #tpu.memory_space<vmem>>, %arg6: memref<1x192xf32, #tpu.memory_space<vmem>>, %arg7: memref<576x64xbf16, #tpu.memory_space<vmem>>, %arg8: memref<576x64xbf16, #tpu.memory_space<vmem>>, %arg9: memref<1x128xf32, #tpu.memory_space<vmem>>, %arg10: memref<64x128xbf16, #tpu.memory_space<vmem>>, %arg11: memref<1x128xf32, #tpu.memory_space<vmem>>, %arg12: memref<64x256xbf16, #tpu.memory_space<vmem>>, %arg13: memref<64x256xbf16, #tpu.memory_space<vmem>>, %arg14: memref<1x256xf32, #tpu.memory_space<vmem>>, %arg15: memref<1x256xf32, #tpu.memory_space<vmem>>, %arg16: memref<256x2xbf16, #tpu.memory_space<vmem>>, %arg17: memref<256x2xbf16, #tpu.memory_space<vmem>>, %arg18: memref<1x2xf32, #tpu.memory_space<vmem>>, %arg19: memref<1x2xf32, #tpu.memory_space<vmem>>, %arg20: memref<1x128xf32, #tpu.memory_space<vmem>>, %arg21: memref<1x1xf32, #tpu.memory_space<vmem>>, %arg22: memref<2x1xf32, #tpu.memory_space<vmem>>, %arg23: memref<2x2xf32, #tpu.memory_space<vmem>>, %arg24: memref<2x1xf32, #tpu.memory_space<vmem>>, %arg25: memref<384x128xf32, #tpu.memory_space<vmem>>, %arg26: memref<24x2048xf32, #tpu.memory_space<vmem>>, %arg27: memref<2048x192xbf16, #tpu.memory_space<vmem>>, %arg28: memref<24x192xf32, #tpu.memory_space<vmem>>, %arg29: memref<2x1152xf32, #tpu.memory_space<vmem>>, %arg30: memref<1152x128xbf16, #tpu.memory_space<vmem>>) attributes {dimension_semantics = [], scalar_prefetch = 0 : i64, scratch_operands = 6 : i64, tpu.core_type = #tpu.core_type<tc>} {
    %cst = arith.constant 0.000000e+00 : bf16
    %0 = vector.broadcast %cst : bf16 to vector<2048x192xbf16>
    %c0 = arith.constant 0 : index
    %c0_0 = arith.constant 0 : index
    %1 = vector.load %arg27[%c0, %c0_0] : memref<2048x192xbf16, #tpu.memory_space<vmem>>, vector<2048x192xbf16>
    tpu.vector_store %arg27[%c0, %c0_0], %0 {strides = array<i32>} : memref<2048x192xbf16, #tpu.memory_space<vmem>>, vector<2048x192xbf16>,
    %c0_1 = arith.constant 0 : index
    %c0_2 = arith.constant 0 : index
    %2 = vector.load %arg3[%c0_1, %c0_2] : memref<512x64xbf16, #tpu.memory_space<vmem>>, vector<32x64xbf16>
    %c0_3 = arith.constant 0 : index
    %c0_4 = arith.constant 0 : index
    %3 = vector.load %arg27[%c0_3, %c0_4] : memref<2048x192xbf16, #tpu.memory_space<vmem>>, vector<32x64xbf16>
    tpu.vector_store %arg27[%c0_3, %c0_4], %2 {strides = array<i32>} : memref<2048x192xbf16, #tpu.memory_space<vmem>>, vector<32x64xbf16>,
    %c0_5 = arith.constant 0 : index
    %c0_6 = arith.constant 0 : index
    %4 = vector.load %arg4[%c0_5, %c0_6] : memref<512x64xbf16, #tpu.memory_space<vmem>>, vector<32x64xbf16>
    %c32 = arith.constant 32 : index
    %c64 = arith.constant 64 : index
    %5 = vector.load %arg27[%c32, %c64] : memref<2048x192xbf16, #tpu.memory_space<vmem>>, vector<32x64xbf16>
    tpu.vector_store %arg27[%c32, %c64], %4 {strides = array<i32>} : memref<2048x192xbf16, #tpu.memory_space<vmem>>, vector<32x64xbf16>,
    %c0_7 = arith.constant 0 : index
    %c0_8 = arith.constant 0 : index
    %6 = vector.load %arg5[%c0_7, %c0_8] : memref<512x64xbf16, #tpu.memory_space<vmem>>, vector<32x64xbf16>
    %c64_9 = arith.constant 64 : index
    %c128 = arith.constant 128 : index
    %7 = vector.load %arg27[%c64_9, %c128] : memref<2048x192xbf16, #tpu.memory_space<vmem>>, vector<32x64xbf16>
    tpu.vector_store %arg27[%c64_9, %c128], %6 {strides = array<i32>} : memref<2048x192xbf16, #tpu.memory_space<vmem>>, vector<32x64xbf16>,
    %c32_10 = arith.constant 32 : index
    %c0_11 = arith.constant 0 : index
    %8 = vector.load %arg3[%c32_10, %c0_11] : memref<512x64xbf16, #tpu.memory_space<vmem>>, vector<32x64xbf16>
    %c128_12 = arith.constant 128 : index
    %c0_13 = arith.constant 0 : index
    %9 = vector.load %arg27[%c128_12, %c0_13] : memref<2048x192xbf16, #tpu.memory_space<vmem>>, vector<32x64xbf16>
    tpu.vector_store %arg27[%c128_12, %c0_13], %8 {strides = array<i32>} : memref<2048x192xbf16, #tpu.memory_space<vmem>>, vector<32x64xbf16>,
    %c32_14 = arith.constant 32 : index
    %c0_15 = arith.constant 0 : index
    %10 = vector.load %arg4[%c32_14, %c0_15] : memref<512x64xbf16, #tpu.memory_space<vmem>>, vector<32x64xbf16>
    %c160 = arith.constant 160 : index
    %c64_16 = arith.constant 64 : index
    %11 = vector.load %arg27[%c160, %c64_16] : memref<2048x192xbf16, #tpu.memory_space<vmem>>, vector<32x64xbf16>
    tpu.vector_store %arg27[%c160, %c64_16], %10 {strides = array<i32>} : memref<2048x192xbf16, #tpu.memory_space<vmem>>, vector<32x64xbf16>,
    %c32_17 = arith.constant 32 : index
    %c0_18 = arith.constant 0 : index
    %12 = vector.load %arg5[%c32_17, %c0_18] : memref<512x64xbf16, #tpu.memory_space<vmem>>, vector<32x64xbf16>
    %c192 = arith.constant 192 : index
    %c128_19 = arith.constant 128 : index
    %13 = vector.load %arg27[%c192, %c128_19] : memref<2048x192xbf16, #tpu.memory_space<vmem>>, vector<32x64xbf16>
    tpu.vector_store %arg27[%c192, %c128_19], %12 {strides = array<i32>} : memref<2048x192xbf16, #tpu.memory_space<vmem>>, vector<32x64xbf16>,
    %c64_20 = arith.constant 64 : index
    %c0_21 = arith.constant 0 : index
    %14 = vector.load %arg3[%c64_20, %c0_21] : memref<512x64xbf16, #tpu.memory_space<vmem>>, vector<32x64xbf16>
    %c256 = arith.constant 256 : index
    %c0_22 = arith.constant 0 : index
    %15 = vector.load %arg27[%c256, %c0_22] : memref<2048x192xbf16, #tpu.memory_space<vmem>>, vector<32x64xbf16>
    tpu.vector_store %arg27[%c256, %c0_22], %14 {strides = array<i32>} : memref<2048x192xbf16, #tpu.memory_space<vmem>>, vector<32x64xbf16>,
    %c64_23 = arith.constant 64 : index
    %c0_24 = arith.constant 0 : index
    %16 = vector.load %arg4[%c64_23, %c0_24] : memref<512x64xbf16, #tpu.memory_space<vmem>>, vector<32x64xbf16>
    %c288 = arith.constant 288 : index
    %c64_25 = arith.constant 64 : index
    %17 = vector.load %arg27[%c288, %c64_25] : memref<2048x192xbf16, #tpu.memory_space<vmem>>, vector<32x64xbf16>
    tpu.vector_store %arg27[%c288, %c64_25], %16 {strides = array<i32>} : memref<2048x192xbf16, #tpu.memory_space<vmem>>, vector<32x64xbf16>,
    %c64_26 = arith.constant 64 : index
    %c0_27 = arith.constant 0 : index
    %18 = vector.load %arg5[%c64_26, %c0_27] : memref<512x64xbf16, #tpu.memory_space<vmem>>, vector<32x64xbf16>
    %c320 = arith.constant 320 : index
    %c128_28 = arith.constant 128 : index
    %19 = vector.load %arg27[%c320, %c128_28] : memref<2048x192xbf16, #tpu.memory_space<vmem>>, vector<32x64xbf16>
    tpu.vector_store %arg27[%c320, %c128_28], %18 {strides = array<i32>} : memref<2048x192xbf16, #tpu.memory_space<vmem>>, vector<32x64xbf16>,
    %c96 = arith.constant 96 : index
    %c0_29 = arith.constant 0 : index
    %20 = vector.load %arg3[%c96, %c0_29] : memref<512x64xbf16, #tpu.memory_space<vmem>>, vector<32x64xbf16>
    %c384 = arith.constant 384 : index
    %c0_30 = arith.constant 0 : index
    %21 = vector.load %arg27[%c384, %c0_30] : memref<2048x192xbf16, #tpu.memory_space<vmem>>, vector<32x64xbf16>
    tpu.vector_store %arg27[%c384, %c0_30], %20 {strides = array<i32>} : memref<2048x192xbf16, #tpu.memory_space<vmem>>, vector<32x64xbf16>,
    %c96_31 = arith.constant 96 : index
    %c0_32 = arith.constant 0 : index
    %22 = vector.load %arg4[%c96_31, %c0_32] : memref<512x64xbf16, #tpu.memory_space<vmem>>, vector<32x64xbf16>
    %c416 = arith.constant 416 : index
    %c64_33 = arith.constant 64 : index
    %23 = vector.load %arg27[%c416, %c64_33] : memref<2048x192xbf16, #tpu.memory_space<vmem>>, vector<32x64xbf16>
    tpu.vector_store %arg27[%c416, %c64_33], %22 {strides = array<i32>} : memref<2048x192xbf16, #tpu.memory_space<vmem>>, vector<32x64xbf16>,
    %c96_34 = arith.constant 96 : index
    %c0_35 = arith.constant 0 : index
    %24 = vector.load %arg5[%c96_34, %c0_35] : memref<512x64xbf16, #tpu.memory_space<vmem>>, vector<32x64xbf16>
    %c448 = arith.constant 448 : index
    %c128_36 = arith.constant 128 : index
    %25 = vector.load %arg27[%c448, %c128_36] : memref<2048x192xbf16, #tpu.memory_space<vmem>>, vector<32x64xbf16>
    tpu.vector_store %arg27[%c448, %c128_36], %24 {strides = array<i32>} : memref<2048x192xbf16, #tpu.memory_space<vmem>>, vector<32x64xbf16>,
    %c128_37 = arith.constant 128 : index
    %c0_38 = arith.constant 0 : index
    %26 = vector.load %arg3[%c128_37, %c0_38] : memref<512x64xbf16, #tpu.memory_space<vmem>>, vector<32x64xbf16>
    %c512 = arith.constant 512 : index
    %c0_39 = arith.constant 0 : index
    %27 = vector.load %arg27[%c512, %c0_39] : memref<2048x192xbf16, #tpu.memory_space<vmem>>, vector<32x64xbf16>
    tpu.vector_store %arg27[%c512, %c0_39], %26 {strides = array<i32>} : memref<2048x192xbf16, #tpu.memory_space<vmem>>, vector<32x64xbf16>,
    %c128_40 = arith.constant 128 : index
    %c0_41 = arith.constant 0 : index
    %28 = vector.load %arg4[%c128_40, %c0_41] : memref<512x64xbf16, #tpu.memory_space<vmem>>, vector<32x64xbf16>
    %c544 = arith.constant 544 : index
    %c64_42 = arith.constant 64 : index
    %29 = vector.load %arg27[%c544, %c64_42] : memref<2048x192xbf16, #tpu.memory_space<vmem>>, vector<32x64xbf16>
    tpu.vector_store %arg27[%c544, %c64_42], %28 {strides = array<i32>} : memref<2048x192xbf16, #tpu.memory_space<vmem>>, vector<32x64xbf16>,
    %c128_43 = arith.constant 128 : index
    %c0_44 = arith.constant 0 : index
    %30 = vector.load %arg5[%c128_43, %c0_44] : memref<512x64xbf16, #tpu.memory_space<vmem>>, vector<32x64xbf16>
    %c576 = arith.constant 576 : index
    %c128_45 = arith.constant 128 : index
    %31 = vector.load %arg27[%c576, %c128_45] : memref<2048x192xbf16, #tpu.memory_space<vmem>>, vector<32x64xbf16>
    tpu.vector_store %arg27[%c576, %c128_45], %30 {strides = array<i32>} : memref<2048x192xbf16, #tpu.memory_space<vmem>>, vector<32x64xbf16>,
    %c160_46 = arith.constant 160 : index
    %c0_47 = arith.constant 0 : index
    %32 = vector.load %arg3[%c160_46, %c0_47] : memref<512x64xbf16, #tpu.memory_space<vmem>>, vector<32x64xbf16>
    %c640 = arith.constant 640 : index
    %c0_48 = arith.constant 0 : index
    %33 = vector.load %arg27[%c640, %c0_48] : memref<2048x192xbf16, #tpu.memory_space<vmem>>, vector<32x64xbf16>
    tpu.vector_store %arg27[%c640, %c0_48], %32 {strides = array<i32>} : memref<2048x192xbf16, #tpu.memory_space<vmem>>, vector<32x64xbf16>,
    %c160_49 = arith.constant 160 : index
    %c0_50 = arith.constant 0 : index
    %34 = vector.load %arg4[%c160_49, %c0_50] : memref<512x64xbf16, #tpu.memory_space<vmem>>, vector<32x64xbf16>
    %c672 = arith.constant 672 : index
    %c64_51 = arith.constant 64 : index
    %35 = vector.load %arg27[%c672, %c64_51] : memref<2048x192xbf16, #tpu.memory_space<vmem>>, vector<32x64xbf16>
    tpu.vector_store %arg27[%c672, %c64_51], %34 {strides = array<i32>} : memref<2048x192xbf16, #tpu.memory_space<vmem>>, vector<32x64xbf16>,
    %c160_52 = arith.constant 160 : index
    %c0_53 = arith.constant 0 : index
    %36 = vector.load %arg5[%c160_52, %c0_53] : memref<512x64xbf16, #tpu.memory_space<vmem>>, vector<32x64xbf16>
    %c704 = arith.constant 704 : index
    %c128_54 = arith.constant 128 : index
    %37 = vector.load %arg27[%c704, %c128_54] : memref<2048x192xbf16, #tpu.memory_space<vmem>>, vector<32x64xbf16>
    tpu.vector_store %arg27[%c704, %c128_54], %36 {strides = array<i32>} : memref<2048x192xbf16, #tpu.memory_space<vmem>>, vector<32x64xbf16>,
    %c192_55 = arith.constant 192 : index
    %c0_56 = arith.constant 0 : index
    %38 = vector.load %arg3[%c192_55, %c0_56] : memref<512x64xbf16, #tpu.memory_space<vmem>>, vector<32x64xbf16>
    %c768 = arith.constant 768 : index
    %c0_57 = arith.constant 0 : index
    %39 = vector.load %arg27[%c768, %c0_57] : memref<2048x192xbf16, #tpu.memory_space<vmem>>, vector<32x64xbf16>
    tpu.vector_store %arg27[%c768, %c0_57], %38 {strides = array<i32>} : memref<2048x192xbf16, #tpu.memory_space<vmem>>, vector<32x64xbf16>,
    %c192_58 = arith.constant 192 : index
    %c0_59 = arith.constant 0 : index
    %40 = vector.load %arg4[%c192_58, %c0_59] : memref<512x64xbf16, #tpu.memory_space<vmem>>, vector<32x64xbf16>
    %c800 = arith.constant 800 : index
    %c64_60 = arith.constant 64 : index
    %41 = vector.load %arg27[%c800, %c64_60] : memref<2048x192xbf16, #tpu.memory_space<vmem>>, vector<32x64xbf16>
    tpu.vector_store %arg27[%c800, %c64_60], %40 {strides = array<i32>} : memref<2048x192xbf16, #tpu.memory_space<vmem>>, vector<32x64xbf16>,
    %c192_61 = arith.constant 192 : index
    %c0_62 = arith.constant 0 : index
    %42 = vector.load %arg5[%c192_61, %c0_62] : memref<512x64xbf16, #tpu.memory_space<vmem>>, vector<32x64xbf16>
    %c832 = arith.constant 832 : index
    %c128_63 = arith.constant 128 : index
    %43 = vector.load %arg27[%c832, %c128_63] : memref<2048x192xbf16, #tpu.memory_space<vmem>>, vector<32x64xbf16>
    tpu.vector_store %arg27[%c832, %c128_63], %42 {strides = array<i32>} : memref<2048x192xbf16, #tpu.memory_space<vmem>>, vector<32x64xbf16>,
    %c224 = arith.constant 224 : index
    %c0_64 = arith.constant 0 : index
    %44 = vector.load %arg3[%c224, %c0_64] : memref<512x64xbf16, #tpu.memory_space<vmem>>, vector<32x64xbf16>
    %c896 = arith.constant 896 : index
    %c0_65 = arith.constant 0 : index
    %45 = vector.load %arg27[%c896, %c0_65] : memref<2048x192xbf16, #tpu.memory_space<vmem>>, vector<32x64xbf16>
    tpu.vector_store %arg27[%c896, %c0_65], %44 {strides = array<i32>} : memref<2048x192xbf16, #tpu.memory_space<vmem>>, vector<32x64xbf16>,
    %c224_66 = arith.constant 224 : index
    %c0_67 = arith.constant 0 : index
    %46 = vector.load %arg4[%c224_66, %c0_67] : memref<512x64xbf16, #tpu.memory_space<vmem>>, vector<32x64xbf16>
    %c928 = arith.constant 928 : index
    %c64_68 = arith.constant 64 : index
    %47 = vector.load %arg27[%c928, %c64_68] : memref<2048x192xbf16, #tpu.memory_space<vmem>>, vector<32x64xbf16>
    tpu.vector_store %arg27[%c928, %c64_68], %46 {strides = array<i32>} : memref<2048x192xbf16, #tpu.memory_space<vmem>>, vector<32x64xbf16>,
    %c224_69 = arith.constant 224 : index
    %c0_70 = arith.constant 0 : index
    %48 = vector.load %arg5[%c224_69, %c0_70] : memref<512x64xbf16, #tpu.memory_space<vmem>>, vector<32x64xbf16>
    %c960 = arith.constant 960 : index
    %c128_71 = arith.constant 128 : index
    %49 = vector.load %arg27[%c960, %c128_71] : memref<2048x192xbf16, #tpu.memory_space<vmem>>, vector<32x64xbf16>
    tpu.vector_store %arg27[%c960, %c128_71], %48 {strides = array<i32>} : memref<2048x192xbf16, #tpu.memory_space<vmem>>, vector<32x64xbf16>,
    %c256_72 = arith.constant 256 : index
    %c0_73 = arith.constant 0 : index
    %50 = vector.load %arg3[%c256_72, %c0_73] : memref<512x64xbf16, #tpu.memory_space<vmem>>, vector<32x64xbf16>
    %c1024 = arith.constant 1024 : index
    %c0_74 = arith.constant 0 : index
    %51 = vector.load %arg27[%c1024, %c0_74] : memref<2048x192xbf16, #tpu.memory_space<vmem>>, vector<32x64xbf16>
    tpu.vector_store %arg27[%c1024, %c0_74], %50 {strides = array<i32>} : memref<2048x192xbf16, #tpu.memory_space<vmem>>, vector<32x64xbf16>,
    %c256_75 = arith.constant 256 : index
    %c0_76 = arith.constant 0 : index
    %52 = vector.load %arg4[%c256_75, %c0_76] : memref<512x64xbf16, #tpu.memory_space<vmem>>, vector<32x64xbf16>
    %c1056 = arith.constant 1056 : index
    %c64_77 = arith.constant 64 : index
    %53 = vector.load %arg27[%c1056, %c64_77] : memref<2048x192xbf16, #tpu.memory_space<vmem>>, vector<32x64xbf16>
    tpu.vector_store %arg27[%c1056, %c64_77], %52 {strides = array<i32>} : memref<2048x192xbf16, #tpu.memory_space<vmem>>, vector<32x64xbf16>,
    %c256_78 = arith.constant 256 : index
    %c0_79 = arith.constant 0 : index
    %54 = vector.load %arg5[%c256_78, %c0_79] : memref<512x64xbf16, #tpu.memory_space<vmem>>, vector<32x64xbf16>
    %c1088 = arith.constant 1088 : index
    %c128_80 = arith.constant 128 : index
    %55 = vector.load %arg27[%c1088, %c128_80] : memref<2048x192xbf16, #tpu.memory_space<vmem>>, vector<32x64xbf16>
    tpu.vector_store %arg27[%c1088, %c128_80], %54 {strides = array<i32>} : memref<2048x192xbf16, #tpu.memory_space<vmem>>, vector<32x64xbf16>,
    %c288_81 = arith.constant 288 : index
    %c0_82 = arith.constant 0 : index
    %56 = vector.load %arg3[%c288_81, %c0_82] : memref<512x64xbf16, #tpu.memory_space<vmem>>, vector<32x64xbf16>
    %c1152 = arith.constant 1152 : index
    %c0_83 = arith.constant 0 : index
    %57 = vector.load %arg27[%c1152, %c0_83] : memref<2048x192xbf16, #tpu.memory_space<vmem>>, vector<32x64xbf16>
    tpu.vector_store %arg27[%c1152, %c0_83], %56 {strides = array<i32>} : memref<2048x192xbf16, #tpu.memory_space<vmem>>, vector<32x64xbf16>,
    %c288_84 = arith.constant 288 : index
    %c0_85 = arith.constant 0 : index
    %58 = vector.load %arg4[%c288_84, %c0_85] : memref<512x64xbf16, #tpu.memory_space<vmem>>, vector<32x64xbf16>
    %c1184 = arith.constant 1184 : index
    %c64_86 = arith.constant 64 : index
    %59 = vector.load %arg27[%c1184, %c64_86] : memref<2048x192xbf16, #tpu.memory_space<vmem>>, vector<32x64xbf16>
    tpu.vector_store %arg27[%c1184, %c64_86], %58 {strides = array<i32>} : memref<2048x192xbf16, #tpu.memory_space<vmem>>, vector<32x64xbf16>,
    %c288_87 = arith.constant 288 : index
    %c0_88 = arith.constant 0 : index
    %60 = vector.load %arg5[%c288_87, %c0_88] : memref<512x64xbf16, #tpu.memory_space<vmem>>, vector<32x64xbf16>
    %c1216 = arith.constant 1216 : index
    %c128_89 = arith.constant 128 : index
    %61 = vector.load %arg27[%c1216, %c128_89] : memref<2048x192xbf16, #tpu.memory_space<vmem>>, vector<32x64xbf16>
    tpu.vector_store %arg27[%c1216, %c128_89], %60 {strides = array<i32>} : memref<2048x192xbf16, #tpu.memory_space<vmem>>, vector<32x64xbf16>,
    %c320_90 = arith.constant 320 : index
    %c0_91 = arith.constant 0 : index
    %62 = vector.load %arg3[%c320_90, %c0_91] : memref<512x64xbf16, #tpu.memory_space<vmem>>, vector<32x64xbf16>
    %c1280 = arith.constant 1280 : index
    %c0_92 = arith.constant 0 : index
    %63 = vector.load %arg27[%c1280, %c0_92] : memref<2048x192xbf16, #tpu.memory_space<vmem>>, vector<32x64xbf16>
    tpu.vector_store %arg27[%c1280, %c0_92], %62 {strides = array<i32>} : memref<2048x192xbf16, #tpu.memory_space<vmem>>, vector<32x64xbf16>,
    %c320_93 = arith.constant 320 : index
    %c0_94 = arith.constant 0 : index
    %64 = vector.load %arg4[%c320_93, %c0_94] : memref<512x64xbf16, #tpu.memory_space<vmem>>, vector<32x64xbf16>
    %c1312 = arith.constant 1312 : index
    %c64_95 = arith.constant 64 : index
    %65 = vector.load %arg27[%c1312, %c64_95] : memref<2048x192xbf16, #tpu.memory_space<vmem>>, vector<32x64xbf16>
    tpu.vector_store %arg27[%c1312, %c64_95], %64 {strides = array<i32>} : memref<2048x192xbf16, #tpu.memory_space<vmem>>, vector<32x64xbf16>,
    %c320_96 = arith.constant 320 : index
    %c0_97 = arith.constant 0 : index
    %66 = vector.load %arg5[%c320_96, %c0_97] : memref<512x64xbf16, #tpu.memory_space<vmem>>, vector<32x64xbf16>
    %c1344 = arith.constant 1344 : index
    %c128_98 = arith.constant 128 : index
    %67 = vector.load %arg27[%c1344, %c128_98] : memref<2048x192xbf16, #tpu.memory_space<vmem>>, vector<32x64xbf16>
    tpu.vector_store %arg27[%c1344, %c128_98], %66 {strides = array<i32>} : memref<2048x192xbf16, #tpu.memory_space<vmem>>, vector<32x64xbf16>,
    %c352 = arith.constant 352 : index
    %c0_99 = arith.constant 0 : index
    %68 = vector.load %arg3[%c352, %c0_99] : memref<512x64xbf16, #tpu.memory_space<vmem>>, vector<32x64xbf16>
    %c1408 = arith.constant 1408 : index
    %c0_100 = arith.constant 0 : index
    %69 = vector.load %arg27[%c1408, %c0_100] : memref<2048x192xbf16, #tpu.memory_space<vmem>>, vector<32x64xbf16>
    tpu.vector_store %arg27[%c1408, %c0_100], %68 {strides = array<i32>} : memref<2048x192xbf16, #tpu.memory_space<vmem>>, vector<32x64xbf16>,
    %c352_101 = arith.constant 352 : index
    %c0_102 = arith.constant 0 : index
    %70 = vector.load %arg4[%c352_101, %c0_102] : memref<512x64xbf16, #tpu.memory_space<vmem>>, vector<32x64xbf16>
    %c1440 = arith.constant 1440 : index
    %c64_103 = arith.constant 64 : index
    %71 = vector.load %arg27[%c1440, %c64_103] : memref<2048x192xbf16, #tpu.memory_space<vmem>>, vector<32x64xbf16>
    tpu.vector_store %arg27[%c1440, %c64_103], %70 {strides = array<i32>} : memref<2048x192xbf16, #tpu.memory_space<vmem>>, vector<32x64xbf16>,
    %c352_104 = arith.constant 352 : index
    %c0_105 = arith.constant 0 : index
    %72 = vector.load %arg5[%c352_104, %c0_105] : memref<512x64xbf16, #tpu.memory_space<vmem>>, vector<32x64xbf16>
    %c1472 = arith.constant 1472 : index
    %c128_106 = arith.constant 128 : index
    %73 = vector.load %arg27[%c1472, %c128_106] : memref<2048x192xbf16, #tpu.memory_space<vmem>>, vector<32x64xbf16>
    tpu.vector_store %arg27[%c1472, %c128_106], %72 {strides = array<i32>} : memref<2048x192xbf16, #tpu.memory_space<vmem>>, vector<32x64xbf16>,
    %c384_107 = arith.constant 384 : index
    %c0_108 = arith.constant 0 : index
    %74 = vector.load %arg3[%c384_107, %c0_108] : memref<512x64xbf16, #tpu.memory_space<vmem>>, vector<32x64xbf16>
    %c1536 = arith.constant 1536 : index
    %c0_109 = arith.constant 0 : index
    %75 = vector.load %arg27[%c1536, %c0_109] : memref<2048x192xbf16, #tpu.memory_space<vmem>>, vector<32x64xbf16>
    tpu.vector_store %arg27[%c1536, %c0_109], %74 {strides = array<i32>} : memref<2048x192xbf16, #tpu.memory_space<vmem>>, vector<32x64xbf16>,
    %c384_110 = arith.constant 384 : index
    %c0_111 = arith.constant 0 : index
    %76 = vector.load %arg4[%c384_110, %c0_111] : memref<512x64xbf16, #tpu.memory_space<vmem>>, vector<32x64xbf16>
    %c1568 = arith.constant 1568 : index
    %c64_112 = arith.constant 64 : index
    %77 = vector.load %arg27[%c1568, %c64_112] : memref<2048x192xbf16, #tpu.memory_space<vmem>>, vector<32x64xbf16>
    tpu.vector_store %arg27[%c1568, %c64_112], %76 {strides = array<i32>} : memref<2048x192xbf16, #tpu.memory_space<vmem>>, vector<32x64xbf16>,
    %c384_113 = arith.constant 384 : index
    %c0_114 = arith.constant 0 : index
    %78 = vector.load %arg5[%c384_113, %c0_114] : memref<512x64xbf16, #tpu.memory_space<vmem>>, vector<32x64xbf16>
    %c1600 = arith.constant 1600 : index
    %c128_115 = arith.constant 128 : index
    %79 = vector.load %arg27[%c1600, %c128_115] : memref<2048x192xbf16, #tpu.memory_space<vmem>>, vector<32x64xbf16>
    tpu.vector_store %arg27[%c1600, %c128_115], %78 {strides = array<i32>} : memref<2048x192xbf16, #tpu.memory_space<vmem>>, vector<32x64xbf16>,
    %c416_116 = arith.constant 416 : index
    %c0_117 = arith.constant 0 : index
    %80 = vector.load %arg3[%c416_116, %c0_117] : memref<512x64xbf16, #tpu.memory_space<vmem>>, vector<32x64xbf16>
    %c1664 = arith.constant 1664 : index
    %c0_118 = arith.constant 0 : index
    %81 = vector.load %arg27[%c1664, %c0_118] : memref<2048x192xbf16, #tpu.memory_space<vmem>>, vector<32x64xbf16>
    tpu.vector_store %arg27[%c1664, %c0_118], %80 {strides = array<i32>} : memref<2048x192xbf16, #tpu.memory_space<vmem>>, vector<32x64xbf16>,
    %c416_119 = arith.constant 416 : index
    %c0_120 = arith.constant 0 : index
    %82 = vector.load %arg4[%c416_119, %c0_120] : memref<512x64xbf16, #tpu.memory_space<vmem>>, vector<32x64xbf16>
    %c1696 = arith.constant 1696 : index
    %c64_121 = arith.constant 64 : index
    %83 = vector.load %arg27[%c1696, %c64_121] : memref<2048x192xbf16, #tpu.memory_space<vmem>>, vector<32x64xbf16>
    tpu.vector_store %arg27[%c1696, %c64_121], %82 {strides = array<i32>} : memref<2048x192xbf16, #tpu.memory_space<vmem>>, vector<32x64xbf16>,
    %c416_122 = arith.constant 416 : index
    %c0_123 = arith.constant 0 : index
    %84 = vector.load %arg5[%c416_122, %c0_123] : memref<512x64xbf16, #tpu.memory_space<vmem>>, vector<32x64xbf16>
    %c1728 = arith.constant 1728 : index
    %c128_124 = arith.constant 128 : index
    %85 = vector.load %arg27[%c1728, %c128_124] : memref<2048x192xbf16, #tpu.memory_space<vmem>>, vector<32x64xbf16>
    tpu.vector_store %arg27[%c1728, %c128_124], %84 {strides = array<i32>} : memref<2048x192xbf16, #tpu.memory_space<vmem>>, vector<32x64xbf16>,
    %c448_125 = arith.constant 448 : index
    %c0_126 = arith.constant 0 : index
    %86 = vector.load %arg3[%c448_125, %c0_126] : memref<512x64xbf16, #tpu.memory_space<vmem>>, vector<32x64xbf16>
    %c1792 = arith.constant 1792 : index
    %c0_127 = arith.constant 0 : index
    %87 = vector.load %arg27[%c1792, %c0_127] : memref<2048x192xbf16, #tpu.memory_space<vmem>>, vector<32x64xbf16>
    tpu.vector_store %arg27[%c1792, %c0_127], %86 {strides = array<i32>} : memref<2048x192xbf16, #tpu.memory_space<vmem>>, vector<32x64xbf16>,
    %c448_128 = arith.constant 448 : index
    %c0_129 = arith.constant 0 : index
    %88 = vector.load %arg4[%c448_128, %c0_129] : memref<512x64xbf16, #tpu.memory_space<vmem>>, vector<32x64xbf16>
    %c1824 = arith.constant 1824 : index
    %c64_130 = arith.constant 64 : index
    %89 = vector.load %arg27[%c1824, %c64_130] : memref<2048x192xbf16, #tpu.memory_space<vmem>>, vector<32x64xbf16>
    tpu.vector_store %arg27[%c1824, %c64_130], %88 {strides = array<i32>} : memref<2048x192xbf16, #tpu.memory_space<vmem>>, vector<32x64xbf16>,
    %c448_131 = arith.constant 448 : index
    %c0_132 = arith.constant 0 : index
    %90 = vector.load %arg5[%c448_131, %c0_132] : memref<512x64xbf16, #tpu.memory_space<vmem>>, vector<32x64xbf16>
    %c1856 = arith.constant 1856 : index
    %c128_133 = arith.constant 128 : index
    %91 = vector.load %arg27[%c1856, %c128_133] : memref<2048x192xbf16, #tpu.memory_space<vmem>>, vector<32x64xbf16>
    tpu.vector_store %arg27[%c1856, %c128_133], %90 {strides = array<i32>} : memref<2048x192xbf16, #tpu.memory_space<vmem>>, vector<32x64xbf16>,
    %c480 = arith.constant 480 : index
    %c0_134 = arith.constant 0 : index
    %92 = vector.load %arg3[%c480, %c0_134] : memref<512x64xbf16, #tpu.memory_space<vmem>>, vector<32x64xbf16>
    %c1920 = arith.constant 1920 : index
    %c0_135 = arith.constant 0 : index
    %93 = vector.load %arg27[%c1920, %c0_135] : memref<2048x192xbf16, #tpu.memory_space<vmem>>, vector<32x64xbf16>
    tpu.vector_store %arg27[%c1920, %c0_135], %92 {strides = array<i32>} : memref<2048x192xbf16, #tpu.memory_space<vmem>>, vector<32x64xbf16>,
    %c480_136 = arith.constant 480 : index
    %c0_137 = arith.constant 0 : index
    %94 = vector.load %arg4[%c480_136, %c0_137] : memref<512x64xbf16, #tpu.memory_space<vmem>>, vector<32x64xbf16>
    %c1952 = arith.constant 1952 : index
    %c64_138 = arith.constant 64 : index
    %95 = vector.load %arg27[%c1952, %c64_138] : memref<2048x192xbf16, #tpu.memory_space<vmem>>, vector<32x64xbf16>
    tpu.vector_store %arg27[%c1952, %c64_138], %94 {strides = array<i32>} : memref<2048x192xbf16, #tpu.memory_space<vmem>>, vector<32x64xbf16>,
    %c480_139 = arith.constant 480 : index
    %c0_140 = arith.constant 0 : index
    %96 = vector.load %arg5[%c480_139, %c0_140] : memref<512x64xbf16, #tpu.memory_space<vmem>>, vector<32x64xbf16>
    %c1984 = arith.constant 1984 : index
    %c128_141 = arith.constant 128 : index
    %97 = vector.load %arg27[%c1984, %c128_141] : memref<2048x192xbf16, #tpu.memory_space<vmem>>, vector<32x64xbf16>
    tpu.vector_store %arg27[%c1984, %c128_141], %96 {strides = array<i32>} : memref<2048x192xbf16, #tpu.memory_space<vmem>>, vector<32x64xbf16>,
    %cst_142 = arith.constant 0.000000e+00 : bf16
    %98 = vector.broadcast %cst_142 : bf16 to vector<1152x128xbf16>
    %c0_143 = arith.constant 0 : index
    %c0_144 = arith.constant 0 : index
    %99 = vector.load %arg30[%c0_143, %c0_144] : memref<1152x128xbf16, #tpu.memory_space<vmem>>, vector<1152x128xbf16>
    tpu.vector_store %arg30[%c0_143, %c0_144], %98 {strides = array<i32>} : memref<1152x128xbf16, #tpu.memory_space<vmem>>, vector<1152x128xbf16>,
    %c0_145 = arith.constant 0 : index
    %c0_146 = arith.constant 0 : index
    %100 = vector.load %arg7[%c0_145, %c0_146] : memref<576x64xbf16, #tpu.memory_space<vmem>>, vector<64x64xbf16>
    %c0_147 = arith.constant 0 : index
    %c0_148 = arith.constant 0 : index
    %101 = vector.load %arg30[%c0_147, %c0_148] : memref<1152x128xbf16, #tpu.memory_space<vmem>>, vector<64x64xbf16>
    tpu.vector_store %arg30[%c0_147, %c0_148], %100 {strides = array<i32>} : memref<1152x128xbf16, #tpu.memory_space<vmem>>, vector<64x64xbf16>,
    %c0_149 = arith.constant 0 : index
    %c0_150 = arith.constant 0 : index
    %102 = vector.load %arg8[%c0_149, %c0_150] : memref<576x64xbf16, #tpu.memory_space<vmem>>, vector<64x64xbf16>
    %c64_151 = arith.constant 64 : index
    %c64_152 = arith.constant 64 : index
    %103 = vector.load %arg30[%c64_151, %c64_152] : memref<1152x128xbf16, #tpu.memory_space<vmem>>, vector<64x64xbf16>
    tpu.vector_store %arg30[%c64_151, %c64_152], %102 {strides = array<i32>} : memref<1152x128xbf16, #tpu.memory_space<vmem>>, vector<64x64xbf16>,
    %c64_153 = arith.constant 64 : index
    %c0_154 = arith.constant 0 : index
    %104 = vector.load %arg7[%c64_153, %c0_154] : memref<576x64xbf16, #tpu.memory_space<vmem>>, vector<64x64xbf16>
    %c128_155 = arith.constant 128 : index
    %c0_156 = arith.constant 0 : index
    %105 = vector.load %arg30[%c128_155, %c0_156] : memref<1152x128xbf16, #tpu.memory_space<vmem>>, vector<64x64xbf16>
    tpu.vector_store %arg30[%c128_155, %c0_156], %104 {strides = array<i32>} : memref<1152x128xbf16, #tpu.memory_space<vmem>>, vector<64x64xbf16>,
    %c64_157 = arith.constant 64 : index
    %c0_158 = arith.constant 0 : index
    %106 = vector.load %arg8[%c64_157, %c0_158] : memref<576x64xbf16, #tpu.memory_space<vmem>>, vector<64x64xbf16>
    %c192_159 = arith.constant 192 : index
    %c64_160 = arith.constant 64 : index
    %107 = vector.load %arg30[%c192_159, %c64_160] : memref<1152x128xbf16, #tpu.memory_space<vmem>>, vector<64x64xbf16>
    tpu.vector_store %arg30[%c192_159, %c64_160], %106 {strides = array<i32>} : memref<1152x128xbf16, #tpu.memory_space<vmem>>, vector<64x64xbf16>,
    %c128_161 = arith.constant 128 : index
    %c0_162 = arith.constant 0 : index
    %108 = vector.load %arg7[%c128_161, %c0_162] : memref<576x64xbf16, #tpu.memory_space<vmem>>, vector<64x64xbf16>
    %c256_163 = arith.constant 256 : index
    %c0_164 = arith.constant 0 : index
    %109 = vector.load %arg30[%c256_163, %c0_164] : memref<1152x128xbf16, #tpu.memory_space<vmem>>, vector<64x64xbf16>
    tpu.vector_store %arg30[%c256_163, %c0_164], %108 {strides = array<i32>} : memref<1152x128xbf16, #tpu.memory_space<vmem>>, vector<64x64xbf16>,
    %c128_165 = arith.constant 128 : index
    %c0_166 = arith.constant 0 : index
    %110 = vector.load %arg8[%c128_165, %c0_166] : memref<576x64xbf16, #tpu.memory_space<vmem>>, vector<64x64xbf16>
    %c320_167 = arith.constant 320 : index
    %c64_168 = arith.constant 64 : index
    %111 = vector.load %arg30[%c320_167, %c64_168] : memref<1152x128xbf16, #tpu.memory_space<vmem>>, vector<64x64xbf16>
    tpu.vector_store %arg30[%c320_167, %c64_168], %110 {strides = array<i32>} : memref<1152x128xbf16, #tpu.memory_space<vmem>>, vector<64x64xbf16>,
    %c192_169 = arith.constant 192 : index
    %c0_170 = arith.constant 0 : index
    %112 = vector.load %arg7[%c192_169, %c0_170] : memref<576x64xbf16, #tpu.memory_space<vmem>>, vector<64x64xbf16>
    %c384_171 = arith.constant 384 : index
    %c0_172 = arith.constant 0 : index
    %113 = vector.load %arg30[%c384_171, %c0_172] : memref<1152x128xbf16, #tpu.memory_space<vmem>>, vector<64x64xbf16>
    tpu.vector_store %arg30[%c384_171, %c0_172], %112 {strides = array<i32>} : memref<1152x128xbf16, #tpu.memory_space<vmem>>, vector<64x64xbf16>,
    %c192_173 = arith.constant 192 : index
    %c0_174 = arith.constant 0 : index
    %114 = vector.load %arg8[%c192_173, %c0_174] : memref<576x64xbf16, #tpu.memory_space<vmem>>, vector<64x64xbf16>
    %c448_175 = arith.constant 448 : index
    %c64_176 = arith.constant 64 : index
    %115 = vector.load %arg30[%c448_175, %c64_176] : memref<1152x128xbf16, #tpu.memory_space<vmem>>, vector<64x64xbf16>
    tpu.vector_store %arg30[%c448_175, %c64_176], %114 {strides = array<i32>} : memref<1152x128xbf16, #tpu.memory_space<vmem>>, vector<64x64xbf16>,
    %c256_177 = arith.constant 256 : index
    %c0_178 = arith.constant 0 : index
    %116 = vector.load %arg7[%c256_177, %c0_178] : memref<576x64xbf16, #tpu.memory_space<vmem>>, vector<64x64xbf16>
    %c512_179 = arith.constant 512 : index
    %c0_180 = arith.constant 0 : index
    %117 = vector.load %arg30[%c512_179, %c0_180] : memref<1152x128xbf16, #tpu.memory_space<vmem>>, vector<64x64xbf16>
    tpu.vector_store %arg30[%c512_179, %c0_180], %116 {strides = array<i32>} : memref<1152x128xbf16, #tpu.memory_space<vmem>>, vector<64x64xbf16>,
    %c256_181 = arith.constant 256 : index
    %c0_182 = arith.constant 0 : index
    %118 = vector.load %arg8[%c256_181, %c0_182] : memref<576x64xbf16, #tpu.memory_space<vmem>>, vector<64x64xbf16>
    %c576_183 = arith.constant 576 : index
    %c64_184 = arith.constant 64 : index
    %119 = vector.load %arg30[%c576_183, %c64_184] : memref<1152x128xbf16, #tpu.memory_space<vmem>>, vector<64x64xbf16>
    tpu.vector_store %arg30[%c576_183, %c64_184], %118 {strides = array<i32>} : memref<1152x128xbf16, #tpu.memory_space<vmem>>, vector<64x64xbf16>,
    %c320_185 = arith.constant 320 : index
    %c0_186 = arith.constant 0 : index
    %120 = vector.load %arg7[%c320_185, %c0_186] : memref<576x64xbf16, #tpu.memory_space<vmem>>, vector<64x64xbf16>
    %c640_187 = arith.constant 640 : index
    %c0_188 = arith.constant 0 : index
    %121 = vector.load %arg30[%c640_187, %c0_188] : memref<1152x128xbf16, #tpu.memory_space<vmem>>, vector<64x64xbf16>
    tpu.vector_store %arg30[%c640_187, %c0_188], %120 {strides = array<i32>} : memref<1152x128xbf16, #tpu.memory_space<vmem>>, vector<64x64xbf16>,
    %c320_189 = arith.constant 320 : index
    %c0_190 = arith.constant 0 : index
    %122 = vector.load %arg8[%c320_189, %c0_190] : memref<576x64xbf16, #tpu.memory_space<vmem>>, vector<64x64xbf16>
    %c704_191 = arith.constant 704 : index
    %c64_192 = arith.constant 64 : index
    %123 = vector.load %arg30[%c704_191, %c64_192] : memref<1152x128xbf16, #tpu.memory_space<vmem>>, vector<64x64xbf16>
    tpu.vector_store %arg30[%c704_191, %c64_192], %122 {strides = array<i32>} : memref<1152x128xbf16, #tpu.memory_space<vmem>>, vector<64x64xbf16>,
    %c384_193 = arith.constant 384 : index
    %c0_194 = arith.constant 0 : index
    %124 = vector.load %arg7[%c384_193, %c0_194] : memref<576x64xbf16, #tpu.memory_space<vmem>>, vector<64x64xbf16>
    %c768_195 = arith.constant 768 : index
    %c0_196 = arith.constant 0 : index
    %125 = vector.load %arg30[%c768_195, %c0_196] : memref<1152x128xbf16, #tpu.memory_space<vmem>>, vector<64x64xbf16>
    tpu.vector_store %arg30[%c768_195, %c0_196], %124 {strides = array<i32>} : memref<1152x128xbf16, #tpu.memory_space<vmem>>, vector<64x64xbf16>,
    %c384_197 = arith.constant 384 : index
    %c0_198 = arith.constant 0 : index
    %126 = vector.load %arg8[%c384_197, %c0_198] : memref<576x64xbf16, #tpu.memory_space<vmem>>, vector<64x64xbf16>
    %c832_199 = arith.constant 832 : index
    %c64_200 = arith.constant 64 : index
    %127 = vector.load %arg30[%c832_199, %c64_200] : memref<1152x128xbf16, #tpu.memory_space<vmem>>, vector<64x64xbf16>
    tpu.vector_store %arg30[%c832_199, %c64_200], %126 {strides = array<i32>} : memref<1152x128xbf16, #tpu.memory_space<vmem>>, vector<64x64xbf16>,
    %c448_201 = arith.constant 448 : index
    %c0_202 = arith.constant 0 : index
    %128 = vector.load %arg7[%c448_201, %c0_202] : memref<576x64xbf16, #tpu.memory_space<vmem>>, vector<64x64xbf16>
    %c896_203 = arith.constant 896 : index
    %c0_204 = arith.constant 0 : index
    %129 = vector.load %arg30[%c896_203, %c0_204] : memref<1152x128xbf16, #tpu.memory_space<vmem>>, vector<64x64xbf16>
    tpu.vector_store %arg30[%c896_203, %c0_204], %128 {strides = array<i32>} : memref<1152x128xbf16, #tpu.memory_space<vmem>>, vector<64x64xbf16>,
    %c448_205 = arith.constant 448 : index
    %c0_206 = arith.constant 0 : index
    %130 = vector.load %arg8[%c448_205, %c0_206] : memref<576x64xbf16, #tpu.memory_space<vmem>>, vector<64x64xbf16>
    %c960_207 = arith.constant 960 : index
    %c64_208 = arith.constant 64 : index
    %131 = vector.load %arg30[%c960_207, %c64_208] : memref<1152x128xbf16, #tpu.memory_space<vmem>>, vector<64x64xbf16>
    tpu.vector_store %arg30[%c960_207, %c64_208], %130 {strides = array<i32>} : memref<1152x128xbf16, #tpu.memory_space<vmem>>, vector<64x64xbf16>,
    %c512_209 = arith.constant 512 : index
    %c0_210 = arith.constant 0 : index
    %132 = vector.load %arg7[%c512_209, %c0_210] : memref<576x64xbf16, #tpu.memory_space<vmem>>, vector<64x64xbf16>
    %c1024_211 = arith.constant 1024 : index
    %c0_212 = arith.constant 0 : index
    %133 = vector.load %arg30[%c1024_211, %c0_212] : memref<1152x128xbf16, #tpu.memory_space<vmem>>, vector<64x64xbf16>
    tpu.vector_store %arg30[%c1024_211, %c0_212], %132 {strides = array<i32>} : memref<1152x128xbf16, #tpu.memory_space<vmem>>, vector<64x64xbf16>,
    %c512_213 = arith.constant 512 : index
    %c0_214 = arith.constant 0 : index
    %134 = vector.load %arg8[%c512_213, %c0_214] : memref<576x64xbf16, #tpu.memory_space<vmem>>, vector<64x64xbf16>
    %c1088_215 = arith.constant 1088 : index
    %c64_216 = arith.constant 64 : index
    %135 = vector.load %arg30[%c1088_215, %c64_216] : memref<1152x128xbf16, #tpu.memory_space<vmem>>, vector<64x64xbf16>
    tpu.vector_store %arg30[%c1088_215, %c64_216], %134 {strides = array<i32>} : memref<1152x128xbf16, #tpu.memory_space<vmem>>, vector<64x64xbf16>,
    %c0_217 = arith.constant 0 : index
    %c0_218 = arith.constant 0 : index
    %136 = vector.load %arg0[%c0_217, %c0_218] : memref<384x256xbf16, #tpu.memory_space<vmem>>, vector<384x256xbf16>
    %c0_219 = arith.constant 0 : index
    %c0_220 = arith.constant 0 : index
    %137 = vector.load %arg1[%c0_219, %c0_220] : memref<256x128xbf16, #tpu.memory_space<vmem>>, vector<256x128xbf16>
    %cst_221 = arith.constant dense<0.000000e+00> : vector<384x128xf32>
    %138 = tpu.matmul %136, %137, %cst_221 {dimension_numbers = #tpu.dot_dimension_numbers<[1], [0], [0], [1], [0, 0, 1, 1], [], []>} : vector<384x256xbf16>, vector<256x128xbf16>, vector<384x128xf32> -> vector<384x128xf32>
    %c0_222 = arith.constant 0 : index
    %c0_223 = arith.constant 0 : index
    %139 = vector.load %arg2[%c0_222, %c0_223] : memref<1x128xf32, #tpu.memory_space<vmem>>, vector<1x128xf32>
    %140 = vector.broadcast %139 : vector<1x128xf32> to vector<384x128xf32>
    %141 = arith.addf %138, %140 : vector<384x128xf32>
    %cst_224 = arith.constant 0.000000e+00 : f32
    %142 = vector.broadcast %cst_224 : f32 to vector<384x128xf32>
    %143 = arith.subf %142, %141 : vector<384x128xf32>
    %144 = math.exp %143 : vector<384x128xf32>
    %cst_225 = arith.constant 1.000000e+00 : f32
    %145 = vector.broadcast %cst_225 : f32 to vector<384x128xf32>
    %146 = arith.addf %145, %144 : vector<384x128xf32>
    %147 = tpu.reciprocal %146 {approx = true} : vector<384x128xf32> -> vector<384x128xf32>
    %148 = arith.mulf %141, %147 : vector<384x128xf32>
    %c0_226 = arith.constant 0 : index
    %c0_227 = arith.constant 0 : index
    %149 = vector.load %arg25[%c0_226, %c0_227] : memref<384x128xf32, #tpu.memory_space<vmem>>, vector<384x128xf32>
    tpu.vector_store %arg25[%c0_226, %c0_227], %148 {strides = array<i32>} : memref<384x128xf32, #tpu.memory_space<vmem>>, vector<384x128xf32>,
    %c0_228 = arith.constant 0 : index
    %c0_229 = arith.constant 0 : index
    %150 = vector.load %arg25[%c0_228, %c0_229] : memref<384x128xf32, #tpu.memory_space<vmem>>, vector<24x128xf32>
    %c0_230 = arith.constant 0 : index
    %c0_231 = arith.constant 0 : index
    %151 = vector.load %arg26[%c0_230, %c0_231] : memref<24x2048xf32, #tpu.memory_space<vmem>>, vector<24x128xf32>
    tpu.vector_store %arg26[%c0_230, %c0_231], %150 {strides = array<i32>} : memref<24x2048xf32, #tpu.memory_space<vmem>>, vector<24x128xf32>,
    %c24 = arith.constant 24 : index
    %c0_232 = arith.constant 0 : index
    %152 = vector.load %arg25[%c24, %c0_232] : memref<384x128xf32, #tpu.memory_space<vmem>>, vector<24x128xf32>
    %c0_233 = arith.constant 0 : index
    %c128_234 = arith.constant 128 : index
    %153 = vector.load %arg26[%c0_233, %c128_234] : memref<24x2048xf32, #tpu.memory_space<vmem>>, vector<24x128xf32>
    tpu.vector_store %arg26[%c0_233, %c128_234], %152 {strides = array<i32>} : memref<24x2048xf32, #tpu.memory_space<vmem>>, vector<24x128xf32>,
    %c48 = arith.constant 48 : index
    %c0_235 = arith.constant 0 : index
    %154 = vector.load %arg25[%c48, %c0_235] : memref<384x128xf32, #tpu.memory_space<vmem>>, vector<24x128xf32>
    %c0_236 = arith.constant 0 : index
    %c256_237 = arith.constant 256 : index
    %155 = vector.load %arg26[%c0_236, %c256_237] : memref<24x2048xf32, #tpu.memory_space<vmem>>, vector<24x128xf32>
    tpu.vector_store %arg26[%c0_236, %c256_237], %154 {strides = array<i32>} : memref<24x2048xf32, #tpu.memory_space<vmem>>, vector<24x128xf32>,
    %c72 = arith.constant 72 : index
    %c0_238 = arith.constant 0 : index
    %156 = vector.load %arg25[%c72, %c0_238] : memref<384x128xf32, #tpu.memory_space<vmem>>, vector<24x128xf32>
    %c0_239 = arith.constant 0 : index
    %c384_240 = arith.constant 384 : index
    %157 = vector.load %arg26[%c0_239, %c384_240] : memref<24x2048xf32, #tpu.memory_space<vmem>>, vector<24x128xf32>
    tpu.vector_store %arg26[%c0_239, %c384_240], %156 {strides = array<i32>} : memref<24x2048xf32, #tpu.memory_space<vmem>>, vector<24x128xf32>,
    %c96_241 = arith.constant 96 : index
    %c0_242 = arith.constant 0 : index
    %158 = vector.load %arg25[%c96_241, %c0_242] : memref<384x128xf32, #tpu.memory_space<vmem>>, vector<24x128xf32>
    %c0_243 = arith.constant 0 : index
    %c512_244 = arith.constant 512 : index
    %159 = vector.load %arg26[%c0_243, %c512_244] : memref<24x2048xf32, #tpu.memory_space<vmem>>, vector<24x128xf32>
    tpu.vector_store %arg26[%c0_243, %c512_244], %158 {strides = array<i32>} : memref<24x2048xf32, #tpu.memory_space<vmem>>, vector<24x128xf32>,
    %c120 = arith.constant 120 : index
    %c0_245 = arith.constant 0 : index
    %160 = vector.load %arg25[%c120, %c0_245] : memref<384x128xf32, #tpu.memory_space<vmem>>, vector<24x128xf32>
    %c0_246 = arith.constant 0 : index
    %c640_247 = arith.constant 640 : index
    %161 = vector.load %arg26[%c0_246, %c640_247] : memref<24x2048xf32, #tpu.memory_space<vmem>>, vector<24x128xf32>
    tpu.vector_store %arg26[%c0_246, %c640_247], %160 {strides = array<i32>} : memref<24x2048xf32, #tpu.memory_space<vmem>>, vector<24x128xf32>,
    %c144 = arith.constant 144 : index
    %c0_248 = arith.constant 0 : index
    %162 = vector.load %arg25[%c144, %c0_248] : memref<384x128xf32, #tpu.memory_space<vmem>>, vector<24x128xf32>
    %c0_249 = arith.constant 0 : index
    %c768_250 = arith.constant 768 : index
    %163 = vector.load %arg26[%c0_249, %c768_250] : memref<24x2048xf32, #tpu.memory_space<vmem>>, vector<24x128xf32>
    tpu.vector_store %arg26[%c0_249, %c768_250], %162 {strides = array<i32>} : memref<24x2048xf32, #tpu.memory_space<vmem>>, vector<24x128xf32>,
    %c168 = arith.constant 168 : index
    %c0_251 = arith.constant 0 : index
    %164 = vector.load %arg25[%c168, %c0_251] : memref<384x128xf32, #tpu.memory_space<vmem>>, vector<24x128xf32>
    %c0_252 = arith.constant 0 : index
    %c896_253 = arith.constant 896 : index
    %165 = vector.load %arg26[%c0_252, %c896_253] : memref<24x2048xf32, #tpu.memory_space<vmem>>, vector<24x128xf32>
    tpu.vector_store %arg26[%c0_252, %c896_253], %164 {strides = array<i32>} : memref<24x2048xf32, #tpu.memory_space<vmem>>, vector<24x128xf32>,
    %c192_254 = arith.constant 192 : index
    %c0_255 = arith.constant 0 : index
    %166 = vector.load %arg25[%c192_254, %c0_255] : memref<384x128xf32, #tpu.memory_space<vmem>>, vector<24x128xf32>
    %c0_256 = arith.constant 0 : index
    %c1024_257 = arith.constant 1024 : index
    %167 = vector.load %arg26[%c0_256, %c1024_257] : memref<24x2048xf32, #tpu.memory_space<vmem>>, vector<24x128xf32>
    tpu.vector_store %arg26[%c0_256, %c1024_257], %166 {strides = array<i32>} : memref<24x2048xf32, #tpu.memory_space<vmem>>, vector<24x128xf32>,
    %c216 = arith.constant 216 : index
    %c0_258 = arith.constant 0 : index
    %168 = vector.load %arg25[%c216, %c0_258] : memref<384x128xf32, #tpu.memory_space<vmem>>, vector<24x128xf32>
    %c0_259 = arith.constant 0 : index
    %c1152_260 = arith.constant 1152 : index
    %169 = vector.load %arg26[%c0_259, %c1152_260] : memref<24x2048xf32, #tpu.memory_space<vmem>>, vector<24x128xf32>
    tpu.vector_store %arg26[%c0_259, %c1152_260], %168 {strides = array<i32>} : memref<24x2048xf32, #tpu.memory_space<vmem>>, vector<24x128xf32>,
    %c240 = arith.constant 240 : index
    %c0_261 = arith.constant 0 : index
    %170 = vector.load %arg25[%c240, %c0_261] : memref<384x128xf32, #tpu.memory_space<vmem>>, vector<24x128xf32>
    %c0_262 = arith.constant 0 : index
    %c1280_263 = arith.constant 1280 : index
    %171 = vector.load %arg26[%c0_262, %c1280_263] : memref<24x2048xf32, #tpu.memory_space<vmem>>, vector<24x128xf32>
    tpu.vector_store %arg26[%c0_262, %c1280_263], %170 {strides = array<i32>} : memref<24x2048xf32, #tpu.memory_space<vmem>>, vector<24x128xf32>,
    %c264 = arith.constant 264 : index
    %c0_264 = arith.constant 0 : index
    %172 = vector.load %arg25[%c264, %c0_264] : memref<384x128xf32, #tpu.memory_space<vmem>>, vector<24x128xf32>
    %c0_265 = arith.constant 0 : index
    %c1408_266 = arith.constant 1408 : index
    %173 = vector.load %arg26[%c0_265, %c1408_266] : memref<24x2048xf32, #tpu.memory_space<vmem>>, vector<24x128xf32>
    tpu.vector_store %arg26[%c0_265, %c1408_266], %172 {strides = array<i32>} : memref<24x2048xf32, #tpu.memory_space<vmem>>, vector<24x128xf32>,
    %c288_267 = arith.constant 288 : index
    %c0_268 = arith.constant 0 : index
    %174 = vector.load %arg25[%c288_267, %c0_268] : memref<384x128xf32, #tpu.memory_space<vmem>>, vector<24x128xf32>
    %c0_269 = arith.constant 0 : index
    %c1536_270 = arith.constant 1536 : index
    %175 = vector.load %arg26[%c0_269, %c1536_270] : memref<24x2048xf32, #tpu.memory_space<vmem>>, vector<24x128xf32>
    tpu.vector_store %arg26[%c0_269, %c1536_270], %174 {strides = array<i32>} : memref<24x2048xf32, #tpu.memory_space<vmem>>, vector<24x128xf32>,
    %c312 = arith.constant 312 : index
    %c0_271 = arith.constant 0 : index
    %176 = vector.load %arg25[%c312, %c0_271] : memref<384x128xf32, #tpu.memory_space<vmem>>, vector<24x128xf32>
    %c0_272 = arith.constant 0 : index
    %c1664_273 = arith.constant 1664 : index
    %177 = vector.load %arg26[%c0_272, %c1664_273] : memref<24x2048xf32, #tpu.memory_space<vmem>>, vector<24x128xf32>
    tpu.vector_store %arg26[%c0_272, %c1664_273], %176 {strides = array<i32>} : memref<24x2048xf32, #tpu.memory_space<vmem>>, vector<24x128xf32>,
    %c336 = arith.constant 336 : index
    %c0_274 = arith.constant 0 : index
    %178 = vector.load %arg25[%c336, %c0_274] : memref<384x128xf32, #tpu.memory_space<vmem>>, vector<24x128xf32>
    %c0_275 = arith.constant 0 : index
    %c1792_276 = arith.constant 1792 : index
    %179 = vector.load %arg26[%c0_275, %c1792_276] : memref<24x2048xf32, #tpu.memory_space<vmem>>, vector<24x128xf32>
    tpu.vector_store %arg26[%c0_275, %c1792_276], %178 {strides = array<i32>} : memref<24x2048xf32, #tpu.memory_space<vmem>>, vector<24x128xf32>,
    %c360 = arith.constant 360 : index
    %c0_277 = arith.constant 0 : index
    %180 = vector.load %arg25[%c360, %c0_277] : memref<384x128xf32, #tpu.memory_space<vmem>>, vector<24x128xf32>
    %c0_278 = arith.constant 0 : index
    %c1920_279 = arith.constant 1920 : index
    %181 = vector.load %arg26[%c0_278, %c1920_279] : memref<24x2048xf32, #tpu.memory_space<vmem>>, vector<24x128xf32>
    tpu.vector_store %arg26[%c0_278, %c1920_279], %180 {strides = array<i32>} : memref<24x2048xf32, #tpu.memory_space<vmem>>, vector<24x128xf32>,
    %c0_280 = arith.constant 0 : index
    %c0_281 = arith.constant 0 : index
    %182 = vector.load %arg26[%c0_280, %c0_281] : memref<24x2048xf32, #tpu.memory_space<vmem>>, vector<24x2048xf32>
    %183 = arith.truncf %182 : vector<24x2048xf32> to vector<24x2048xbf16>
    %c0_282 = arith.constant 0 : index
    %c0_283 = arith.constant 0 : index
    %184 = vector.load %arg27[%c0_282, %c0_283] : memref<2048x192xbf16, #tpu.memory_space<vmem>>, vector<2048x192xbf16>
    %cst_284 = arith.constant dense<0.000000e+00> : vector<24x192xf32>
    %185 = tpu.matmul %183, %184, %cst_284 {dimension_numbers = #tpu.dot_dimension_numbers<[1], [0], [0], [1], [0, 0, 1, 1], [], []>} : vector<24x2048xbf16>, vector<2048x192xbf16>, vector<24x192xf32> -> vector<24x192xf32>
    %c0_285 = arith.constant 0 : index
    %c0_286 = arith.constant 0 : index
    %186 = vector.load %arg6[%c0_285, %c0_286] : memref<1x192xf32, #tpu.memory_space<vmem>>, vector<1x192xf32>
    %187 = vector.broadcast %186 : vector<1x192xf32> to vector<24x192xf32>
    %188 = arith.addf %185, %187 : vector<24x192xf32>
    %cst_287 = arith.constant 0.000000e+00 : f32
    %189 = vector.broadcast %cst_287 : f32 to vector<24x192xf32>
    %190 = arith.subf %189, %188 : vector<24x192xf32>
    %191 = math.exp %190 : vector<24x192xf32>
    %cst_288 = arith.constant 1.000000e+00 : f32
    %192 = vector.broadcast %cst_288 : f32 to vector<24x192xf32>
    %193 = arith.addf %192, %191 : vector<24x192xf32>
    %194 = tpu.reciprocal %193 {approx = true} : vector<24x192xf32> -> vector<24x192xf32>
    %195 = arith.mulf %188, %194 : vector<24x192xf32>
    %c0_289 = arith.constant 0 : index
    %c0_290 = arith.constant 0 : index
    %196 = vector.load %arg28[%c0_289, %c0_290] : memref<24x192xf32, #tpu.memory_space<vmem>>, vector<24x192xf32>
    tpu.vector_store %arg28[%c0_289, %c0_290], %195 {strides = array<i32>} : memref<24x192xf32, #tpu.memory_space<vmem>>, vector<24x192xf32>,
    %c0_291 = arith.constant 0 : index
    %c0_292 = arith.constant 0 : index
    %197 = vector.load %arg28[%c0_291, %c0_292] : memref<24x192xf32, #tpu.memory_space<vmem>>, vector<1x128xf32>
    %c0_293 = arith.constant 0 : index
    %c0_294 = arith.constant 0 : index
    %198 = vector.load %arg29[%c0_293, %c0_294] : memref<2x1152xf32, #tpu.memory_space<vmem>>, vector<1x128xf32>
    tpu.vector_store %arg29[%c0_293, %c0_294], %197 {strides = array<i32>} : memref<2x1152xf32, #tpu.memory_space<vmem>>, vector<1x128xf32>,
    %c1 = arith.constant 1 : index
    %c0_295 = arith.constant 0 : index
    %199 = vector.load %arg28[%c1, %c0_295] : memref<24x192xf32, #tpu.memory_space<vmem>>, vector<1x128xf32>
    %c0_296 = arith.constant 0 : index
    %c128_297 = arith.constant 128 : index
    %200 = vector.load %arg29[%c0_296, %c128_297] : memref<2x1152xf32, #tpu.memory_space<vmem>>, vector<1x128xf32>
    tpu.vector_store %arg29[%c0_296, %c128_297], %199 {strides = array<i32>} : memref<2x1152xf32, #tpu.memory_space<vmem>>, vector<1x128xf32>,
    %c2 = arith.constant 2 : index
    %c0_298 = arith.constant 0 : index
    %201 = vector.load %arg28[%c2, %c0_298] : memref<24x192xf32, #tpu.memory_space<vmem>>, vector<1x128xf32>
    %c0_299 = arith.constant 0 : index
    %c256_300 = arith.constant 256 : index
    %202 = vector.load %arg29[%c0_299, %c256_300] : memref<2x1152xf32, #tpu.memory_space<vmem>>, vector<1x128xf32>
    tpu.vector_store %arg29[%c0_299, %c256_300], %201 {strides = array<i32>} : memref<2x1152xf32, #tpu.memory_space<vmem>>, vector<1x128xf32>,
    %c3 = arith.constant 3 : index
    %c0_301 = arith.constant 0 : index
    %203 = vector.load %arg28[%c3, %c0_301] : memref<24x192xf32, #tpu.memory_space<vmem>>, vector<1x128xf32>
    %c0_302 = arith.constant 0 : index
    %c384_303 = arith.constant 384 : index
    %204 = vector.load %arg29[%c0_302, %c384_303] : memref<2x1152xf32, #tpu.memory_space<vmem>>, vector<1x128xf32>
    tpu.vector_store %arg29[%c0_302, %c384_303], %203 {strides = array<i32>} : memref<2x1152xf32, #tpu.memory_space<vmem>>, vector<1x128xf32>,
    %c4 = arith.constant 4 : index
    %c0_304 = arith.constant 0 : index
    %205 = vector.load %arg28[%c4, %c0_304] : memref<24x192xf32, #tpu.memory_space<vmem>>, vector<1x128xf32>
    %c0_305 = arith.constant 0 : index
    %c512_306 = arith.constant 512 : index
    %206 = vector.load %arg29[%c0_305, %c512_306] : memref<2x1152xf32, #tpu.memory_space<vmem>>, vector<1x128xf32>
    tpu.vector_store %arg29[%c0_305, %c512_306], %205 {strides = array<i32>} : memref<2x1152xf32, #tpu.memory_space<vmem>>, vector<1x128xf32>,
    %c5 = arith.constant 5 : index
    %c0_307 = arith.constant 0 : index
    %207 = vector.load %arg28[%c5, %c0_307] : memref<24x192xf32, #tpu.memory_space<vmem>>, vector<1x128xf32>
    %c0_308 = arith.constant 0 : index
    %c640_309 = arith.constant 640 : index
    %208 = vector.load %arg29[%c0_308, %c640_309] : memref<2x1152xf32, #tpu.memory_space<vmem>>, vector<1x128xf32>
    tpu.vector_store %arg29[%c0_308, %c640_309], %207 {strides = array<i32>} : memref<2x1152xf32, #tpu.memory_space<vmem>>, vector<1x128xf32>,
    %c6 = arith.constant 6 : index
    %c0_310 = arith.constant 0 : index
    %209 = vector.load %arg28[%c6, %c0_310] : memref<24x192xf32, #tpu.memory_space<vmem>>, vector<1x128xf32>
    %c0_311 = arith.constant 0 : index
    %c768_312 = arith.constant 768 : index
    %210 = vector.load %arg29[%c0_311, %c768_312] : memref<2x1152xf32, #tpu.memory_space<vmem>>, vector<1x128xf32>
    tpu.vector_store %arg29[%c0_311, %c768_312], %209 {strides = array<i32>} : memref<2x1152xf32, #tpu.memory_space<vmem>>, vector<1x128xf32>,
    %c7 = arith.constant 7 : index
    %c0_313 = arith.constant 0 : index
    %211 = vector.load %arg28[%c7, %c0_313] : memref<24x192xf32, #tpu.memory_space<vmem>>, vector<1x128xf32>
    %c0_314 = arith.constant 0 : index
    %c896_315 = arith.constant 896 : index
    %212 = vector.load %arg29[%c0_314, %c896_315] : memref<2x1152xf32, #tpu.memory_space<vmem>>, vector<1x128xf32>
    tpu.vector_store %arg29[%c0_314, %c896_315], %211 {strides = array<i32>} : memref<2x1152xf32, #tpu.memory_space<vmem>>, vector<1x128xf32>,
    %c8 = arith.constant 8 : index
    %c0_316 = arith.constant 0 : index
    %213 = vector.load %arg28[%c8, %c0_316] : memref<24x192xf32, #tpu.memory_space<vmem>>, vector<1x128xf32>
    %c0_317 = arith.constant 0 : index
    %c1024_318 = arith.constant 1024 : index
    %214 = vector.load %arg29[%c0_317, %c1024_318] : memref<2x1152xf32, #tpu.memory_space<vmem>>, vector<1x128xf32>
    tpu.vector_store %arg29[%c0_317, %c1024_318], %213 {strides = array<i32>} : memref<2x1152xf32, #tpu.memory_space<vmem>>, vector<1x128xf32>,
    %c9 = arith.constant 9 : index
    %c0_319 = arith.constant 0 : index
    %215 = vector.load %arg28[%c9, %c0_319] : memref<24x192xf32, #tpu.memory_space<vmem>>, vector<1x128xf32>
    %c1_320 = arith.constant 1 : index
    %c0_321 = arith.constant 0 : index
    %216 = vector.load %arg29[%c1_320, %c0_321] : memref<2x1152xf32, #tpu.memory_space<vmem>>, vector<1x128xf32>
    tpu.vector_store %arg29[%c1_320, %c0_321], %215 {strides = array<i32>} : memref<2x1152xf32, #tpu.memory_space<vmem>>, vector<1x128xf32>,
    %c10 = arith.constant 10 : index
    %c0_322 = arith.constant 0 : index
    %217 = vector.load %arg28[%c10, %c0_322] : memref<24x192xf32, #tpu.memory_space<vmem>>, vector<1x128xf32>
    %c1_323 = arith.constant 1 : index
    %c128_324 = arith.constant 128 : index
    %218 = vector.load %arg29[%c1_323, %c128_324] : memref<2x1152xf32, #tpu.memory_space<vmem>>, vector<1x128xf32>
    tpu.vector_store %arg29[%c1_323, %c128_324], %217 {strides = array<i32>} : memref<2x1152xf32, #tpu.memory_space<vmem>>, vector<1x128xf32>,
    %c11 = arith.constant 11 : index
    %c0_325 = arith.constant 0 : index
    %219 = vector.load %arg28[%c11, %c0_325] : memref<24x192xf32, #tpu.memory_space<vmem>>, vector<1x128xf32>
    %c1_326 = arith.constant 1 : index
    %c256_327 = arith.constant 256 : index
    %220 = vector.load %arg29[%c1_326, %c256_327] : memref<2x1152xf32, #tpu.memory_space<vmem>>, vector<1x128xf32>
    tpu.vector_store %arg29[%c1_326, %c256_327], %219 {strides = array<i32>} : memref<2x1152xf32, #tpu.memory_space<vmem>>, vector<1x128xf32>,
    %c12 = arith.constant 12 : index
    %c0_328 = arith.constant 0 : index
    %221 = vector.load %arg28[%c12, %c0_328] : memref<24x192xf32, #tpu.memory_space<vmem>>, vector<1x128xf32>
    %c1_329 = arith.constant 1 : index
    %c384_330 = arith.constant 384 : index
    %222 = vector.load %arg29[%c1_329, %c384_330] : memref<2x1152xf32, #tpu.memory_space<vmem>>, vector<1x128xf32>
    tpu.vector_store %arg29[%c1_329, %c384_330], %221 {strides = array<i32>} : memref<2x1152xf32, #tpu.memory_space<vmem>>, vector<1x128xf32>,
    %c13 = arith.constant 13 : index
    %c0_331 = arith.constant 0 : index
    %223 = vector.load %arg28[%c13, %c0_331] : memref<24x192xf32, #tpu.memory_space<vmem>>, vector<1x128xf32>
    %c1_332 = arith.constant 1 : index
    %c512_333 = arith.constant 512 : index
    %224 = vector.load %arg29[%c1_332, %c512_333] : memref<2x1152xf32, #tpu.memory_space<vmem>>, vector<1x128xf32>
    tpu.vector_store %arg29[%c1_332, %c512_333], %223 {strides = array<i32>} : memref<2x1152xf32, #tpu.memory_space<vmem>>, vector<1x128xf32>,
    %c14 = arith.constant 14 : index
    %c0_334 = arith.constant 0 : index
    %225 = vector.load %arg28[%c14, %c0_334] : memref<24x192xf32, #tpu.memory_space<vmem>>, vector<1x128xf32>
    %c1_335 = arith.constant 1 : index
    %c640_336 = arith.constant 640 : index
    %226 = vector.load %arg29[%c1_335, %c640_336] : memref<2x1152xf32, #tpu.memory_space<vmem>>, vector<1x128xf32>
    tpu.vector_store %arg29[%c1_335, %c640_336], %225 {strides = array<i32>} : memref<2x1152xf32, #tpu.memory_space<vmem>>, vector<1x128xf32>,
    %c15 = arith.constant 15 : index
    %c0_337 = arith.constant 0 : index
    %227 = vector.load %arg28[%c15, %c0_337] : memref<24x192xf32, #tpu.memory_space<vmem>>, vector<1x128xf32>
    %c1_338 = arith.constant 1 : index
    %c768_339 = arith.constant 768 : index
    %228 = vector.load %arg29[%c1_338, %c768_339] : memref<2x1152xf32, #tpu.memory_space<vmem>>, vector<1x128xf32>
    tpu.vector_store %arg29[%c1_338, %c768_339], %227 {strides = array<i32>} : memref<2x1152xf32, #tpu.memory_space<vmem>>, vector<1x128xf32>,
    %c16 = arith.constant 16 : index
    %c0_340 = arith.constant 0 : index
    %229 = vector.load %arg28[%c16, %c0_340] : memref<24x192xf32, #tpu.memory_space<vmem>>, vector<1x128xf32>
    %c1_341 = arith.constant 1 : index
    %c896_342 = arith.constant 896 : index
    %230 = vector.load %arg29[%c1_341, %c896_342] : memref<2x1152xf32, #tpu.memory_space<vmem>>, vector<1x128xf32>
    tpu.vector_store %arg29[%c1_341, %c896_342], %229 {strides = array<i32>} : memref<2x1152xf32, #tpu.memory_space<vmem>>, vector<1x128xf32>,
    %c17 = arith.constant 17 : index
    %c0_343 = arith.constant 0 : index
    %231 = vector.load %arg28[%c17, %c0_343] : memref<24x192xf32, #tpu.memory_space<vmem>>, vector<1x128xf32>
    %c1_344 = arith.constant 1 : index
    %c1024_345 = arith.constant 1024 : index
    %232 = vector.load %arg29[%c1_344, %c1024_345] : memref<2x1152xf32, #tpu.memory_space<vmem>>, vector<1x128xf32>
    tpu.vector_store %arg29[%c1_344, %c1024_345], %231 {strides = array<i32>} : memref<2x1152xf32, #tpu.memory_space<vmem>>, vector<1x128xf32>,
    %c0_346 = arith.constant 0 : index
    %c128_347 = arith.constant 128 : index
    %233 = vector.load %arg28[%c0_346, %c128_347] : memref<24x192xf32, #tpu.memory_space<vmem>>, vector<9x64xf32>
    %cst_348 = arith.constant dense<0.000000e+00> : vector<64xf32>
    %234 = vector.multi_reduction <add>, %233, %cst_348 [0] : vector<9x64xf32> to vector<64xf32>
    %235 = vector.shape_cast %234 : vector<64xf32> to vector<1x64xf32>
    %c9_349 = arith.constant 9 : index
    %c128_350 = arith.constant 128 : index
    %236 = vector.load %arg28[%c9_349, %c128_350] : memref<24x192xf32, #tpu.memory_space<vmem>>, vector<9x64xf32>
    %cst_351 = arith.constant dense<0.000000e+00> : vector<64xf32>
    %237 = vector.multi_reduction <add>, %236, %cst_351 [0] : vector<9x64xf32> to vector<64xf32>
    %238 = vector.shape_cast %237 : vector<64xf32> to vector<1x64xf32>
    %239 = tpu.concatenate %235, %238 in 0 : vector<1x64xf32>, vector<1x64xf32> -> vector<2x64xf32>
    %c0_352 = arith.constant 0 : index
    %c0_353 = arith.constant 0 : index
    %240 = vector.load %arg29[%c0_352, %c0_353] : memref<2x1152xf32, #tpu.memory_space<vmem>>, vector<2x1152xf32>
    %241 = arith.truncf %240 : vector<2x1152xf32> to vector<2x1152xbf16>
    %c0_354 = arith.constant 0 : index
    %c0_355 = arith.constant 0 : index
    %242 = vector.load %arg30[%c0_354, %c0_355] : memref<1152x128xbf16, #tpu.memory_space<vmem>>, vector<1152x128xbf16>
    %cst_356 = arith.constant dense<0.000000e+00> : vector<2x128xf32>
    %243 = tpu.matmul %241, %242, %cst_356 {dimension_numbers = #tpu.dot_dimension_numbers<[1], [0], [0], [1], [0, 0, 1, 1], [], []>} : vector<2x1152xbf16>, vector<1152x128xbf16>, vector<2x128xf32> -> vector<2x128xf32>
    %c0_357 = arith.constant 0 : index
    %c0_358 = arith.constant 0 : index
    %244 = vector.load %arg9[%c0_357, %c0_358] : memref<1x128xf32, #tpu.memory_space<vmem>>, vector<1x128xf32>
    %245 = vector.broadcast %244 : vector<1x128xf32> to vector<2x128xf32>
    %246 = arith.addf %243, %245 : vector<2x128xf32>
    %cst_359 = arith.constant 0.000000e+00 : f32
    %247 = vector.broadcast %cst_359 : f32 to vector<2x128xf32>
    %248 = arith.subf %247, %246 : vector<2x128xf32>
    %249 = math.exp %248 : vector<2x128xf32>
    %cst_360 = arith.constant 1.000000e+00 : f32
    %250 = vector.broadcast %cst_360 : f32 to vector<2x128xf32>
    %251 = arith.addf %250, %249 : vector<2x128xf32>
    %252 = tpu.reciprocal %251 {approx = true} : vector<2x128xf32> -> vector<2x128xf32>
    %253 = arith.mulf %246, %252 : vector<2x128xf32>
    %254 = arith.truncf %239 : vector<2x64xf32> to vector<2x64xbf16>
    %c0_361 = arith.constant 0 : index
    %c0_362 = arith.constant 0 : index
    %255 = vector.load %arg10[%c0_361, %c0_362] : memref<64x128xbf16, #tpu.memory_space<vmem>>, vector<64x128xbf16>
    %cst_363 = arith.constant dense<0.000000e+00> : vector<2x128xf32>
    %256 = tpu.matmul %254, %255, %cst_363 {dimension_numbers = #tpu.dot_dimension_numbers<[1], [0], [0], [1], [0, 0, 1, 1], [], []>} : vector<2x64xbf16>, vector<64x128xbf16>, vector<2x128xf32> -> vector<2x128xf32>
    %c0_364 = arith.constant 0 : index
    %c0_365 = arith.constant 0 : index
    %257 = vector.load %arg11[%c0_364, %c0_365] : memref<1x128xf32, #tpu.memory_space<vmem>>, vector<1x128xf32>
    %258 = vector.broadcast %257 : vector<1x128xf32> to vector<2x128xf32>
    %259 = arith.addf %256, %258 : vector<2x128xf32>
    %cst_366 = arith.constant 0.000000e+00 : f32
    %260 = vector.broadcast %cst_366 : f32 to vector<2x128xf32>
    %261 = arith.subf %260, %259 : vector<2x128xf32>
    %262 = math.exp %261 : vector<2x128xf32>
    %cst_367 = arith.constant 1.000000e+00 : f32
    %263 = vector.broadcast %cst_367 : f32 to vector<2x128xf32>
    %264 = arith.addf %263, %262 : vector<2x128xf32>
    %265 = tpu.reciprocal %264 {approx = true} : vector<2x128xf32> -> vector<2x128xf32>
    %266 = arith.mulf %259, %265 : vector<2x128xf32>
    %267 = vector.extract_strided_slice %253 {offsets = [0, 0], sizes = [2, 64], strides = [1, 1]} : vector<2x128xf32> to vector<2x64xf32>
    %268 = arith.truncf %267 : vector<2x64xf32> to vector<2x64xbf16>
    %c0_368 = arith.constant 0 : index
    %c0_369 = arith.constant 0 : index
    %269 = vector.load %arg12[%c0_368, %c0_369] : memref<64x256xbf16, #tpu.memory_space<vmem>>, vector<64x256xbf16>
    %cst_370 = arith.constant dense<0.000000e+00> : vector<2x256xf32>
    %270 = tpu.matmul %268, %269, %cst_370 {dimension_numbers = #tpu.dot_dimension_numbers<[1], [0], [0], [1], [0, 0, 1, 1], [], []>} : vector<2x64xbf16>, vector<64x256xbf16>, vector<2x256xf32> -> vector<2x256xf32>
    %c0_371 = arith.constant 0 : index
    %c0_372 = arith.constant 0 : index
    %271 = vector.load %arg14[%c0_371, %c0_372] : memref<1x256xf32, #tpu.memory_space<vmem>>, vector<1x256xf32>
    %272 = vector.broadcast %271 : vector<1x256xf32> to vector<2x256xf32>
    %273 = arith.addf %270, %272 : vector<2x256xf32>
    %cst_373 = arith.constant 0.000000e+00 : f32
    %274 = vector.broadcast %cst_373 : f32 to vector<2x256xf32>
    %275 = arith.subf %274, %273 : vector<2x256xf32>
    %276 = math.exp %275 : vector<2x256xf32>
    %cst_374 = arith.constant 1.000000e+00 : f32
    %277 = vector.broadcast %cst_374 : f32 to vector<2x256xf32>
    %278 = arith.addf %277, %276 : vector<2x256xf32>
    %279 = tpu.reciprocal %278 {approx = true} : vector<2x256xf32> -> vector<2x256xf32>
    %280 = arith.mulf %273, %279 : vector<2x256xf32>
    %281 = vector.extract_strided_slice %253 {offsets = [0, 64], sizes = [2, 64], strides = [1, 1]} : vector<2x128xf32> to vector<2x64xf32>
    %282 = arith.truncf %281 : vector<2x64xf32> to vector<2x64xbf16>
    %c0_375 = arith.constant 0 : index
    %c0_376 = arith.constant 0 : index
    %283 = vector.load %arg13[%c0_375, %c0_376] : memref<64x256xbf16, #tpu.memory_space<vmem>>, vector<64x256xbf16>
    %cst_377 = arith.constant dense<0.000000e+00> : vector<2x256xf32>
    %284 = tpu.matmul %282, %283, %cst_377 {dimension_numbers = #tpu.dot_dimension_numbers<[1], [0], [0], [1], [0, 0, 1, 1], [], []>} : vector<2x64xbf16>, vector<64x256xbf16>, vector<2x256xf32> -> vector<2x256xf32>
    %c0_378 = arith.constant 0 : index
    %c0_379 = arith.constant 0 : index
    %285 = vector.load %arg15[%c0_378, %c0_379] : memref<1x256xf32, #tpu.memory_space<vmem>>, vector<1x256xf32>
    %286 = vector.broadcast %285 : vector<1x256xf32> to vector<2x256xf32>
    %287 = arith.addf %284, %286 : vector<2x256xf32>
    %cst_380 = arith.constant 0.000000e+00 : f32
    %288 = vector.broadcast %cst_380 : f32 to vector<2x256xf32>
    %289 = arith.subf %288, %287 : vector<2x256xf32>
    %290 = math.exp %289 : vector<2x256xf32>
    %cst_381 = arith.constant 1.000000e+00 : f32
    %291 = vector.broadcast %cst_381 : f32 to vector<2x256xf32>
    %292 = arith.addf %291, %290 : vector<2x256xf32>
    %293 = tpu.reciprocal %292 {approx = true} : vector<2x256xf32> -> vector<2x256xf32>
    %294 = arith.mulf %287, %293 : vector<2x256xf32>
    %c0_382 = arith.constant 0 : index
    %c0_383 = arith.constant 0 : index
    %295 = vector.load %arg20[%c0_382, %c0_383] : memref<1x128xf32, #tpu.memory_space<vmem>>, vector<1x128xf32>
    %296 = vector.broadcast %295 : vector<1x128xf32> to vector<2x128xf32>
    %297 = arith.mulf %266, %296 : vector<2x128xf32>
    %cst_384 = arith.constant dense<0.000000e+00> : vector<2xf32>
    %298 = vector.multi_reduction <add>, %297, %cst_384 [1] : vector<2x128xf32> to vector<2xf32>
    %299 = vector.shape_cast %298 : vector<2xf32> to vector<2x1xf32>
    %c0_385 = arith.constant 0 : index
    %c0_386 = arith.constant 0 : index
    %300 = vector.load %arg21[%c0_385, %c0_386] : memref<1x1xf32, #tpu.memory_space<vmem>>, vector<1x1xf32>
    %301 = vector.broadcast %300 : vector<1x1xf32> to vector<2x1xf32>
    %302 = arith.addf %299, %301 : vector<2x1xf32>
    %cst_387 = arith.constant 0.000000e+00 : f32
    %303 = vector.broadcast %cst_387 : f32 to vector<2x1xf32>
    %304 = arith.subf %303, %302 : vector<2x1xf32>
    %305 = math.exp %304 : vector<2x1xf32>
    %cst_388 = arith.constant 1.000000e+00 : f32
    %306 = vector.broadcast %cst_388 : f32 to vector<2x1xf32>
    %307 = arith.addf %306, %305 : vector<2x1xf32>
    %cst_389 = arith.constant 1.000000e+00 : f32
    %308 = vector.broadcast %cst_389 : f32 to vector<2x1xf32>
    %309 = arith.divf %308, %307 : vector<2x1xf32>
    %310 = arith.truncf %280 : vector<2x256xf32> to vector<2x256xbf16>
    %c0_390 = arith.constant 0 : index
    %c0_391 = arith.constant 0 : index
    %311 = vector.load %arg16[%c0_390, %c0_391] : memref<256x2xbf16, #tpu.memory_space<vmem>>, vector<256x2xbf16>
    %cst_392 = arith.constant dense<0.000000e+00> : vector<2x2xf32>
    %312 = tpu.matmul %310, %311, %cst_392 {dimension_numbers = #tpu.dot_dimension_numbers<[1], [0], [0], [1], [0, 0, 1, 1], [], []>} : vector<2x256xbf16>, vector<256x2xbf16>, vector<2x2xf32> -> vector<2x2xf32>
    %c0_393 = arith.constant 0 : index
    %c0_394 = arith.constant 0 : index
    %313 = vector.load %arg18[%c0_393, %c0_394] : memref<1x2xf32, #tpu.memory_space<vmem>>, vector<1x2xf32>
    %314 = vector.broadcast %313 : vector<1x2xf32> to vector<2x2xf32>
    %315 = arith.addf %312, %314 : vector<2x2xf32>
    %316 = arith.truncf %294 : vector<2x256xf32> to vector<2x256xbf16>
    %c0_395 = arith.constant 0 : index
    %c0_396 = arith.constant 0 : index
    %317 = vector.load %arg17[%c0_395, %c0_396] : memref<256x2xbf16, #tpu.memory_space<vmem>>, vector<256x2xbf16>
    %cst_397 = arith.constant dense<0.000000e+00> : vector<2x2xf32>
    %318 = tpu.matmul %316, %317, %cst_397 {dimension_numbers = #tpu.dot_dimension_numbers<[1], [0], [0], [1], [0, 0, 1, 1], [], []>} : vector<2x256xbf16>, vector<256x2xbf16>, vector<2x2xf32> -> vector<2x2xf32>
    %c0_398 = arith.constant 0 : index
    %c0_399 = arith.constant 0 : index
    %319 = vector.load %arg19[%c0_398, %c0_399] : memref<1x2xf32, #tpu.memory_space<vmem>>, vector<1x2xf32>
    %320 = vector.broadcast %319 : vector<1x2xf32> to vector<2x2xf32>
    %321 = arith.addf %318, %320 : vector<2x2xf32>
    %cst_400 = arith.constant 5.000000e-01 : f32
    %322 = vector.broadcast %cst_400 : f32 to vector<2x1xf32>
    %323 = arith.cmpf ogt, %309, %322 : vector<2x1xf32>
    %324 = vector.shape_cast %323 : vector<2x1xi1> to vector<2x1xi1>
    %325 = vector.broadcast %324 : vector<2x1xi1> to vector<2x2xi1>
    %326 = arith.select %325, %315, %321 : vector<2x2xi1>, vector<2x2xf32>
    %c0_401 = arith.constant 0 : index
    %c0_402 = arith.constant 0 : index
    %327 = vector.load %arg23[%c0_401, %c0_402] : memref<2x2xf32, #tpu.memory_space<vmem>>, vector<2x2xf32>
    tpu.vector_store %arg23[%c0_401, %c0_402], %326 {strides = array<i32>} : memref<2x2xf32, #tpu.memory_space<vmem>>, vector<2x2xf32>,
    %c0_403 = arith.constant 0 : index
    %c0_404 = arith.constant 0 : index
    %328 = vector.load %arg24[%c0_403, %c0_404] : memref<2x1xf32, #tpu.memory_space<vmem>>, vector<2x1xf32>
    tpu.vector_store %arg24[%c0_403, %c0_404], %309 {strides = array<i32>} : memref<2x1xf32, #tpu.memory_space<vmem>>, vector<2x1xf32>,
    return
  }
}

</mosaic_0001>

<llo_original>
// kernel: experts_forward.1
$region0: #{experts_forward.1}
  #allocation0 [shape = 'u32[]', space=smem, size = 0x4, offset = 0x4, fixed_abs, tag = 'smem constant byte address 0x4 - core index']
  #allocation1 [shape = 'u32[144,128]{1,0:T(1,128)}', space=vmem, size = 0x12000, scoped, tag = 'internal scratch']
  #allocation2 [shape = 'f32[384,128]{1,0:T(8,128)}', space=vmem, size = 0x30000, scoped, tag = 'scratch operand']
  #allocation3 [shape = 'f32[24,2048]{1,0:T(8,128)}', space=vmem, size = 0x30000, scoped, tag = 'scratch operand']
  #allocation4 [shape = 'bf16[2048,192]{1,0:T(16,128)(2,1)}', space=vmem, size = 0x100000, scoped, tag = 'scratch operand']
  #allocation5 [shape = 'f32[24,192]{1,0:T(8,128)}', space=vmem, size = 0x6000, scoped, tag = 'scratch operand']
  #allocation6 [shape = 'f32[2,1152]{1,0:T(2,128)}', space=vmem, size = 0x2400, scoped, tag = 'scratch operand']
  #allocation7 [shape = 'bf16[1152,128]{1,0:T(16,128)(2,1)}', space=vmem, size = 0x48000, scoped, tag = 'scratch operand']
  #allocation8 [shape = 'f32[1,1]{1,0:T(1,128)S(1)}', space=vmem, size = 0x200, scoped, tag = 'scoped memory for experts_forward.1']
  %s0 = inlined_call_operand.vmem [shape: bf16[384,256], index: 0, kind: input, shape index: {}]
  %s1 = inlined_call_operand.vmem [shape: bf16[256,128], index: 1, kind: input, shape index: {}]
  %s2 = inlined_call_operand.vmem [shape: f32[1,128], index: 2, kind: input, shape index: {}]
  %s3 = inlined_call_operand.vmem [shape: bf16[512,64], index: 3, kind: input, shape index: {}]
  %s4 = inlined_call_operand.vmem [shape: bf16[512,64], index: 4, kind: input, shape index: {}]
  %s5 = inlined_call_operand.vmem [shape: bf16[512,64], index: 5, kind: input, shape index: {}]
  %s6 = inlined_call_operand.vmem [shape: f32[1,192], index: 6, kind: input, shape index: {}]
  %s7 = inlined_call_operand.vmem [shape: bf16[576,64], index: 7, kind: input, shape index: {}]
  %s8 = inlined_call_operand.vmem [shape: bf16[576,64], index: 8, kind: input, shape index: {}]
  %s9 = inlined_call_operand.vmem [shape: f32[1,128], index: 9, kind: input, shape index: {}]
  %s10 = inlined_call_operand.vmem [shape: bf16[64,128], index: 10, kind: input, shape index: {}]
  %s11 = inlined_call_operand.vmem [shape: f32[1,128], index: 11, kind: input, shape index: {}]
  %s12 = inlined_call_operand.vmem [shape: bf16[64,256], index: 12, kind: input, shape index: {}]
  %s13 = inlined_call_operand.vmem [shape: bf16[64,256], index: 13, kind: input, shape index: {}]
  %s14 = inlined_call_operand.vmem [shape: f32[1,256], index: 14, kind: input, shape index: {}]
  %s15 = inlined_call_operand.vmem [shape: f32[1,256], index: 15, kind: input, shape index: {}]
  %s16 = inlined_call_operand.vmem [shape: bf16[256,2], index: 16, kind: input, shape index: {}]
  %s17 = inlined_call_operand.vmem [shape: bf16[256,2], index: 17, kind: input, shape index: {}]
  %s18 = inlined_call_operand.vmem [shape: f32[1,2], index: 18, kind: input, shape index: {}]
  %s19 = inlined_call_operand.vmem [shape: f32[1,2], index: 19, kind: input, shape index: {}]
  %s20 = inlined_call_operand.vmem [shape: f32[1,128], index: 20, kind: input, shape index: {}]
  %s21 = inlined_call_operand.<no memory space> [shape: f32[1,1], index: 21, kind: input, shape index: {}]
  %s22 = inlined_call_operand.vmem [shape: f32[2,1], index: 22, kind: input, shape index: {}]
  %s23 = inlined_call_operand.hbm [shape: f32[2,2], index: 23, kind: output, shape index: {0}]
  %s24 = inlined_call_operand.vmem [shape: f32[2,1], index: 24, kind: output, shape index: {1}]
  %25 = xla_tuple %s23, %s24
  %s26 = sld [smem:[#allocation0]]
  $region110: #{experts_forward.1} parent=0
    _
  %s28 = ssub.s32 1, %s26
  %s29 = scalar_select 0, %s28, %s26
  %v30 = vstv %s21
  %31 = vst [vmem:[#allocation8] sm:$0x1] %v30
  $region1: #{experts_forward.1} parent=0
    #allocation9 [shape = 'u8[1024]{0}', space=vmem, size = 0x400, scoped, tag = 'output window, operand 0, single buffered']
    #allocation10 [shape = 's32[1]{0}', space=sflag, size = 0x4, scoped, tag = 'scoped memory for experts_forward.1']
    %32 = vsyncpa [#allocation10], 0
    // Predicated region
    $region2: #{experts_forward.1} parent=1 // pred_check
      _
    $region3: #{experts_forward.1} parent=1 // pred_check_branch
      %34 = sbr.rel (0) target = $region5
    $region4: #{experts_forward.1} parent=1 // pred_region
      _
    $region5: #{experts_forward.1} parent=1 // pred_fallthru
      _
    // Predicated region
    $region6: #{experts_forward.1} parent=1 // pred_check
      _
    $region7: #{experts_forward.1} parent=1 // pred_check_branch
      %36 = sbr.rel (0) target = $region9
    $region8: #{experts_forward.1} parent=1 // pred_region
      _
    $region9: #{experts_forward.1} parent=1 // pred_fallthru
      _
    // Predicated region
    $region10: #{experts_forward.1} parent=1 // pred_check
      _
    $region11: #{experts_forward.1} parent=1 // pred_check_branch
      %38 = sbr.rel (0) target = $region13
    $region12: #{experts_forward.1} parent=1 // pred_region
      _
    $region13: #{experts_forward.1} parent=1 // pred_fallthru
      _
    // Predicated region
    $region14: #{experts_forward.1} parent=1 // pred_check
      _
    $region15: #{experts_forward.1} parent=1 // pred_check_branch
      %40 = sbr.rel (0) target = $region17
    $region16: #{experts_forward.1} parent=1 // pred_region
      _
    $region17: #{experts_forward.1} parent=1 // pred_fallthru
      _
    // Predicated region
    $region18: #{experts_forward.1} parent=1 // pred_check
      _
    $region19: #{experts_forward.1} parent=1 // pred_check_branch
      %42 = sbr.rel (0) target = $region21
    $region20: #{experts_forward.1} parent=1 // pred_region
      _
    $region21: #{experts_forward.1} parent=1 // pred_fallthru
      _
    // Predicated region
    $region22: #{experts_forward.1} parent=1 // pred_check
      _
    $region23: #{experts_forward.1} parent=1 // pred_check_branch
      %44 = sbr.rel (0) target = $region25
    $region24: #{experts_forward.1} parent=1 // pred_region
      _
    $region25: #{experts_forward.1} parent=1 // pred_fallthru
      _
    // Predicated region
    $region26: #{experts_forward.1} parent=1 // pred_check
      _
    $region27: #{experts_forward.1} parent=1 // pred_check_branch
      %46 = sbr.rel (0) target = $region29
    $region28: #{experts_forward.1} parent=1 // pred_region
      _
    $region29: #{experts_forward.1} parent=1 // pred_fallthru
      _
    // Predicated region
    $region30: #{experts_forward.1} parent=1 // pred_check
      _
    $region31: #{experts_forward.1} parent=1 // pred_check_branch
      %48 = sbr.rel (0) target = $region33
    $region32: #{experts_forward.1} parent=1 // pred_region
      _
    $region33: #{experts_forward.1} parent=1 // pred_fallthru
      _
    // Predicated region
    $region34: #{experts_forward.1} parent=1 // pred_check
      _
    $region35: #{experts_forward.1} parent=1 // pred_check_branch
      %50 = sbr.rel (0) target = $region37
    $region36: #{experts_forward.1} parent=1 // pred_region
      _
    $region37: #{experts_forward.1} parent=1 // pred_fallthru
      _
    // Predicated region
    $region38: #{experts_forward.1} parent=1 // pred_check
      _
    $region39: #{experts_forward.1} parent=1 // pred_check_branch
      %52 = sbr.rel (0) target = $region41
    $region40: #{experts_forward.1} parent=1 // pred_region
      _
    $region41: #{experts_forward.1} parent=1 // pred_fallthru
      _
    // Predicated region
    $region42: #{experts_forward.1} parent=1 // pred_check
      _
    $region43: #{experts_forward.1} parent=1 // pred_check_branch
      %54 = sbr.rel (0) target = $region45
    $region44: #{experts_forward.1} parent=1 // pred_region
      _
    $region45: #{experts_forward.1} parent=1 // pred_fallthru
      _
    // Predicated region
    $region46: #{experts_forward.1} parent=1 // pred_check
      _
    $region47: #{experts_forward.1} parent=1 // pred_check_branch
      %56 = sbr.rel (0) target = $region49
    $region48: #{experts_forward.1} parent=1 // pred_region
      _
    $region49: #{experts_forward.1} parent=1 // pred_fallthru
      _
    // Predicated region
    $region50: #{experts_forward.1} parent=1 // pred_check
      _
    $region51: #{experts_forward.1} parent=1 // pred_check_branch
      %58 = sbr.rel (0) target = $region53
    $region52: #{experts_forward.1} parent=1 // pred_region
      _
    $region53: #{experts_forward.1} parent=1 // pred_fallthru
      _
    // Predicated region
    $region54: #{experts_forward.1} parent=1 // pred_check
      _
    $region55: #{experts_forward.1} parent=1 // pred_check_branch
      %60 = sbr.rel (0) target = $region57
    $region56: #{experts_forward.1} parent=1 // pred_region
      _
    $region57: #{experts_forward.1} parent=1 // pred_fallthru
      _
    // Predicated region
    $region58: #{experts_forward.1} parent=1 // pred_check
      _
    $region59: #{experts_forward.1} parent=1 // pred_check_branch
      %62 = sbr.rel (0) target = $region61
    $region60: #{experts_forward.1} parent=1 // pred_region
      _
    $region61: #{experts_forward.1} parent=1 // pred_fallthru
      _
    // Predicated region
    $region62: #{experts_forward.1} parent=1 // pred_check
      _
    $region63: #{experts_forward.1} parent=1 // pred_check_branch
      %64 = sbr.rel (0) target = $region65
    $region64: #{experts_forward.1} parent=1 // pred_region
      _
    $region65: #{experts_forward.1} parent=1 // pred_fallthru
      _
    // Predicated region
    $region66: #{experts_forward.1} parent=1 // pred_check
      _
    $region67: #{experts_forward.1} parent=1 // pred_check_branch
      %66 = sbr.rel (0) target = $region69
    $region68: #{experts_forward.1} parent=1 // pred_region
      _
    $region69: #{experts_forward.1} parent=1 // pred_fallthru
      _
    // Predicated region
    $region70: #{experts_forward.1} parent=1 // pred_check
      _
    $region71: #{experts_forward.1} parent=1 // pred_check_branch
      %68 = sbr.rel (0) target = $region73
    $region72: #{experts_forward.1} parent=1 // pred_region
      _
    $region73: #{experts_forward.1} parent=1 // pred_fallthru
      _
    // Predicated region
    $region74: #{experts_forward.1} parent=1 // pred_check
      _
    $region75: #{experts_forward.1} parent=1 // pred_check_branch
      %70 = sbr.rel (0) target = $region77
    $region76: #{experts_forward.1} parent=1 // pred_region
      _
    $region77: #{experts_forward.1} parent=1 // pred_fallthru
      _
    // Predicated region
    $region78: #{experts_forward.1} parent=1 // pred_check
      _
    $region79: #{experts_forward.1} parent=1 // pred_check_branch
      %72 = sbr.rel (0) target = $region81
    $region80: #{experts_forward.1} parent=1 // pred_region
      _
    $region81: #{experts_forward.1} parent=1 // pred_fallthru
      _
    // Predicated region
    $region82: #{experts_forward.1} parent=1 // pred_check
      _
    $region83: #{experts_forward.1} parent=1 // pred_check_branch
      %74 = sbr.rel (0) target = $region85
    $region84: #{experts_forward.1} parent=1 // pred_region
      _
    $region85: #{experts_forward.1} parent=1 // pred_fallthru
      _
    // Predicated region
    $region86: #{experts_forward.1} parent=1 // pred_check
      _
    $region87: #{experts_forward.1} parent=1 // pred_check_branch
      %76 = sbr.rel (0) target = $region89
    $region88: #{experts_forward.1} parent=1 // pred_region
      _
    $region89: #{experts_forward.1} parent=1 // pred_fallthru
      _
    // Predicated region
    $region90: #{experts_forward.1} parent=1 // pred_check
      _
    $region91: #{experts_forward.1} parent=1 // pred_check_branch
      %78 = sbr.rel (0) target = $region93
    $region92: #{experts_forward.1} parent=1 // pred_region
      _
    $region93: #{experts_forward.1} parent=1 // pred_fallthru
      _
    %80 = vst [vmem:[#allocation4] sm:$0xff] 0
    %vm81 = vcmask 523264
    %82 = vst.msk [vmem:[#allocation4 + $0x8] sm:$0xff] %vm81, 0
    %83 = vst [vmem:[#allocation4 + $0x10] sm:$0xff] 0
    %84 = vst.msk [vmem:[#allocation4 + $0x18] sm:$0xff] %vm81, 0
    %85 = vst [vmem:[#allocation4 + $0x20] sm:$0xff] 0
    %86 = vst.msk [vmem:[#allocation4 + $0x28] sm:$0xff] %vm81, 0
    %87 = vst [vmem:[#allocation4 + $0x30] sm:$0xff] 0
    %88 = vst.msk [vmem:[#allocation4 + $0x38] sm:$0xff] %vm81, 0
    %89 = vst [vmem:[#allocation4 + $0x40] sm:$0xff] 0
    %90 = vst.msk [vmem:[#allocation4 + $0x48] sm:$0xff] %vm81, 0
    %91 = vst [vmem:[#allocation4 + $0x50] sm:$0xff] 0
    %92 = vst.msk [vmem:[#allocation4 + $0x58] sm:$0xff] %vm81, 0
    %93 = vst [vmem:[#allocation4 + $0x60] sm:$0xff] 0
    %94 = vst.msk [vmem:[#allocation4 + $0x68] sm:$0xff] %vm81, 0
    %95 = vst [vmem:[#allocation4 + $0x70] sm:$0xff] 0
    %96 = vst.msk [vmem:[#allocation4 + $0x78] sm:$0xff] %vm81, 0
    %97 = vst [vmem:[#allocation4 + $0x80] sm:$0xff] 0
    %98 = vst.msk [vmem:[#allocation4 + $0x88] sm:$0xff] %vm81, 0
    %99 = vst [vmem:[#allocation4 + $0x90] sm:$0xff] 0
    %100 = vst.msk [vmem:[#allocation4 + $0x98] sm:$0xff] %vm81, 0
    %101 = vst [vmem:[#allocation4 + $0xa0] sm:$0xff] 0
    %102 = vst.msk [vmem:[#allocation4 + $0xa8] sm:$0xff] %vm81, 0
    %103 = vst [vmem:[#allocation4 + $0xb0] sm:$0xff] 0
    %104 = vst.msk [vmem:[#allocation4 + $0xb8] sm:$0xff] %vm81, 0
    %105 = vst [vmem:[#allocation4 + $0xc0] sm:$0xff] 0
    %106 = vst.msk [vmem:[#allocation4 + $0xc8] sm:$0xff] %vm81, 0
    %107 = vst [vmem:[#allocation4 + $0xd0] sm:$0xff] 0
    %108 = vst.msk [vmem:[#allocation4 + $0xd8] sm:$0xff] %vm81, 0
    %109 = vst [vmem:[#allocation4 + $0xe0] sm:$0xff] 0
    %110 = vst.msk [vmem:[#allocation4 + $0xe8] sm:$0xff] %vm81, 0
    %111 = vst [vmem:[#allocation4 + $0xf0] sm:$0xff] 0
    %112 = vst.msk [vmem:[#allocation4 + $0xf8] sm:$0xff] %vm81, 0
    %113 = vst [vmem:[#allocation4 + $0x100] sm:$0xff] 0
    %114 = vst.msk [vmem:[#allocation4 + $0x108] sm:$0xff] %vm81, 0
    %115 = vst [vmem:[#allocation4 + $0x110] sm:$0xff] 0
    %116 = vst.msk [vmem:[#allocation4 + $0x118] sm:$0xff] %vm81, 0
    %117 = vst [vmem:[#allocation4 + $0x120] sm:$0xff] 0
    %118 = vst.msk [vmem:[#allocation4 + $0x128] sm:$0xff] %vm81, 0
    %119 = vst [vmem:[#allocation4 + $0x130] sm:$0xff] 0
    %120 = vst.msk [vmem:[#allocation4 + $0x138] sm:$0xff] %vm81, 0
    %121 = vst [vmem:[#allocation4 + $0x140] sm:$0xff] 0
    %122 = vst.msk [vmem:[#allocation4 + $0x148] sm:$0xff] %vm81, 0
    %123 = vst [vmem:[#allocation4 + $0x150] sm:$0xff] 0
    %124 = vst.msk [vmem:[#allocation4 + $0x158] sm:$0xff] %vm81, 0
    %125 = vst [vmem:[#allocation4 + $0x160] sm:$0xff] 0
    %126 = vst.msk [vmem:[#allocation4 + $0x168] sm:$0xff] %vm81, 0
    %127 = vst [vmem:[#allocation4 + $0x170] sm:$0xff] 0
    %128 = vst.msk [vmem:[#allocation4 + $0x178] sm:$0xff] %vm81, 0
    %129 = vst [vmem:[#allocation4 + $0x180] sm:$0xff] 0
    %130 = vst.msk [vmem:[#allocation4 + $0x188] sm:$0xff] %vm81, 0
    %131 = vst [vmem:[#allocation4 + $0x190] sm:$0xff] 0
    %132 = vst.msk [vmem:[#allocation4 + $0x198] sm:$0xff] %vm81, 0
    %133 = vst [vmem:[#allocation4 + $0x1a0] sm:$0xff] 0
    %134 = vst.msk [vmem:[#allocation4 + $0x1a8] sm:$0xff] %vm81, 0
    %135 = vst [vmem:[#allocation4 + $0x1b0] sm:$0xff] 0
    %136 = vst.msk [vmem:[#allocation4 + $0x1b8] sm:$0xff] %vm81, 0
    %137 = vst [vmem:[#allocation4 + $0x1c0] sm:$0xff] 0
    %138 = vst.msk [vmem:[#allocation4 + $0x1c8] sm:$0xff] %vm81, 0
    %139 = vst [vmem:[#allocation4 + $0x1d0] sm:$0xff] 0
    %140 = vst.msk [vmem:[#allocation4 + $0x1d8] sm:$0xff] %vm81, 0
    %141 = vst [vmem:[#allocation4 + $0x1e0] sm:$0xff] 0
    %142 = vst.msk [vmem:[#allocation4 + $0x1e8] sm:$0xff] %vm81, 0
    %143 = vst [vmem:[#allocation4 + $0x1f0] sm:$0xff] 0
    %144 = vst.msk [vmem:[#allocation4 + $0x1f8] sm:$0xff] %vm81, 0
    %145 = vst [vmem:[#allocation4 + $0x200] sm:$0xff] 0
    %146 = vst.msk [vmem:[#allocation4 + $0x208] sm:$0xff] %vm81, 0
    %147 = vst [vmem:[#allocation4 + $0x210] sm:$0xff] 0
    %148 = vst.msk [vmem:[#allocation4 + $0x218] sm:$0xff] %vm81, 0
    %149 = vst [vmem:[#allocation4 + $0x220] sm:$0xff] 0
    %150 = vst.msk [vmem:[#allocation4 + $0x228] sm:$0xff] %vm81, 0
    %151 = vst [vmem:[#allocation4 + $0x230] sm:$0xff] 0
    %152 = vst.msk [vmem:[#allocation4 + $0x238] sm:$0xff] %vm81, 0
    %153 = vst [vmem:[#allocation4 + $0x240] sm:$0xff] 0
    %154 = vst.msk [vmem:[#allocation4 + $0x248] sm:$0xff] %vm81, 0
    %155 = vst [vmem:[#allocation4 + $0x250] sm:$0xff] 0
    %156 = vst.msk [vmem:[#allocation4 + $0x258] sm:$0xff] %vm81, 0
    %157 = vst [vmem:[#allocation4 + $0x260] sm:$0xff] 0
    %158 = vst.msk [vmem:[#allocation4 + $0x268] sm:$0xff] %vm81, 0
    %159 = vst [vmem:[#allocation4 + $0x270] sm:$0xff] 0
    %160 = vst.msk [vmem:[#allocation4 + $0x278] sm:$0xff] %vm81, 0
    %161 = vst [vmem:[#allocation4 + $0x280] sm:$0xff] 0
    %162 = vst.msk [vmem:[#allocation4 + $0x288] sm:$0xff] %vm81, 0
    %163 = vst [vmem:[#allocation4 + $0x290] sm:$0xff] 0
    %164 = vst.msk [vmem:[#allocation4 + $0x298] sm:$0xff] %vm81, 0
    %165 = vst [vmem:[#allocation4 + $0x2a0] sm:$0xff] 0
    %166 = vst.msk [vmem:[#allocation4 + $0x2a8] sm:$0xff] %vm81, 0
    %167 = vst [vmem:[#allocation4 + $0x2b0] sm:$0xff] 0
    %168 = vst.msk [vmem:[#allocation4 + $0x2b8] sm:$0xff] %vm81, 0
    %169 = vst [vmem:[#allocation4 + $0x2c0] sm:$0xff] 0
    %170 = vst.msk [vmem:[#allocation4 + $0x2c8] sm:$0xff] %vm81, 0
    %171 = vst [vmem:[#allocation4 + $0x2d0] sm:$0xff] 0
    %172 = vst.msk [vmem:[#allocation4 + $0x2d8] sm:$0xff] %vm81, 0
    %173 = vst [vmem:[#allocation4 + $0x2e0] sm:$0xff] 0
    %174 = vst.msk [vmem:[#allocation4 + $0x2e8] sm:$0xff] %vm81, 0
    %175 = vst [vmem:[#allocation4 + $0x2f0] sm:$0xff] 0
    %176 = vst.msk [vmem:[#allocation4 + $0x2f8] sm:$0xff] %vm81, 0
    %177 = vst [vmem:[#allocation4 + $0x300] sm:$0xff] 0
    %178 = vst.msk [vmem:[#allocation4 + $0x308] sm:$0xff] %vm81, 0
    %179 = vst [vmem:[#allocation4 + $0x310] sm:$0xff] 0
    %180 = vst.msk [vmem:[#allocation4 + $0x318] sm:$0xff] %vm81, 0
    %181 = vst [vmem:[#allocation4 + $0x320] sm:$0xff] 0
    %182 = vst.msk [vmem:[#allocation4 + $0x328] sm:$0xff] %vm81, 0
    %183 = vst [vmem:[#allocation4 + $0x330] sm:$0xff] 0
    %184 = vst.msk [vmem:[#allocation4 + $0x338] sm:$0xff] %vm81, 0
    %185 = vst [vmem:[#allocation4 + $0x340] sm:$0xff] 0
    %186 = vst.msk [vmem:[#allocation4 + $0x348] sm:$0xff] %vm81, 0
    %187 = vst [vmem:[#allocation4 + $0x350] sm:$0xff] 0
    %188 = vst.msk [vmem:[#allocation4 + $0x358] sm:$0xff] %vm81, 0
    %189 = vst [vmem:[#allocation4 + $0x360] sm:$0xff] 0
    %190 = vst.msk [vmem:[#allocation4 + $0x368] sm:$0xff] %vm81, 0
    %191 = vst [vmem:[#allocation4 + $0x370] sm:$0xff] 0
    %192 = vst.msk [vmem:[#allocation4 + $0x378] sm:$0xff] %vm81, 0
    %193 = vst [vmem:[#allocation4 + $0x380] sm:$0xff] 0
    %194 = vst.msk [vmem:[#allocation4 + $0x388] sm:$0xff] %vm81, 0
    %195 = vst [vmem:[#allocation4 + $0x390] sm:$0xff] 0
    %196 = vst.msk [vmem:[#allocation4 + $0x398] sm:$0xff] %vm81, 0
    %197 = vst [vmem:[#allocation4 + $0x3a0] sm:$0xff] 0
    %198 = vst.msk [vmem:[#allocation4 + $0x3a8] sm:$0xff] %vm81, 0
    %199 = vst [vmem:[#allocation4 + $0x3b0] sm:$0xff] 0
    %200 = vst.msk [vmem:[#allocation4 + $0x3b8] sm:$0xff] %vm81, 0
    %201 = vst [vmem:[#allocation4 + $0x3c0] sm:$0xff] 0
    %202 = vst.msk [vmem:[#allocation4 + $0x3c8] sm:$0xff] %vm81, 0
    %203 = vst [vmem:[#allocation4 + $0x3d0] sm:$0xff] 0
    %204 = vst.msk [vmem:[#allocation4 + $0x3d8] sm:$0xff] %vm81, 0
    %205 = vst [vmem:[#allocation4 + $0x3e0] sm:$0xff] 0
    %206 = vst.msk [vmem:[#allocation4 + $0x3e8] sm:$0xff] %vm81, 0
    %207 = vst [vmem:[#allocation4 + $0x3f0] sm:$0xff] 0
    %208 = vst.msk [vmem:[#allocation4 + $0x3f8] sm:$0xff] %vm81, 0
    %209 = vst [vmem:[#allocation4 + $0x400] sm:$0xff] 0
    %210 = vst.msk [vmem:[#allocation4 + $0x408] sm:$0xff] %vm81, 0
    %211 = vst [vmem:[#allocation4 + $0x410] sm:$0xff] 0
    %212 = vst.msk [vmem:[#allocation4 + $0x418] sm:$0xff] %vm81, 0
    %213 = vst [vmem:[#allocation4 + $0x420] sm:$0xff] 0
    %214 = vst.msk [vmem:[#allocation4 + $0x428] sm:$0xff] %vm81, 0
    %215 = vst [vmem:[#allocation4 + $0x430] sm:$0xff] 0
    %216 = vst.msk [vmem:[#allocation4 + $0x438] sm:$0xff] %vm81, 0
    %217 = vst [vmem:[#allocation4 + $0x440] sm:$0xff] 0
    %218 = vst.msk [vmem:[#allocation4 + $0x448] sm:$0xff] %vm81, 0
    %219 = vst [vmem:[#allocation4 + $0x450] sm:$0xff] 0
    %220 = vst.msk [vmem:[#allocation4 + $0x458] sm:$0xff] %vm81, 0
    %221 = vst [vmem:[#allocation4 + $0x460] sm:$0xff] 0
    %222 = vst.msk [vmem:[#allocation4 + $0x468] sm:$0xff] %vm81, 0
    %223 = vst [vmem:[#allocation4 + $0x470] sm:$0xff] 0
    %224 = vst.msk [vmem:[#allocation4 + $0x478] sm:$0xff] %vm81, 0
    %225 = vst [vmem:[#allocation4 + $0x480] sm:$0xff] 0
    %226 = vst.msk [vmem:[#allocation4 + $0x488] sm:$0xff] %vm81, 0
    %227 = vst [vmem:[#allocation4 + $0x490] sm:$0xff] 0
    %228 = vst.msk [vmem:[#allocation4 + $0x498] sm:$0xff] %vm81, 0
    %229 = vst [vmem:[#allocation4 + $0x4a0] sm:$0xff] 0
    %230 = vst.msk [vmem:[#allocation4 + $0x4a8] sm:$0xff] %vm81, 0
    %231 = vst [vmem:[#allocation4 + $0x4b0] sm:$0xff] 0
    %232 = vst.msk [vmem:[#allocation4 + $0x4b8] sm:$0xff] %vm81, 0
    %233 = vst [vmem:[#allocation4 + $0x4c0] sm:$0xff] 0
    %234 = vst.msk [vmem:[#allocation4 + $0x4c8] sm:$0xff] %vm81, 0
    %235 = vst [vmem:[#allocation4 + $0x4d0] sm:$0xff] 0
    %236 = vst.msk [vmem:[#allocation4 + $0x4d8] sm:$0xff] %vm81, 0
    %237 = vst [vmem:[#allocation4 + $0x4e0] sm:$0xff] 0
    %238 = vst.msk [vmem:[#allocation4 + $0x4e8] sm:$0xff] %vm81, 0
    %239 = vst [vmem:[#allocation4 + $0x4f0] sm:$0xff] 0
    %240 = vst.msk [vmem:[#allocation4 + $0x4f8] sm:$0xff] %vm81, 0
    %241 = vst [vmem:[#allocation4 + $0x500] sm:$0xff] 0
    %242 = vst.msk [vmem:[#allocation4 + $0x508] sm:$0xff] %vm81, 0
    %243 = vst [vmem:[#allocation4 + $0x510] sm:$0xff] 0
    %244 = vst.msk [vmem:[#allocation4 + $0x518] sm:$0xff] %vm81, 0
    %245 = vst [vmem:[#allocation4 + $0x520] sm:$0xff] 0
    %246 = vst.msk [vmem:[#allocation4 + $0x528] sm:$0xff] %vm81, 0
    %247 = vst [vmem:[#allocation4 + $0x530] sm:$0xff] 0
    %248 = vst.msk [vmem:[#allocation4 + $0x538] sm:$0xff] %vm81, 0
    %249 = vst [vmem:[#allocation4 + $0x540] sm:$0xff] 0
    %250 = vst.msk [vmem:[#allocation4 + $0x548] sm:$0xff] %vm81, 0
    %251 = vst [vmem:[#allocation4 + $0x550] sm:$0xff] 0
    %252 = vst.msk [vmem:[#allocation4 + $0x558] sm:$0xff] %vm81, 0
    %253 = vst [vmem:[#allocation4 + $0x560] sm:$0xff] 0
    %254 = vst.msk [vmem:[#allocation4 + $0x568] sm:$0xff] %vm81, 0
    %255 = vst [vmem:[#allocation4 + $0x570] sm:$0xff] 0
    %256 = vst.msk [vmem:[#allocation4 + $0x578] sm:$0xff] %vm81, 0
    %257 = vst [vmem:[#allocation4 + $0x580] sm:$0xff] 0
    %258 = vst.msk [vmem:[#allocation4 + $0x588] sm:$0xff] %vm81, 0
    %259 = vst [vmem:[#allocation4 + $0x590] sm:$0xff] 0
    %260 = vst.msk [vmem:[#allocation4 + $0x598] sm:$0xff] %vm81, 0
    %261 = vst [vmem:[#allocation4 + $0x5a0] sm:$0xff] 0
    %262 = vst.msk [vmem:[#allocation4 + $0x5a8] sm:$0xff] %vm81, 0
    %263 = vst [vmem:[#allocation4 + $0x5b0] sm:$0xff] 0
    %264 = vst.msk [vmem:[#allocation4 + $0x5b8] sm:$0xff] %vm81, 0
    %265 = vst [vmem:[#allocation4 + $0x5c0] sm:$0xff] 0
    %266 = vst.msk [vmem:[#allocation4 + $0x5c8] sm:$0xff] %vm81, 0
    %267 = vst [vmem:[#allocation4 + $0x5d0] sm:$0xff] 0
    %268 = vst.msk [vmem:[#allocation4 + $0x5d8] sm:$0xff] %vm81, 0
    %269 = vst [vmem:[#allocation4 + $0x5e0] sm:$0xff] 0
    %270 = vst.msk [vmem:[#allocation4 + $0x5e8] sm:$0xff] %vm81, 0
    %271 = vst [vmem:[#allocation4 + $0x5f0] sm:$0xff] 0
    %272 = vst.msk [vmem:[#allocation4 + $0x5f8] sm:$0xff] %vm81, 0
    %273 = vst [vmem:[#allocation4 + $0x600] sm:$0xff] 0
    %274 = vst.msk [vmem:[#allocation4 + $0x608] sm:$0xff] %vm81, 0
    %275 = vst [vmem:[#allocation4 + $0x610] sm:$0xff] 0
    %276 = vst.msk [vmem:[#allocation4 + $0x618] sm:$0xff] %vm81, 0
    %277 = vst [vmem:[#allocation4 + $0x620] sm:$0xff] 0
    %278 = vst.msk [vmem:[#allocation4 + $0x628] sm:$0xff] %vm81, 0
    %279 = vst [vmem:[#allocation4 + $0x630] sm:$0xff] 0
    %280 = vst.msk [vmem:[#allocation4 + $0x638] sm:$0xff] %vm81, 0
    %281 = vst [vmem:[#allocation4 + $0x640] sm:$0xff] 0
    %282 = vst.msk [vmem:[#allocation4 + $0x648] sm:$0xff] %vm81, 0
    %283 = vst [vmem:[#allocation4 + $0x650] sm:$0xff] 0
    %284 = vst.msk [vmem:[#allocation4 + $0x658] sm:$0xff] %vm81, 0
    %285 = vst [vmem:[#allocation4 + $0x660] sm:$0xff] 0
    %286 = vst.msk [vmem:[#allocation4 + $0x668] sm:$0xff] %vm81, 0
    %287 = vst [vmem:[#allocation4 + $0x670] sm:$0xff] 0
    %288 = vst.msk [vmem:[#allocation4 + $0x678] sm:$0xff] %vm81, 0
    %289 = vst [vmem:[#allocation4 + $0x680] sm:$0xff] 0
    %290 = vst.msk [vmem:[#allocation4 + $0x688] sm:$0xff] %vm81, 0
    %291 = vst [vmem:[#allocation4 + $0x690] sm:$0xff] 0
    %292 = vst.msk [vmem:[#allocation4 + $0x698] sm:$0xff] %vm81, 0
    %293 = vst [vmem:[#allocation4 + $0x6a0] sm:$0xff] 0
    %294 = vst.msk [vmem:[#allocation4 + $0x6a8] sm:$0xff] %vm81, 0
    %295 = vst [vmem:[#allocation4 + $0x6b0] sm:$0xff] 0
    %296 = vst.msk [vmem:[#allocation4 + $0x6b8] sm:$0xff] %vm81, 0
    %297 = vst [vmem:[#allocation4 + $0x6c0] sm:$0xff] 0
    %298 = vst.msk [vmem:[#allocation4 + $0x6c8] sm:$0xff] %vm81, 0
    %299 = vst [vmem:[#allocation4 + $0x6d0] sm:$0xff] 0
    %300 = vst.msk [vmem:[#allocation4 + $0x6d8] sm:$0xff] %vm81, 0
    %301 = vst [vmem:[#allocation4 + $0x6e0] sm:$0xff] 0
    %302 = vst.msk [vmem:[#allocation4 + $0x6e8] sm:$0xff] %vm81, 0
    %303 = vst [vmem:[#allocation4 + $0x6f0] sm:$0xff] 0
    %304 = vst.msk [vmem:[#allocation4 + $0x6f8] sm:$0xff] %vm81, 0
    %305 = vst [vmem:[#allocation4 + $0x700] sm:$0xff] 0
    %306 = vst.msk [vmem:[#allocation4 + $0x708] sm:$0xff] %vm81, 0
    %307 = vst [vmem:[#allocation4 + $0x710] sm:$0xff] 0
    %308 = vst.msk [vmem:[#allocation4 + $0x718] sm:$0xff] %vm81, 0
    %309 = vst [vmem:[#allocation4 + $0x720] sm:$0xff] 0
    %310 = vst.msk [vmem:[#allocation4 + $0x728] sm:$0xff] %vm81, 0
    %311 = vst [vmem:[#allocation4 + $0x730] sm:$0xff] 0
    %312 = vst.msk [vmem:[#allocation4 + $0x738] sm:$0xff] %vm81, 0
    %313 = vst [vmem:[#allocation4 + $0x740] sm:$0xff] 0
    %314 = vst.msk [vmem:[#allocation4 + $0x748] sm:$0xff] %vm81, 0
    %315 = vst [vmem:[#allocation4 + $0x750] sm:$0xff] 0
    %316 = vst.msk [vmem:[#allocation4 + $0x758] sm:$0xff] %vm81, 0
    %317 = vst [vmem:[#allocation4 + $0x760] sm:$0xff] 0
    %318 = vst.msk [vmem:[#allocation4 + $0x768] sm:$0xff] %vm81, 0
    %319 = vst [vmem:[#allocation4 + $0x770] sm:$0xff] 0
    %320 = vst.msk [vmem:[#allocation4 + $0x778] sm:$0xff] %vm81, 0
    %321 = vst [vmem:[#allocation4 + $0x780] sm:$0xff] 0
    %322 = vst.msk [vmem:[#allocation4 + $0x788] sm:$0xff] %vm81, 0
    %323 = vst [vmem:[#allocation4 + $0x790] sm:$0xff] 0
    %324 = vst.msk [vmem:[#allocation4 + $0x798] sm:$0xff] %vm81, 0
    %325 = vst [vmem:[#allocation4 + $0x7a0] sm:$0xff] 0
    %326 = vst.msk [vmem:[#allocation4 + $0x7a8] sm:$0xff] %vm81, 0
    %327 = vst [vmem:[#allocation4 + $0x7b0] sm:$0xff] 0
    %328 = vst.msk [vmem:[#allocation4 + $0x7b8] sm:$0xff] %vm81, 0
    %329 = vst [vmem:[#allocation4 + $0x7c0] sm:$0xff] 0
    %330 = vst.msk [vmem:[#allocation4 + $0x7c8] sm:$0xff] %vm81, 0
    %331 = vst [vmem:[#allocation4 + $0x7d0] sm:$0xff] 0
    %332 = vst.msk [vmem:[#allocation4 + $0x7d8] sm:$0xff] %vm81, 0
    %333 = vst [vmem:[#allocation4 + $0x7e0] sm:$0xff] 0
    %334 = vst.msk [vmem:[#allocation4 + $0x7e8] sm:$0xff] %vm81, 0
    %335 = vst [vmem:[#allocation4 + $0x7f0] sm:$0xff] 0
    %336 = vst.msk [vmem:[#allocation4 + $0x7f8] sm:$0xff] %vm81, 0
    %v337 = vld [vmem:[%s3] sm:$0xf]
    %v338 = vld [vmem:[%s3 + $0x4] sm:$0xf]
    %v339 = vld [vmem:[%s3 + $0x8] sm:$0xf]
    %v340 = vld [vmem:[%s3 + $0xc] sm:$0xf]
    %v345 = vunpack.c.l.b16 %v337
    %v346 = vunpack.c.l.b16 %v338
    %v347 = vunpack.c.l.b16 %v339
    %v348 = vunpack.c.l.b16 %v340
    %v349 = vpack.c.b16 %v346, %v345
    %v350 = vpack.c.b16 %v348, %v347
    %353 = vst.msk [vmem:[#allocation4] sm:$0xff] %vm81, %v349
    %354 = vst.msk [vmem:[#allocation4 + $0x10] sm:$0xff] %vm81, %v350
    %v355 = vld [vmem:[%s4] sm:$0xf]
    %v356 = vld [vmem:[%s4 + $0x4] sm:$0xf]
    %v357 = vld [vmem:[%s4 + $0x8] sm:$0xf]
    %v358 = vld [vmem:[%s4 + $0xc] sm:$0xf]
    %v363 = vunpack.c.l.b16 %v355
    %v364 = vunpack.c.l.b16 %v356
    %v365 = vunpack.c.l.b16 %v357
    %v366 = vunpack.c.l.b16 %v358
    %v367 = vpack.c.b16 %v364, %v363
    %v368 = vpack.c.b16 %v366, %v365
    %369 = vrot.lane.b32.xlu0 %v367, 64
    %v370 = vpop.permute.xlu0 %369
    %371 = vrot.lane.b32.xlu0 %v368, 64
    %v372 = vpop.permute.xlu0 %371
    %vm375 = vcmask 1048064
    %376 = vst.msk [vmem:[#allocation4 + $0x20] sm:$0xff] %vm375, %v370
    %377 = vst.msk [vmem:[#allocation4 + $0x30] sm:$0xff] %vm375, %v372
    %v378 = vld [vmem:[%s5] sm:$0xf]
    %v379 = vld [vmem:[%s5 + $0x4] sm:$0xf]
    %v380 = vld [vmem:[%s5 + $0x8] sm:$0xf]
    %v381 = vld [vmem:[%s5 + $0xc] sm:$0xf]
    %v386 = vunpack.c.l.b16 %v378
    %v387 = vunpack.c.l.b16 %v379
    %v388 = vunpack.c.l.b16 %v380
    %v389 = vunpack.c.l.b16 %v381
    %v390 = vpack.c.b16 %v387, %v386
    %v391 = vpack.c.b16 %v389, %v388
    %394 = vst.msk [vmem:[#allocation4 + $0x48] sm:$0xff] %vm81, %v390
    %395 = vst.msk [vmem:[#allocation4 + $0x58] sm:$0xff] %vm81, %v391
    %v396 = vld [vmem:[%s3 + $0x10] sm:$0xf]
    %v397 = vld [vmem:[%s3 + $0x14] sm:$0xf]
    %v398 = vld [vmem:[%s3 + $0x18] sm:$0xf]
    %v399 = vld [vmem:[%s3 + $0x1c] sm:$0xf]
    %v404 = vunpack.c.l.b16 %v396
    %v405 = vunpack.c.l.b16 %v397
    %v406 = vunpack.c.l.b16 %v398
    %v407 = vunpack.c.l.b16 %v399
    %v408 = vpack.c.b16 %v405, %v404
    %v409 = vpack.c.b16 %v407, %v406
    %412 = vst.msk [vmem:[#allocation4 + $0x80] sm:$0xff] %vm81, %v408
    %413 = vst.msk [vmem:[#allocation4 + $0x90] sm:$0xff] %vm81, %v409
    %v414 = vld [vmem:[%s4 + $0x10] sm:$0xf]
    %v415 = vld [vmem:[%s4 + $0x14] sm:$0xf]
    %v416 = vld [vmem:[%s4 + $0x18] sm:$0xf]
    %v417 = vld [vmem:[%s4 + $0x1c] sm:$0xf]
    %v422 = vunpack.c.l.b16 %v414
    %v423 = vunpack.c.l.b16 %v415
    %v424 = vunpack.c.l.b16 %v416
    %v425 = vunpack.c.l.b16 %v417
    %v426 = vpack.c.b16 %v423, %v422
    %v427 = vpack.c.b16 %v425, %v424
    %428 = vrot.lane.b32.xlu0 %v426, 64
    %v429 = vpop.permute.xlu0 %428
    %430 = vrot.lane.b32.xlu0 %v427, 64
    %v431 = vpop.permute.xlu0 %430
    %434 = vst.msk [vmem:[#allocation4 + $0xa0] sm:$0xff] %vm375, %v429
    %435 = vst.msk [vmem:[#allocation4 + $0xb0] sm:$0xff] %vm375, %v431
    %v436 = vld [vmem:[%s5 + $0x10] sm:$0xf]
    %v437 = vld [vmem:[%s5 + $0x14] sm:$0xf]
    %v438 = vld [vmem:[%s5 + $0x18] sm:$0xf]
    %v439 = vld [vmem:[%s5 + $0x1c] sm:$0xf]
    %v444 = vunpack.c.l.b16 %v436
    %v445 = vunpack.c.l.b16 %v437
    %v446 = vunpack.c.l.b16 %v438
    %v447 = vunpack.c.l.b16 %v439
    %v448 = vpack.c.b16 %v445, %v444
    %v449 = vpack.c.b16 %v447, %v446
    %452 = vst.msk [vmem:[#allocation4 + $0xc8] sm:$0xff] %vm81, %v448
    %453 = vst.msk [vmem:[#allocation4 + $0xd8] sm:$0xff] %vm81, %v449
    %v454 = vld [vmem:[%s3 + $0x20] sm:$0xf]
    %v455 = vld [vmem:[%s3 + $0x24] sm:$0xf]
    %v456 = vld [vmem:[%s3 + $0x28] sm:$0xf]
    %v457 = vld [vmem:[%s3 + $0x2c] sm:$0xf]
    %v462 = vunpack.c.l.b16 %v454
    %v463 = vunpack.c.l.b16 %v455
    %v464 = vunpack.c.l.b16 %v456
    %v465 = vunpack.c.l.b16 %v457
    %v466 = vpack.c.b16 %v463, %v462
    %v467 = vpack.c.b16 %v465, %v464
    %470 = vst.msk [vmem:[#allocation4 + $0x100] sm:$0xff] %vm81, %v466
    %471 = vst.msk [vmem:[#allocation4 + $0x110] sm:$0xff] %vm81, %v467
    %v472 = vld [vmem:[%s4 + $0x20] sm:$0xf]
    %v473 = vld [vmem:[%s4 + $0x24] sm:$0xf]
    %v474 = vld [vmem:[%s4 + $0x28] sm:$0xf]
    %v475 = vld [vmem:[%s4 + $0x2c] sm:$0xf]
    %v480 = vunpack.c.l.b16 %v472
    %v481 = vunpack.c.l.b16 %v473
    %v482 = vunpack.c.l.b16 %v474
    %v483 = vunpack.c.l.b16 %v475
    %v484 = vpack.c.b16 %v481, %v480
    %v485 = vpack.c.b16 %v483, %v482
    %486 = vrot.lane.b32.xlu0 %v484, 64
    %v487 = vpop.permute.xlu0 %486
    %488 = vrot.lane.b32.xlu0 %v485, 64
    %v489 = vpop.permute.xlu0 %488
    %492 = vst.msk [vmem:[#allocation4 + $0x120] sm:$0xff] %vm375, %v487
    %493 = vst.msk [vmem:[#allocation4 + $0x130] sm:$0xff] %vm375, %v489
    %v494 = vld [vmem:[%s5 + $0x20] sm:$0xf]
    %v495 = vld [vmem:[%s5 + $0x24] sm:$0xf]
    %v496 = vld [vmem:[%s5 + $0x28] sm:$0xf]
    %v497 = vld [vmem:[%s5 + $0x2c] sm:$0xf]
    %v502 = vunpack.c.l.b16 %v494
    %v503 = vunpack.c.l.b16 %v495
    %v504 = vunpack.c.l.b16 %v496
    %v505 = vunpack.c.l.b16 %v497
    %v506 = vpack.c.b16 %v503, %v502
    %v507 = vpack.c.b16 %v505, %v504
    %510 = vst.msk [vmem:[#allocation4 + $0x148] sm:$0xff] %vm81, %v506
    %511 = vst.msk [vmem:[#allocation4 + $0x158] sm:$0xff] %vm81, %v507
    %v512 = vld [vmem:[%s3 + $0x30] sm:$0xf]
    %v513 = vld [vmem:[%s3 + $0x34] sm:$0xf]
    %v514 = vld [vmem:[%s3 + $0x38] sm:$0xf]
    %v515 = vld [vmem:[%s3 + $0x3c] sm:$0xf]
    %v520 = vunpack.c.l.b16 %v512
    %v521 = vunpack.c.l.b16 %v513
    %v522 = vunpack.c.l.b16 %v514
    %v523 = vunpack.c.l.b16 %v515
    %v524 = vpack.c.b16 %v521, %v520
    %v525 = vpack.c.b16 %v523, %v522
    %528 = vst.msk [vmem:[#allocation4 + $0x180] sm:$0xff] %vm81, %v524
    %529 = vst.msk [vmem:[#allocation4 + $0x190] sm:$0xff] %vm81, %v525
    %v530 = vld [vmem:[%s4 + $0x30] sm:$0xf]
    %v531 = vld [vmem:[%s4 + $0x34] sm:$0xf]
    %v532 = vld [vmem:[%s4 + $0x38] sm:$0xf]
    %v533 = vld [vmem:[%s4 + $0x3c] sm:$0xf]
    %v538 = vunpack.c.l.b16 %v530
    %v539 = vunpack.c.l.b16 %v531
    %v540 = vunpack.c.l.b16 %v532
    %v541 = vunpack.c.l.b16 %v533
    %v542 = vpack.c.b16 %v539, %v538
    %v543 = vpack.c.b16 %v541, %v540
    %544 = vrot.lane.b32.xlu0 %v542, 64
    %v545 = vpop.permute.xlu0 %544
    %546 = vrot.lane.b32.xlu0 %v543, 64
    %v547 = vpop.permute.xlu0 %546
    %550 = vst.msk [vmem:[#allocation4 + $0x1a0] sm:$0xff] %vm375, %v545
    %551 = vst.msk [vmem:[#allocation4 + $0x1b0] sm:$0xff] %vm375, %v547
    %v552 = vld [vmem:[%s5 + $0x30] sm:$0xf]
    %v553 = vld [vmem:[%s5 + $0x34] sm:$0xf]
    %v554 = vld [vmem:[%s5 + $0x38] sm:$0xf]
    %v555 = vld [vmem:[%s5 + $0x3c] sm:$0xf]
    %v560 = vunpack.c.l.b16 %v552
    %v561 = vunpack.c.l.b16 %v553
    %v562 = vunpack.c.l.b16 %v554
    %v563 = vunpack.c.l.b16 %v555
    %v564 = vpack.c.b16 %v561, %v560
    %v565 = vpack.c.b16 %v563, %v562
    %568 = vst.msk [vmem:[#allocation4 + $0x1c8] sm:$0xff] %vm81, %v564
    %569 = vst.msk [vmem:[#allocation4 + $0x1d8] sm:$0xff] %vm81, %v565
    %v570 = vld [vmem:[%s3 + $0x40] sm:$0xf]
    %v571 = vld [vmem:[%s3 + $0x44] sm:$0xf]
    %v572 = vld [vmem:[%s3 + $0x48] sm:$0xf]
    %v573 = vld [vmem:[%s3 + $0x4c] sm:$0xf]
    %v578 = vunpack.c.l.b16 %v570
    %v579 = vunpack.c.l.b16 %v571
    %v580 = vunpack.c.l.b16 %v572
    %v581 = vunpack.c.l.b16 %v573
    %v582 = vpack.c.b16 %v579, %v578
    %v583 = vpack.c.b16 %v581, %v580
    %586 = vst.msk [vmem:[#allocation4 + $0x200] sm:$0xff] %vm81, %v582
    %587 = vst.msk [vmem:[#allocation4 + $0x210] sm:$0xff] %vm81, %v583
    %v588 = vld [vmem:[%s4 + $0x40] sm:$0xf]
    %v589 = vld [vmem:[%s4 + $0x44] sm:$0xf]
    %v590 = vld [vmem:[%s4 + $0x48] sm:$0xf]
    %v591 = vld [vmem:[%s4 + $0x4c] sm:$0xf]
    %v596 = vunpack.c.l.b16 %v588
    %v597 = vunpack.c.l.b16 %v589
    %v598 = vunpack.c.l.b16 %v590
    %v599 = vunpack.c.l.b16 %v591
    %v600 = vpack.c.b16 %v597, %v596
    %v601 = vpack.c.b16 %v599, %v598
    %602 = vrot.lane.b32.xlu0 %v600, 64
    %v603 = vpop.permute.xlu0 %602
    %604 = vrot.lane.b32.xlu0 %v601, 64
    %v605 = vpop.permute.xlu0 %604
    %608 = vst.msk [vmem:[#allocation4 + $0x220] sm:$0xff] %vm375, %v603
    %609 = vst.msk [vmem:[#allocation4 + $0x230] sm:$0xff] %vm375, %v605
    %v610 = vld [vmem:[%s5 + $0x40] sm:$0xf]
    %v611 = vld [vmem:[%s5 + $0x44] sm:$0xf]
    %v612 = vld [vmem:[%s5 + $0x48] sm:$0xf]
    %v613 = vld [vmem:[%s5 + $0x4c] sm:$0xf]
    %v618 = vunpack.c.l.b16 %v610
    %v619 = vunpack.c.l.b16 %v611
    %v620 = vunpack.c.l.b16 %v612
    %v621 = vunpack.c.l.b16 %v613
    %v622 = vpack.c.b16 %v619, %v618
    %v623 = vpack.c.b16 %v621, %v620
    %626 = vst.msk [vmem:[#allocation4 + $0x248] sm:$0xff] %vm81, %v622
    %627 = vst.msk [vmem:[#allocation4 + $0x258] sm:$0xff] %vm81, %v623
    %v628 = vld [vmem:[%s3 + $0x50] sm:$0xf]
    %v629 = vld [vmem:[%s3 + $0x54] sm:$0xf]
    %v630 = vld [vmem:[%s3 + $0x58] sm:$0xf]
    %v631 = vld [vmem:[%s3 + $0x5c] sm:$0xf]
    %v636 = vunpack.c.l.b16 %v628
    %v637 = vunpack.c.l.b16 %v629
    %v638 = vunpack.c.l.b16 %v630
    %v639 = vunpack.c.l.b16 %v631
    %v640 = vpack.c.b16 %v637, %v636
    %v641 = vpack.c.b16 %v639, %v638
    %644 = vst.msk [vmem:[#allocation4 + $0x280] sm:$0xff] %vm81, %v640
    %645 = vst.msk [vmem:[#allocation4 + $0x290] sm:$0xff] %vm81, %v641
    %v646 = vld [vmem:[%s4 + $0x50] sm:$0xf]
    %v647 = vld [vmem:[%s4 + $0x54] sm:$0xf]
    %v648 = vld [vmem:[%s4 + $0x58] sm:$0xf]
    %v649 = vld [vmem:[%s4 + $0x5c] sm:$0xf]
    %v654 = vunpack.c.l.b16 %v646
    %v655 = vunpack.c.l.b16 %v647
    %v656 = vunpack.c.l.b16 %v648
    %v657 = vunpack.c.l.b16 %v649
    %v658 = vpack.c.b16 %v655, %v654
    %v659 = vpack.c.b16 %v657, %v656
    %660 = vrot.lane.b32.xlu0 %v658, 64
    %v661 = vpop.permute.xlu0 %660
    %662 = vrot.lane.b32.xlu0 %v659, 64
    %v663 = vpop.permute.xlu0 %662
    %666 = vst.msk [vmem:[#allocation4 + $0x2a0] sm:$0xff] %vm375, %v661
    %667 = vst.msk [vmem:[#allocation4 + $0x2b0] sm:$0xff] %vm375, %v663
    %v668 = vld [vmem:[%s5 + $0x50] sm:$0xf]
    %v669 = vld [vmem:[%s5 + $0x54] sm:$0xf]
    %v670 = vld [vmem:[%s5 + $0x58] sm:$0xf]
    %v671 = vld [vmem:[%s5 + $0x5c] sm:$0xf]
    %v676 = vunpack.c.l.b16 %v668
    %v677 = vunpack.c.l.b16 %v669
    %v678 = vunpack.c.l.b16 %v670
    %v679 = vunpack.c.l.b16 %v671
    %v680 = vpack.c.b16 %v677, %v676
    %v681 = vpack.c.b16 %v679, %v678
    %684 = vst.msk [vmem:[#allocation4 + $0x2c8] sm:$0xff] %vm81, %v680
    %685 = vst.msk [vmem:[#allocation4 + $0x2d8] sm:$0xff] %vm81, %v681
    %v686 = vld [vmem:[%s3 + $0x60] sm:$0xf]
    %v687 = vld [vmem:[%s3 + $0x64] sm:$0xf]
    %v688 = vld [vmem:[%s3 + $0x68] sm:$0xf]
    %v689 = vld [vmem:[%s3 + $0x6c] sm:$0xf]
    %v694 = vunpack.c.l.b16 %v686
    %v695 = vunpack.c.l.b16 %v687
    %v696 = vunpack.c.l.b16 %v688
    %v697 = vunpack.c.l.b16 %v689
    %v698 = vpack.c.b16 %v695, %v694
    %v699 = vpack.c.b16 %v697, %v696
    %702 = vst.msk [vmem:[#allocation4 + $0x300] sm:$0xff] %vm81, %v698
    %703 = vst.msk [vmem:[#allocation4 + $0x310] sm:$0xff] %vm81, %v699
    %v704 = vld [vmem:[%s4 + $0x60] sm:$0xf]
    %v705 = vld [vmem:[%s4 + $0x64] sm:$0xf]
    %v706 = vld [vmem:[%s4 + $0x68] sm:$0xf]
    %v707 = vld [vmem:[%s4 + $0x6c] sm:$0xf]
    %v712 = vunpack.c.l.b16 %v704
    %v713 = vunpack.c.l.b16 %v705
    %v714 = vunpack.c.l.b16 %v706
    %v715 = vunpack.c.l.b16 %v707
    %v716 = vpack.c.b16 %v713, %v712
    %v717 = vpack.c.b16 %v715, %v714
    %718 = vrot.lane.b32.xlu0 %v716, 64
    %v719 = vpop.permute.xlu0 %718
    %720 = vrot.lane.b32.xlu0 %v717, 64
    %v721 = vpop.permute.xlu0 %720
    %724 = vst.msk [vmem:[#allocation4 + $0x320] sm:$0xff] %vm375, %v719
    %725 = vst.msk [vmem:[#allocation4 + $0x330] sm:$0xff] %vm375, %v721
    %v726 = vld [vmem:[%s5 + $0x60] sm:$0xf]
    %v727 = vld [vmem:[%s5 + $0x64] sm:$0xf]
    %v728 = vld [vmem:[%s5 + $0x68] sm:$0xf]
    %v729 = vld [vmem:[%s5 + $0x6c] sm:$0xf]
    %v734 = vunpack.c.l.b16 %v726
    %v735 = vunpack.c.l.b16 %v727
    %v736 = vunpack.c.l.b16 %v728
    %v737 = vunpack.c.l.b16 %v729
    %v738 = vpack.c.b16 %v735, %v734
    %v739 = vpack.c.b16 %v737, %v736
    %742 = vst.msk [vmem:[#allocation4 + $0x348] sm:$0xff] %vm81, %v738
    %743 = vst.msk [vmem:[#allocation4 + $0x358] sm:$0xff] %vm81, %v739
    %v744 = vld [vmem:[%s3 + $0x70] sm:$0xf]
    %v745 = vld [vmem:[%s3 + $0x74] sm:$0xf]
    %v746 = vld [vmem:[%s3 + $0x78] sm:$0xf]
    %v747 = vld [vmem:[%s3 + $0x7c] sm:$0xf]
    %v752 = vunpack.c.l.b16 %v744
    %v753 = vunpack.c.l.b16 %v745
    %v754 = vunpack.c.l.b16 %v746
    %v755 = vunpack.c.l.b16 %v747
    %v756 = vpack.c.b16 %v753, %v752
    %v757 = vpack.c.b16 %v755, %v754
    %760 = vst.msk [vmem:[#allocation4 + $0x380] sm:$0xff] %vm81, %v756
    %761 = vst.msk [vmem:[#allocation4 + $0x390] sm:$0xff] %vm81, %v757
    %v762 = vld [vmem:[%s4 + $0x70] sm:$0xf]
    %v763 = vld [vmem:[%s4 + $0x74] sm:$0xf]
    %v764 = vld [vmem:[%s4 + $0x78] sm:$0xf]
    %v765 = vld [vmem:[%s4 + $0x7c] sm:$0xf]
    %v770 = vunpack.c.l.b16 %v762
    %v771 = vunpack.c.l.b16 %v763
    %v772 = vunpack.c.l.b16 %v764
    %v773 = vunpack.c.l.b16 %v765
    %v774 = vpack.c.b16 %v771, %v770
    %v775 = vpack.c.b16 %v773, %v772
    %776 = vrot.lane.b32.xlu0 %v774, 64
    %v777 = vpop.permute.xlu0 %776
    %778 = vrot.lane.b32.xlu0 %v775, 64
    %v779 = vpop.permute.xlu0 %778
    %782 = vst.msk [vmem:[#allocation4 + $0x3a0] sm:$0xff] %vm375, %v777
    %783 = vst.msk [vmem:[#allocation4 + $0x3b0] sm:$0xff] %vm375, %v779
    %v784 = vld [vmem:[%s5 + $0x70] sm:$0xf]
    %v785 = vld [vmem:[%s5 + $0x74] sm:$0xf]
    %v786 = vld [vmem:[%s5 + $0x78] sm:$0xf]
    %v787 = vld [vmem:[%s5 + $0x7c] sm:$0xf]
    %v792 = vunpack.c.l.b16 %v784
    %v793 = vunpack.c.l.b16 %v785
    %v794 = vunpack.c.l.b16 %v786
    %v795 = vunpack.c.l.b16 %v787
    %v796 = vpack.c.b16 %v793, %v792
    %v797 = vpack.c.b16 %v795, %v794
    %800 = vst.msk [vmem:[#allocation4 + $0x3c8] sm:$0xff] %vm81, %v796
    %801 = vst.msk [vmem:[#allocation4 + $0x3d8] sm:$0xff] %vm81, %v797
    %v802 = vld [vmem:[%s3 + $0x80] sm:$0xf]
    %v803 = vld [vmem:[%s3 + $0x84] sm:$0xf]
    %v804 = vld [vmem:[%s3 + $0x88] sm:$0xf]
    %v805 = vld [vmem:[%s3 + $0x8c] sm:$0xf]
    %v810 = vunpack.c.l.b16 %v802
    %v811 = vunpack.c.l.b16 %v803
    %v812 = vunpack.c.l.b16 %v804
    %v813 = vunpack.c.l.b16 %v805
    %v814 = vpack.c.b16 %v811, %v810
    %v815 = vpack.c.b16 %v813, %v812
    %818 = vst.msk [vmem:[#allocation4 + $0x400] sm:$0xff] %vm81, %v814
    %819 = vst.msk [vmem:[#allocation4 + $0x410] sm:$0xff] %vm81, %v815
    %v820 = vld [vmem:[%s4 + $0x80] sm:$0xf]
    %v821 = vld [vmem:[%s4 + $0x84] sm:$0xf]
    %v822 = vld [vmem:[%s4 + $0x88] sm:$0xf]
    %v823 = vld [vmem:[%s4 + $0x8c] sm:$0xf]
    %v828 = vunpack.c.l.b16 %v820
    %v829 = vunpack.c.l.b16 %v821
    %v830 = vunpack.c.l.b16 %v822
    %v831 = vunpack.c.l.b16 %v823
    %v832 = vpack.c.b16 %v829, %v828
    %v833 = vpack.c.b16 %v831, %v830
    %834 = vrot.lane.b32.xlu0 %v832, 64
    %v835 = vpop.permute.xlu0 %834
    %836 = vrot.lane.b32.xlu0 %v833, 64
    %v837 = vpop.permute.xlu0 %836
    %840 = vst.msk [vmem:[#allocation4 + $0x420] sm:$0xff] %vm375, %v835
    %841 = vst.msk [vmem:[#allocation4 + $0x430] sm:$0xff] %vm375, %v837
    %v842 = vld [vmem:[%s5 + $0x80] sm:$0xf]
    %v843 = vld [vmem:[%s5 + $0x84] sm:$0xf]
    %v844 = vld [vmem:[%s5 + $0x88] sm:$0xf]
    %v845 = vld [vmem:[%s5 + $0x8c] sm:$0xf]
    %v850 = vunpack.c.l.b16 %v842
    %v851 = vunpack.c.l.b16 %v843
    %v852 = vunpack.c.l.b16 %v844
    %v853 = vunpack.c.l.b16 %v845
    %v854 = vpack.c.b16 %v851, %v850
    %v855 = vpack.c.b16 %v853, %v852
    %858 = vst.msk [vmem:[#allocation4 + $0x448] sm:$0xff] %vm81, %v854
    %859 = vst.msk [vmem:[#allocation4 + $0x458] sm:$0xff] %vm81, %v855
    %v860 = vld [vmem:[%s3 + $0x90] sm:$0xf]
    %v861 = vld [vmem:[%s3 + $0x94] sm:$0xf]
    %v862 = vld [vmem:[%s3 + $0x98] sm:$0xf]
    %v863 = vld [vmem:[%s3 + $0x9c] sm:$0xf]
    %v868 = vunpack.c.l.b16 %v860
    %v869 = vunpack.c.l.b16 %v861
    %v870 = vunpack.c.l.b16 %v862
    %v871 = vunpack.c.l.b16 %v863
    %v872 = vpack.c.b16 %v869, %v868
    %v873 = vpack.c.b16 %v871, %v870
    %876 = vst.msk [vmem:[#allocation4 + $0x480] sm:$0xff] %vm81, %v872
    %877 = vst.msk [vmem:[#allocation4 + $0x490] sm:$0xff] %vm81, %v873
    %v878 = vld [vmem:[%s4 + $0x90] sm:$0xf]
    %v879 = vld [vmem:[%s4 + $0x94] sm:$0xf]
    %v880 = vld [vmem:[%s4 + $0x98] sm:$0xf]
    %v881 = vld [vmem:[%s4 + $0x9c] sm:$0xf]
    %v886 = vunpack.c.l.b16 %v878
    %v887 = vunpack.c.l.b16 %v879
    %v888 = vunpack.c.l.b16 %v880
    %v889 = vunpack.c.l.b16 %v881
    %v890 = vpack.c.b16 %v887, %v886
    %v891 = vpack.c.b16 %v889, %v888
    %892 = vrot.lane.b32.xlu0 %v890, 64
    %v893 = vpop.permute.xlu0 %892
    %894 = vrot.lane.b32.xlu0 %v891, 64
    %v895 = vpop.permute.xlu0 %894
    %898 = vst.msk [vmem:[#allocation4 + $0x4a0] sm:$0xff] %vm375, %v893
    %899 = vst.msk [vmem:[#allocation4 + $0x4b0] sm:$0xff] %vm375, %v895
    %v900 = vld [vmem:[%s5 + $0x90] sm:$0xf]
    %v901 = vld [vmem:[%s5 + $0x94] sm:$0xf]
    %v902 = vld [vmem:[%s5 + $0x98] sm:$0xf]
    %v903 = vld [vmem:[%s5 + $0x9c] sm:$0xf]
    %v908 = vunpack.c.l.b16 %v900
    %v909 = vunpack.c.l.b16 %v901
    %v910 = vunpack.c.l.b16 %v902
    %v911 = vunpack.c.l.b16 %v903
    %v912 = vpack.c.b16 %v909, %v908
    %v913 = vpack.c.b16 %v911, %v910
    %916 = vst.msk [vmem:[#allocation4 + $0x4c8] sm:$0xff] %vm81, %v912
    %917 = vst.msk [vmem:[#allocation4 + $0x4d8] sm:$0xff] %vm81, %v913
    %v918 = vld [vmem:[%s3 + $0xa0] sm:$0xf]
    %v919 = vld [vmem:[%s3 + $0xa4] sm:$0xf]
    %v920 = vld [vmem:[%s3 + $0xa8] sm:$0xf]
    %v921 = vld [vmem:[%s3 + $0xac] sm:$0xf]
    %v926 = vunpack.c.l.b16 %v918
    %v927 = vunpack.c.l.b16 %v919
    %v928 = vunpack.c.l.b16 %v920
    %v929 = vunpack.c.l.b16 %v921
    %v930 = vpack.c.b16 %v927, %v926
    %v931 = vpack.c.b16 %v929, %v928
    %934 = vst.msk [vmem:[#allocation4 + $0x500] sm:$0xff] %vm81, %v930
    %935 = vst.msk [vmem:[#allocation4 + $0x510] sm:$0xff] %vm81, %v931
    %v936 = vld [vmem:[%s4 + $0xa0] sm:$0xf]
    %v937 = vld [vmem:[%s4 + $0xa4] sm:$0xf]
    %v938 = vld [vmem:[%s4 + $0xa8] sm:$0xf]
    %v939 = vld [vmem:[%s4 + $0xac] sm:$0xf]
    %v944 = vunpack.c.l.b16 %v936
    %v945 = vunpack.c.l.b16 %v937
    %v946 = vunpack.c.l.b16 %v938
    %v947 = vunpack.c.l.b16 %v939
    %v948 = vpack.c.b16 %v945, %v944
    %v949 = vpack.c.b16 %v947, %v946
    %950 = vrot.lane.b32.xlu0 %v948, 64
    %v951 = vpop.permute.xlu0 %950
    %952 = vrot.lane.b32.xlu0 %v949, 64
    %v953 = vpop.permute.xlu0 %952
    %956 = vst.msk [vmem:[#allocation4 + $0x520] sm:$0xff] %vm375, %v951
    %957 = vst.msk [vmem:[#allocation4 + $0x530] sm:$0xff] %vm375, %v953
    %v958 = vld [vmem:[%s5 + $0xa0] sm:$0xf]
    %v959 = vld [vmem:[%s5 + $0xa4] sm:$0xf]
    %v960 = vld [vmem:[%s5 + $0xa8] sm:$0xf]
    %v961 = vld [vmem:[%s5 + $0xac] sm:$0xf]
    %v966 = vunpack.c.l.b16 %v958
    %v967 = vunpack.c.l.b16 %v959
    %v968 = vunpack.c.l.b16 %v960
    %v969 = vunpack.c.l.b16 %v961
    %v970 = vpack.c.b16 %v967, %v966
    %v971 = vpack.c.b16 %v969, %v968
    %974 = vst.msk [vmem:[#allocation4 + $0x548] sm:$0xff] %vm81, %v970
    %975 = vst.msk [vmem:[#allocation4 + $0x558] sm:$0xff] %vm81, %v971
    %v976 = vld [vmem:[%s3 + $0xb0] sm:$0xf]
    %v977 = vld [vmem:[%s3 + $0xb4] sm:$0xf]
    %v978 = vld [vmem:[%s3 + $0xb8] sm:$0xf]
    %v979 = vld [vmem:[%s3 + $0xbc] sm:$0xf]
    %v984 = vunpack.c.l.b16 %v976
    %v985 = vunpack.c.l.b16 %v977
    %v986 = vunpack.c.l.b16 %v978
    %v987 = vunpack.c.l.b16 %v979
    %v988 = vpack.c.b16 %v985, %v984
    %v989 = vpack.c.b16 %v987, %v986
    %992 = vst.msk [vmem:[#allocation4 + $0x580] sm:$0xff] %vm81, %v988
    %993 = vst.msk [vmem:[#allocation4 + $0x590] sm:$0xff] %vm81, %v989
    %v994 = vld [vmem:[%s4 + $0xb0] sm:$0xf]
    %v995 = vld [vmem:[%s4 + $0xb4] sm:$0xf]
    %v996 = vld [vmem:[%s4 + $0xb8] sm:$0xf]
    %v997 = vld [vmem:[%s4 + $0xbc] sm:$0xf]
    %v1002 = vunpack.c.l.b16 %v994
    %v1003 = vunpack.c.l.b16 %v995
    %v1004 = vunpack.c.l.b16 %v996
    %v1005 = vunpack.c.l.b16 %v997
    %v1006 = vpack.c.b16 %v1003, %v1002
    %v1007 = vpack.c.b16 %v1005, %v1004
    %1008 = vrot.lane.b32.xlu0 %v1006, 64
    %v1009 = vpop.permute.xlu0 %1008
    %1010 = vrot.lane.b32.xlu0 %v1007, 64
    %v1011 = vpop.permute.xlu0 %1010
    %1014 = vst.msk [vmem:[#allocation4 + $0x5a0] sm:$0xff] %vm375, %v1009
    %1015 = vst.msk [vmem:[#allocation4 + $0x5b0] sm:$0xff] %vm375, %v1011
    %v1016 = vld [vmem:[%s5 + $0xb0] sm:$0xf]
    %v1017 = vld [vmem:[%s5 + $0xb4] sm:$0xf]
    %v1018 = vld [vmem:[%s5 + $0xb8] sm:$0xf]
    %v1019 = vld [vmem:[%s5 + $0xbc] sm:$0xf]
    %v1024 = vunpack.c.l.b16 %v1016
    %v1025 = vunpack.c.l.b16 %v1017
    %v1026 = vunpack.c.l.b16 %v1018
    %v1027 = vunpack.c.l.b16 %v1019
    %v1028 = vpack.c.b16 %v1025, %v1024
    %v1029 = vpack.c.b16 %v1027, %v1026
    %1032 = vst.msk [vmem:[#allocation4 + $0x5c8] sm:$0xff] %vm81, %v1028
    %1033 = vst.msk [vmem:[#allocation4 + $0x5d8] sm:$0xff] %vm81, %v1029
    %v1034 = vld [vmem:[%s3 + $0xc0] sm:$0xf]
    %v1035 = vld [vmem:[%s3 + $0xc4] sm:$0xf]
    %v1036 = vld [vmem:[%s3 + $0xc8] sm:$0xf]
    %v1037 = vld [vmem:[%s3 + $0xcc] sm:$0xf]
    %v1042 = vunpack.c.l.b16 %v1034
    %v1043 = vunpack.c.l.b16 %v1035
    %v1044 = vunpack.c.l.b16 %v1036
    %v1045 = vunpack.c.l.b16 %v1037
    %v1046 = vpack.c.b16 %v1043, %v1042
    %v1047 = vpack.c.b16 %v1045, %v1044
    %1050 = vst.msk [vmem:[#allocation4 + $0x600] sm:$0xff] %vm81, %v1046
    %1051 = vst.msk [vmem:[#allocation4 + $0x610] sm:$0xff] %vm81, %v1047
    %v1052 = vld [vmem:[%s4 + $0xc0] sm:$0xf]
    %v1053 = vld [vmem:[%s4 + $0xc4] sm:$0xf]
    %v1054 = vld [vmem:[%s4 + $0xc8] sm:$0xf]
    %v1055 = vld [vmem:[%s4 + $0xcc] sm:$0xf]
    %v1060 = vunpack.c.l.b16 %v1052
    %v1061 = vunpack.c.l.b16 %v1053
    %v1062 = vunpack.c.l.b16 %v1054
    %v1063 = vunpack.c.l.b16 %v1055
    %v1064 = vpack.c.b16 %v1061, %v1060
    %v1065 = vpack.c.b16 %v1063, %v1062
    %1066 = vrot.lane.b32.xlu0 %v1064, 64
    %v1067 = vpop.permute.xlu0 %1066
    %1068 = vrot.lane.b32.xlu0 %v1065, 64
    %v1069 = vpop.permute.xlu0 %1068
    %1072 = vst.msk [vmem:[#allocation4 + $0x620] sm:$0xff] %vm375, %v1067
    %1073 = vst.msk [vmem:[#allocation4 + $0x630] sm:$0xff] %vm375, %v1069
    %v1074 = vld [vmem:[%s5 + $0xc0] sm:$0xf]
    %v1075 = vld [vmem:[%s5 + $0xc4] sm:$0xf]
    %v1076 = vld [vmem:[%s5 + $0xc8] sm:$0xf]
    %v1077 = vld [vmem:[%s5 + $0xcc] sm:$0xf]
    %v1082 = vunpack.c.l.b16 %v1074
    %v1083 = vunpack.c.l.b16 %v1075
    %v1084 = vunpack.c.l.b16 %v1076
    %v1085 = vunpack.c.l.b16 %v1077
    %v1086 = vpack.c.b16 %v1083, %v1082
    %v1087 = vpack.c.b16 %v1085, %v1084
    %1090 = vst.msk [vmem:[#allocation4 + $0x648] sm:$0xff] %vm81, %v1086
    %1091 = vst.msk [vmem:[#allocation4 + $0x658] sm:$0xff] %vm81, %v1087
    %v1092 = vld [vmem:[%s3 + $0xd0] sm:$0xf]
    %v1093 = vld [vmem:[%s3 + $0xd4] sm:$0xf]
    %v1094 = vld [vmem:[%s3 + $0xd8] sm:$0xf]
    %v1095 = vld [vmem:[%s3 + $0xdc] sm:$0xf]
    %v1100 = vunpack.c.l.b16 %v1092
    %v1101 = vunpack.c.l.b16 %v1093
    %v1102 = vunpack.c.l.b16 %v1094
    %v1103 = vunpack.c.l.b16 %v1095
    %v1104 = vpack.c.b16 %v1101, %v1100
    %v1105 = vpack.c.b16 %v1103, %v1102
    %1108 = vst.msk [vmem:[#allocation4 + $0x680] sm:$0xff] %vm81, %v1104
    %1109 = vst.msk [vmem:[#allocation4 + $0x690] sm:$0xff] %vm81, %v1105
    %v1110 = vld [vmem:[%s4 + $0xd0] sm:$0xf]
    %v1111 = vld [vmem:[%s4 + $0xd4] sm:$0xf]
    %v1112 = vld [vmem:[%s4 + $0xd8] sm:$0xf]
    %v1113 = vld [vmem:[%s4 + $0xdc] sm:$0xf]
    %v1118 = vunpack.c.l.b16 %v1110
    %v1119 = vunpack.c.l.b16 %v1111
    %v1120 = vunpack.c.l.b16 %v1112
    %v1121 = vunpack.c.l.b16 %v1113
    %v1122 = vpack.c.b16 %v1119, %v1118
    %v1123 = vpack.c.b16 %v1121, %v1120
    %1124 = vrot.lane.b32.xlu0 %v1122, 64
    %v1125 = vpop.permute.xlu0 %1124
    %1126 = vrot.lane.b32.xlu0 %v1123, 64
    %v1127 = vpop.permute.xlu0 %1126
    %1130 = vst.msk [vmem:[#allocation4 + $0x6a0] sm:$0xff] %vm375, %v1125
    %1131 = vst.msk [vmem:[#allocation4 + $0x6b0] sm:$0xff] %vm375, %v1127
    %v1132 = vld [vmem:[%s5 + $0xd0] sm:$0xf]
    %v1133 = vld [vmem:[%s5 + $0xd4] sm:$0xf]
    %v1134 = vld [vmem:[%s5 + $0xd8] sm:$0xf]
    %v1135 = vld [vmem:[%s5 + $0xdc] sm:$0xf]
    %v1140 = vunpack.c.l.b16 %v1132
    %v1141 = vunpack.c.l.b16 %v1133
    %v1142 = vunpack.c.l.b16 %v1134
    %v1143 = vunpack.c.l.b16 %v1135
    %v1144 = vpack.c.b16 %v1141, %v1140
    %v1145 = vpack.c.b16 %v1143, %v1142
    %1148 = vst.msk [vmem:[#allocation4 + $0x6c8] sm:$0xff] %vm81, %v1144
    %1149 = vst.msk [vmem:[#allocation4 + $0x6d8] sm:$0xff] %vm81, %v1145
    %v1150 = vld [vmem:[%s3 + $0xe0] sm:$0xf]
    %v1151 = vld [vmem:[%s3 + $0xe4] sm:$0xf]
    %v1152 = vld [vmem:[%s3 + $0xe8] sm:$0xf]
    %v1153 = vld [vmem:[%s3 + $0xec] sm:$0xf]
    %v1158 = vunpack.c.l.b16 %v1150
    %v1159 = vunpack.c.l.b16 %v1151
    %v1160 = vunpack.c.l.b16 %v1152
    %v1161 = vunpack.c.l.b16 %v1153
    %v1162 = vpack.c.b16 %v1159, %v1158
    %v1163 = vpack.c.b16 %v1161, %v1160
    %1166 = vst.msk [vmem:[#allocation4 + $0x700] sm:$0xff] %vm81, %v1162
    %1167 = vst.msk [vmem:[#allocation4 + $0x710] sm:$0xff] %vm81, %v1163
    %v1168 = vld [vmem:[%s4 + $0xe0] sm:$0xf]
    %v1169 = vld [vmem:[%s4 + $0xe4] sm:$0xf]
    %v1170 = vld [vmem:[%s4 + $0xe8] sm:$0xf]
    %v1171 = vld [vmem:[%s4 + $0xec] sm:$0xf]
    %v1176 = vunpack.c.l.b16 %v1168
    %v1177 = vunpack.c.l.b16 %v1169
    %v1178 = vunpack.c.l.b16 %v1170
    %v1179 = vunpack.c.l.b16 %v1171
    %v1180 = vpack.c.b16 %v1177, %v1176
    %v1181 = vpack.c.b16 %v1179, %v1178
    %1182 = vrot.lane.b32.xlu0 %v1180, 64
    %v1183 = vpop.permute.xlu0 %1182
    %1184 = vrot.lane.b32.xlu0 %v1181, 64
    %v1185 = vpop.permute.xlu0 %1184
    %1188 = vst.msk [vmem:[#allocation4 + $0x720] sm:$0xff] %vm375, %v1183
    %1189 = vst.msk [vmem:[#allocation4 + $0x730] sm:$0xff] %vm375, %v1185
    %v1190 = vld [vmem:[%s5 + $0xe0] sm:$0xf]
    %v1191 = vld [vmem:[%s5 + $0xe4] sm:$0xf]
    %v1192 = vld [vmem:[%s5 + $0xe8] sm:$0xf]
    %v1193 = vld [vmem:[%s5 + $0xec] sm:$0xf]
    %v1198 = vunpack.c.l.b16 %v1190
    %v1199 = vunpack.c.l.b16 %v1191
    %v1200 = vunpack.c.l.b16 %v1192
    %v1201 = vunpack.c.l.b16 %v1193
    %v1202 = vpack.c.b16 %v1199, %v1198
    %v1203 = vpack.c.b16 %v1201, %v1200
    %1206 = vst.msk [vmem:[#allocation4 + $0x748] sm:$0xff] %vm81, %v1202
    %1207 = vst.msk [vmem:[#allocation4 + $0x758] sm:$0xff] %vm81, %v1203
    %v1208 = vld [vmem:[%s3 + $0xf0] sm:$0xf]
    %v1209 = vld [vmem:[%s3 + $0xf4] sm:$0xf]
    %v1210 = vld [vmem:[%s3 + $0xf8] sm:$0xf]
    %v1211 = vld [vmem:[%s3 + $0xfc] sm:$0xf]
    %v1216 = vunpack.c.l.b16 %v1208
    %v1217 = vunpack.c.l.b16 %v1209
    %v1218 = vunpack.c.l.b16 %v1210
    %v1219 = vunpack.c.l.b16 %v1211
    %v1220 = vpack.c.b16 %v1217, %v1216
    %v1221 = vpack.c.b16 %v1219, %v1218
    %1224 = vst.msk [vmem:[#allocation4 + $0x780] sm:$0xff] %vm81, %v1220
    %1225 = vst.msk [vmem:[#allocation4 + $0x790] sm:$0xff] %vm81, %v1221
    %v1226 = vld [vmem:[%s4 + $0xf0] sm:$0xf]
    %v1227 = vld [vmem:[%s4 + $0xf4] sm:$0xf]
    %v1228 = vld [vmem:[%s4 + $0xf8] sm:$0xf]
    %v1229 = vld [vmem:[%s4 + $0xfc] sm:$0xf]
    %v1234 = vunpack.c.l.b16 %v1226
    %v1235 = vunpack.c.l.b16 %v1227
    %v1236 = vunpack.c.l.b16 %v1228
    %v1237 = vunpack.c.l.b16 %v1229
    %v1238 = vpack.c.b16 %v1235, %v1234
    %v1239 = vpack.c.b16 %v1237, %v1236
    %1240 = vrot.lane.b32.xlu0 %v1238, 64
    %v1241 = vpop.permute.xlu0 %1240
    %1242 = vrot.lane.b32.xlu0 %v1239, 64
    %v1243 = vpop.permute.xlu0 %1242
    %1246 = vst.msk [vmem:[#allocation4 + $0x7a0] sm:$0xff] %vm375, %v1241
    %1247 = vst.msk [vmem:[#allocation4 + $0x7b0] sm:$0xff] %vm375, %v1243
    %v1248 = vld [vmem:[%s5 + $0xf0] sm:$0xf]
    %v1249 = vld [vmem:[%s5 + $0xf4] sm:$0xf]
    %v1250 = vld [vmem:[%s5 + $0xf8] sm:$0xf]
    %v1251 = vld [vmem:[%s5 + $0xfc] sm:$0xf]
    %v1256 = vunpack.c.l.b16 %v1248
    %v1257 = vunpack.c.l.b16 %v1249
    %v1258 = vunpack.c.l.b16 %v1250
    %v1259 = vunpack.c.l.b16 %v1251
    %v1260 = vpack.c.b16 %v1257, %v1256
    %v1261 = vpack.c.b16 %v1259, %v1258
    %1264 = vst.msk [vmem:[#allocation4 + $0x7c8] sm:$0xff] %vm81, %v1260
    %1265 = vst.msk [vmem:[#allocation4 + $0x7d8] sm:$0xff] %vm81, %v1261
    %1266 = vst [vmem:[#allocation7] sm:$0xff] 0
    %1267 = vst [vmem:[#allocation7 + $0x8] sm:$0xff] 0
    %1268 = vst [vmem:[#allocation7 + $0x10] sm:$0xff] 0
    %1269 = vst [vmem:[#allocation7 + $0x18] sm:$0xff] 0
    %1270 = vst [vmem:[#allocation7 + $0x20] sm:$0xff] 0
    %1271 = vst [vmem:[#allocation7 + $0x28] sm:$0xff] 0
    %1272 = vst [vmem:[#allocation7 + $0x30] sm:$0xff] 0
    %1273 = vst [vmem:[#allocation7 + $0x38] sm:$0xff] 0
    %1274 = vst [vmem:[#allocation7 + $0x40] sm:$0xff] 0
    %1275 = vst [vmem:[#allocation7 + $0x48] sm:$0xff] 0
    %1276 = vst [vmem:[#allocation7 + $0x50] sm:$0xff] 0
    %1277 = vst [vmem:[#allocation7 + $0x58] sm:$0xff] 0
    %1278 = vst [vmem:[#allocation7 + $0x60] sm:$0xff] 0
    %1279 = vst [vmem:[#allocation7 + $0x68] sm:$0xff] 0
    %1280 = vst [vmem:[#allocation7 + $0x70] sm:$0xff] 0
    %1281 = vst [vmem:[#allocation7 + $0x78] sm:$0xff] 0
    %1282 = vst [vmem:[#allocation7 + $0x80] sm:$0xff] 0
    %1283 = vst [vmem:[#allocation7 + $0x88] sm:$0xff] 0
    %1284 = vst [vmem:[#allocation7 + $0x90] sm:$0xff] 0
    %1285 = vst [vmem:[#allocation7 + $0x98] sm:$0xff] 0
    %1286 = vst [vmem:[#allocation7 + $0xa0] sm:$0xff] 0
    %1287 = vst [vmem:[#allocation7 + $0xa8] sm:$0xff] 0
    %1288 = vst [vmem:[#allocation7 + $0xb0] sm:$0xff] 0
    %1289 = vst [vmem:[#allocation7 + $0xb8] sm:$0xff] 0
    %1290 = vst [vmem:[#allocation7 + $0xc0] sm:$0xff] 0
    %1291 = vst [vmem:[#allocation7 + $0xc8] sm:$0xff] 0
    %1292 = vst [vmem:[#allocation7 + $0xd0] sm:$0xff] 0
    %1293 = vst [vmem:[#allocation7 + $0xd8] sm:$0xff] 0
    %1294 = vst [vmem:[#allocation7 + $0xe0] sm:$0xff] 0
    %1295 = vst [vmem:[#allocation7 + $0xe8] sm:$0xff] 0
    %1296 = vst [vmem:[#allocation7 + $0xf0] sm:$0xff] 0
    %1297 = vst [vmem:[#allocation7 + $0xf8] sm:$0xff] 0
    %1298 = vst [vmem:[#allocation7 + $0x100] sm:$0xff] 0
    %1299 = vst [vmem:[#allocation7 + $0x108] sm:$0xff] 0
    %1300 = vst [vmem:[#allocation7 + $0x110] sm:$0xff] 0
    %1301 = vst [vmem:[#allocation7 + $0x118] sm:$0xff] 0
    %1302 = vst [vmem:[#allocation7 + $0x120] sm:$0xff] 0
    %1303 = vst [vmem:[#allocation7 + $0x128] sm:$0xff] 0
    %1304 = vst [vmem:[#allocation7 + $0x130] sm:$0xff] 0
    %1305 = vst [vmem:[#allocation7 + $0x138] sm:$0xff] 0
    %1306 = vst [vmem:[#allocation7 + $0x140] sm:$0xff] 0
    %1307 = vst [vmem:[#allocation7 + $0x148] sm:$0xff] 0
    %1308 = vst [vmem:[#allocation7 + $0x150] sm:$0xff] 0
    %1309 = vst [vmem:[#allocation7 + $0x158] sm:$0xff] 0
    %1310 = vst [vmem:[#allocation7 + $0x160] sm:$0xff] 0
    %1311 = vst [vmem:[#allocation7 + $0x168] sm:$0xff] 0
    %1312 = vst [vmem:[#allocation7 + $0x170] sm:$0xff] 0
    %1313 = vst [vmem:[#allocation7 + $0x178] sm:$0xff] 0
    %1314 = vst [vmem:[#allocation7 + $0x180] sm:$0xff] 0
    %1315 = vst [vmem:[#allocation7 + $0x188] sm:$0xff] 0
    %1316 = vst [vmem:[#allocation7 + $0x190] sm:$0xff] 0
    %1317 = vst [vmem:[#allocation7 + $0x198] sm:$0xff] 0
    %1318 = vst [vmem:[#allocation7 + $0x1a0] sm:$0xff] 0
    %1319 = vst [vmem:[#allocation7 + $0x1a8] sm:$0xff] 0
    %1320 = vst [vmem:[#allocation7 + $0x1b0] sm:$0xff] 0
    %1321 = vst [vmem:[#allocation7 + $0x1b8] sm:$0xff] 0
    %1322 = vst [vmem:[#allocation7 + $0x1c0] sm:$0xff] 0
    %1323 = vst [vmem:[#allocation7 + $0x1c8] sm:$0xff] 0
    %1324 = vst [vmem:[#allocation7 + $0x1d0] sm:$0xff] 0
    %1325 = vst [vmem:[#allocation7 + $0x1d8] sm:$0xff] 0
    %1326 = vst [vmem:[#allocation7 + $0x1e0] sm:$0xff] 0
    %1327 = vst [vmem:[#allocation7 + $0x1e8] sm:$0xff] 0
    %1328 = vst [vmem:[#allocation7 + $0x1f0] sm:$0xff] 0
    %1329 = vst [vmem:[#allocation7 + $0x1f8] sm:$0xff] 0
    %1330 = vst [vmem:[#allocation7 + $0x200] sm:$0xff] 0
    %1331 = vst [vmem:[#allocation7 + $0x208] sm:$0xff] 0
    %1332 = vst [vmem:[#allocation7 + $0x210] sm:$0xff] 0
    %1333 = vst [vmem:[#allocation7 + $0x218] sm:$0xff] 0
    %1334 = vst [vmem:[#allocation7 + $0x220] sm:$0xff] 0
    %1335 = vst [vmem:[#allocation7 + $0x228] sm:$0xff] 0
    %1336 = vst [vmem:[#allocation7 + $0x230] sm:$0xff] 0
    %1337 = vst [vmem:[#allocation7 + $0x238] sm:$0xff] 0
    %v1338 = vld [vmem:[%s7] sm:$0xf]
    %v1339 = vld [vmem:[%s7 + $0x4] sm:$0xf]
    %v1340 = vld [vmem:[%s7 + $0x8] sm:$0xf]
    %v1341 = vld [vmem:[%s7 + $0xc] sm:$0xf]
    %v1342 = vld [vmem:[%s7 + $0x10] sm:$0xf]
    %v1343 = vld [vmem:[%s7 + $0x14] sm:$0xf]
    %v1344 = vld [vmem:[%s7 + $0x18] sm:$0xf]
    %v1345 = vld [vmem:[%s7 + $0x1c] sm:$0xf]
    %v1354 = vunpack.c.l.b16 %v1338
    %v1355 = vunpack.c.l.b16 %v1339
    %v1356 = vunpack.c.l.b16 %v1340
    %v1357 = vunpack.c.l.b16 %v1341
    %v1358 = vunpack.c.l.b16 %v1342
    %v1359 = vunpack.c.l.b16 %v1343
    %v1360 = vunpack.c.l.b16 %v1344
    %v1361 = vunpack.c.l.b16 %v1345
    %v1362 = vpack.c.b16 %v1355, %v1354
    %v1363 = vpack.c.b16 %v1357, %v1356
    %v1364 = vpack.c.b16 %v1359, %v1358
    %v1365 = vpack.c.b16 %v1361, %v1360
    %1370 = vst.msk [vmem:[#allocation7] sm:$0xff] %vm81, %v1362
    %1371 = vst.msk [vmem:[#allocation7 + $0x8] sm:$0xff] %vm81, %v1363
    %1372 = vst.msk [vmem:[#allocation7 + $0x10] sm:$0xff] %vm81, %v1364
    %1373 = vst.msk [vmem:[#allocation7 + $0x18] sm:$0xff] %vm81, %v1365
    %v1374 = vld [vmem:[%s8] sm:$0xf]
    %v1375 = vld [vmem:[%s8 + $0x4] sm:$0xf]
    %v1376 = vld [vmem:[%s8 + $0x8] sm:$0xf]
    %v1377 = vld [vmem:[%s8 + $0xc] sm:$0xf]
    %v1378 = vld [vmem:[%s8 + $0x10] sm:$0xf]
    %v1379 = vld [vmem:[%s8 + $0x14] sm:$0xf]
    %v1380 = vld [vmem:[%s8 + $0x18] sm:$0xf]
    %v1381 = vld [vmem:[%s8 + $0x1c] sm:$0xf]
    %v1390 = vunpack.c.l.b16 %v1374
    %v1391 = vunpack.c.l.b16 %v1375
    %v1392 = vunpack.c.l.b16 %v1376
    %v1393 = vunpack.c.l.b16 %v1377
    %v1394 = vunpack.c.l.b16 %v1378
    %v1395 = vunpack.c.l.b16 %v1379
    %v1396 = vunpack.c.l.b16 %v1380
    %v1397 = vunpack.c.l.b16 %v1381
    %v1398 = vpack.c.b16 %v1391, %v1390
    %v1399 = vpack.c.b16 %v1393, %v1392
    %v1400 = vpack.c.b16 %v1395, %v1394
    %v1401 = vpack.c.b16 %v1397, %v1396
    %1402 = vrot.lane.b32.xlu0 %v1398, 64
    %v1403 = vpop.permute.xlu0 %1402
    %1404 = vrot.lane.b32.xlu0 %v1399, 64
    %v1405 = vpop.permute.xlu0 %1404
    %1406 = vrot.lane.b32.xlu0 %v1400, 64
    %v1407 = vpop.permute.xlu0 %1406
    %1408 = vrot.lane.b32.xlu0 %v1401, 64
    %v1409 = vpop.permute.xlu0 %1408
    %1414 = vst.msk [vmem:[#allocation7 + $0x20] sm:$0xff] %vm375, %v1403
    %1415 = vst.msk [vmem:[#allocation7 + $0x28] sm:$0xff] %vm375, %v1405
    %1416 = vst.msk [vmem:[#allocation7 + $0x30] sm:$0xff] %vm375, %v1407
    %1417 = vst.msk [vmem:[#allocation7 + $0x38] sm:$0xff] %vm375, %v1409
    %v1418 = vld [vmem:[%s7 + $0x20] sm:$0xf]
    %v1419 = vld [vmem:[%s7 + $0x24] sm:$0xf]
    %v1420 = vld [vmem:[%s7 + $0x28] sm:$0xf]
    %v1421 = vld [vmem:[%s7 + $0x2c] sm:$0xf]
    %v1422 = vld [vmem:[%s7 + $0x30] sm:$0xf]
    %v1423 = vld [vmem:[%s7 + $0x34] sm:$0xf]
    %v1424 = vld [vmem:[%s7 + $0x38] sm:$0xf]
    %v1425 = vld [vmem:[%s7 + $0x3c] sm:$0xf]
    %v1434 = vunpack.c.l.b16 %v1418
    %v1435 = vunpack.c.l.b16 %v1419
    %v1436 = vunpack.c.l.b16 %v1420
    %v1437 = vunpack.c.l.b16 %v1421
    %v1438 = vunpack.c.l.b16 %v1422
    %v1439 = vunpack.c.l.b16 %v1423
    %v1440 = vunpack.c.l.b16 %v1424
    %v1441 = vunpack.c.l.b16 %v1425
    %v1442 = vpack.c.b16 %v1435, %v1434
    %v1443 = vpack.c.b16 %v1437, %v1436
    %v1444 = vpack.c.b16 %v1439, %v1438
    %v1445 = vpack.c.b16 %v1441, %v1440
    %1450 = vst.msk [vmem:[#allocation7 + $0x40] sm:$0xff] %vm81, %v1442
    %1451 = vst.msk [vmem:[#allocation7 + $0x48] sm:$0xff] %vm81, %v1443
    %1452 = vst.msk [vmem:[#allocation7 + $0x50] sm:$0xff] %vm81, %v1444
    %1453 = vst.msk [vmem:[#allocation7 + $0x58] sm:$0xff] %vm81, %v1445
    %v1454 = vld [vmem:[%s8 + $0x20] sm:$0xf]
    %v1455 = vld [vmem:[%s8 + $0x24] sm:$0xf]
    %v1456 = vld [vmem:[%s8 + $0x28] sm:$0xf]
    %v1457 = vld [vmem:[%s8 + $0x2c] sm:$0xf]
    %v1458 = vld [vmem:[%s8 + $0x30] sm:$0xf]
    %v1459 = vld [vmem:[%s8 + $0x34] sm:$0xf]
    %v1460 = vld [vmem:[%s8 + $0x38] sm:$0xf]
    %v1461 = vld [vmem:[%s8 + $0x3c] sm:$0xf]
    %v1470 = vunpack.c.l.b16 %v1454
    %v1471 = vunpack.c.l.b16 %v1455
    %v1472 = vunpack.c.l.b16 %v1456
    %v1473 = vunpack.c.l.b16 %v1457
    %v1474 = vunpack.c.l.b16 %v1458
    %v1475 = vunpack.c.l.b16 %v1459
    %v1476 = vunpack.c.l.b16 %v1460
    %v1477 = vunpack.c.l.b16 %v1461
    %v1478 = vpack.c.b16 %v1471, %v1470
    %v1479 = vpack.c.b16 %v1473, %v1472
    %v1480 = vpack.c.b16 %v1475, %v1474
    %v1481 = vpack.c.b16 %v1477, %v1476
    %1482 = vrot.lane.b32.xlu0 %v1478, 64
    %v1483 = vpop.permute.xlu0 %1482
    %1484 = vrot.lane.b32.xlu0 %v1479, 64
    %v1485 = vpop.permute.xlu0 %1484
    %1486 = vrot.lane.b32.xlu0 %v1480, 64
    %v1487 = vpop.permute.xlu0 %1486
    %1488 = vrot.lane.b32.xlu0 %v1481, 64
    %v1489 = vpop.permute.xlu0 %1488
    %1494 = vst.msk [vmem:[#allocation7 + $0x60] sm:$0xff] %vm375, %v1483
    %1495 = vst.msk [vmem:[#allocation7 + $0x68] sm:$0xff] %vm375, %v1485
    %1496 = vst.msk [vmem:[#allocation7 + $0x70] sm:$0xff] %vm375, %v1487
    %1497 = vst.msk [vmem:[#allocation7 + $0x78] sm:$0xff] %vm375, %v1489
    %v1498 = vld [vmem:[%s7 + $0x40] sm:$0xf]
    %v1499 = vld [vmem:[%s7 + $0x44] sm:$0xf]
    %v1500 = vld [vmem:[%s7 + $0x48] sm:$0xf]
    %v1501 = vld [vmem:[%s7 + $0x4c] sm:$0xf]
    %v1502 = vld [vmem:[%s7 + $0x50] sm:$0xf]
    %v1503 = vld [vmem:[%s7 + $0x54] sm:$0xf]
    %v1504 = vld [vmem:[%s7 + $0x58] sm:$0xf]
    %v1505 = vld [vmem:[%s7 + $0x5c] sm:$0xf]
    %v1514 = vunpack.c.l.b16 %v1498
    %v1515 = vunpack.c.l.b16 %v1499
    %v1516 = vunpack.c.l.b16 %v1500
    %v1517 = vunpack.c.l.b16 %v1501
    %v1518 = vunpack.c.l.b16 %v1502
    %v1519 = vunpack.c.l.b16 %v1503
    %v1520 = vunpack.c.l.b16 %v1504
    %v1521 = vunpack.c.l.b16 %v1505
    %v1522 = vpack.c.b16 %v1515, %v1514
    %v1523 = vpack.c.b16 %v1517, %v1516
    %v1524 = vpack.c.b16 %v1519, %v1518
    %v1525 = vpack.c.b16 %v1521, %v1520
    %1530 = vst.msk [vmem:[#allocation7 + $0x80] sm:$0xff] %vm81, %v1522
    %1531 = vst.msk [vmem:[#allocation7 + $0x88] sm:$0xff] %vm81, %v1523
    %1532 = vst.msk [vmem:[#allocation7 + $0x90] sm:$0xff] %vm81, %v1524
    %1533 = vst.msk [vmem:[#allocation7 + $0x98] sm:$0xff] %vm81, %v1525
    %v1534 = vld [vmem:[%s8 + $0x40] sm:$0xf]
    %v1535 = vld [vmem:[%s8 + $0x44] sm:$0xf]
    %v1536 = vld [vmem:[%s8 + $0x48] sm:$0xf]
    %v1537 = vld [vmem:[%s8 + $0x4c] sm:$0xf]
    %v1538 = vld [vmem:[%s8 + $0x50] sm:$0xf]
    %v1539 = vld [vmem:[%s8 + $0x54] sm:$0xf]
    %v1540 = vld [vmem:[%s8 + $0x58] sm:$0xf]
    %v1541 = vld [vmem:[%s8 + $0x5c] sm:$0xf]
    %v1550 = vunpack.c.l.b16 %v1534
    %v1551 = vunpack.c.l.b16 %v1535
    %v1552 = vunpack.c.l.b16 %v1536
    %v1553 = vunpack.c.l.b16 %v1537
    %v1554 = vunpack.c.l.b16 %v1538
    %v1555 = vunpack.c.l.b16 %v1539
    %v1556 = vunpack.c.l.b16 %v1540
    %v1557 = vunpack.c.l.b16 %v1541
    %v1558 = vpack.c.b16 %v1551, %v1550
    %v1559 = vpack.c.b16 %v1553, %v1552
    %v1560 = vpack.c.b16 %v1555, %v1554
    %v1561 = vpack.c.b16 %v1557, %v1556
    %1562 = vrot.lane.b32.xlu0 %v1558, 64
    %v1563 = vpop.permute.xlu0 %1562
    %1564 = vrot.lane.b32.xlu0 %v1559, 64
    %v1565 = vpop.permute.xlu0 %1564
    %1566 = vrot.lane.b32.xlu0 %v1560, 64
    %v1567 = vpop.permute.xlu0 %1566
    %1568 = vrot.lane.b32.xlu0 %v1561, 64
    %v1569 = vpop.permute.xlu0 %1568
    %1574 = vst.msk [vmem:[#allocation7 + $0xa0] sm:$0xff] %vm375, %v1563
    %1575 = vst.msk [vmem:[#allocation7 + $0xa8] sm:$0xff] %vm375, %v1565
    %1576 = vst.msk [vmem:[#allocation7 + $0xb0] sm:$0xff] %vm375, %v1567
    %1577 = vst.msk [vmem:[#allocation7 + $0xb8] sm:$0xff] %vm375, %v1569
    %v1578 = vld [vmem:[%s7 + $0x60] sm:$0xf]
    %v1579 = vld [vmem:[%s7 + $0x64] sm:$0xf]
    %v1580 = vld [vmem:[%s7 + $0x68] sm:$0xf]
    %v1581 = vld [vmem:[%s7 + $0x6c] sm:$0xf]
    %v1582 = vld [vmem:[%s7 + $0x70] sm:$0xf]
    %v1583 = vld [vmem:[%s7 + $0x74] sm:$0xf]
    %v1584 = vld [vmem:[%s7 + $0x78] sm:$0xf]
    %v1585 = vld [vmem:[%s7 + $0x7c] sm:$0xf]
    %v1594 = vunpack.c.l.b16 %v1578
    %v1595 = vunpack.c.l.b16 %v1579
    %v1596 = vunpack.c.l.b16 %v1580
    %v1597 = vunpack.c.l.b16 %v1581
    %v1598 = vunpack.c.l.b16 %v1582
    %v1599 = vunpack.c.l.b16 %v1583
    %v1600 = vunpack.c.l.b16 %v1584
    %v1601 = vunpack.c.l.b16 %v1585
    %v1602 = vpack.c.b16 %v1595, %v1594
    %v1603 = vpack.c.b16 %v1597, %v1596
    %v1604 = vpack.c.b16 %v1599, %v1598
    %v1605 = vpack.c.b16 %v1601, %v1600
    %1610 = vst.msk [vmem:[#allocation7 + $0xc0] sm:$0xff] %vm81, %v1602
    %1611 = vst.msk [vmem:[#allocation7 + $0xc8] sm:$0xff] %vm81, %v1603
    %1612 = vst.msk [vmem:[#allocation7 + $0xd0] sm:$0xff] %vm81, %v1604
    %1613 = vst.msk [vmem:[#allocation7 + $0xd8] sm:$0xff] %vm81, %v1605
    %v1614 = vld [vmem:[%s8 + $0x60] sm:$0xf]
    %v1615 = vld [vmem:[%s8 + $0x64] sm:$0xf]
    %v1616 = vld [vmem:[%s8 + $0x68] sm:$0xf]
    %v1617 = vld [vmem:[%s8 + $0x6c] sm:$0xf]
    %v1618 = vld [vmem:[%s8 + $0x70] sm:$0xf]
    %v1619 = vld [vmem:[%s8 + $0x74] sm:$0xf]
    %v1620 = vld [vmem:[%s8 + $0x78] sm:$0xf]
    %v1621 = vld [vmem:[%s8 + $0x7c] sm:$0xf]
    %v1630 = vunpack.c.l.b16 %v1614
    %v1631 = vunpack.c.l.b16 %v1615
    %v1632 = vunpack.c.l.b16 %v1616
    %v1633 = vunpack.c.l.b16 %v1617
    %v1634 = vunpack.c.l.b16 %v1618
    %v1635 = vunpack.c.l.b16 %v1619
    %v1636 = vunpack.c.l.b16 %v1620
    %v1637 = vunpack.c.l.b16 %v1621
    %v1638 = vpack.c.b16 %v1631, %v1630
    %v1639 = vpack.c.b16 %v1633, %v1632
    %v1640 = vpack.c.b16 %v1635, %v1634
    %v1641 = vpack.c.b16 %v1637, %v1636
    %1642 = vrot.lane.b32.xlu0 %v1638, 64
    %v1643 = vpop.permute.xlu0 %1642
    %1644 = vrot.lane.b32.xlu0 %v1639, 64
    %v1645 = vpop.permute.xlu0 %1644
    %1646 = vrot.lane.b32.xlu0 %v1640, 64
    %v1647 = vpop.permute.xlu0 %1646
    %1648 = vrot.lane.b32.xlu0 %v1641, 64
    %v1649 = vpop.permute.xlu0 %1648
    %1654 = vst.msk [vmem:[#allocation7 + $0xe0] sm:$0xff] %vm375, %v1643
    %1655 = vst.msk [vmem:[#allocation7 + $0xe8] sm:$0xff] %vm375, %v1645
    %1656 = vst.msk [vmem:[#allocation7 + $0xf0] sm:$0xff] %vm375, %v1647
    %1657 = vst.msk [vmem:[#allocation7 + $0xf8] sm:$0xff] %vm375, %v1649
    %v1658 = vld [vmem:[%s7 + $0x80] sm:$0xf]
    %v1659 = vld [vmem:[%s7 + $0x84] sm:$0xf]
    %v1660 = vld [vmem:[%s7 + $0x88] sm:$0xf]
    %v1661 = vld [vmem:[%s7 + $0x8c] sm:$0xf]
    %v1662 = vld [vmem:[%s7 + $0x90] sm:$0xf]
    %v1663 = vld [vmem:[%s7 + $0x94] sm:$0xf]
    %v1664 = vld [vmem:[%s7 + $0x98] sm:$0xf]
    %v1665 = vld [vmem:[%s7 + $0x9c] sm:$0xf]
    %v1674 = vunpack.c.l.b16 %v1658
    %v1675 = vunpack.c.l.b16 %v1659
    %v1676 = vunpack.c.l.b16 %v1660
    %v1677 = vunpack.c.l.b16 %v1661
    %v1678 = vunpack.c.l.b16 %v1662
    %v1679 = vunpack.c.l.b16 %v1663
    %v1680 = vunpack.c.l.b16 %v1664
    %v1681 = vunpack.c.l.b16 %v1665
    %v1682 = vpack.c.b16 %v1675, %v1674
    %v1683 = vpack.c.b16 %v1677, %v1676
    %v1684 = vpack.c.b16 %v1679, %v1678
    %v1685 = vpack.c.b16 %v1681, %v1680
    %1690 = vst.msk [vmem:[#allocation7 + $0x100] sm:$0xff] %vm81, %v1682
    %1691 = vst.msk [vmem:[#allocation7 + $0x108] sm:$0xff] %vm81, %v1683
    %1692 = vst.msk [vmem:[#allocation7 + $0x110] sm:$0xff] %vm81, %v1684
    %1693 = vst.msk [vmem:[#allocation7 + $0x118] sm:$0xff] %vm81, %v1685
    %v1694 = vld [vmem:[%s8 + $0x80] sm:$0xf]
    %v1695 = vld [vmem:[%s8 + $0x84] sm:$0xf]
    %v1696 = vld [vmem:[%s8 + $0x88] sm:$0xf]
    %v1697 = vld [vmem:[%s8 + $0x8c] sm:$0xf]
    %v1698 = vld [vmem:[%s8 + $0x90] sm:$0xf]
    %v1699 = vld [vmem:[%s8 + $0x94] sm:$0xf]
    %v1700 = vld [vmem:[%s8 + $0x98] sm:$0xf]
    %v1701 = vld [vmem:[%s8 + $0x9c] sm:$0xf]
    %v1710 = vunpack.c.l.b16 %v1694
    %v1711 = vunpack.c.l.b16 %v1695
    %v1712 = vunpack.c.l.b16 %v1696
    %v1713 = vunpack.c.l.b16 %v1697
    %v1714 = vunpack.c.l.b16 %v1698
    %v1715 = vunpack.c.l.b16 %v1699
    %v1716 = vunpack.c.l.b16 %v1700
    %v1717 = vunpack.c.l.b16 %v1701
    %v1718 = vpack.c.b16 %v1711, %v1710
    %v1719 = vpack.c.b16 %v1713, %v1712
    %v1720 = vpack.c.b16 %v1715, %v1714
    %v1721 = vpack.c.b16 %v1717, %v1716
    %1722 = vrot.lane.b32.xlu0 %v1718, 64
    %v1723 = vpop.permute.xlu0 %1722
    %1724 = vrot.lane.b32.xlu0 %v1719, 64
    %v1725 = vpop.permute.xlu0 %1724
    %1726 = vrot.lane.b32.xlu0 %v1720, 64
    %v1727 = vpop.permute.xlu0 %1726
    %1728 = vrot.lane.b32.xlu0 %v1721, 64
    %v1729 = vpop.permute.xlu0 %1728
    %1734 = vst.msk [vmem:[#allocation7 + $0x120] sm:$0xff] %vm375, %v1723
    %1735 = vst.msk [vmem:[#allocation7 + $0x128] sm:$0xff] %vm375, %v1725
    %1736 = vst.msk [vmem:[#allocation7 + $0x130] sm:$0xff] %vm375, %v1727
    %1737 = vst.msk [vmem:[#allocation7 + $0x138] sm:$0xff] %vm375, %v1729
    %v1738 = vld [vmem:[%s7 + $0xa0] sm:$0xf]
    %v1739 = vld [vmem:[%s7 + $0xa4] sm:$0xf]
    %v1740 = vld [vmem:[%s7 + $0xa8] sm:$0xf]
    %v1741 = vld [vmem:[%s7 + $0xac] sm:$0xf]
    %v1742 = vld [vmem:[%s7 + $0xb0] sm:$0xf]
    %v1743 = vld [vmem:[%s7 + $0xb4] sm:$0xf]
    %v1744 = vld [vmem:[%s7 + $0xb8] sm:$0xf]
    %v1745 = vld [vmem:[%s7 + $0xbc] sm:$0xf]
    %v1754 = vunpack.c.l.b16 %v1738
    %v1755 = vunpack.c.l.b16 %v1739
    %v1756 = vunpack.c.l.b16 %v1740
    %v1757 = vunpack.c.l.b16 %v1741
    %v1758 = vunpack.c.l.b16 %v1742
    %v1759 = vunpack.c.l.b16 %v1743
    %v1760 = vunpack.c.l.b16 %v1744
    %v1761 = vunpack.c.l.b16 %v1745
    %v1762 = vpack.c.b16 %v1755, %v1754
    %v1763 = vpack.c.b16 %v1757, %v1756
    %v1764 = vpack.c.b16 %v1759, %v1758
    %v1765 = vpack.c.b16 %v1761, %v1760
    %1770 = vst.msk [vmem:[#allocation7 + $0x140] sm:$0xff] %vm81, %v1762
    %1771 = vst.msk [vmem:[#allocation7 + $0x148] sm:$0xff] %vm81, %v1763
    %1772 = vst.msk [vmem:[#allocation7 + $0x150] sm:$0xff] %vm81, %v1764
    %1773 = vst.msk [vmem:[#allocation7 + $0x158] sm:$0xff] %vm81, %v1765
    %v1774 = vld [vmem:[%s8 + $0xa0] sm:$0xf]
    %v1775 = vld [vmem:[%s8 + $0xa4] sm:$0xf]
    %v1776 = vld [vmem:[%s8 + $0xa8] sm:$0xf]
    %v1777 = vld [vmem:[%s8 + $0xac] sm:$0xf]
    %v1778 = vld [vmem:[%s8 + $0xb0] sm:$0xf]
    %v1779 = vld [vmem:[%s8 + $0xb4] sm:$0xf]
    %v1780 = vld [vmem:[%s8 + $0xb8] sm:$0xf]
    %v1781 = vld [vmem:[%s8 + $0xbc] sm:$0xf]
    %v1790 = vunpack.c.l.b16 %v1774
    %v1791 = vunpack.c.l.b16 %v1775
    %v1792 = vunpack.c.l.b16 %v1776
    %v1793 = vunpack.c.l.b16 %v1777
    %v1794 = vunpack.c.l.b16 %v1778
    %v1795 = vunpack.c.l.b16 %v1779
    %v1796 = vunpack.c.l.b16 %v1780
    %v1797 = vunpack.c.l.b16 %v1781
    %v1798 = vpack.c.b16 %v1791, %v1790
    %v1799 = vpack.c.b16 %v1793, %v1792
    %v1800 = vpack.c.b16 %v1795, %v1794
    %v1801 = vpack.c.b16 %v1797, %v1796
    %1802 = vrot.lane.b32.xlu0 %v1798, 64
    %v1803 = vpop.permute.xlu0 %1802
    %1804 = vrot.lane.b32.xlu0 %v1799, 64
    %v1805 = vpop.permute.xlu0 %1804
    %1806 = vrot.lane.b32.xlu0 %v1800, 64
    %v1807 = vpop.permute.xlu0 %1806
    %1808 = vrot.lane.b32.xlu0 %v1801, 64
    %v1809 = vpop.permute.xlu0 %1808
    %1814 = vst.msk [vmem:[#allocation7 + $0x160] sm:$0xff] %vm375, %v1803
    %1815 = vst.msk [vmem:[#allocation7 + $0x168] sm:$0xff] %vm375, %v1805
    %1816 = vst.msk [vmem:[#allocation7 + $0x170] sm:$0xff] %vm375, %v1807
    %1817 = vst.msk [vmem:[#allocation7 + $0x178] sm:$0xff] %vm375, %v1809
    %v1818 = vld [vmem:[%s7 + $0xc0] sm:$0xf]
    %v1819 = vld [vmem:[%s7 + $0xc4] sm:$0xf]
    %v1820 = vld [vmem:[%s7 + $0xc8] sm:$0xf]
    %v1821 = vld [vmem:[%s7 + $0xcc] sm:$0xf]
    %v1822 = vld [vmem:[%s7 + $0xd0] sm:$0xf]
    %v1823 = vld [vmem:[%s7 + $0xd4] sm:$0xf]
    %v1824 = vld [vmem:[%s7 + $0xd8] sm:$0xf]
    %v1825 = vld [vmem:[%s7 + $0xdc] sm:$0xf]
    %v1834 = vunpack.c.l.b16 %v1818
    %v1835 = vunpack.c.l.b16 %v1819
    %v1836 = vunpack.c.l.b16 %v1820
    %v1837 = vunpack.c.l.b16 %v1821
    %v1838 = vunpack.c.l.b16 %v1822
    %v1839 = vunpack.c.l.b16 %v1823
    %v1840 = vunpack.c.l.b16 %v1824
    %v1841 = vunpack.c.l.b16 %v1825
    %v1842 = vpack.c.b16 %v1835, %v1834
    %v1843 = vpack.c.b16 %v1837, %v1836
    %v1844 = vpack.c.b16 %v1839, %v1838
    %v1845 = vpack.c.b16 %v1841, %v1840
    %1850 = vst.msk [vmem:[#allocation7 + $0x180] sm:$0xff] %vm81, %v1842
    %1851 = vst.msk [vmem:[#allocation7 + $0x188] sm:$0xff] %vm81, %v1843
    %1852 = vst.msk [vmem:[#allocation7 + $0x190] sm:$0xff] %vm81, %v1844
    %1853 = vst.msk [vmem:[#allocation7 + $0x198] sm:$0xff] %vm81, %v1845
    %v1854 = vld [vmem:[%s8 + $0xc0] sm:$0xf]
    %v1855 = vld [vmem:[%s8 + $0xc4] sm:$0xf]
    %v1856 = vld [vmem:[%s8 + $0xc8] sm:$0xf]
    %v1857 = vld [vmem:[%s8 + $0xcc] sm:$0xf]
    %v1858 = vld [vmem:[%s8 + $0xd0] sm:$0xf]
    %v1859 = vld [vmem:[%s8 + $0xd4] sm:$0xf]
    %v1860 = vld [vmem:[%s8 + $0xd8] sm:$0xf]
    %v1861 = vld [vmem:[%s8 + $0xdc] sm:$0xf]
    %v1870 = vunpack.c.l.b16 %v1854
    %v1871 = vunpack.c.l.b16 %v1855
    %v1872 = vunpack.c.l.b16 %v1856
    %v1873 = vunpack.c.l.b16 %v1857
    %v1874 = vunpack.c.l.b16 %v1858
    %v1875 = vunpack.c.l.b16 %v1859
    %v1876 = vunpack.c.l.b16 %v1860
    %v1877 = vunpack.c.l.b16 %v1861
    %v1878 = vpack.c.b16 %v1871, %v1870
    %v1879 = vpack.c.b16 %v1873, %v1872
    %v1880 = vpack.c.b16 %v1875, %v1874
    %v1881 = vpack.c.b16 %v1877, %v1876
    %1882 = vrot.lane.b32.xlu0 %v1878, 64
    %v1883 = vpop.permute.xlu0 %1882
    %1884 = vrot.lane.b32.xlu0 %v1879, 64
    %v1885 = vpop.permute.xlu0 %1884
    %1886 = vrot.lane.b32.xlu0 %v1880, 64
    %v1887 = vpop.permute.xlu0 %1886
    %1888 = vrot.lane.b32.xlu0 %v1881, 64
    %v1889 = vpop.permute.xlu0 %1888
    %1894 = vst.msk [vmem:[#allocation7 + $0x1a0] sm:$0xff] %vm375, %v1883
    %1895 = vst.msk [vmem:[#allocation7 + $0x1a8] sm:$0xff] %vm375, %v1885
    %1896 = vst.msk [vmem:[#allocation7 + $0x1b0] sm:$0xff] %vm375, %v1887
    %1897 = vst.msk [vmem:[#allocation7 + $0x1b8] sm:$0xff] %vm375, %v1889
    %v1898 = vld [vmem:[%s7 + $0xe0] sm:$0xf]
    %v1899 = vld [vmem:[%s7 + $0xe4] sm:$0xf]
    %v1900 = vld [vmem:[%s7 + $0xe8] sm:$0xf]
    %v1901 = vld [vmem:[%s7 + $0xec] sm:$0xf]
    %v1902 = vld [vmem:[%s7 + $0xf0] sm:$0xf]
    %v1903 = vld [vmem:[%s7 + $0xf4] sm:$0xf]
    %v1904 = vld [vmem:[%s7 + $0xf8] sm:$0xf]
    %v1905 = vld [vmem:[%s7 + $0xfc] sm:$0xf]
    %v1914 = vunpack.c.l.b16 %v1898
    %v1915 = vunpack.c.l.b16 %v1899
    %v1916 = vunpack.c.l.b16 %v1900
    %v1917 = vunpack.c.l.b16 %v1901
    %v1918 = vunpack.c.l.b16 %v1902
    %v1919 = vunpack.c.l.b16 %v1903
    %v1920 = vunpack.c.l.b16 %v1904
    %v1921 = vunpack.c.l.b16 %v1905
    %v1922 = vpack.c.b16 %v1915, %v1914
    %v1923 = vpack.c.b16 %v1917, %v1916
    %v1924 = vpack.c.b16 %v1919, %v1918
    %v1925 = vpack.c.b16 %v1921, %v1920
    %1930 = vst.msk [vmem:[#allocation7 + $0x1c0] sm:$0xff] %vm81, %v1922
    %1931 = vst.msk [vmem:[#allocation7 + $0x1c8] sm:$0xff] %vm81, %v1923
    %1932 = vst.msk [vmem:[#allocation7 + $0x1d0] sm:$0xff] %vm81, %v1924
    %1933 = vst.msk [vmem:[#allocation7 + $0x1d8] sm:$0xff] %vm81, %v1925
    %v1934 = vld [vmem:[%s8 + $0xe0] sm:$0xf]
    %v1935 = vld [vmem:[%s8 + $0xe4] sm:$0xf]
    %v1936 = vld [vmem:[%s8 + $0xe8] sm:$0xf]
    %v1937 = vld [vmem:[%s8 + $0xec] sm:$0xf]
    %v1938 = vld [vmem:[%s8 + $0xf0] sm:$0xf]
    %v1939 = vld [vmem:[%s8 + $0xf4] sm:$0xf]
    %v1940 = vld [vmem:[%s8 + $0xf8] sm:$0xf]
    %v1941 = vld [vmem:[%s8 + $0xfc] sm:$0xf]
    %v1950 = vunpack.c.l.b16 %v1934
    %v1951 = vunpack.c.l.b16 %v1935
    %v1952 = vunpack.c.l.b16 %v1936
    %v1953 = vunpack.c.l.b16 %v1937
    %v1954 = vunpack.c.l.b16 %v1938
    %v1955 = vunpack.c.l.b16 %v1939
    %v1956 = vunpack.c.l.b16 %v1940
    %v1957 = vunpack.c.l.b16 %v1941
    %v1958 = vpack.c.b16 %v1951, %v1950
    %v1959 = vpack.c.b16 %v1953, %v1952
    %v1960 = vpack.c.b16 %v1955, %v1954
    %v1961 = vpack.c.b16 %v1957, %v1956
    %1962 = vrot.lane.b32.xlu0 %v1958, 64
    %v1963 = vpop.permute.xlu0 %1962
    %1964 = vrot.lane.b32.xlu0 %v1959, 64
    %v1965 = vpop.permute.xlu0 %1964
    %1966 = vrot.lane.b32.xlu0 %v1960, 64
    %v1967 = vpop.permute.xlu0 %1966
    %1968 = vrot.lane.b32.xlu0 %v1961, 64
    %v1969 = vpop.permute.xlu0 %1968
    %1974 = vst.msk [vmem:[#allocation7 + $0x1e0] sm:$0xff] %vm375, %v1963
    %1975 = vst.msk [vmem:[#allocation7 + $0x1e8] sm:$0xff] %vm375, %v1965
    %1976 = vst.msk [vmem:[#allocation7 + $0x1f0] sm:$0xff] %vm375, %v1967
    %1977 = vst.msk [vmem:[#allocation7 + $0x1f8] sm:$0xff] %vm375, %v1969
    %v1978 = vld [vmem:[%s7 + $0x100] sm:$0xf]
    %v1979 = vld [vmem:[%s7 + $0x104] sm:$0xf]
    %v1980 = vld [vmem:[%s7 + $0x108] sm:$0xf]
    %v1981 = vld [vmem:[%s7 + $0x10c] sm:$0xf]
    %v1982 = vld [vmem:[%s7 + $0x110] sm:$0xf]
    %v1983 = vld [vmem:[%s7 + $0x114] sm:$0xf]
    %v1984 = vld [vmem:[%s7 + $0x118] sm:$0xf]
    %v1985 = vld [vmem:[%s7 + $0x11c] sm:$0xf]
    %v1994 = vunpack.c.l.b16 %v1978
    %v1995 = vunpack.c.l.b16 %v1979
    %v1996 = vunpack.c.l.b16 %v1980
    %v1997 = vunpack.c.l.b16 %v1981
    %v1998 = vunpack.c.l.b16 %v1982
    %v1999 = vunpack.c.l.b16 %v1983
    %v2000 = vunpack.c.l.b16 %v1984
    %v2001 = vunpack.c.l.b16 %v1985
    %v2002 = vpack.c.b16 %v1995, %v1994
    %v2003 = vpack.c.b16 %v1997, %v1996
    %v2004 = vpack.c.b16 %v1999, %v1998
    %v2005 = vpack.c.b16 %v2001, %v2000
    %2010 = vst.msk [vmem:[#allocation7 + $0x200] sm:$0xff] %vm81, %v2002
    %2011 = vst.msk [vmem:[#allocation7 + $0x208] sm:$0xff] %vm81, %v2003
    %2012 = vst.msk [vmem:[#allocation7 + $0x210] sm:$0xff] %vm81, %v2004
    %2013 = vst.msk [vmem:[#allocation7 + $0x218] sm:$0xff] %vm81, %v2005
    %v2014 = vld [vmem:[%s8 + $0x100] sm:$0xf]
    %v2015 = vld [vmem:[%s8 + $0x104] sm:$0xf]
    %v2016 = vld [vmem:[%s8 + $0x108] sm:$0xf]
    %v2017 = vld [vmem:[%s8 + $0x10c] sm:$0xf]
    %v2018 = vld [vmem:[%s8 + $0x110] sm:$0xf]
    %v2019 = vld [vmem:[%s8 + $0x114] sm:$0xf]
    %v2020 = vld [vmem:[%s8 + $0x118] sm:$0xf]
    %v2021 = vld [vmem:[%s8 + $0x11c] sm:$0xf]
    %v2030 = vunpack.c.l.b16 %v2014
    %v2031 = vunpack.c.l.b16 %v2015
    %v2032 = vunpack.c.l.b16 %v2016
    %v2033 = vunpack.c.l.b16 %v2017
    %v2034 = vunpack.c.l.b16 %v2018
    %v2035 = vunpack.c.l.b16 %v2019
    %v2036 = vunpack.c.l.b16 %v2020
    %v2037 = vunpack.c.l.b16 %v2021
    %v2038 = vpack.c.b16 %v2031, %v2030
    %v2039 = vpack.c.b16 %v2033, %v2032
    %v2040 = vpack.c.b16 %v2035, %v2034
    %v2041 = vpack.c.b16 %v2037, %v2036
    %2042 = vrot.lane.b32.xlu0 %v2038, 64
    %v2043 = vpop.permute.xlu0 %2042
    %2044 = vrot.lane.b32.xlu0 %v2039, 64
    %v2045 = vpop.permute.xlu0 %2044
    %2046 = vrot.lane.b32.xlu0 %v2040, 64
    %v2047 = vpop.permute.xlu0 %2046
    %2048 = vrot.lane.b32.xlu0 %v2041, 64
    %v2049 = vpop.permute.xlu0 %2048
    %2054 = vst.msk [vmem:[#allocation7 + $0x220] sm:$0xff] %vm375, %v2043
    %2055 = vst.msk [vmem:[#allocation7 + $0x228] sm:$0xff] %vm375, %v2045
    %2056 = vst.msk [vmem:[#allocation7 + $0x230] sm:$0xff] %vm375, %v2047
    %2057 = vst.msk [vmem:[#allocation7 + $0x238] sm:$0xff] %vm375, %v2049
    %v2058 = vld [vmem:[%s0] sm:$0xff]
    %v2059 = vld [vmem:[%s0 + $0x8] sm:$0xff]
    %v2060 = vld [vmem:[%s0 + $0x10] sm:$0xff]
    %v2061 = vld [vmem:[%s0 + $0x18] sm:$0xff]
    %v2062 = vld [vmem:[%s0 + $0x20] sm:$0xff]
    %v2063 = vld [vmem:[%s0 + $0x28] sm:$0xff]
    %v2064 = vld [vmem:[%s0 + $0x30] sm:$0xff]
    %v2065 = vld [vmem:[%s0 + $0x38] sm:$0xff]
    %v2066 = vld [vmem:[%s0 + $0x40] sm:$0xff]
    %v2067 = vld [vmem:[%s0 + $0x48] sm:$0xff]
    %v2068 = vld [vmem:[%s0 + $0x50] sm:$0xff]
    %v2069 = vld [vmem:[%s0 + $0x58] sm:$0xff]
    %v2070 = vld [vmem:[%s0 + $0x60] sm:$0xff]
    %v2071 = vld [vmem:[%s0 + $0x68] sm:$0xff]
    %v2072 = vld [vmem:[%s0 + $0x70] sm:$0xff]
    %v2073 = vld [vmem:[%s0 + $0x78] sm:$0xff]
    %v2074 = vld [vmem:[%s0 + $0x80] sm:$0xff]
    %v2075 = vld [vmem:[%s0 + $0x88] sm:$0xff]
    %v2076 = vld [vmem:[%s0 + $0x90] sm:$0xff]
    %v2077 = vld [vmem:[%s0 + $0x98] sm:$0xff]
    %v2078 = vld [vmem:[%s0 + $0xa0] sm:$0xff]
    %v2079 = vld [vmem:[%s0 + $0xa8] sm:$0xff]
    %v2080 = vld [vmem:[%s0 + $0xb0] sm:$0xff]
    %v2081 = vld [vmem:[%s0 + $0xb8] sm:$0xff]
    %v2082 = vld [vmem:[%s0 + $0xc0] sm:$0xff]
    %v2083 = vld [vmem:[%s0 + $0xc8] sm:$0xff]
    %v2084 = vld [vmem:[%s0 + $0xd0] sm:$0xff]
    %v2085 = vld [vmem:[%s0 + $0xd8] sm:$0xff]
    %v2086 = vld [vmem:[%s0 + $0xe0] sm:$0xff]
    %v2087 = vld [vmem:[%s0 + $0xe8] sm:$0xff]
    %v2088 = vld [vmem:[%s0 + $0xf0] sm:$0xff]
    %v2089 = vld [vmem:[%s0 + $0xf8] sm:$0xff]
    %v2090 = vld [vmem:[%s0 + $0x100] sm:$0xff]
    %v2091 = vld [vmem:[%s0 + $0x108] sm:$0xff]
    %v2092 = vld [vmem:[%s0 + $0x110] sm:$0xff]
    %v2093 = vld [vmem:[%s0 + $0x118] sm:$0xff]
    %v2094 = vld [vmem:[%s0 + $0x120] sm:$0xff]
    %v2095 = vld [vmem:[%s0 + $0x128] sm:$0xff]
    %v2096 = vld [vmem:[%s0 + $0x130] sm:$0xff]
    %v2097 = vld [vmem:[%s0 + $0x138] sm:$0xff]
    %v2098 = vld [vmem:[%s0 + $0x140] sm:$0xff]
    %v2099 = vld [vmem:[%s0 + $0x148] sm:$0xff]
    %v2100 = vld [vmem:[%s0 + $0x150] sm:$0xff]
    %v2101 = vld [vmem:[%s0 + $0x158] sm:$0xff]
    %v2102 = vld [vmem:[%s0 + $0x160] sm:$0xff]
    %v2103 = vld [vmem:[%s0 + $0x168] sm:$0xff]
    %v2104 = vld [vmem:[%s0 + $0x170] sm:$0xff]
    %v2105 = vld [vmem:[%s0 + $0x178] sm:$0xff]
    %v2106 = vld [vmem:[%s1] sm:$0xf]
    %v2107 = vld [vmem:[%s1 + $0x4] sm:$0xf]
    %v2108 = vld [vmem:[%s1 + $0x8] sm:$0xf]
    %v2109 = vld [vmem:[%s1 + $0xc] sm:$0xf]
    %v2110 = vld [vmem:[%s1 + $0x10] sm:$0xf]
    %v2111 = vld [vmem:[%s1 + $0x14] sm:$0xf]
    %v2112 = vld [vmem:[%s1 + $0x18] sm:$0xf]
    %v2113 = vld [vmem:[%s1 + $0x1c] sm:$0xf]
    %v2114 = vld [vmem:[%s1 + $0x20] sm:$0xf]
    %v2115 = vld [vmem:[%s1 + $0x24] sm:$0xf]
    %v2116 = vld [vmem:[%s1 + $0x28] sm:$0xf]
    %v2117 = vld [vmem:[%s1 + $0x2c] sm:$0xf]
    %v2118 = vld [vmem:[%s1 + $0x30] sm:$0xf]
    %v2119 = vld [vmem:[%s1 + $0x34] sm:$0xf]
    %v2120 = vld [vmem:[%s1 + $0x38] sm:$0xf]
    %v2121 = vld [vmem:[%s1 + $0x3c] sm:$0xf]
    %v2122 = vld [vmem:[%s1 + $0x40] sm:$0xf]
    %v2123 = vld [vmem:[%s1 + $0x44] sm:$0xf]
    %v2124 = vld [vmem:[%s1 + $0x48] sm:$0xf]
    %v2125 = vld [vmem:[%s1 + $0x4c] sm:$0xf]
    %v2126 = vld [vmem:[%s1 + $0x50] sm:$0xf]
    %v2127 = vld [vmem:[%s1 + $0x54] sm:$0xf]
    %v2128 = vld [vmem:[%s1 + $0x58] sm:$0xf]
    %v2129 = vld [vmem:[%s1 + $0x5c] sm:$0xf]
    %v2130 = vld [vmem:[%s1 + $0x60] sm:$0xf]
    %v2131 = vld [vmem:[%s1 + $0x64] sm:$0xf]
    %v2132 = vld [vmem:[%s1 + $0x68] sm:$0xf]
    %v2133 = vld [vmem:[%s1 + $0x6c] sm:$0xf]
    %v2134 = vld [vmem:[%s1 + $0x70] sm:$0xf]
    %v2135 = vld [vmem:[%s1 + $0x74] sm:$0xf]
    %v2136 = vld [vmem:[%s1 + $0x78] sm:$0xf]
    %v2137 = vld [vmem:[%s1 + $0x7c] sm:$0xf]
    %v2138 = vld [vmem:[%s2] sm:$0x1]
    %v2140 = vlaneseq
    %v2141 = vshrl.u32 %v2140, 7
    %v2142 = vsub.s32 0, %v2141
    %v2143 = vrot.slane %v2138, %v2142
    %v2193 = vunpack.c.l.b16 %v2058
    %v2194 = vunpack.c.h.b16 %v2058
    %v2195 = vunpack.c.l.b16 %v2059
    %v2196 = vunpack.c.h.b16 %v2059
    %v2197 = vunpack.c.l.b16 %v2060
    %v2198 = vunpack.c.h.b16 %v2060
    %v2199 = vunpack.c.l.b16 %v2061
    %v2200 = vunpack.c.h.b16 %v2061
    %v2201 = vunpack.c.l.b16 %v2062
    %v2202 = vunpack.c.h.b16 %v2062
    %v2203 = vunpack.c.l.b16 %v2063
    %v2204 = vunpack.c.h.b16 %v2063
    %v2205 = vunpack.c.l.b16 %v2064
    %v2206 = vunpack.c.h.b16 %v2064
    %v2207 = vunpack.c.l.b16 %v2065
    %v2208 = vunpack.c.h.b16 %v2065
    %v2209 = vunpack.c.l.b16 %v2066
    %v2210 = vunpack.c.h.b16 %v2066
    %v2211 = vunpack.c.l.b16 %v2067
    %v2212 = vunpack.c.h.b16 %v2067
    %v2213 = vunpack.c.l.b16 %v2068
    %v2214 = vunpack.c.h.b16 %v2068
    %v2215 = vunpack.c.l.b16 %v2069
    %v2216 = vunpack.c.h.b16 %v2069
    %v2217 = vunpack.c.l.b16 %v2070
    %v2218 = vunpack.c.h.b16 %v2070
    %v2219 = vunpack.c.l.b16 %v2071
    %v2220 = vunpack.c.h.b16 %v2071
    %v2221 = vunpack.c.l.b16 %v2072
    %v2222 = vunpack.c.h.b16 %v2072
    %v2223 = vunpack.c.l.b16 %v2073
    %v2224 = vunpack.c.h.b16 %v2073
    %v2225 = vunpack.c.l.b16 %v2074
    %v2226 = vunpack.c.h.b16 %v2074
    %v2227 = vunpack.c.l.b16 %v2075
    %v2228 = vunpack.c.h.b16 %v2075
    %v2229 = vunpack.c.l.b16 %v2076
    %v2230 = vunpack.c.h.b16 %v2076
    %v2231 = vunpack.c.l.b16 %v2077
    %v2232 = vunpack.c.h.b16 %v2077
    %v2233 = vunpack.c.l.b16 %v2078
    %v2234 = vunpack.c.h.b16 %v2078
    %v2235 = vunpack.c.l.b16 %v2079
    %v2236 = vunpack.c.h.b16 %v2079
    %v2237 = vunpack.c.l.b16 %v2080
    %v2238 = vunpack.c.h.b16 %v2080
    %v2239 = vunpack.c.l.b16 %v2081
    %v2240 = vunpack.c.h.b16 %v2081
    %v2241 = vunpack.c.l.b16 %v2082
    %v2242 = vunpack.c.h.b16 %v2082
    %v2243 = vunpack.c.l.b16 %v2083
    %v2244 = vunpack.c.h.b16 %v2083
    %v2245 = vunpack.c.l.b16 %v2084
    %v2246 = vunpack.c.h.b16 %v2084
    %v2247 = vunpack.c.l.b16 %v2085
    %v2248 = vunpack.c.h.b16 %v2085
    %v2249 = vunpack.c.l.b16 %v2086
    %v2250 = vunpack.c.h.b16 %v2086
    %v2251 = vunpack.c.l.b16 %v2087
    %v2252 = vunpack.c.h.b16 %v2087
    %v2253 = vunpack.c.l.b16 %v2088
    %v2254 = vunpack.c.h.b16 %v2088
    %v2255 = vunpack.c.l.b16 %v2089
    %v2256 = vunpack.c.h.b16 %v2089
    %v2257 = vunpack.c.l.b16 %v2090
    %v2258 = vunpack.c.h.b16 %v2090
    %v2259 = vunpack.c.l.b16 %v2091
    %v2260 = vunpack.c.h.b16 %v2091
    %v2261 = vunpack.c.l.b16 %v2092
    %v2262 = vunpack.c.h.b16 %v2092
    %v2263 = vunpack.c.l.b16 %v2093
    %v2264 = vunpack.c.h.b16 %v2093
    %v2265 = vunpack.c.l.b16 %v2094
    %v2266 = vunpack.c.h.b16 %v2094
    %v2267 = vunpack.c.l.b16 %v2095
    %v2268 = vunpack.c.h.b16 %v2095
    %v2269 = vunpack.c.l.b16 %v2096
    %v2270 = vunpack.c.h.b16 %v2096
    %v2271 = vunpack.c.l.b16 %v2097
    %v2272 = vunpack.c.h.b16 %v2097
    %v2273 = vunpack.c.l.b16 %v2098
    %v2274 = vunpack.c.h.b16 %v2098
    %v2275 = vunpack.c.l.b16 %v2099
    %v2276 = vunpack.c.h.b16 %v2099
    %v2277 = vunpack.c.l.b16 %v2100
    %v2278 = vunpack.c.h.b16 %v2100
    %v2279 = vunpack.c.l.b16 %v2101
    %v2280 = vunpack.c.h.b16 %v2101
    %v2281 = vunpack.c.l.b16 %v2102
    %v2282 = vunpack.c.h.b16 %v2102
    %v2283 = vunpack.c.l.b16 %v2103
    %v2284 = vunpack.c.h.b16 %v2103
    %v2285 = vunpack.c.l.b16 %v2104
    %v2286 = vunpack.c.h.b16 %v2104
    %v2287 = vunpack.c.l.b16 %v2105
    %v2288 = vunpack.c.h.b16 %v2105
    %v2289 = vpack.c.b16 %v2195, %v2193
    %v2290 = vpack.c.b16 %v2196, %v2194
    %v2291 = vpack.c.b16 %v2199, %v2197
    %v2292 = vpack.c.b16 %v2200, %v2198
    %v2293 = vpack.c.b16 %v2203, %v2201
    %v2294 = vpack.c.b16 %v2204, %v2202
    %v2295 = vpack.c.b16 %v2207, %v2205
    %v2296 = vpack.c.b16 %v2208, %v2206
    %v2297 = vpack.c.b16 %v2211, %v2209
    %v2298 = vpack.c.b16 %v2212, %v2210
    %v2299 = vpack.c.b16 %v2215, %v2213
    %v2300 = vpack.c.b16 %v2216, %v2214
    %v2301 = vpack.c.b16 %v2219, %v2217
    %v2302 = vpack.c.b16 %v2220, %v2218
    %v2303 = vpack.c.b16 %v2223, %v2221
    %v2304 = vpack.c.b16 %v2224, %v2222
    %v2305 = vpack.c.b16 %v2227, %v2225
    %v2306 = vpack.c.b16 %v2228, %v2226
    %v2307 = vpack.c.b16 %v2231, %v2229
    %v2308 = vpack.c.b16 %v2232, %v2230
    %v2309 = vpack.c.b16 %v2235, %v2233
    %v2310 = vpack.c.b16 %v2236, %v2234
    %v2311 = vpack.c.b16 %v2239, %v2237
    %v2312 = vpack.c.b16 %v2240, %v2238
    %v2313 = vpack.c.b16 %v2243, %v2241
    %v2314 = vpack.c.b16 %v2244, %v2242
    %v2315 = vpack.c.b16 %v2247, %v2245
    %v2316 = vpack.c.b16 %v2248, %v2246
    %v2317 = vpack.c.b16 %v2251, %v2249
    %v2318 = vpack.c.b16 %v2252, %v2250
    %v2319 = vpack.c.b16 %v2255, %v2253
    %v2320 = vpack.c.b16 %v2256, %v2254
    %v2321 = vpack.c.b16 %v2259, %v2257
    %v2322 = vpack.c.b16 %v2260, %v2258
    %v2323 = vpack.c.b16 %v2263, %v2261
    %v2324 = vpack.c.b16 %v2264, %v2262
    %v2325 = vpack.c.b16 %v2267, %v2265
    %v2326 = vpack.c.b16 %v2268, %v2266
    %v2327 = vpack.c.b16 %v2271, %v2269
    %v2328 = vpack.c.b16 %v2272, %v2270
    %v2329 = vpack.c.b16 %v2275, %v2273
    %v2330 = vpack.c.b16 %v2276, %v2274
    %v2331 = vpack.c.b16 %v2279, %v2277
    %v2332 = vpack.c.b16 %v2280, %v2278
    %v2333 = vpack.c.b16 %v2283, %v2281
    %v2334 = vpack.c.b16 %v2284, %v2282
    %v2335 = vpack.c.b16 %v2287, %v2285
    %v2336 = vpack.c.b16 %v2288, %v2286
    %v2417 = vunpack.c.l.b16 %v2106
    %v2418 = vunpack.c.l.b16 %v2107
    %v2419 = vunpack.c.l.b16 %v2108
    %v2420 = vunpack.c.l.b16 %v2109
    %v2421 = vunpack.c.l.b16 %v2110
    %v2422 = vunpack.c.l.b16 %v2111
    %v2423 = vunpack.c.l.b16 %v2112
    %v2424 = vunpack.c.l.b16 %v2113
    %v2425 = vunpack.c.l.b16 %v2114
    %v2426 = vunpack.c.l.b16 %v2115
    %v2427 = vunpack.c.l.b16 %v2116
    %v2428 = vunpack.c.l.b16 %v2117
    %v2429 = vunpack.c.l.b16 %v2118
    %v2430 = vunpack.c.l.b16 %v2119
    %v2431 = vunpack.c.l.b16 %v2120
    %v2432 = vunpack.c.l.b16 %v2121
    %v2433 = vunpack.c.l.b16 %v2122
    %v2434 = vunpack.c.l.b16 %v2123
    %v2435 = vunpack.c.l.b16 %v2124
    %v2436 = vunpack.c.l.b16 %v2125
    %v2437 = vunpack.c.l.b16 %v2126
    %v2438 = vunpack.c.l.b16 %v2127
    %v2439 = vunpack.c.l.b16 %v2128
    %v2440 = vunpack.c.l.b16 %v2129
    %v2441 = vunpack.c.l.b16 %v2130
    %v2442 = vunpack.c.l.b16 %v2131
    %v2443 = vunpack.c.l.b16 %v2132
    %v2444 = vunpack.c.l.b16 %v2133
    %v2445 = vunpack.c.l.b16 %v2134
    %v2446 = vunpack.c.l.b16 %v2135
    %v2447 = vunpack.c.l.b16 %v2136
    %v2448 = vunpack.c.l.b16 %v2137
    %v2449 = vpack.c.b16 %v2418, %v2417
    %v2450 = vpack.c.b16 %v2420, %v2419
    %v2451 = vpack.c.b16 %v2422, %v2421
    %v2452 = vpack.c.b16 %v2424, %v2423
    %v2453 = vpack.c.b16 %v2426, %v2425
    %v2454 = vpack.c.b16 %v2428, %v2427
    %v2455 = vpack.c.b16 %v2430, %v2429
    %v2456 = vpack.c.b16 %v2432, %v2431
    %v2457 = vpack.c.b16 %v2434, %v2433
    %v2458 = vpack.c.b16 %v2436, %v2435
    %v2459 = vpack.c.b16 %v2438, %v2437
    %v2460 = vpack.c.b16 %v2440, %v2439
    %v2461 = vpack.c.b16 %v2442, %v2441
    %v2462 = vpack.c.b16 %v2444, %v2443
    %v2463 = vpack.c.b16 %v2446, %v2445
    %v2464 = vpack.c.b16 %v2448, %v2447
    %2481 = vmatprep.subr.bf16.mxu0 0
    %2482 = vmatpush1.bf16.msra.mxu0 %v2449
    %2483 = vmatprep.subr.bf16.mxu0 0
    %2484 = vmatpush1.bf16.msra.mxu0 %v2450
    %2485 = vmatprep.subr.bf16.mxu0 0
    %2486 = vmatpush1.bf16.msra.mxu0 %v2451
    %2487 = vmatprep.subr.bf16.mxu0 0
    %2488 = vmatpush1.bf16.msra.mxu0 %v2452
    %2489 = vmatprep.subr.bf16.mxu0 0
    %2490 = vmatpush1.bf16.msra.mxu0 %v2453
    %2491 = vmatprep.subr.bf16.mxu0 0
    %2492 = vmatpush1.bf16.msra.mxu0 %v2454
    %2493 = vmatprep.subr.bf16.mxu0 0
    %2494 = vmatpush1.bf16.msra.mxu0 %v2455
    %2495 = vmatprep.subr.bf16.mxu0 0
    %2496 = vmatpush1.bf16.msra.mxu0 %v2456
    %2497 = vmatprep.subr.bf16.mxu0 0
    %2498 = vmatpush1.bf16.msra.mxu0 %v2457
    %2499 = vmatprep.subr.bf16.mxu0 0
    %2500 = vmatpush1.bf16.msra.mxu0 %v2458
    %2501 = vmatprep.subr.bf16.mxu0 0
    %2502 = vmatpush1.bf16.msra.mxu0 %v2459
    %2503 = vmatprep.subr.bf16.mxu0 0
    %2504 = vmatpush1.bf16.msra.mxu0 %v2460
    %2505 = vmatprep.subr.bf16.mxu0 0
    %2506 = vmatpush1.bf16.msra.mxu0 %v2461
    %2507 = vmatprep.subr.bf16.mxu0 0
    %2508 = vmatpush1.bf16.msra.mxu0 %v2462
    %2509 = vmatprep.subr.bf16.mxu0 0
    %2510 = vmatpush1.bf16.msra.mxu0 %v2463
    %2511 = vmatprep.subr.bf16.mxu0 0
    %2512 = vmatpush1.bf16.msra.mxu0 %v2464
    %2513 = vmatprep.mubr.bf16.mxu0 %v2290
    %2514 = vmatmul.mubr.bf16.gmra.mrb[0].mxu0 %v2289
    %v2515 = vpop.f32.mrb[0].mxu0
    %v2516 = vadd.f32 %v2143, %v2515
    %v2517 = vpop.f32.mrb[0].mxu0
    %v2518 = vpop.f32.mrb[0].mxu0
    %v2519 = vadd.f32 %v2143, %v2518
    %v2520 = vpop.f32.mrb[0].mxu0
    %2521 = vmatprep.mubr.bf16.mxu0 %v2292
    %2522 = vmatmul.mubr.bf16.gmra.mrb[0].mxu0 %v2291
    %v2523 = vpop.f32.mrb[0].mxu0
    %v2524 = vadd.f32 %v2143, %v2523
    %v2525 = vpop.f32.mrb[0].mxu0
    %v2526 = vpop.f32.mrb[0].mxu0
    %v2527 = vadd.f32 %v2143, %v2526
    %v2528 = vpop.f32.mrb[0].mxu0
    %2529 = vmatprep.mubr.bf16.mxu0 %v2294
    %2530 = vmatmul.mubr.bf16.gmra.mrb[0].mxu0 %v2293
    %v2531 = vpop.f32.mrb[0].mxu0
    %v2532 = vadd.f32 %v2143, %v2531
    %v2533 = vpop.f32.mrb[0].mxu0
    %v2534 = vpop.f32.mrb[0].mxu0
    %v2535 = vadd.f32 %v2143, %v2534
    %v2536 = vpop.f32.mrb[0].mxu0
    %2537 = vmatprep.mubr.bf16.mxu0 %v2296
    %2538 = vmatmul.mubr.bf16.gmra.mrb[0].mxu0 %v2295
    %v2539 = vpop.f32.mrb[0].mxu0
    %v2540 = vadd.f32 %v2143, %v2539
    %v2541 = vpop.f32.mrb[0].mxu0
    %v2542 = vpop.f32.mrb[0].mxu0
    %v2543 = vadd.f32 %v2143, %v2542
    %v2544 = vpop.f32.mrb[0].mxu0
    %2545 = vmatprep.mubr.bf16.mxu0 %v2298
    %2546 = vmatmul.mubr.bf16.gmra.mrb[0].mxu0 %v2297
    %v2547 = vpop.f32.mrb[0].mxu0
    %v2548 = vadd.f32 %v2143, %v2547
    %v2549 = vpop.f32.mrb[0].mxu0
    %v2550 = vpop.f32.mrb[0].mxu0
    %v2551 = vadd.f32 %v2143, %v2550
    %v2552 = vpop.f32.mrb[0].mxu0
    %2553 = vmatprep.mubr.bf16.mxu0 %v2300
    %2554 = vmatmul.mubr.bf16.gmra.mrb[0].mxu0 %v2299
    %v2555 = vpop.f32.mrb[0].mxu0
    %v2556 = vadd.f32 %v2143, %v2555
    %v2557 = vpop.f32.mrb[0].mxu0
    %v2558 = vpop.f32.mrb[0].mxu0
    %v2559 = vadd.f32 %v2143, %v2558
    %v2560 = vpop.f32.mrb[0].mxu0
    %2561 = vmatprep.mubr.bf16.mxu0 %v2302
    %2562 = vmatmul.mubr.bf16.gmra.mrb[0].mxu0 %v2301
    %v2563 = vpop.f32.mrb[0].mxu0
    %v2564 = vadd.f32 %v2143, %v2563
    %v2565 = vpop.f32.mrb[0].mxu0
    %v2566 = vpop.f32.mrb[0].mxu0
    %v2567 = vadd.f32 %v2143, %v2566
    %v2568 = vpop.f32.mrb[0].mxu0
    %2569 = vmatprep.mubr.bf16.mxu0 %v2304
    %2570 = vmatmul.mubr.bf16.gmra.mrb[0].mxu0 %v2303
    %v2571 = vpop.f32.mrb[0].mxu0
    %v2572 = vadd.f32 %v2143, %v2571
    %v2573 = vpop.f32.mrb[0].mxu0
    %v2574 = vpop.f32.mrb[0].mxu0
    %v2575 = vadd.f32 %v2143, %v2574
    %v2576 = vpop.f32.mrb[0].mxu0
    %2577 = vmatprep.mubr.bf16.mxu0 %v2306
    %2578 = vmatmul.mubr.bf16.gmra.mrb[0].mxu0 %v2305
    %v2579 = vpop.f32.mrb[0].mxu0
    %v2580 = vadd.f32 %v2143, %v2579
    %v2581 = vpop.f32.mrb[0].mxu0
    %v2582 = vpop.f32.mrb[0].mxu0
    %v2583 = vadd.f32 %v2143, %v2582
    %v2584 = vpop.f32.mrb[0].mxu0
    %2585 = vmatprep.mubr.bf16.mxu0 %v2308
    %2586 = vmatmul.mubr.bf16.gmra.mrb[0].mxu0 %v2307
    %v2587 = vpop.f32.mrb[0].mxu0
    %v2588 = vadd.f32 %v2143, %v2587
    %v2589 = vpop.f32.mrb[0].mxu0
    %v2590 = vpop.f32.mrb[0].mxu0
    %v2591 = vadd.f32 %v2143, %v2590
    %v2592 = vpop.f32.mrb[0].mxu0
    %2593 = vmatprep.mubr.bf16.mxu0 %v2310
    %2594 = vmatmul.mubr.bf16.gmra.mrb[0].mxu0 %v2309
    %v2595 = vpop.f32.mrb[0].mxu0
    %v2596 = vadd.f32 %v2143, %v2595
    %v2597 = vpop.f32.mrb[0].mxu0
    %v2598 = vpop.f32.mrb[0].mxu0
    %v2599 = vadd.f32 %v2143, %v2598
    %v2600 = vpop.f32.mrb[0].mxu0
    %2601 = vmatprep.mubr.bf16.mxu0 %v2312
    %2602 = vmatmul.mubr.bf16.gmra.mrb[0].mxu0 %v2311
    %v2603 = vpop.f32.mrb[0].mxu0
    %v2604 = vadd.f32 %v2143, %v2603
    %v2605 = vpop.f32.mrb[0].mxu0
    %v2606 = vpop.f32.mrb[0].mxu0
    %v2607 = vadd.f32 %v2143, %v2606
    %v2608 = vpop.f32.mrb[0].mxu0
    %2609 = vmatprep.mubr.bf16.mxu0 %v2314
    %2610 = vmatmul.mubr.bf16.gmra.mrb[0].mxu0 %v2313
    %v2611 = vpop.f32.mrb[0].mxu0
    %v2612 = vadd.f32 %v2143, %v2611
    %v2613 = vpop.f32.mrb[0].mxu0
    %v2614 = vpop.f32.mrb[0].mxu0
    %v2615 = vadd.f32 %v2143, %v2614
    %v2616 = vpop.f32.mrb[0].mxu0
    %2617 = vmatprep.mubr.bf16.mxu0 %v2316
    %2618 = vmatmul.mubr.bf16.gmra.mrb[0].mxu0 %v2315
    %v2619 = vpop.f32.mrb[0].mxu0
    %v2620 = vadd.f32 %v2143, %v2619
    %v2621 = vpop.f32.mrb[0].mxu0
    %v2622 = vpop.f32.mrb[0].mxu0
    %v2623 = vadd.f32 %v2143, %v2622
    %v2624 = vpop.f32.mrb[0].mxu0
    %2625 = vmatprep.mubr.bf16.mxu0 %v2318
    %2626 = vmatmul.mubr.bf16.gmra.mrb[0].mxu0 %v2317
    %v2627 = vpop.f32.mrb[0].mxu0
    %v2628 = vadd.f32 %v2143, %v2627
    %v2629 = vpop.f32.mrb[0].mxu0
    %v2630 = vpop.f32.mrb[0].mxu0
    %v2631 = vadd.f32 %v2143, %v2630
    %v2632 = vpop.f32.mrb[0].mxu0
    %2633 = vmatprep.mubr.bf16.mxu0 %v2320
    %2634 = vmatmul.mubr.bf16.gmra.mrb[0].mxu0 %v2319
    %v2635 = vpop.f32.mrb[0].mxu0
    %v2636 = vadd.f32 %v2143, %v2635
    %v2637 = vpop.f32.mrb[0].mxu0
    %v2638 = vpop.f32.mrb[0].mxu0
    %v2639 = vadd.f32 %v2143, %v2638
    %v2640 = vpop.f32.mrb[0].mxu0
    %2641 = vmatprep.mubr.bf16.mxu0 %v2322
    %2642 = vmatmul.mubr.bf16.gmra.mrb[0].mxu0 %v2321
    %v2643 = vpop.f32.mrb[0].mxu0
    %v2644 = vadd.f32 %v2143, %v2643
    %v2645 = vpop.f32.mrb[0].mxu0
    %v2646 = vpop.f32.mrb[0].mxu0
    %v2647 = vadd.f32 %v2143, %v2646
    %v2648 = vpop.f32.mrb[0].mxu0
    %2649 = vmatprep.mubr.bf16.mxu0 %v2324
    %2650 = vmatmul.mubr.bf16.gmra.mrb[0].mxu0 %v2323
    %v2651 = vpop.f32.mrb[0].mxu0
    %v2652 = vadd.f32 %v2143, %v2651
    %v2653 = vpop.f32.mrb[0].mxu0
    %v2654 = vpop.f32.mrb[0].mxu0
    %v2655 = vadd.f32 %v2143, %v2654
    %v2656 = vpop.f32.mrb[0].mxu0
    %2657 = vmatprep.mubr.bf16.mxu0 %v2326
    %2658 = vmatmul.mubr.bf16.gmra.mrb[0].mxu0 %v2325
    %v2659 = vpop.f32.mrb[0].mxu0
    %v2660 = vadd.f32 %v2143, %v2659
    %v2661 = vpop.f32.mrb[0].mxu0
    %v2662 = vpop.f32.mrb[0].mxu0
    %v2663 = vadd.f32 %v2143, %v2662
    %v2664 = vpop.f32.mrb[0].mxu0
    %2665 = vmatprep.mubr.bf16.mxu0 %v2328
    %2666 = vmatmul.mubr.bf16.gmra.mrb[0].mxu0 %v2327
    %v2667 = vpop.f32.mrb[0].mxu0
    %v2668 = vadd.f32 %v2143, %v2667
    %v2669 = vpop.f32.mrb[0].mxu0
    %v2670 = vpop.f32.mrb[0].mxu0
    %v2671 = vadd.f32 %v2143, %v2670
    %v2672 = vpop.f32.mrb[0].mxu0
    %2673 = vmatprep.mubr.bf16.mxu0 %v2330
    %2674 = vmatmul.mubr.bf16.gmra.mrb[0].mxu0 %v2329
    %v2675 = vpop.f32.mrb[0].mxu0
    %v2676 = vadd.f32 %v2143, %v2675
    %v2677 = vpop.f32.mrb[0].mxu0
    %v2678 = vpop.f32.mrb[0].mxu0
    %v2679 = vadd.f32 %v2143, %v2678
    %v2680 = vpop.f32.mrb[0].mxu0
    %2681 = vmatprep.mubr.bf16.mxu0 %v2332
    %2682 = vmatmul.mubr.bf16.gmra.mrb[0].mxu0 %v2331
    %v2683 = vpop.f32.mrb[0].mxu0
    %v2684 = vadd.f32 %v2143, %v2683
    %v2685 = vpop.f32.mrb[0].mxu0
    %v2686 = vpop.f32.mrb[0].mxu0
    %v2687 = vadd.f32 %v2143, %v2686
    %v2688 = vpop.f32.mrb[0].mxu0
    %2689 = vmatprep.mubr.bf16.mxu0 %v2334
    %2690 = vmatmul.mubr.bf16.gmra.mrb[0].mxu0 %v2333
    %v2691 = vpop.f32.mrb[0].mxu0
    %v2692 = vadd.f32 %v2143, %v2691
    %v2693 = vpop.f32.mrb[0].mxu0
    %v2694 = vpop.f32.mrb[0].mxu0
    %v2695 = vadd.f32 %v2143, %v2694
    %v2696 = vpop.f32.mrb[0].mxu0
    %2697 = vmatprep.mubr.bf16.mxu0 %v2336
    %2698 = vmatmul.mubr.bf16.gmra.mrb[0].mxu0 %v2335
    %v2699 = vpop.f32.mrb[0].mxu0
    %v2700 = vadd.f32 %v2143, %v2699
    %v2701 = vpop.f32.mrb[0].mxu0
    %v2702 = vpop.f32.mrb[0].mxu0
    %v2703 = vadd.f32 %v2143, %v2702
    %v2704 = vpop.f32.mrb[0].mxu0
    %2705 = vdwg.mxu0
    %v2706 = vsub.f32 0.0, %v2516
    %v2707 = vsub.f32 0.0, %v2519
    %v2708 = vsub.f32 0.0, %v2524
    %v2709 = vsub.f32 0.0, %v2527
    %v2710 = vsub.f32 0.0, %v2532
    %v2711 = vsub.f32 0.0, %v2535
    %v2712 = vsub.f32 0.0, %v2540
    %v2713 = vsub.f32 0.0, %v2543
    %v2714 = vsub.f32 0.0, %v2548
    %v2715 = vsub.f32 0.0, %v2551
    %v2716 = vsub.f32 0.0, %v2556
    %v2717 = vsub.f32 0.0, %v2559
    %v2718 = vsub.f32 0.0, %v2564
    %v2719 = vsub.f32 0.0, %v2567
    %v2720 = vsub.f32 0.0, %v2572
    %v2721 = vsub.f32 0.0, %v2575
    %v2722 = vsub.f32 0.0, %v2580
    %v2723 = vsub.f32 0.0, %v2583
    %v2724 = vsub.f32 0.0, %v2588
    %v2725 = vsub.f32 0.0, %v2591
    %v2726 = vsub.f32 0.0, %v2596
    %v2727 = vsub.f32 0.0, %v2599
    %v2728 = vsub.f32 0.0, %v2604
    %v2729 = vsub.f32 0.0, %v2607
    %v2730 = vsub.f32 0.0, %v2612
    %v2731 = vsub.f32 0.0, %v2615
    %v2732 = vsub.f32 0.0, %v2620
    %v2733 = vsub.f32 0.0, %v2623
    %v2734 = vsub.f32 0.0, %v2628
    %v2735 = vsub.f32 0.0, %v2631
    %v2736 = vsub.f32 0.0, %v2636
    %v2737 = vsub.f32 0.0, %v2639
    %v2738 = vsub.f32 0.0, %v2644
    %v2739 = vsub.f32 0.0, %v2647
    %v2740 = vsub.f32 0.0, %v2652
    %v2741 = vsub.f32 0.0, %v2655
    %v2742 = vsub.f32 0.0, %v2660
    %v2743 = vsub.f32 0.0, %v2663
    %v2744 = vsub.f32 0.0, %v2668
    %v2745 = vsub.f32 0.0, %v2671
    %v2746 = vsub.f32 0.0, %v2676
    %v2747 = vsub.f32 0.0, %v2679
    %v2748 = vsub.f32 0.0, %v2684
    %v2749 = vsub.f32 0.0, %v2687
    %v2750 = vsub.f32 0.0, %v2692
    %v2751 = vsub.f32 0.0, %v2695
    %v2752 = vsub.f32 0.0, %v2700
    %v2753 = vsub.f32 0.0, %v2703
    %v2754 = vmul.f32 %v2706, 1.442695
    %v2755 = vpow.pop %v2754
    %v2756 = vmul.f32 %v2707, 1.442695
    %v2757 = vpow.pop %v2756
    %v2758 = vmul.f32 %v2708, 1.442695
    %v2759 = vpow.pop %v2758
    %v2760 = vmul.f32 %v2709, 1.442695
    %v2761 = vpow.pop %v2760
    %v2762 = vmul.f32 %v2710, 1.442695
    %v2763 = vpow.pop %v2762
    %v2764 = vmul.f32 %v2711, 1.442695
    %v2765 = vpow.pop %v2764
    %v2766 = vmul.f32 %v2712, 1.442695
    %v2767 = vpow.pop %v2766
    %v2768 = vmul.f32 %v2713, 1.442695
    %v2769 = vpow.pop %v2768
    %v2770 = vmul.f32 %v2714, 1.442695
    %v2771 = vpow.pop %v2770
    %v2772 = vmul.f32 %v2715, 1.442695
    %v2773 = vpow.pop %v2772
    %v2774 = vmul.f32 %v2716, 1.442695
    %v2775 = vpow.pop %v2774
    %v2776 = vmul.f32 %v2717, 1.442695
    %v2777 = vpow.pop %v2776
    %v2778 = vmul.f32 %v2718, 1.442695
    %v2779 = vpow.pop %v2778
    %v2780 = vmul.f32 %v2719, 1.442695
    %v2781 = vpow.pop %v2780
    %v2782 = vmul.f32 %v2720, 1.442695
    %v2783 = vpow.pop %v2782
    %v2784 = vmul.f32 %v2721, 1.442695
    %v2785 = vpow.pop %v2784
    %v2786 = vmul.f32 %v2722, 1.442695
    %v2787 = vpow.pop %v2786
    %v2788 = vmul.f32 %v2723, 1.442695
    %v2789 = vpow.pop %v2788
    %v2790 = vmul.f32 %v2724, 1.442695
    %v2791 = vpow.pop %v2790
    %v2792 = vmul.f32 %v2725, 1.442695
    %v2793 = vpow.pop %v2792
    %v2794 = vmul.f32 %v2726, 1.442695
    %v2795 = vpow.pop %v2794
    %v2796 = vmul.f32 %v2727, 1.442695
    %v2797 = vpow.pop %v2796
    %v2798 = vmul.f32 %v2728, 1.442695
    %v2799 = vpow.pop %v2798
    %v2800 = vmul.f32 %v2729, 1.442695
    %v2801 = vpow.pop %v2800
    %v2802 = vmul.f32 %v2730, 1.442695
    %v2803 = vpow.pop %v2802
    %v2804 = vmul.f32 %v2731, 1.442695
    %v2805 = vpow.pop %v2804
    %v2806 = vmul.f32 %v2732, 1.442695
    %v2807 = vpow.pop %v2806
    %v2808 = vmul.f32 %v2733, 1.442695
    %v2809 = vpow.pop %v2808
    %v2810 = vmul.f32 %v2734, 1.442695
    %v2811 = vpow.pop %v2810
    %v2812 = vmul.f32 %v2735, 1.442695
    %v2813 = vpow.pop %v2812
    %v2814 = vmul.f32 %v2736, 1.442695
    %v2815 = vpow.pop %v2814
    %v2816 = vmul.f32 %v2737, 1.442695
    %v2817 = vpow.pop %v2816
    %v2818 = vmul.f32 %v2738, 1.442695
    %v2819 = vpow.pop %v2818
    %v2820 = vmul.f32 %v2739, 1.442695
    %v2821 = vpow.pop %v2820
    %v2822 = vmul.f32 %v2740, 1.442695
    %v2823 = vpow.pop %v2822
    %v2824 = vmul.f32 %v2741, 1.442695
    %v2825 = vpow.pop %v2824
    %v2826 = vmul.f32 %v2742, 1.442695
    %v2827 = vpow.pop %v2826
    %v2828 = vmul.f32 %v2743, 1.442695
    %v2829 = vpow.pop %v2828
    %v2830 = vmul.f32 %v2744, 1.442695
    %v2831 = vpow.pop %v2830
    %v2832 = vmul.f32 %v2745, 1.442695
    %v2833 = vpow.pop %v2832
    %v2834 = vmul.f32 %v2746, 1.442695
    %v2835 = vpow.pop %v2834
    %v2836 = vmul.f32 %v2747, 1.442695
    %v2837 = vpow.pop %v2836
    %v2838 = vmul.f32 %v2748, 1.442695
    %v2839 = vpow.pop %v2838
    %v2840 = vmul.f32 %v2749, 1.442695
    %v2841 = vpow.pop %v2840
    %v2842 = vmul.f32 %v2750, 1.442695
    %v2843 = vpow.pop %v2842
    %v2844 = vmul.f32 %v2751, 1.442695
    %v2845 = vpow.pop %v2844
    %v2846 = vmul.f32 %v2752, 1.442695
    %v2847 = vpow.pop %v2846
    %v2848 = vmul.f32 %v2753, 1.442695
    %v2849 = vpow.pop %v2848
    %v2850 = vadd.f32 %v2755, 1.0
    %v2851 = vadd.f32 %v2757, 1.0
    %v2852 = vadd.f32 %v2759, 1.0
    %v2853 = vadd.f32 %v2761, 1.0
    %v2854 = vadd.f32 %v2763, 1.0
    %v2855 = vadd.f32 %v2765, 1.0
    %v2856 = vadd.f32 %v2767, 1.0
    %v2857 = vadd.f32 %v2769, 1.0
    %v2858 = vadd.f32 %v2771, 1.0
    %v2859 = vadd.f32 %v2773, 1.0
    %v2860 = vadd.f32 %v2775, 1.0
    %v2861 = vadd.f32 %v2777, 1.0
    %v2862 = vadd.f32 %v2779, 1.0
    %v2863 = vadd.f32 %v2781, 1.0
    %v2864 = vadd.f32 %v2783, 1.0
    %v2865 = vadd.f32 %v2785, 1.0
    %v2866 = vadd.f32 %v2787, 1.0
    %v2867 = vadd.f32 %v2789, 1.0
    %v2868 = vadd.f32 %v2791, 1.0
    %v2869 = vadd.f32 %v2793, 1.0
    %v2870 = vadd.f32 %v2795, 1.0
    %v2871 = vadd.f32 %v2797, 1.0
    %v2872 = vadd.f32 %v2799, 1.0
    %v2873 = vadd.f32 %v2801, 1.0
    %v2874 = vadd.f32 %v2803, 1.0
    %v2875 = vadd.f32 %v2805, 1.0
    %v2876 = vadd.f32 %v2807, 1.0
    %v2877 = vadd.f32 %v2809, 1.0
    %v2878 = vadd.f32 %v2811, 1.0
    %v2879 = vadd.f32 %v2813, 1.0
    %v2880 = vadd.f32 %v2815, 1.0
    %v2881 = vadd.f32 %v2817, 1.0
    %v2882 = vadd.f32 %v2819, 1.0
    %v2883 = vadd.f32 %v2821, 1.0
    %v2884 = vadd.f32 %v2823, 1.0
    %v2885 = vadd.f32 %v2825, 1.0
    %v2886 = vadd.f32 %v2827, 1.0
    %v2887 = vadd.f32 %v2829, 1.0
    %v2888 = vadd.f32 %v2831, 1.0
    %v2889 = vadd.f32 %v2833, 1.0
    %v2890 = vadd.f32 %v2835, 1.0
    %v2891 = vadd.f32 %v2837, 1.0
    %v2892 = vadd.f32 %v2839, 1.0
    %v2893 = vadd.f32 %v2841, 1.0
    %v2894 = vadd.f32 %v2843, 1.0
    %v2895 = vadd.f32 %v2845, 1.0
    %v2896 = vadd.f32 %v2847, 1.0
    %v2897 = vadd.f32 %v2849, 1.0
    %v2898 = vrcp.pop %v2850
    %v2899 = vrcp.pop %v2851
    %v2900 = vrcp.pop %v2852
    %v2901 = vrcp.pop %v2853
    %v2902 = vrcp.pop %v2854
    %v2903 = vrcp.pop %v2855
    %v2904 = vrcp.pop %v2856
    %v2905 = vrcp.pop %v2857
    %v2906 = vrcp.pop %v2858
    %v2907 = vrcp.pop %v2859
    %v2908 = vrcp.pop %v2860
    %v2909 = vrcp.pop %v2861
    %v2910 = vrcp.pop %v2862
    %v2911 = vrcp.pop %v2863
    %v2912 = vrcp.pop %v2864
    %v2913 = vrcp.pop %v2865
    %v2914 = vrcp.pop %v2866
    %v2915 = vrcp.pop %v2867
    %v2916 = vrcp.pop %v2868
    %v2917 = vrcp.pop %v2869
    %v2918 = vrcp.pop %v2870
    %v2919 = vrcp.pop %v2871
    %v2920 = vrcp.pop %v2872
    %v2921 = vrcp.pop %v2873
    %v2922 = vrcp.pop %v2874
    %v2923 = vrcp.pop %v2875
    %v2924 = vrcp.pop %v2876
    %v2925 = vrcp.pop %v2877
    %v2926 = vrcp.pop %v2878
    %v2927 = vrcp.pop %v2879
    %v2928 = vrcp.pop %v2880
    %v2929 = vrcp.pop %v2881
    %v2930 = vrcp.pop %v2882
    %v2931 = vrcp.pop %v2883
    %v2932 = vrcp.pop %v2884
    %v2933 = vrcp.pop %v2885
    %v2934 = vrcp.pop %v2886
    %v2935 = vrcp.pop %v2887
    %v2936 = vrcp.pop %v2888
    %v2937 = vrcp.pop %v2889
    %v2938 = vrcp.pop %v2890
    %v2939 = vrcp.pop %v2891
    %v2940 = vrcp.pop %v2892
    %v2941 = vrcp.pop %v2893
    %v2942 = vrcp.pop %v2894
    %v2943 = vrcp.pop %v2895
    %v2944 = vrcp.pop %v2896
    %v2945 = vrcp.pop %v2897
    %v2946 = vmul.f32 %v2516, %v2898
    %v2947 = vmul.f32 %v2519, %v2899
    %v2948 = vmul.f32 %v2524, %v2900
    %v2949 = vmul.f32 %v2527, %v2901
    %v2950 = vmul.f32 %v2532, %v2902
    %v2951 = vmul.f32 %v2535, %v2903
    %v2952 = vmul.f32 %v2540, %v2904
    %v2953 = vmul.f32 %v2543, %v2905
    %v2954 = vmul.f32 %v2548, %v2906
    %v2955 = vmul.f32 %v2551, %v2907
    %v2956 = vmul.f32 %v2556, %v2908
    %v2957 = vmul.f32 %v2559, %v2909
    %v2958 = vmul.f32 %v2564, %v2910
    %v2959 = vmul.f32 %v2567, %v2911
    %v2960 = vmul.f32 %v2572, %v2912
    %v2961 = vmul.f32 %v2575, %v2913
    %v2962 = vmul.f32 %v2580, %v2914
    %v2963 = vmul.f32 %v2583, %v2915
    %v2964 = vmul.f32 %v2588, %v2916
    %v2965 = vmul.f32 %v2591, %v2917
    %v2966 = vmul.f32 %v2596, %v2918
    %v2967 = vmul.f32 %v2599, %v2919
    %v2968 = vmul.f32 %v2604, %v2920
    %v2969 = vmul.f32 %v2607, %v2921
    %v2970 = vmul.f32 %v2612, %v2922
    %v2971 = vmul.f32 %v2615, %v2923
    %v2972 = vmul.f32 %v2620, %v2924
    %v2973 = vmul.f32 %v2623, %v2925
    %v2974 = vmul.f32 %v2628, %v2926
    %v2975 = vmul.f32 %v2631, %v2927
    %v2976 = vmul.f32 %v2636, %v2928
    %v2977 = vmul.f32 %v2639, %v2929
    %v2978 = vmul.f32 %v2644, %v2930
    %v2979 = vmul.f32 %v2647, %v2931
    %v2980 = vmul.f32 %v2652, %v2932
    %v2981 = vmul.f32 %v2655, %v2933
    %v2982 = vmul.f32 %v2660, %v2934
    %v2983 = vmul.f32 %v2663, %v2935
    %v2984 = vmul.f32 %v2668, %v2936
    %v2985 = vmul.f32 %v2671, %v2937
    %v2986 = vmul.f32 %v2676, %v2938
    %v2987 = vmul.f32 %v2679, %v2939
    %v2988 = vmul.f32 %v2684, %v2940
    %v2989 = vmul.f32 %v2687, %v2941
    %v2990 = vmul.f32 %v2692, %v2942
    %v2991 = vmul.f32 %v2695, %v2943
    %v2992 = vmul.f32 %v2700, %v2944
    %v2993 = vmul.f32 %v2703, %v2945
    %2994 = vst [vmem:[#allocation2] sm:$0xff] %v2946
    %2995 = vst [vmem:[#allocation2 + $0x8] sm:$0xff] %v2947
    %2996 = vst [vmem:[#allocation2 + $0x10] sm:$0xff] %v2948
    %2997 = vst [vmem:[#allocation2 + $0x18] sm:$0xff] %v2949
    %2998 = vst [vmem:[#allocation2 + $0x20] sm:$0xff] %v2950
    %2999 = vst [vmem:[#allocation2 + $0x28] sm:$0xff] %v2951
    %3000 = vst [vmem:[#allocation2 + $0x30] sm:$0xff] %v2952
    %3001 = vst [vmem:[#allocation2 + $0x38] sm:$0xff] %v2953
    %3002 = vst [vmem:[#allocation2 + $0x40] sm:$0xff] %v2954
    %3003 = vst [vmem:[#allocation2 + $0x48] sm:$0xff] %v2955
    %3004 = vst [vmem:[#allocation2 + $0x50] sm:$0xff] %v2956
    %3005 = vst [vmem:[#allocation2 + $0x58] sm:$0xff] %v2957
    %3006 = vst [vmem:[#allocation2 + $0x60] sm:$0xff] %v2958
    %3007 = vst [vmem:[#allocation2 + $0x68] sm:$0xff] %v2959
    %3008 = vst [vmem:[#allocation2 + $0x70] sm:$0xff] %v2960
    %3009 = vst [vmem:[#allocation2 + $0x78] sm:$0xff] %v2961
    %3010 = vst [vmem:[#allocation2 + $0x80] sm:$0xff] %v2962
    %3011 = vst [vmem:[#allocation2 + $0x88] sm:$0xff] %v2963
    %3012 = vst [vmem:[#allocation2 + $0x90] sm:$0xff] %v2964
    %3013 = vst [vmem:[#allocation2 + $0x98] sm:$0xff] %v2965
    %3014 = vst [vmem:[#allocation2 + $0xa0] sm:$0xff] %v2966
    %3015 = vst [vmem:[#allocation2 + $0xa8] sm:$0xff] %v2967
    %3016 = vst [vmem:[#allocation2 + $0xb0] sm:$0xff] %v2968
    %3017 = vst [vmem:[#allocation2 + $0xb8] sm:$0xff] %v2969
    %3018 = vst [vmem:[#allocation2 + $0xc0] sm:$0xff] %v2970
    %3019 = vst [vmem:[#allocation2 + $0xc8] sm:$0xff] %v2971
    %3020 = vst [vmem:[#allocation2 + $0xd0] sm:$0xff] %v2972
    %3021 = vst [vmem:[#allocation2 + $0xd8] sm:$0xff] %v2973
    %3022 = vst [vmem:[#allocation2 + $0xe0] sm:$0xff] %v2974
    %3023 = vst [vmem:[#allocation2 + $0xe8] sm:$0xff] %v2975
    %3024 = vst [vmem:[#allocation2 + $0xf0] sm:$0xff] %v2976
    %3025 = vst [vmem:[#allocation2 + $0xf8] sm:$0xff] %v2977
    %3026 = vst [vmem:[#allocation2 + $0x100] sm:$0xff] %v2978
    %3027 = vst [vmem:[#allocation2 + $0x108] sm:$0xff] %v2979
    %3028 = vst [vmem:[#allocation2 + $0x110] sm:$0xff] %v2980
    %3029 = vst [vmem:[#allocation2 + $0x118] sm:$0xff] %v2981
    %3030 = vst [vmem:[#allocation2 + $0x120] sm:$0xff] %v2982
    %3031 = vst [vmem:[#allocation2 + $0x128] sm:$0xff] %v2983
    %3032 = vst [vmem:[#allocation2 + $0x130] sm:$0xff] %v2984
    %3033 = vst [vmem:[#allocation2 + $0x138] sm:$0xff] %v2985
    %3034 = vst [vmem:[#allocation2 + $0x140] sm:$0xff] %v2986
    %3035 = vst [vmem:[#allocation2 + $0x148] sm:$0xff] %v2987
    %3036 = vst [vmem:[#allocation2 + $0x150] sm:$0xff] %v2988
    %3037 = vst [vmem:[#allocation2 + $0x158] sm:$0xff] %v2989
    %3038 = vst [vmem:[#allocation2 + $0x160] sm:$0xff] %v2990
    %3039 = vst [vmem:[#allocation2 + $0x168] sm:$0xff] %v2991
    %3040 = vst [vmem:[#allocation2 + $0x170] sm:$0xff] %v2992
    %3041 = vst [vmem:[#allocation2 + $0x178] sm:$0xff] %v2993
    %v3042 = vld [vmem:[#allocation2] sm:$0xff]
    %v3043 = vld [vmem:[#allocation2 + $0x8] sm:$0xff]
    %v3044 = vld [vmem:[#allocation2 + $0x10] sm:$0xff]
    %3045 = vst [vmem:[#allocation3] sm:$0xff] %v3042
    %3046 = vst [vmem:[#allocation3 + $0x80] sm:$0xff] %v3043
    %3047 = vst [vmem:[#allocation3 + $0x100] sm:$0xff] %v3044
    %v3048 = vld [vmem:[#allocation2 + $0x18] sm:$0xff]
    %v3049 = vld [vmem:[#allocation2 + $0x20] sm:$0xff]
    %v3050 = vld [vmem:[#allocation2 + $0x28] sm:$0xff]
    %3051 = vst [vmem:[#allocation3 + $0x8] sm:$0xff] %v3048
    %3052 = vst [vmem:[#allocation3 + $0x88] sm:$0xff] %v3049
    %3053 = vst [vmem:[#allocation3 + $0x108] sm:$0xff] %v3050
    %v3054 = vld [vmem:[#allocation2 + $0x30] sm:$0xff]
    %v3055 = vld [vmem:[#allocation2 + $0x38] sm:$0xff]
    %v3056 = vld [vmem:[#allocation2 + $0x40] sm:$0xff]
    %3057 = vst [vmem:[#allocation3 + $0x10] sm:$0xff] %v3054
    %3058 = vst [vmem:[#allocation3 + $0x90] sm:$0xff] %v3055
    %3059 = vst [vmem:[#allocation3 + $0x110] sm:$0xff] %v3056
    %v3060 = vld [vmem:[#allocation2 + $0x48] sm:$0xff]
    %v3061 = vld [vmem:[#allocation2 + $0x50] sm:$0xff]
    %v3062 = vld [vmem:[#allocation2 + $0x58] sm:$0xff]
    %3063 = vst [vmem:[#allocation3 + $0x18] sm:$0xff] %v3060
    %3064 = vst [vmem:[#allocation3 + $0x98] sm:$0xff] %v3061
    %3065 = vst [vmem:[#allocation3 + $0x118] sm:$0xff] %v3062
    %v3066 = vld [vmem:[#allocation2 + $0x60] sm:$0xff]
    %v3067 = vld [vmem:[#allocation2 + $0x68] sm:$0xff]
    %v3068 = vld [vmem:[#allocation2 + $0x70] sm:$0xff]
    %3069 = vst [vmem:[#allocation3 + $0x20] sm:$0xff] %v3066
    %3070 = vst [vmem:[#allocation3 + $0xa0] sm:$0xff] %v3067
    %3071 = vst [vmem:[#allocation3 + $0x120] sm:$0xff] %v3068
    %v3072 = vld [vmem:[#allocation2 + $0x78] sm:$0xff]
    %v3073 = vld [vmem:[#allocation2 + $0x80] sm:$0xff]
    %v3074 = vld [vmem:[#allocation2 + $0x88] sm:$0xff]
    %3075 = vst [vmem:[#allocation3 + $0x28] sm:$0xff] %v3072
    %3076 = vst [vmem:[#allocation3 + $0xa8] sm:$0xff] %v3073
    %3077 = vst [vmem:[#allocation3 + $0x128] sm:$0xff] %v3074
    %v3078 = vld [vmem:[#allocation2 + $0x90] sm:$0xff]
    %v3079 = vld [vmem:[#allocation2 + $0x98] sm:$0xff]
    %v3080 = vld [vmem:[#allocation2 + $0xa0] sm:$0xff]
    %3081 = vst [vmem:[#allocation3 + $0x30] sm:$0xff] %v3078
    %3082 = vst [vmem:[#allocation3 + $0xb0] sm:$0xff] %v3079
    %3083 = vst [vmem:[#allocation3 + $0x130] sm:$0xff] %v3080
    %v3084 = vld [vmem:[#allocation2 + $0xa8] sm:$0xff]
    %v3085 = vld [vmem:[#allocation2 + $0xb0] sm:$0xff]
    %v3086 = vld [vmem:[#allocation2 + $0xb8] sm:$0xff]
    %3087 = vst [vmem:[#allocation3 + $0x38] sm:$0xff] %v3084
    %3088 = vst [vmem:[#allocation3 + $0xb8] sm:$0xff] %v3085
    %3089 = vst [vmem:[#allocation3 + $0x138] sm:$0xff] %v3086
    %v3090 = vld [vmem:[#allocation2 + $0xc0] sm:$0xff]
    %v3091 = vld [vmem:[#allocation2 + $0xc8] sm:$0xff]
    %v3092 = vld [vmem:[#allocation2 + $0xd0] sm:$0xff]
    %3093 = vst [vmem:[#allocation3 + $0x40] sm:$0xff] %v3090
    %3094 = vst [vmem:[#allocation3 + $0xc0] sm:$0xff] %v3091
    %3095 = vst [vmem:[#allocation3 + $0x140] sm:$0xff] %v3092
    %v3096 = vld [vmem:[#allocation2 + $0xd8] sm:$0xff]
    %v3097 = vld [vmem:[#allocation2 + $0xe0] sm:$0xff]
    %v3098 = vld [vmem:[#allocation2 + $0xe8] sm:$0xff]
    %3099 = vst [vmem:[#allocation3 + $0x48] sm:$0xff] %v3096
    %3100 = vst [vmem:[#allocation3 + $0xc8] sm:$0xff] %v3097
    %3101 = vst [vmem:[#allocation3 + $0x148] sm:$0xff] %v3098
    %v3102 = vld [vmem:[#allocation2 + $0xf0] sm:$0xff]
    %v3103 = vld [vmem:[#allocation2 + $0xf8] sm:$0xff]
    %v3104 = vld [vmem:[#allocation2 + $0x100] sm:$0xff]
    %3105 = vst [vmem:[#allocation3 + $0x50] sm:$0xff] %v3102
    %3106 = vst [vmem:[#allocation3 + $0xd0] sm:$0xff] %v3103
    %3107 = vst [vmem:[#allocation3 + $0x150] sm:$0xff] %v3104
    %v3108 = vld [vmem:[#allocation2 + $0x108] sm:$0xff]
    %v3109 = vld [vmem:[#allocation2 + $0x110] sm:$0xff]
    %v3110 = vld [vmem:[#allocation2 + $0x118] sm:$0xff]
    %3111 = vst [vmem:[#allocation3 + $0x58] sm:$0xff] %v3108
    %3112 = vst [vmem:[#allocation3 + $0xd8] sm:$0xff] %v3109
    %3113 = vst [vmem:[#allocation3 + $0x158] sm:$0xff] %v3110
    %v3114 = vld [vmem:[#allocation2 + $0x120] sm:$0xff]
    %v3115 = vld [vmem:[#allocation2 + $0x128] sm:$0xff]
    %v3116 = vld [vmem:[#allocation2 + $0x130] sm:$0xff]
    %3117 = vst [vmem:[#allocation3 + $0x60] sm:$0xff] %v3114
    %3118 = vst [vmem:[#allocation3 + $0xe0] sm:$0xff] %v3115
    %3119 = vst [vmem:[#allocation3 + $0x160] sm:$0xff] %v3116
    %v3120 = vld [vmem:[#allocation2 + $0x138] sm:$0xff]
    %v3121 = vld [vmem:[#allocation2 + $0x140] sm:$0xff]
    %v3122 = vld [vmem:[#allocation2 + $0x148] sm:$0xff]
    %3123 = vst [vmem:[#allocation3 + $0x68] sm:$0xff] %v3120
    %3124 = vst [vmem:[#allocation3 + $0xe8] sm:$0xff] %v3121
    %3125 = vst [vmem:[#allocation3 + $0x168] sm:$0xff] %v3122
    %v3126 = vld [vmem:[#allocation2 + $0x150] sm:$0xff]
    %v3127 = vld [vmem:[#allocation2 + $0x158] sm:$0xff]
    %v3128 = vld [vmem:[#allocation2 + $0x160] sm:$0xff]
    %3129 = vst [vmem:[#allocation3 + $0x70] sm:$0xff] %v3126
    %3130 = vst [vmem:[#allocation3 + $0xf0] sm:$0xff] %v3127
    %3131 = vst [vmem:[#allocation3 + $0x170] sm:$0xff] %v3128
    %v3132 = vld [vmem:[#allocation2 + $0x168] sm:$0xff]
    %v3133 = vld [vmem:[#allocation2 + $0x170] sm:$0xff]
    %v3134 = vld [vmem:[#allocation2 + $0x178] sm:$0xff]
    %3135 = vst [vmem:[#allocation3 + $0x78] sm:$0xff] %v3132
    %3136 = vst [vmem:[#allocation3 + $0xf8] sm:$0xff] %v3133
    %3137 = vst [vmem:[#allocation3 + $0x178] sm:$0xff] %v3134
    %v3138 = vld [vmem:[#allocation3] sm:$0xff]
    %v3139 = vld [vmem:[#allocation3 + $0x8] sm:$0xff]
    %v3140 = vld [vmem:[#allocation3 + $0x10] sm:$0xff]
    %v3141 = vld [vmem:[#allocation3 + $0x18] sm:$0xff]
    %v3142 = vld [vmem:[#allocation3 + $0x20] sm:$0xff]
    %v3143 = vld [vmem:[#allocation3 + $0x28] sm:$0xff]
    %v3144 = vld [vmem:[#allocation3 + $0x30] sm:$0xff]
    %v3145 = vld [vmem:[#allocation3 + $0x38] sm:$0xff]
    %v3146 = vld [vmem:[#allocation3 + $0x40] sm:$0xff]
    %v3147 = vld [vmem:[#allocation3 + $0x48] sm:$0xff]
    %v3148 = vld [vmem:[#allocation3 + $0x50] sm:$0xff]
    %v3149 = vld [vmem:[#allocation3 + $0x58] sm:$0xff]
    %v3150 = vld [vmem:[#allocation3 + $0x60] sm:$0xff]
    %v3151 = vld [vmem:[#allocation3 + $0x68] sm:$0xff]
    %v3152 = vld [vmem:[#allocation3 + $0x70] sm:$0xff]
    %v3153 = vld [vmem:[#allocation3 + $0x78] sm:$0xff]
    %v3154 = vld [vmem:[#allocation3 + $0x80] sm:$0xff]
    %v3155 = vld [vmem:[#allocation3 + $0x88] sm:$0xff]
    %v3156 = vld [vmem:[#allocation3 + $0x90] sm:$0xff]
    %v3157 = vld [vmem:[#allocation3 + $0x98] sm:$0xff]
    %v3158 = vld [vmem:[#allocation3 + $0xa0] sm:$0xff]
    %v3159 = vld [vmem:[#allocation3 + $0xa8] sm:$0xff]
    %v3160 = vld [vmem:[#allocation3 + $0xb0] sm:$0xff]
    %v3161 = vld [vmem:[#allocation3 + $0xb8] sm:$0xff]
    %v3162 = vld [vmem:[#allocation3 + $0xc0] sm:$0xff]
    %v3163 = vld [vmem:[#allocation3 + $0xc8] sm:$0xff]
    %v3164 = vld [vmem:[#allocation3 + $0xd0] sm:$0xff]
    %v3165 = vld [vmem:[#allocation3 + $0xd8] sm:$0xff]
    %v3166 = vld [vmem:[#allocation3 + $0xe0] sm:$0xff]
    %v3167 = vld [vmem:[#allocation3 + $0xe8] sm:$0xff]
    %v3168 = vld [vmem:[#allocation3 + $0xf0] sm:$0xff]
    %v3169 = vld [vmem:[#allocation3 + $0xf8] sm:$0xff]
    %v3170 = vld [vmem:[#allocation3 + $0x100] sm:$0xff]
    %v3171 = vld [vmem:[#allocation3 + $0x108] sm:$0xff]
    %v3172 = vld [vmem:[#allocation3 + $0x110] sm:$0xff]
    %v3173 = vld [vmem:[#allocation3 + $0x118] sm:$0xff]
    %v3174 = vld [vmem:[#allocation3 + $0x120] sm:$0xff]
    %v3175 = vld [vmem:[#allocation3 + $0x128] sm:$0xff]
    %v3176 = vld [vmem:[#allocation3 + $0x130] sm:$0xff]
    %v3177 = vld [vmem:[#allocation3 + $0x138] sm:$0xff]
    %v3178 = vld [vmem:[#allocation3 + $0x140] sm:$0xff]
    %v3179 = vld [vmem:[#allocation3 + $0x148] sm:$0xff]
    %v3180 = vld [vmem:[#allocation3 + $0x150] sm:$0xff]
    %v3181 = vld [vmem:[#allocation3 + $0x158] sm:$0xff]
    %v3182 = vld [vmem:[#allocation3 + $0x160] sm:$0xff]
    %v3183 = vld [vmem:[#allocation3 + $0x168] sm:$0xff]
    %v3184 = vld [vmem:[#allocation3 + $0x170] sm:$0xff]
    %v3185 = vld [vmem:[#allocation3 + $0x178] sm:$0xff]
    %v3186 = vpack.c.bf16 %v3154, %v3138
    %v3187 = vpack.c.bf16 %v3155, %v3139
    %v3188 = vpack.c.bf16 %v3156, %v3140
    %v3189 = vpack.c.bf16 %v3157, %v3141
    %v3190 = vpack.c.bf16 %v3158, %v3142
    %v3191 = vpack.c.bf16 %v3159, %v3143
    %v3192 = vpack.c.bf16 %v3160, %v3144
    %v3193 = vpack.c.bf16 %v3161, %v3145
    %v3194 = vpack.c.bf16 %v3162, %v3146
    %v3195 = vpack.c.bf16 %v3163, %v3147
    %v3196 = vpack.c.bf16 %v3164, %v3148
    %v3197 = vpack.c.bf16 %v3165, %v3149
    %v3198 = vpack.c.bf16 %v3166, %v3150
    %v3199 = vpack.c.bf16 %v3167, %v3151
    %v3200 = vpack.c.bf16 %v3168, %v3152
    %v3201 = vpack.c.bf16 %v3169, %v3153
    %v3202 = vpack.c.bf16 %v3170, %v3170
    %v3203 = vpack.c.bf16 %v3171, %v3171
    %v3204 = vpack.c.bf16 %v3172, %v3172
    %v3205 = vpack.c.bf16 %v3173, %v3173
    %v3206 = vpack.c.bf16 %v3174, %v3174
    %v3207 = vpack.c.bf16 %v3175, %v3175
    %v3208 = vpack.c.bf16 %v3176, %v3176
    %v3209 = vpack.c.bf16 %v3177, %v3177
    %v3210 = vpack.c.bf16 %v3178, %v3178
    %v3211 = vpack.c.bf16 %v3179, %v3179
    %v3212 = vpack.c.bf16 %v3180, %v3180
    %v3213 = vpack.c.bf16 %v3181, %v3181
    %v3214 = vpack.c.bf16 %v3182, %v3182
    %v3215 = vpack.c.bf16 %v3183, %v3183
    %v3216 = vpack.c.bf16 %v3184, %v3184
    %v3217 = vpack.c.bf16 %v3185, %v3185
    %v3218 = vld [vmem:[#allocation4] sm:$0xff]
    %v3219 = vld [vmem:[#allocation4 + $0x8] sm:$0xff]
    %v3220 = vld [vmem:[#allocation4 + $0x10] sm:$0xff]
    %v3221 = vld [vmem:[#allocation4 + $0x18] sm:$0xff]
    %v3222 = vld [vmem:[#allocation4 + $0x20] sm:$0xff]
    %v3223 = vld [vmem:[#allocation4 + $0x28] sm:$0xff]
    %v3224 = vld [vmem:[#allocation4 + $0x30] sm:$0xff]
    %v3225 = vld [vmem:[#allocation4 + $0x38] sm:$0xff]
    %v3226 = vld [vmem:[#allocation4 + $0x40] sm:$0xff]
    %v3227 = vld [vmem:[#allocation4 + $0x48] sm:$0xff]
    %v3228 = vld [vmem:[#allocation4 + $0x50] sm:$0xff]
    %v3229 = vld [vmem:[#allocation4 + $0x58] sm:$0xff]
    %v3230 = vld [vmem:[#allocation4 + $0x60] sm:$0xff]
    %v3231 = vld [vmem:[#allocation4 + $0x68] sm:$0xff]
    %v3232 = vld [vmem:[#allocation4 + $0x70] sm:$0xff]
    %v3233 = vld [vmem:[#allocation4 + $0x78] sm:$0xff]
    %v3234 = vld [vmem:[#allocation4 + $0x80] sm:$0xff]
    %v3235 = vld [vmem:[#allocation4 + $0x88] sm:$0xff]
    %v3236 = vld [vmem:[#allocation4 + $0x90] sm:$0xff]
    %v3237 = vld [vmem:[#allocation4 + $0x98] sm:$0xff]
    %v3238 = vld [vmem:[#allocation4 + $0xa0] sm:$0xff]
    %v3239 = vld [vmem:[#allocation4 + $0xa8] sm:$0xff]
    %v3240 = vld [vmem:[#allocation4 + $0xb0] sm:$0xff]
    %v3241 = vld [vmem:[#allocation4 + $0xb8] sm:$0xff]
    %v3242 = vld [vmem:[#allocation4 + $0xc0] sm:$0xff]
    %v3243 = vld [vmem:[#allocation4 + $0xc8] sm:$0xff]
    %v3244 = vld [vmem:[#allocation4 + $0xd0] sm:$0xff]
    %v3245 = vld [vmem:[#allocation4 + $0xd8] sm:$0xff]
    %v3246 = vld [vmem:[#allocation4 + $0xe0] sm:$0xff]
    %v3247 = vld [vmem:[#allocation4 + $0xe8] sm:$0xff]
    %v3248 = vld [vmem:[#allocation4 + $0xf0] sm:$0xff]
    %v3249 = vld [vmem:[#allocation4 + $0xf8] sm:$0xff]
    %v3250 = vld [vmem:[#allocation4 + $0x100] sm:$0xff]
    %v3251 = vld [vmem:[#allocation4 + $0x108] sm:$0xff]
    %v3252 = vld [vmem:[#allocation4 + $0x110] sm:$0xff]
    %v3253 = vld [vmem:[#allocation4 + $0x118] sm:$0xff]
    %v3254 = vld [vmem:[#allocation4 + $0x120] sm:$0xff]
    %v3255 = vld [vmem:[#allocation4 + $0x128] sm:$0xff]
    %v3256 = vld [vmem:[#allocation4 + $0x130] sm:$0xff]
    %v3257 = vld [vmem:[#allocation4 + $0x138] sm:$0xff]
    %v3258 = vld [vmem:[#allocation4 + $0x140] sm:$0xff]
    %v3259 = vld [vmem:[#allocation4 + $0x148] sm:$0xff]
    %v3260 = vld [vmem:[#allocation4 + $0x150] sm:$0xff]
    %v3261 = vld [vmem:[#allocation4 + $0x158] sm:$0xff]
    %v3262 = vld [vmem:[#allocation4 + $0x160] sm:$0xff]
    %v3263 = vld [vmem:[#allocation4 + $0x168] sm:$0xff]
    %v3264 = vld [vmem:[#allocation4 + $0x170] sm:$0xff]
    %v3265 = vld [vmem:[#allocation4 + $0x178] sm:$0xff]
    %v3266 = vld [vmem:[#allocation4 + $0x180] sm:$0xff]
    %v3267 = vld [vmem:[#allocation4 + $0x188] sm:$0xff]
    %v3268 = vld [vmem:[#allocation4 + $0x190] sm:$0xff]
    %v3269 = vld [vmem:[#allocation4 + $0x198] sm:$0xff]
    %v3270 = vld [vmem:[#allocation4 + $0x1a0] sm:$0xff]
    %v3271 = vld [vmem:[#allocation4 + $0x1a8] sm:$0xff]
    %v3272 = vld [vmem:[#allocation4 + $0x1b0] sm:$0xff]
    %v3273 = vld [vmem:[#allocation4 + $0x1b8] sm:$0xff]
    %v3274 = vld [vmem:[#allocation4 + $0x1c0] sm:$0xff]
    %v3275 = vld [vmem:[#allocation4 + $0x1c8] sm:$0xff]
    %v3276 = vld [vmem:[#allocation4 + $0x1d0] sm:$0xff]
    %v3277 = vld [vmem:[#allocation4 + $0x1d8] sm:$0xff]
    %v3278 = vld [vmem:[#allocation4 + $0x1e0] sm:$0xff]
    %v3279 = vld [vmem:[#allocation4 + $0x1e8] sm:$0xff]
    %v3280 = vld [vmem:[#allocation4 + $0x1f0] sm:$0xff]
    %v3281 = vld [vmem:[#allocation4 + $0x1f8] sm:$0xff]
    %v3282 = vld [vmem:[#allocation4 + $0x200] sm:$0xff]
    %v3283 = vld [vmem:[#allocation4 + $0x208] sm:$0xff]
    %v3284 = vld [vmem:[#allocation4 + $0x210] sm:$0xff]
    %v3285 = vld [vmem:[#allocation4 + $0x218] sm:$0xff]
    %v3286 = vld [vmem:[#allocation4 + $0x220] sm:$0xff]
    %v3287 = vld [vmem:[#allocation4 + $0x228] sm:$0xff]
    %v3288 = vld [vmem:[#allocation4 + $0x230] sm:$0xff]
    %v3289 = vld [vmem:[#allocation4 + $0x238] sm:$0xff]
    %v3290 = vld [vmem:[#allocation4 + $0x240] sm:$0xff]
    %v3291 = vld [vmem:[#allocation4 + $0x248] sm:$0xff]
    %v3292 = vld [vmem:[#allocation4 + $0x250] sm:$0xff]
    %v3293 = vld [vmem:[#allocation4 + $0x258] sm:$0xff]
    %v3294 = vld [vmem:[#allocation4 + $0x260] sm:$0xff]
    %v3295 = vld [vmem:[#allocation4 + $0x268] sm:$0xff]
    %v3296 = vld [vmem:[#allocation4 + $0x270] sm:$0xff]
    %v3297 = vld [vmem:[#allocation4 + $0x278] sm:$0xff]
    %v3298 = vld [vmem:[#allocation4 + $0x280] sm:$0xff]
    %v3299 = vld [vmem:[#allocation4 + $0x288] sm:$0xff]
    %v3300 = vld [vmem:[#allocation4 + $0x290] sm:$0xff]
    %v3301 = vld [vmem:[#allocation4 + $0x298] sm:$0xff]
    %v3302 = vld [vmem:[#allocation4 + $0x2a0] sm:$0xff]
    %v3303 = vld [vmem:[#allocation4 + $0x2a8] sm:$0xff]
    %v3304 = vld [vmem:[#allocation4 + $0x2b0] sm:$0xff]
    %v3305 = vld [vmem:[#allocation4 + $0x2b8] sm:$0xff]
    %v3306 = vld [vmem:[#allocation4 + $0x2c0] sm:$0xff]
    %v3307 = vld [vmem:[#allocation4 + $0x2c8] sm:$0xff]
    %v3308 = vld [vmem:[#allocation4 + $0x2d0] sm:$0xff]
    %v3309 = vld [vmem:[#allocation4 + $0x2d8] sm:$0xff]
    %v3310 = vld [vmem:[#allocation4 + $0x2e0] sm:$0xff]
    %v3311 = vld [vmem:[#allocation4 + $0x2e8] sm:$0xff]
    %v3312 = vld [vmem:[#allocation4 + $0x2f0] sm:$0xff]
    %v3313 = vld [vmem:[#allocation4 + $0x2f8] sm:$0xff]
    %v3314 = vld [vmem:[#allocation4 + $0x300] sm:$0xff]
    %v3315 = vld [vmem:[#allocation4 + $0x308] sm:$0xff]
    %v3316 = vld [vmem:[#allocation4 + $0x310] sm:$0xff]
    %v3317 = vld [vmem:[#allocation4 + $0x318] sm:$0xff]
    %v3318 = vld [vmem:[#allocation4 + $0x320] sm:$0xff]
    %v3319 = vld [vmem:[#allocation4 + $0x328] sm:$0xff]
    %v3320 = vld [vmem:[#allocation4 + $0x330] sm:$0xff]
    %v3321 = vld [vmem:[#allocation4 + $0x338] sm:$0xff]
    %v3322 = vld [vmem:[#allocation4 + $0x340] sm:$0xff]
    %v3323 = vld [vmem:[#allocation4 + $0x348] sm:$0xff]
    %v3324 = vld [vmem:[#allocation4 + $0x350] sm:$0xff]
    %v3325 = vld [vmem:[#allocation4 + $0x358] sm:$0xff]
    %v3326 = vld [vmem:[#allocation4 + $0x360] sm:$0xff]
    %v3327 = vld [vmem:[#allocation4 + $0x368] sm:$0xff]
    %v3328 = vld [vmem:[#allocation4 + $0x370] sm:$0xff]
    %v3329 = vld [vmem:[#allocation4 + $0x378] sm:$0xff]
    %v3330 = vld [vmem:[#allocation4 + $0x380] sm:$0xff]
    %v3331 = vld [vmem:[#allocation4 + $0x388] sm:$0xff]
    %v3332 = vld [vmem:[#allocation4 + $0x390] sm:$0xff]
    %v3333 = vld [vmem:[#allocation4 + $0x398] sm:$0xff]
    %v3334 = vld [vmem:[#allocation4 + $0x3a0] sm:$0xff]
    %v3335 = vld [vmem:[#allocation4 + $0x3a8] sm:$0xff]
    %v3336 = vld [vmem:[#allocation4 + $0x3b0] sm:$0xff]
    %v3337 = vld [vmem:[#allocation4 + $0x3b8] sm:$0xff]
    %v3338 = vld [vmem:[#allocation4 + $0x3c0] sm:$0xff]
    %v3339 = vld [vmem:[#allocation4 + $0x3c8] sm:$0xff]
    %v3340 = vld [vmem:[#allocation4 + $0x3d0] sm:$0xff]
    %v3341 = vld [vmem:[#allocation4 + $0x3d8] sm:$0xff]
    %v3342 = vld [vmem:[#allocation4 + $0x3e0] sm:$0xff]
    %v3343 = vld [vmem:[#allocation4 + $0x3e8] sm:$0xff]
    %v3344 = vld [vmem:[#allocation4 + $0x3f0] sm:$0xff]
    %v3345 = vld [vmem:[#allocation4 + $0x3f8] sm:$0xff]
    %v3346 = vld [vmem:[#allocation4 + $0x400] sm:$0xff]
    %v3347 = vld [vmem:[#allocation4 + $0x408] sm:$0xff]
    %v3348 = vld [vmem:[#allocation4 + $0x410] sm:$0xff]
    %v3349 = vld [vmem:[#allocation4 + $0x418] sm:$0xff]
    %v3350 = vld [vmem:[#allocation4 + $0x420] sm:$0xff]
    %v3351 = vld [vmem:[#allocation4 + $0x428] sm:$0xff]
    %v3352 = vld [vmem:[#allocation4 + $0x430] sm:$0xff]
    %v3353 = vld [vmem:[#allocation4 + $0x438] sm:$0xff]
    %v3354 = vld [vmem:[#allocation4 + $0x440] sm:$0xff]
    %v3355 = vld [vmem:[#allocation4 + $0x448] sm:$0xff]
    %v3356 = vld [vmem:[#allocation4 + $0x450] sm:$0xff]
    %v3357 = vld [vmem:[#allocation4 + $0x458] sm:$0xff]
    %v3358 = vld [vmem:[#allocation4 + $0x460] sm:$0xff]
    %v3359 = vld [vmem:[#allocation4 + $0x468] sm:$0xff]
    %v3360 = vld [vmem:[#allocation4 + $0x470] sm:$0xff]
    %v3361 = vld [vmem:[#allocation4 + $0x478] sm:$0xff]
    %v3362 = vld [vmem:[#allocation4 + $0x480] sm:$0xff]
    %v3363 = vld [vmem:[#allocation4 + $0x488] sm:$0xff]
    %v3364 = vld [vmem:[#allocation4 + $0x490] sm:$0xff]
    %v3365 = vld [vmem:[#allocation4 + $0x498] sm:$0xff]
    %v3366 = vld [vmem:[#allocation4 + $0x4a0] sm:$0xff]
    %v3367 = vld [vmem:[#allocation4 + $0x4a8] sm:$0xff]
    %v3368 = vld [vmem:[#allocation4 + $0x4b0] sm:$0xff]
    %v3369 = vld [vmem:[#allocation4 + $0x4b8] sm:$0xff]
    %v3370 = vld [vmem:[#allocation4 + $0x4c0] sm:$0xff]
    %v3371 = vld [vmem:[#allocation4 + $0x4c8] sm:$0xff]
    %v3372 = vld [vmem:[#allocation4 + $0x4d0] sm:$0xff]
    %v3373 = vld [vmem:[#allocation4 + $0x4d8] sm:$0xff]
    %v3374 = vld [vmem:[#allocation4 + $0x4e0] sm:$0xff]
    %v3375 = vld [vmem:[#allocation4 + $0x4e8] sm:$0xff]
    %v3376 = vld [vmem:[#allocation4 + $0x4f0] sm:$0xff]
    %v3377 = vld [vmem:[#allocation4 + $0x4f8] sm:$0xff]
    %v3378 = vld [vmem:[#allocation4 + $0x500] sm:$0xff]
    %v3379 = vld [vmem:[#allocation4 + $0x508] sm:$0xff]
    %v3380 = vld [vmem:[#allocation4 + $0x510] sm:$0xff]
    %v3381 = vld [vmem:[#allocation4 + $0x518] sm:$0xff]
    %v3382 = vld [vmem:[#allocation4 + $0x520] sm:$0xff]
    %v3383 = vld [vmem:[#allocation4 + $0x528] sm:$0xff]
    %v3384 = vld [vmem:[#allocation4 + $0x530] sm:$0xff]
    %v3385 = vld [vmem:[#allocation4 + $0x538] sm:$0xff]
    %v3386 = vld [vmem:[#allocation4 + $0x540] sm:$0xff]
    %v3387 = vld [vmem:[#allocation4 + $0x548] sm:$0xff]
    %v3388 = vld [vmem:[#allocation4 + $0x550] sm:$0xff]
    %v3389 = vld [vmem:[#allocation4 + $0x558] sm:$0xff]
    %v3390 = vld [vmem:[#allocation4 + $0x560] sm:$0xff]
    %v3391 = vld [vmem:[#allocation4 + $0x568] sm:$0xff]
    %v3392 = vld [vmem:[#allocation4 + $0x570] sm:$0xff]
    %v3393 = vld [vmem:[#allocation4 + $0x578] sm:$0xff]
    %v3394 = vld [vmem:[#allocation4 + $0x580] sm:$0xff]
    %v3395 = vld [vmem:[#allocation4 + $0x588] sm:$0xff]
    %v3396 = vld [vmem:[#allocation4 + $0x590] sm:$0xff]
    %v3397 = vld [vmem:[#allocation4 + $0x598] sm:$0xff]
    %v3398 = vld [vmem:[#allocation4 + $0x5a0] sm:$0xff]
    %v3399 = vld [vmem:[#allocation4 + $0x5a8] sm:$0xff]
    %v3400 = vld [vmem:[#allocation4 + $0x5b0] sm:$0xff]
    %v3401 = vld [vmem:[#allocation4 + $0x5b8] sm:$0xff]
    %v3402 = vld [vmem:[#allocation4 + $0x5c0] sm:$0xff]
    %v3403 = vld [vmem:[#allocation4 + $0x5c8] sm:$0xff]
    %v3404 = vld [vmem:[#allocation4 + $0x5d0] sm:$0xff]
    %v3405 = vld [vmem:[#allocation4 + $0x5d8] sm:$0xff]
    %v3406 = vld [vmem:[#allocation4 + $0x5e0] sm:$0xff]
    %v3407 = vld [vmem:[#allocation4 + $0x5e8] sm:$0xff]
    %v3408 = vld [vmem:[#allocation4 + $0x5f0] sm:$0xff]
    %v3409 = vld [vmem:[#allocation4 + $0x5f8] sm:$0xff]
    %v3410 = vld [vmem:[#allocation4 + $0x600] sm:$0xff]
    %v3411 = vld [vmem:[#allocation4 + $0x608] sm:$0xff]
    %v3412 = vld [vmem:[#allocation4 + $0x610] sm:$0xff]
    %v3413 = vld [vmem:[#allocation4 + $0x618] sm:$0xff]
    %v3414 = vld [vmem:[#allocation4 + $0x620] sm:$0xff]
    %v3415 = vld [vmem:[#allocation4 + $0x628] sm:$0xff]
    %v3416 = vld [vmem:[#allocation4 + $0x630] sm:$0xff]
    %v3417 = vld [vmem:[#allocation4 + $0x638] sm:$0xff]
    %v3418 = vld [vmem:[#allocation4 + $0x640] sm:$0xff]
    %v3419 = vld [vmem:[#allocation4 + $0x648] sm:$0xff]
    %v3420 = vld [vmem:[#allocation4 + $0x650] sm:$0xff]
    %v3421 = vld [vmem:[#allocation4 + $0x658] sm:$0xff]
    %v3422 = vld [vmem:[#allocation4 + $0x660] sm:$0xff]
    %v3423 = vld [vmem:[#allocation4 + $0x668] sm:$0xff]
    %v3424 = vld [vmem:[#allocation4 + $0x670] sm:$0xff]
    %v3425 = vld [vmem:[#allocation4 + $0x678] sm:$0xff]
    %v3426 = vld [vmem:[#allocation4 + $0x680] sm:$0xff]
    %v3427 = vld [vmem:[#allocation4 + $0x688] sm:$0xff]
    %v3428 = vld [vmem:[#allocation4 + $0x690] sm:$0xff]
    %v3429 = vld [vmem:[#allocation4 + $0x698] sm:$0xff]
    %v3430 = vld [vmem:[#allocation4 + $0x6a0] sm:$0xff]
    %v3431 = vld [vmem:[#allocation4 + $0x6a8] sm:$0xff]
    %v3432 = vld [vmem:[#allocation4 + $0x6b0] sm:$0xff]
    %v3433 = vld [vmem:[#allocation4 + $0x6b8] sm:$0xff]
    %v3434 = vld [vmem:[#allocation4 + $0x6c0] sm:$0xff]
    %v3435 = vld [vmem:[#allocation4 + $0x6c8] sm:$0xff]
    %v3436 = vld [vmem:[#allocation4 + $0x6d0] sm:$0xff]
    %v3437 = vld [vmem:[#allocation4 + $0x6d8] sm:$0xff]
    %v3438 = vld [vmem:[#allocation4 + $0x6e0] sm:$0xff]
    %v3439 = vld [vmem:[#allocation4 + $0x6e8] sm:$0xff]
    %v3440 = vld [vmem:[#allocation4 + $0x6f0] sm:$0xff]
    %v3441 = vld [vmem:[#allocation4 + $0x6f8] sm:$0xff]
    %v3442 = vld [vmem:[#allocation4 + $0x700] sm:$0xff]
    %v3443 = vld [vmem:[#allocation4 + $0x708] sm:$0xff]
    %v3444 = vld [vmem:[#allocation4 + $0x710] sm:$0xff]
    %v3445 = vld [vmem:[#allocation4 + $0x718] sm:$0xff]
    %v3446 = vld [vmem:[#allocation4 + $0x720] sm:$0xff]
    %v3447 = vld [vmem:[#allocation4 + $0x728] sm:$0xff]
    %v3448 = vld [vmem:[#allocation4 + $0x730] sm:$0xff]
    %v3449 = vld [vmem:[#allocation4 + $0x738] sm:$0xff]
    %v3450 = vld [vmem:[#allocation4 + $0x740] sm:$0xff]
    %v3451 = vld [vmem:[#allocation4 + $0x748] sm:$0xff]
    %v3452 = vld [vmem:[#allocation4 + $0x750] sm:$0xff]
    %v3453 = vld [vmem:[#allocation4 + $0x758] sm:$0xff]
    %v3454 = vld [vmem:[#allocation4 + $0x760] sm:$0xff]
    %v3455 = vld [vmem:[#allocation4 + $0x768] sm:$0xff]
    %v3456 = vld [vmem:[#allocation4 + $0x770] sm:$0xff]
    %v3457 = vld [vmem:[#allocation4 + $0x778] sm:$0xff]
    %v3458 = vld [vmem:[#allocation4 + $0x780] sm:$0xff]
    %v3459 = vld [vmem:[#allocation4 + $0x788] sm:$0xff]
    %v3460 = vld [vmem:[#allocation4 + $0x790] sm:$0xff]
    %v3461 = vld [vmem:[#allocation4 + $0x798] sm:$0xff]
    %v3462 = vld [vmem:[#allocation4 + $0x7a0] sm:$0xff]
    %v3463 = vld [vmem:[#allocation4 + $0x7a8] sm:$0xff]
    %v3464 = vld [vmem:[#allocation4 + $0x7b0] sm:$0xff]
    %v3465 = vld [vmem:[#allocation4 + $0x7b8] sm:$0xff]
    %v3466 = vld [vmem:[#allocation4 + $0x7c0] sm:$0xff]
    %v3467 = vld [vmem:[#allocation4 + $0x7c8] sm:$0xff]
    %v3468 = vld [vmem:[#allocation4 + $0x7d0] sm:$0xff]
    %v3469 = vld [vmem:[#allocation4 + $0x7d8] sm:$0xff]
    %v3470 = vld [vmem:[#allocation4 + $0x7e0] sm:$0xff]
    %v3471 = vld [vmem:[#allocation4 + $0x7e8] sm:$0xff]
    %v3472 = vld [vmem:[#allocation4 + $0x7f0] sm:$0xff]
    %v3473 = vld [vmem:[#allocation4 + $0x7f8] sm:$0xff]
    %v3474 = vld [vmem:[%s6] sm:$0x3]
    %v3476 = vlaneseq
    %v3477 = vshrl.u32 %v3476, 7
    %v3478 = vsub.s32 0, %v3477
    %v3479 = vrot.slane %v3474, %v3478
    %v3480 = vlaneseq
    %v3481 = vshrl.u32 %v3480, 7
    %v3482 = vsub.s32 1, %v3481
    %v3483 = vrot.slane %v3474, %v3482
    %3486 = vmatprep.subr.bf16.mxu0 %v3219
    %3487 = vmatpush1.bf16.msra.mxu0 %v3218
    %3488 = vmatprep.subr.bf16.mxu0 %v3221
    %3489 = vmatpush1.bf16.msra.mxu0 %v3220
    %3490 = vmatprep.subr.bf16.mxu0 %v3223
    %3491 = vmatpush1.bf16.msra.mxu0 %v3222
    %3492 = vmatprep.subr.bf16.mxu0 %v3225
    %3493 = vmatpush1.bf16.msra.mxu0 %v3224
    %3494 = vmatprep.subr.bf16.mxu0 %v3227
    %3495 = vmatpush1.bf16.msra.mxu0 %v3226
    %3496 = vmatprep.subr.bf16.mxu0 %v3229
    %3497 = vmatpush1.bf16.msra.mxu0 %v3228
    %3498 = vmatprep.subr.bf16.mxu0 %v3231
    %3499 = vmatpush1.bf16.msra.mxu0 %v3230
    %3500 = vmatprep.subr.bf16.mxu0 %v3233
    %3501 = vmatpush1.bf16.msra.mxu0 %v3232
    %3502 = vmatprep.subr.bf16.mxu0 %v3235
    %3503 = vmatpush1.bf16.msra.mxu0 %v3234
    %3504 = vmatprep.subr.bf16.mxu0 %v3237
    %3505 = vmatpush1.bf16.msra.mxu0 %v3236
    %3506 = vmatprep.subr.bf16.mxu0 %v3239
    %3507 = vmatpush1.bf16.msra.mxu0 %v3238
    %3508 = vmatprep.subr.bf16.mxu0 %v3241
    %3509 = vmatpush1.bf16.msra.mxu0 %v3240
    %3510 = vmatprep.subr.bf16.mxu0 %v3243
    %3511 = vmatpush1.bf16.msra.mxu0 %v3242
    %3512 = vmatprep.subr.bf16.mxu0 %v3245
    %3513 = vmatpush1.bf16.msra.mxu0 %v3244
    %3514 = vmatprep.subr.bf16.mxu0 %v3247
    %3515 = vmatpush1.bf16.msra.mxu0 %v3246
    %3516 = vmatprep.subr.bf16.mxu0 %v3249
    %3517 = vmatpush1.bf16.msra.mxu0 %v3248
    %3518 = vmatprep.mubr.bf16.mxu0 %v3187
    %3519 = vmatmul.mubr.bf16.gmra.mrb[0].mxu0 %v3186
    %v3520 = vpop.f32.mrb[0].mxu0
    %v3521 = vadd.f32 %v3479, %v3520
    %v3522 = vpop.f32.mrb[0].mxu0
    %v3523 = vadd.f32 %v3483, %v3522
    %v3524 = vpop.f32.mrb[0].mxu0
    %v3525 = vadd.f32 %v3479, %v3524
    %v3526 = vpop.f32.mrb[0].mxu0
    %v3527 = vadd.f32 %v3483, %v3526
    %3528 = vmatprep.mubr.bf16.mxu0 %v3203
    %3529 = vmatmul.mubr.bf16.gmra.mrb[0].mxu0 %v3202
    %v3530 = vpop.f32.mrb[0].mxu0
    %v3531 = vadd.f32 %v3479, %v3530
    %v3532 = vpop.f32.mrb[0].mxu0
    %v3533 = vadd.f32 %v3483, %v3532
    %v3534 = vpop.f32.mrb[0].mxu0
    %v3535 = vpop.f32.mrb[0].mxu0
    %3536 = vdwg.mxu0
    %3537 = vmatprep.subr.bf16.mxu0 %v3251
    %3538 = vmatpush1.bf16.msra.mxu0 %v3250
    %3539 = vmatprep.subr.bf16.mxu0 %v3253
    %3540 = vmatpush1.bf16.msra.mxu0 %v3252
    %3541 = vmatprep.subr.bf16.mxu0 %v3255
    %3542 = vmatpush1.bf16.msra.mxu0 %v3254
    %3543 = vmatprep.subr.bf16.mxu0 %v3257
    %3544 = vmatpush1.bf16.msra.mxu0 %v3256
    %3545 = vmatprep.subr.bf16.mxu0 %v3259
    %3546 = vmatpush1.bf16.msra.mxu0 %v3258
    %3547 = vmatprep.subr.bf16.mxu0 %v3261
    %3548 = vmatpush1.bf16.msra.mxu0 %v3260
    %3549 = vmatprep.subr.bf16.mxu0 %v3263
    %3550 = vmatpush1.bf16.msra.mxu0 %v3262
    %3551 = vmatprep.subr.bf16.mxu0 %v3265
    %3552 = vmatpush1.bf16.msra.mxu0 %v3264
    %3553 = vmatprep.subr.bf16.mxu0 %v3267
    %3554 = vmatpush1.bf16.msra.mxu0 %v3266
    %3555 = vmatprep.subr.bf16.mxu0 %v3269
    %3556 = vmatpush1.bf16.msra.mxu0 %v3268
    %3557 = vmatprep.subr.bf16.mxu0 %v3271
    %3558 = vmatpush1.bf16.msra.mxu0 %v3270
    %3559 = vmatprep.subr.bf16.mxu0 %v3273
    %3560 = vmatpush1.bf16.msra.mxu0 %v3272
    %3561 = vmatprep.subr.bf16.mxu0 %v3275
    %3562 = vmatpush1.bf16.msra.mxu0 %v3274
    %3563 = vmatprep.subr.bf16.mxu0 %v3277
    %3564 = vmatpush1.bf16.msra.mxu0 %v3276
    %3565 = vmatprep.subr.bf16.mxu0 %v3279
    %3566 = vmatpush1.bf16.msra.mxu0 %v3278
    %3567 = vmatprep.subr.bf16.mxu0 %v3281
    %3568 = vmatpush1.bf16.msra.mxu0 %v3280
    %3569 = vmatprep.mubr.bf16.mxu0 %v3189
    %3570 = vmatmul.mubr.bf16.gmra.mrb[0].mxu0 %v3188
    %v3571 = vpop.f32.mrb[0].mxu0
    %v3572 = vadd.f32 %v3521, %v3571
    %v3573 = vpop.f32.mrb[0].mxu0
    %v3574 = vadd.f32 %v3523, %v3573
    %v3575 = vpop.f32.mrb[0].mxu0
    %v3576 = vadd.f32 %v3525, %v3575
    %v3577 = vpop.f32.mrb[0].mxu0
    %v3578 = vadd.f32 %v3527, %v3577
    %3579 = vmatprep.mubr.bf16.mxu0 %v3205
    %3580 = vmatmul.mubr.bf16.gmra.mrb[0].mxu0 %v3204
    %v3581 = vpop.f32.mrb[0].mxu0
    %v3582 = vadd.f32 %v3531, %v3581
    %v3583 = vpop.f32.mrb[0].mxu0
    %v3584 = vadd.f32 %v3533, %v3583
    %v3585 = vpop.f32.mrb[0].mxu0
    %v3586 = vpop.f32.mrb[0].mxu0
    %3587 = vdwg.mxu0
    %3588 = vmatprep.subr.bf16.mxu0 %v3283
    %3589 = vmatpush1.bf16.msra.mxu0 %v3282
    %3590 = vmatprep.subr.bf16.mxu0 %v3285
    %3591 = vmatpush1.bf16.msra.mxu0 %v3284
    %3592 = vmatprep.subr.bf16.mxu0 %v3287
    %3593 = vmatpush1.bf16.msra.mxu0 %v3286
    %3594 = vmatprep.subr.bf16.mxu0 %v3289
    %3595 = vmatpush1.bf16.msra.mxu0 %v3288
    %3596 = vmatprep.subr.bf16.mxu0 %v3291
    %3597 = vmatpush1.bf16.msra.mxu0 %v3290
    %3598 = vmatprep.subr.bf16.mxu0 %v3293
    %3599 = vmatpush1.bf16.msra.mxu0 %v3292
    %3600 = vmatprep.subr.bf16.mxu0 %v3295
    %3601 = vmatpush1.bf16.msra.mxu0 %v3294
    %3602 = vmatprep.subr.bf16.mxu0 %v3297
    %3603 = vmatpush1.bf16.msra.mxu0 %v3296
    %3604 = vmatprep.subr.bf16.mxu0 %v3299
    %3605 = vmatpush1.bf16.msra.mxu0 %v3298
    %3606 = vmatprep.subr.bf16.mxu0 %v3301
    %3607 = vmatpush1.bf16.msra.mxu0 %v3300
    %3608 = vmatprep.subr.bf16.mxu0 %v3303
    %3609 = vmatpush1.bf16.msra.mxu0 %v3302
    %3610 = vmatprep.subr.bf16.mxu0 %v3305
    %3611 = vmatpush1.bf16.msra.mxu0 %v3304
    %3612 = vmatprep.subr.bf16.mxu0 %v3307
    %3613 = vmatpush1.bf16.msra.mxu0 %v3306
    %3614 = vmatprep.subr.bf16.mxu0 %v3309
    %3615 = vmatpush1.bf16.msra.mxu0 %v3308
    %3616 = vmatprep.subr.bf16.mxu0 %v3311
    %3617 = vmatpush1.bf16.msra.mxu0 %v3310
    %3618 = vmatprep.subr.bf16.mxu0 %v3313
    %3619 = vmatpush1.bf16.msra.mxu0 %v3312
    %3620 = vmatprep.mubr.bf16.mxu0 %v3191
    %3621 = vmatmul.mubr.bf16.gmra.mrb[0].mxu0 %v3190
    %v3622 = vpop.f32.mrb[0].mxu0
    %v3623 = vadd.f32 %v3572, %v3622
    %v3624 = vpop.f32.mrb[0].mxu0
    %v3625 = vadd.f32 %v3574, %v3624
    %v3626 = vpop.f32.mrb[0].mxu0
    %v3627 = vadd.f32 %v3576, %v3626
    %v3628 = vpop.f32.mrb[0].mxu0
    %v3629 = vadd.f32 %v3578, %v3628
    %3630 = vmatprep.mubr.bf16.mxu0 %v3207
    %3631 = vmatmul.mubr.bf16.gmra.mrb[0].mxu0 %v3206
    %v3632 = vpop.f32.mrb[0].mxu0
    %v3633 = vadd.f32 %v3582, %v3632
    %v3634 = vpop.f32.mrb[0].mxu0
    %v3635 = vadd.f32 %v3584, %v3634
    %v3636 = vpop.f32.mrb[0].mxu0
    %v3637 = vpop.f32.mrb[0].mxu0
    %3638 = vdwg.mxu0
    %3639 = vmatprep.subr.bf16.mxu0 %v3315
    %3640 = vmatpush1.bf16.msra.mxu0 %v3314
    %3641 = vmatprep.subr.bf16.mxu0 %v3317
    %3642 = vmatpush1.bf16.msra.mxu0 %v3316
    %3643 = vmatprep.subr.bf16.mxu0 %v3319
    %3644 = vmatpush1.bf16.msra.mxu0 %v3318
    %3645 = vmatprep.subr.bf16.mxu0 %v3321
    %3646 = vmatpush1.bf16.msra.mxu0 %v3320
    %3647 = vmatprep.subr.bf16.mxu0 %v3323
    %3648 = vmatpush1.bf16.msra.mxu0 %v3322
    %3649 = vmatprep.subr.bf16.mxu0 %v3325
    %3650 = vmatpush1.bf16.msra.mxu0 %v3324
    %3651 = vmatprep.subr.bf16.mxu0 %v3327
    %3652 = vmatpush1.bf16.msra.mxu0 %v3326
    %3653 = vmatprep.subr.bf16.mxu0 %v3329
    %3654 = vmatpush1.bf16.msra.mxu0 %v3328
    %3655 = vmatprep.subr.bf16.mxu0 %v3331
    %3656 = vmatpush1.bf16.msra.mxu0 %v3330
    %3657 = vmatprep.subr.bf16.mxu0 %v3333
    %3658 = vmatpush1.bf16.msra.mxu0 %v3332
    %3659 = vmatprep.subr.bf16.mxu0 %v3335
    %3660 = vmatpush1.bf16.msra.mxu0 %v3334
    %3661 = vmatprep.subr.bf16.mxu0 %v3337
    %3662 = vmatpush1.bf16.msra.mxu0 %v3336
    %3663 = vmatprep.subr.bf16.mxu0 %v3339
    %3664 = vmatpush1.bf16.msra.mxu0 %v3338
    %3665 = vmatprep.subr.bf16.mxu0 %v3341
    %3666 = vmatpush1.bf16.msra.mxu0 %v3340
    %3667 = vmatprep.subr.bf16.mxu0 %v3343
    %3668 = vmatpush1.bf16.msra.mxu0 %v3342
    %3669 = vmatprep.subr.bf16.mxu0 %v3345
    %3670 = vmatpush1.bf16.msra.mxu0 %v3344
    %3671 = vmatprep.mubr.bf16.mxu0 %v3193
    %3672 = vmatmul.mubr.bf16.gmra.mrb[0].mxu0 %v3192
    %v3673 = vpop.f32.mrb[0].mxu0
    %v3674 = vadd.f32 %v3623, %v3673
    %v3675 = vpop.f32.mrb[0].mxu0
    %v3676 = vadd.f32 %v3625, %v3675
    %v3677 = vpop.f32.mrb[0].mxu0
    %v3678 = vadd.f32 %v3627, %v3677
    %v3679 = vpop.f32.mrb[0].mxu0
    %v3680 = vadd.f32 %v3629, %v3679
    %3681 = vmatprep.mubr.bf16.mxu0 %v3209
    %3682 = vmatmul.mubr.bf16.gmra.mrb[0].mxu0 %v3208
    %v3683 = vpop.f32.mrb[0].mxu0
    %v3684 = vadd.f32 %v3633, %v3683
    %v3685 = vpop.f32.mrb[0].mxu0
    %v3686 = vadd.f32 %v3635, %v3685
    %v3687 = vpop.f32.mrb[0].mxu0
    %v3688 = vpop.f32.mrb[0].mxu0
    %3689 = vdwg.mxu0
    %3690 = vmatprep.subr.bf16.mxu0 %v3347
    %3691 = vmatpush1.bf16.msra.mxu0 %v3346
    %3692 = vmatprep.subr.bf16.mxu0 %v3349
    %3693 = vmatpush1.bf16.msra.mxu0 %v3348
    %3694 = vmatprep.subr.bf16.mxu0 %v3351
    %3695 = vmatpush1.bf16.msra.mxu0 %v3350
    %3696 = vmatprep.subr.bf16.mxu0 %v3353
    %3697 = vmatpush1.bf16.msra.mxu0 %v3352
    %3698 = vmatprep.subr.bf16.mxu0 %v3355
    %3699 = vmatpush1.bf16.msra.mxu0 %v3354
    %3700 = vmatprep.subr.bf16.mxu0 %v3357
    %3701 = vmatpush1.bf16.msra.mxu0 %v3356
    %3702 = vmatprep.subr.bf16.mxu0 %v3359
    %3703 = vmatpush1.bf16.msra.mxu0 %v3358
    %3704 = vmatprep.subr.bf16.mxu0 %v3361
    %3705 = vmatpush1.bf16.msra.mxu0 %v3360
    %3706 = vmatprep.subr.bf16.mxu0 %v3363
    %3707 = vmatpush1.bf16.msra.mxu0 %v3362
    %3708 = vmatprep.subr.bf16.mxu0 %v3365
    %3709 = vmatpush1.bf16.msra.mxu0 %v3364
    %3710 = vmatprep.subr.bf16.mxu0 %v3367
    %3711 = vmatpush1.bf16.msra.mxu0 %v3366
    %3712 = vmatprep.subr.bf16.mxu0 %v3369
    %3713 = vmatpush1.bf16.msra.mxu0 %v3368
    %3714 = vmatprep.subr.bf16.mxu0 %v3371
    %3715 = vmatpush1.bf16.msra.mxu0 %v3370
    %3716 = vmatprep.subr.bf16.mxu0 %v3373
    %3717 = vmatpush1.bf16.msra.mxu0 %v3372
    %3718 = vmatprep.subr.bf16.mxu0 %v3375
    %3719 = vmatpush1.bf16.msra.mxu0 %v3374
    %3720 = vmatprep.subr.bf16.mxu0 %v3377
    %3721 = vmatpush1.bf16.msra.mxu0 %v3376
    %3722 = vmatprep.mubr.bf16.mxu0 %v3195
    %3723 = vmatmul.mubr.bf16.gmra.mrb[0].mxu0 %v3194
    %v3724 = vpop.f32.mrb[0].mxu0
    %v3725 = vadd.f32 %v3674, %v3724
    %v3726 = vpop.f32.mrb[0].mxu0
    %v3727 = vadd.f32 %v3676, %v3726
    %v3728 = vpop.f32.mrb[0].mxu0
    %v3729 = vadd.f32 %v3678, %v3728
    %v3730 = vpop.f32.mrb[0].mxu0
    %v3731 = vadd.f32 %v3680, %v3730
    %3732 = vmatprep.mubr.bf16.mxu0 %v3211
    %3733 = vmatmul.mubr.bf16.gmra.mrb[0].mxu0 %v3210
    %v3734 = vpop.f32.mrb[0].mxu0
    %v3735 = vadd.f32 %v3684, %v3734
    %v3736 = vpop.f32.mrb[0].mxu0
    %v3737 = vadd.f32 %v3686, %v3736
    %v3738 = vpop.f32.mrb[0].mxu0
    %v3739 = vpop.f32.mrb[0].mxu0
    %3740 = vdwg.mxu0
    %3741 = vmatprep.subr.bf16.mxu0 %v3379
    %3742 = vmatpush1.bf16.msra.mxu0 %v3378
    %3743 = vmatprep.subr.bf16.mxu0 %v3381
    %3744 = vmatpush1.bf16.msra.mxu0 %v3380
    %3745 = vmatprep.subr.bf16.mxu0 %v3383
    %3746 = vmatpush1.bf16.msra.mxu0 %v3382
    %3747 = vmatprep.subr.bf16.mxu0 %v3385
    %3748 = vmatpush1.bf16.msra.mxu0 %v3384
    %3749 = vmatprep.subr.bf16.mxu0 %v3387
    %3750 = vmatpush1.bf16.msra.mxu0 %v3386
    %3751 = vmatprep.subr.bf16.mxu0 %v3389
    %3752 = vmatpush1.bf16.msra.mxu0 %v3388
    %3753 = vmatprep.subr.bf16.mxu0 %v3391
    %3754 = vmatpush1.bf16.msra.mxu0 %v3390
    %3755 = vmatprep.subr.bf16.mxu0 %v3393
    %3756 = vmatpush1.bf16.msra.mxu0 %v3392
    %3757 = vmatprep.subr.bf16.mxu0 %v3395
    %3758 = vmatpush1.bf16.msra.mxu0 %v3394
    %3759 = vmatprep.subr.bf16.mxu0 %v3397
    %3760 = vmatpush1.bf16.msra.mxu0 %v3396
    %3761 = vmatprep.subr.bf16.mxu0 %v3399
    %3762 = vmatpush1.bf16.msra.mxu0 %v3398
    %3763 = vmatprep.subr.bf16.mxu0 %v3401
    %3764 = vmatpush1.bf16.msra.mxu0 %v3400
    %3765 = vmatprep.subr.bf16.mxu0 %v3403
    %3766 = vmatpush1.bf16.msra.mxu0 %v3402
    %3767 = vmatprep.subr.bf16.mxu0 %v3405
    %3768 = vmatpush1.bf16.msra.mxu0 %v3404
    %3769 = vmatprep.subr.bf16.mxu0 %v3407
    %3770 = vmatpush1.bf16.msra.mxu0 %v3406
    %3771 = vmatprep.subr.bf16.mxu0 %v3409
    %3772 = vmatpush1.bf16.msra.mxu0 %v3408
    %3773 = vmatprep.mubr.bf16.mxu0 %v3197
    %3774 = vmatmul.mubr.bf16.gmra.mrb[0].mxu0 %v3196
    %v3775 = vpop.f32.mrb[0].mxu0
    %v3776 = vadd.f32 %v3725, %v3775
    %v3777 = vpop.f32.mrb[0].mxu0
    %v3778 = vadd.f32 %v3727, %v3777
    %v3779 = vpop.f32.mrb[0].mxu0
    %v3780 = vadd.f32 %v3729, %v3779
    %v3781 = vpop.f32.mrb[0].mxu0
    %v3782 = vadd.f32 %v3731, %v3781
    %3783 = vmatprep.mubr.bf16.mxu0 %v3213
    %3784 = vmatmul.mubr.bf16.gmra.mrb[0].mxu0 %v3212
    %v3785 = vpop.f32.mrb[0].mxu0
    %v3786 = vadd.f32 %v3735, %v3785
    %v3787 = vpop.f32.mrb[0].mxu0
    %v3788 = vadd.f32 %v3737, %v3787
    %v3789 = vpop.f32.mrb[0].mxu0
    %v3790 = vpop.f32.mrb[0].mxu0
    %3791 = vdwg.mxu0
    %3792 = vmatprep.subr.bf16.mxu0 %v3411
    %3793 = vmatpush1.bf16.msra.mxu0 %v3410
    %3794 = vmatprep.subr.bf16.mxu0 %v3413
    %3795 = vmatpush1.bf16.msra.mxu0 %v3412
    %3796 = vmatprep.subr.bf16.mxu0 %v3415
    %3797 = vmatpush1.bf16.msra.mxu0 %v3414
    %3798 = vmatprep.subr.bf16.mxu0 %v3417
    %3799 = vmatpush1.bf16.msra.mxu0 %v3416
    %3800 = vmatprep.subr.bf16.mxu0 %v3419
    %3801 = vmatpush1.bf16.msra.mxu0 %v3418
    %3802 = vmatprep.subr.bf16.mxu0 %v3421
    %3803 = vmatpush1.bf16.msra.mxu0 %v3420
    %3804 = vmatprep.subr.bf16.mxu0 %v3423
    %3805 = vmatpush1.bf16.msra.mxu0 %v3422
    %3806 = vmatprep.subr.bf16.mxu0 %v3425
    %3807 = vmatpush1.bf16.msra.mxu0 %v3424
    %3808 = vmatprep.subr.bf16.mxu0 %v3427
    %3809 = vmatpush1.bf16.msra.mxu0 %v3426
    %3810 = vmatprep.subr.bf16.mxu0 %v3429
    %3811 = vmatpush1.bf16.msra.mxu0 %v3428
    %3812 = vmatprep.subr.bf16.mxu0 %v3431
    %3813 = vmatpush1.bf16.msra.mxu0 %v3430
    %3814 = vmatprep.subr.bf16.mxu0 %v3433
    %3815 = vmatpush1.bf16.msra.mxu0 %v3432
    %3816 = vmatprep.subr.bf16.mxu0 %v3435
    %3817 = vmatpush1.bf16.msra.mxu0 %v3434
    %3818 = vmatprep.subr.bf16.mxu0 %v3437
    %3819 = vmatpush1.bf16.msra.mxu0 %v3436
    %3820 = vmatprep.subr.bf16.mxu0 %v3439
    %3821 = vmatpush1.bf16.msra.mxu0 %v3438
    %3822 = vmatprep.subr.bf16.mxu0 %v3441
    %3823 = vmatpush1.bf16.msra.mxu0 %v3440
    %3824 = vmatprep.mubr.bf16.mxu0 %v3199
    %3825 = vmatmul.mubr.bf16.gmra.mrb[0].mxu0 %v3198
    %v3826 = vpop.f32.mrb[0].mxu0
    %v3827 = vadd.f32 %v3776, %v3826
    %v3828 = vpop.f32.mrb[0].mxu0
    %v3829 = vadd.f32 %v3778, %v3828
    %v3830 = vpop.f32.mrb[0].mxu0
    %v3831 = vadd.f32 %v3780, %v3830
    %v3832 = vpop.f32.mrb[0].mxu0
    %v3833 = vadd.f32 %v3782, %v3832
    %3834 = vmatprep.mubr.bf16.mxu0 %v3215
    %3835 = vmatmul.mubr.bf16.gmra.mrb[0].mxu0 %v3214
    %v3836 = vpop.f32.mrb[0].mxu0
    %v3837 = vadd.f32 %v3786, %v3836
    %v3838 = vpop.f32.mrb[0].mxu0
    %v3839 = vadd.f32 %v3788, %v3838
    %v3840 = vpop.f32.mrb[0].mxu0
    %v3841 = vpop.f32.mrb[0].mxu0
    %3842 = vdwg.mxu0
    %3843 = vmatprep.subr.bf16.mxu0 %v3443
    %3844 = vmatpush1.bf16.msra.mxu0 %v3442
    %3845 = vmatprep.subr.bf16.mxu0 %v3445
    %3846 = vmatpush1.bf16.msra.mxu0 %v3444
    %3847 = vmatprep.subr.bf16.mxu0 %v3447
    %3848 = vmatpush1.bf16.msra.mxu0 %v3446
    %3849 = vmatprep.subr.bf16.mxu0 %v3449
    %3850 = vmatpush1.bf16.msra.mxu0 %v3448
    %3851 = vmatprep.subr.bf16.mxu0 %v3451
    %3852 = vmatpush1.bf16.msra.mxu0 %v3450
    %3853 = vmatprep.subr.bf16.mxu0 %v3453
    %3854 = vmatpush1.bf16.msra.mxu0 %v3452
    %3855 = vmatprep.subr.bf16.mxu0 %v3455
    %3856 = vmatpush1.bf16.msra.mxu0 %v3454
    %3857 = vmatprep.subr.bf16.mxu0 %v3457
    %3858 = vmatpush1.bf16.msra.mxu0 %v3456
    %3859 = vmatprep.subr.bf16.mxu0 %v3459
    %3860 = vmatpush1.bf16.msra.mxu0 %v3458
    %3861 = vmatprep.subr.bf16.mxu0 %v3461
    %3862 = vmatpush1.bf16.msra.mxu0 %v3460
    %3863 = vmatprep.subr.bf16.mxu0 %v3463
    %3864 = vmatpush1.bf16.msra.mxu0 %v3462
    %3865 = vmatprep.subr.bf16.mxu0 %v3465
    %3866 = vmatpush1.bf16.msra.mxu0 %v3464
    %3867 = vmatprep.subr.bf16.mxu0 %v3467
    %3868 = vmatpush1.bf16.msra.mxu0 %v3466
    %3869 = vmatprep.subr.bf16.mxu0 %v3469
    %3870 = vmatpush1.bf16.msra.mxu0 %v3468
    %3871 = vmatprep.subr.bf16.mxu0 %v3471
    %3872 = vmatpush1.bf16.msra.mxu0 %v3470
    %3873 = vmatprep.subr.bf16.mxu0 %v3473
    %3874 = vmatpush1.bf16.msra.mxu0 %v3472
    %3875 = vmatprep.mubr.bf16.mxu0 %v3201
    %3876 = vmatmul.mubr.bf16.gmra.mrb[0].mxu0 %v3200
    %v3877 = vpop.f32.mrb[0].mxu0
    %v3878 = vadd.f32 %v3827, %v3877
    %v3879 = vpop.f32.mrb[0].mxu0
    %v3880 = vadd.f32 %v3829, %v3879
    %v3881 = vpop.f32.mrb[0].mxu0
    %v3882 = vadd.f32 %v3831, %v3881
    %v3883 = vpop.f32.mrb[0].mxu0
    %v3884 = vadd.f32 %v3833, %v3883
    %3885 = vmatprep.mubr.bf16.mxu0 %v3217
    %3886 = vmatmul.mubr.bf16.gmra.mrb[0].mxu0 %v3216
    %v3887 = vpop.f32.mrb[0].mxu0
    %v3888 = vadd.f32 %v3837, %v3887
    %v3889 = vpop.f32.mrb[0].mxu0
    %v3890 = vadd.f32 %v3839, %v3889
    %v3891 = vpop.f32.mrb[0].mxu0
    %v3892 = vpop.f32.mrb[0].mxu0
    %3893 = vdwg.mxu0
    %v3894 = vsub.f32 0.0, %v3878
    %v3895 = vsub.f32 0.0, %v3880
    %v3896 = vsub.f32 0.0, %v3882
    %v3897 = vsub.f32 0.0, %v3884
    %v3898 = vsub.f32 0.0, %v3888
    %v3899 = vsub.f32 0.0, %v3890
    %v3900 = vmul.f32 %v3894, 1.442695
    %v3901 = vpow.pop %v3900
    %v3902 = vmul.f32 %v3895, 1.442695
    %v3903 = vpow.pop %v3902
    %v3904 = vmul.f32 %v3896, 1.442695
    %v3905 = vpow.pop %v3904
    %v3906 = vmul.f32 %v3897, 1.442695
    %v3907 = vpow.pop %v3906
    %v3908 = vmul.f32 %v3898, 1.442695
    %v3909 = vpow.pop %v3908
    %v3910 = vmul.f32 %v3899, 1.442695
    %v3911 = vpow.pop %v3910
    %v3912 = vadd.f32 %v3901, 1.0
    %v3913 = vadd.f32 %v3903, 1.0
    %v3914 = vadd.f32 %v3905, 1.0
    %v3915 = vadd.f32 %v3907, 1.0
    %v3916 = vadd.f32 %v3909, 1.0
    %v3917 = vadd.f32 %v3911, 1.0
    %v3918 = vrcp.pop %v3912
    %v3919 = vrcp.pop %v3913
    %v3920 = vrcp.pop %v3914
    %v3921 = vrcp.pop %v3915
    %v3922 = vrcp.pop %v3916
    %v3923 = vrcp.pop %v3917
    %v3924 = vmul.f32 %v3878, %v3918
    %v3925 = vmul.f32 %v3880, %v3919
    %v3926 = vmul.f32 %v3882, %v3920
    %v3927 = vmul.f32 %v3884, %v3921
    %v3928 = vmul.f32 %v3888, %v3922
    %v3929 = vmul.f32 %v3890, %v3923
    %3930 = vst [vmem:[#allocation5] sm:$0xff] %v3924
    %3931 = vst.msk [vmem:[#allocation5 + $0x8] sm:$0xff] %vm81, %v3925
    %3932 = vst [vmem:[#allocation5 + $0x10] sm:$0xff] %v3926
    %3933 = vst.msk [vmem:[#allocation5 + $0x18] sm:$0xff] %vm81, %v3927
    %3934 = vst [vmem:[#allocation5 + $0x20] sm:$0xff] %v3928
    %3935 = vst.msk [vmem:[#allocation5 + $0x28] sm:$0xff] %vm81, %v3929
    %v3936 = vld [vmem:[#allocation5] ss:$0 sm:$0xff]
    %3937 = vst [vmem:[#allocation6] sm:$0x1] %v3936
    %v3938 = vld [vmem:[#allocation5 + $0x1] ss:$0 sm:$0xff]
    %3939 = vst [vmem:[#allocation6 + $0x2] sm:$0x1] %v3938
    %v3940 = vld [vmem:[#allocation5 + $0x2] ss:$0 sm:$0xff]
    %3941 = vst [vmem:[#allocation6 + $0x4] sm:$0x1] %v3940
    %v3942 = vld [vmem:[#allocation5 + $0x3] ss:$0 sm:$0xff]
    %3943 = vst [vmem:[#allocation6 + $0x6] sm:$0x1] %v3942
    %v3944 = vld [vmem:[#allocation5 + $0x4] ss:$0 sm:$0xff]
    %3945 = vst [vmem:[#allocation6 + $0x8] sm:$0x1] %v3944
    %v3946 = vld [vmem:[#allocation5 + $0x5] ss:$0 sm:$0xff]
    %3947 = vst [vmem:[#allocation6 + $0xa] sm:$0x1] %v3946
    %v3948 = vld [vmem:[#allocation5 + $0x6] ss:$0 sm:$0xff]
    %3949 = vst [vmem:[#allocation6 + $0xc] sm:$0x1] %v3948
    %v3950 = vld [vmem:[#allocation5 + $0x7] ss:$0 sm:$0xff]
    %3951 = vst [vmem:[#allocation6 + $0xe] sm:$0x1] %v3950
    %v3952 = vld [vmem:[#allocation5 + $0x10] ss:$0 sm:$0xff]
    %3953 = vst [vmem:[#allocation6 + $0x10] sm:$0x1] %v3952
    %v3954 = vld [vmem:[#allocation5 + $0x11] ss:$0 sm:$0xff]
    %3955 = vst [vmem:[#allocation6 + $0x1] sm:$0x1] %v3954
    %v3956 = vld [vmem:[#allocation5 + $0x12] ss:$0 sm:$0xff]
    %3957 = vst [vmem:[#allocation6 + $0x3] sm:$0x1] %v3956
    %v3958 = vld [vmem:[#allocation5 + $0x13] ss:$0 sm:$0xff]
    %3959 = vst [vmem:[#allocation6 + $0x5] sm:$0x1] %v3958
    %v3960 = vld [vmem:[#allocation5 + $0x14] ss:$0 sm:$0xff]
    %3961 = vst [vmem:[#allocation6 + $0x7] sm:$0x1] %v3960
    %v3962 = vld [vmem:[#allocation5 + $0x15] ss:$0 sm:$0xff]
    %3963 = vst [vmem:[#allocation6 + $0x9] sm:$0x1] %v3962
    %v3964 = vld [vmem:[#allocation5 + $0x16] ss:$0 sm:$0xff]
    %3965 = vst [vmem:[#allocation6 + $0xb] sm:$0x1] %v3964
    %v3966 = vld [vmem:[#allocation5 + $0x17] ss:$0 sm:$0xff]
    %3967 = vst [vmem:[#allocation6 + $0xd] sm:$0x1] %v3966
    %v3968 = vld [vmem:[#allocation5 + $0x20] ss:$0 sm:$0xff]
    %3969 = vst [vmem:[#allocation6 + $0xf] sm:$0x1] %v3968
    %v3970 = vld [vmem:[#allocation5 + $0x21] ss:$0 sm:$0xff]
    %3971 = vst [vmem:[#allocation6 + $0x11] sm:$0x1] %v3970
    %v3972 = vld [vmem:[#allocation5 + $0x8] sm:$0xff]
    %v3973 = vld [vmem:[#allocation5 + $0x18] sm:$0x1]
    %v3974 = vsel %vm81, %v3972, 0.0
    %vm3975 = vcmask 516096
    %v3976 = vsel %vm3975, %v3973, 0.0
    %v3977 = vadd.f32 %v3974, %v3976
    %v3978 = vrot.slane %v3977, 4
    %v3979 = vadd.f32 %v3977, %v3978
    %v3980 = vrot.slane %v3979, 2
    %v3981 = vadd.f32 %v3979, %v3980
    %v3982 = vrot.slane %v3981, 1
    %v3983 = vadd.f32 %v3981, %v3982
    %v3984 = vld [vmem:[#allocation5 + $0x18] sm:$0xfe]
    %v3985 = vld [vmem:[#allocation5 + $0x28] sm:$0x3]
    %vm3988 = vcmask 1046528
    %v3989 = vrot.slane %v3984, 1
    %v3990 = vrot.slane %v3985, 1
    %v3991 = vsel %vm3988, %v3989, %v3990
    %v3994 = vsel %vm81, %v3991, 0.0
    %v3995 = vsel %vm3975, %v3990, 0.0
    %v3996 = vadd.f32 %v3994, %v3995
    %v3997 = vrot.slane %v3996, 4
    %v3998 = vadd.f32 %v3996, %v3997
    %v3999 = vrot.slane %v3998, 2
    %v4000 = vadd.f32 %v3998, %v3999
    %v4001 = vrot.slane %v4000, 1
    %v4002 = vadd.f32 %v4000, %v4001
    %vm4003 = vcmask 1040384
    %v4004 = vsel %vm4003, %v3983, %v4002
    %v4005 = vld [vmem:[#allocation6] sm:$0xff]
    %v4006 = vld [vmem:[#allocation6 + $0x8] sm:$0xff]
    %v4007 = vld [vmem:[#allocation6 + $0x10] sm:$0x3]
    %v4011 = vcombine.high %v4005, %v4005
    %v4013 = vunpack.c.l.s4 1983009808
    %v4014 = vunpack.c.0.s8 %v4013
    %v4015 = vlaneseq
    %v4016 = vshrl.u32 %v4015, 7
    %v4017 = vsub.s32 %v4014, %v4016
    %v4018 = vrot.slane %v4005, %v4017
    %v4020 = vunpack.c.l.s4 1983009808
    %v4021 = vunpack.c.0.s8 %v4020
    %v4022 = vlaneseq
    %v4023 = vshrl.u32 %v4022, 7
    %v4024 = vsub.s32 %v4021, %v4023
    %v4025 = vrot.slane %v4011, %v4024
    %v4026 = vcombine.high %v4018, %v4018
    %v4027 = vcombine.high %v4025, %v4025
    %v4028 = vcombine.high %v4006, %v4006
    %v4030 = vunpack.c.l.s4 1983009808
    %v4031 = vunpack.c.0.s8 %v4030
    %v4032 = vlaneseq
    %v4033 = vshrl.u32 %v4032, 7
    %v4034 = vsub.s32 %v4031, %v4033
    %v4035 = vrot.slane %v4006, %v4034
    %v4037 = vunpack.c.l.s4 1983009808
    %v4038 = vunpack.c.0.s8 %v4037
    %v4039 = vlaneseq
    %v4040 = vshrl.u32 %v4039, 7
    %v4041 = vsub.s32 %v4038, %v4040
    %v4042 = vrot.slane %v4028, %v4041
    %v4043 = vcombine.high %v4035, %v4035
    %v4044 = vcombine.high %v4042, %v4042
    %v4046 = vunpack.c.l.s4 1983009808
    %v4047 = vunpack.c.0.s8 %v4046
    %v4048 = vlaneseq
    %v4049 = vshrl.u32 %v4048, 7
    %v4050 = vsub.s32 %v4047, %v4049
    %v4051 = vrot.slane %v4007, %v4050
    %v4061 = vpack.c.bf16 %v4018, %v4018
    %v4062 = vpack.c.bf16 %v4026, %v4026
    %v4063 = vpack.c.bf16 %v4025, %v4025
    %v4064 = vpack.c.bf16 %v4027, %v4027
    %v4065 = vpack.c.bf16 %v4035, %v4035
    %v4066 = vpack.c.bf16 %v4043, %v4043
    %v4067 = vpack.c.bf16 %v4042, %v4042
    %v4068 = vpack.c.bf16 %v4044, %v4044
    %v4069 = vpack.c.bf16 %v4051, %v4051
    %v4070 = vld [vmem:[#allocation7] sm:$0xff]
    %v4071 = vld [vmem:[#allocation7 + $0x8] sm:$0xff]
    %v4072 = vld [vmem:[#allocation7 + $0x10] sm:$0xff]
    %v4073 = vld [vmem:[#allocation7 + $0x18] sm:$0xff]
    %v4074 = vld [vmem:[#allocation7 + $0x20] sm:$0xff]
    %v4075 = vld [vmem:[#allocation7 + $0x28] sm:$0xff]
    %v4076 = vld [vmem:[#allocation7 + $0x30] sm:$0xff]
    %v4077 = vld [vmem:[#allocation7 + $0x38] sm:$0xff]
    %v4078 = vld [vmem:[#allocation7 + $0x40] sm:$0xff]
    %v4079 = vld [vmem:[#allocation7 + $0x48] sm:$0xff]
    %v4080 = vld [vmem:[#allocation7 + $0x50] sm:$0xff]
    %v4081 = vld [vmem:[#allocation7 + $0x58] sm:$0xff]
    %v4082 = vld [vmem:[#allocation7 + $0x60] sm:$0xff]
    %v4083 = vld [vmem:[#allocation7 + $0x68] sm:$0xff]
    %v4084 = vld [vmem:[#allocation7 + $0x70] sm:$0xff]
    %v4085 = vld [vmem:[#allocation7 + $0x78] sm:$0xff]
    %v4086 = vld [vmem:[#allocation7 + $0x80] sm:$0xff]
    %v4087 = vld [vmem:[#allocation7 + $0x88] sm:$0xff]
    %v4088 = vld [vmem:[#allocation7 + $0x90] sm:$0xff]
    %v4089 = vld [vmem:[#allocation7 + $0x98] sm:$0xff]
    %v4090 = vld [vmem:[#allocation7 + $0xa0] sm:$0xff]
    %v4091 = vld [vmem:[#allocation7 + $0xa8] sm:$0xff]
    %v4092 = vld [vmem:[#allocation7 + $0xb0] sm:$0xff]
    %v4093 = vld [vmem:[#allocation7 + $0xb8] sm:$0xff]
    %v4094 = vld [vmem:[#allocation7 + $0xc0] sm:$0xff]
    %v4095 = vld [vmem:[#allocation7 + $0xc8] sm:$0xff]
    %v4096 = vld [vmem:[#allocation7 + $0xd0] sm:$0xff]
    %v4097 = vld [vmem:[#allocation7 + $0xd8] sm:$0xff]
    %v4098 = vld [vmem:[#allocation7 + $0xe0] sm:$0xff]
    %v4099 = vld [vmem:[#allocation7 + $0xe8] sm:$0xff]
    %v4100 = vld [vmem:[#allocation7 + $0xf0] sm:$0xff]
    %v4101 = vld [vmem:[#allocation7 + $0xf8] sm:$0xff]
    %v4102 = vld [vmem:[#allocation7 + $0x100] sm:$0xff]
    %v4103 = vld [vmem:[#allocation7 + $0x108] sm:$0xff]
    %v4104 = vld [vmem:[#allocation7 + $0x110] sm:$0xff]
    %v4105 = vld [vmem:[#allocation7 + $0x118] sm:$0xff]
    %v4106 = vld [vmem:[#allocation7 + $0x120] sm:$0xff]
    %v4107 = vld [vmem:[#allocation7 + $0x128] sm:$0xff]
    %v4108 = vld [vmem:[#allocation7 + $0x130] sm:$0xff]
    %v4109 = vld [vmem:[#allocation7 + $0x138] sm:$0xff]
    %v4110 = vld [vmem:[#allocation7 + $0x140] sm:$0xff]
    %v4111 = vld [vmem:[#allocation7 + $0x148] sm:$0xff]
    %v4112 = vld [vmem:[#allocation7 + $0x150] sm:$0xff]
    %v4113 = vld [vmem:[#allocation7 + $0x158] sm:$0xff]
    %v4114 = vld [vmem:[#allocation7 + $0x160] sm:$0xff]
    %v4115 = vld [vmem:[#allocation7 + $0x168] sm:$0xff]
    %v4116 = vld [vmem:[#allocation7 + $0x170] sm:$0xff]
    %v4117 = vld [vmem:[#allocation7 + $0x178] sm:$0xff]
    %v4118 = vld [vmem:[#allocation7 + $0x180] sm:$0xff]
    %v4119 = vld [vmem:[#allocation7 + $0x188] sm:$0xff]
    %v4120 = vld [vmem:[#allocation7 + $0x190] sm:$0xff]
    %v4121 = vld [vmem:[#allocation7 + $0x198] sm:$0xff]
    %v4122 = vld [vmem:[#allocation7 + $0x1a0] sm:$0xff]
    %v4123 = vld [vmem:[#allocation7 + $0x1a8] sm:$0xff]
    %v4124 = vld [vmem:[#allocation7 + $0x1b0] sm:$0xff]
    %v4125 = vld [vmem:[#allocation7 + $0x1b8] sm:$0xff]
    %v4126 = vld [vmem:[#allocation7 + $0x1c0] sm:$0xff]
    %v4127 = vld [vmem:[#allocation7 + $0x1c8] sm:$0xff]
    %v4128 = vld [vmem:[#allocation7 + $0x1d0] sm:$0xff]
    %v4129 = vld [vmem:[#allocation7 + $0x1d8] sm:$0xff]
    %v4130 = vld [vmem:[#allocation7 + $0x1e0] sm:$0xff]
    %v4131 = vld [vmem:[#allocation7 + $0x1e8] sm:$0xff]
    %v4132 = vld [vmem:[#allocation7 + $0x1f0] sm:$0xff]
    %v4133 = vld [vmem:[#allocation7 + $0x1f8] sm:$0xff]
    %v4134 = vld [vmem:[#allocation7 + $0x200] sm:$0xff]
    %v4135 = vld [vmem:[#allocation7 + $0x208] sm:$0xff]
    %v4136 = vld [vmem:[#allocation7 + $0x210] sm:$0xff]
    %v4137 = vld [vmem:[#allocation7 + $0x218] sm:$0xff]
    %v4138 = vld [vmem:[#allocation7 + $0x220] sm:$0xff]
    %v4139 = vld [vmem:[#allocation7 + $0x228] sm:$0xff]
    %v4140 = vld [vmem:[#allocation7 + $0x230] sm:$0xff]
    %v4141 = vld [vmem:[#allocation7 + $0x238] sm:$0xff]
    %v4142 = vld [vmem:[%s9] sm:$0x1]
    %v4144 = vlaneseq
    %v4145 = vshrl.u32 %v4144, 7
    %v4146 = vsub.s32 0, %v4145
    %v4147 = vrot.slane %v4142, %v4146
    %4149 = vmatprep.subr.bf16.mxu0 0
    %4150 = vmatpush1.bf16.msra.mxu0 %v4070
    %4151 = vmatprep.subr.bf16.mxu0 0
    %4152 = vmatpush1.bf16.msra.mxu0 %v4071
    %4153 = vmatprep.subr.bf16.mxu0 0
    %4154 = vmatpush1.bf16.msra.mxu0 %v4072
    %4155 = vmatprep.subr.bf16.mxu0 0
    %4156 = vmatpush1.bf16.msra.mxu0 %v4073
    %4157 = vmatprep.subr.bf16.mxu0 0
    %4158 = vmatpush1.bf16.msra.mxu0 %v4074
    %4159 = vmatprep.subr.bf16.mxu0 0
    %4160 = vmatpush1.bf16.msra.mxu0 %v4075
    %4161 = vmatprep.subr.bf16.mxu0 0
    %4162 = vmatpush1.bf16.msra.mxu0 %v4076
    %4163 = vmatprep.subr.bf16.mxu0 0
    %4164 = vmatpush1.bf16.msra.mxu0 %v4077
    %4165 = vmatprep.subr.bf16.mxu0 0
    %4166 = vmatpush1.bf16.msra.mxu0 %v4078
    %4167 = vmatprep.subr.bf16.mxu0 0
    %4168 = vmatpush1.bf16.msra.mxu0 %v4079
    %4169 = vmatprep.subr.bf16.mxu0 0
    %4170 = vmatpush1.bf16.msra.mxu0 %v4080
    %4171 = vmatprep.subr.bf16.mxu0 0
    %4172 = vmatpush1.bf16.msra.mxu0 %v4081
    %4173 = vmatprep.subr.bf16.mxu0 0
    %4174 = vmatpush1.bf16.msra.mxu0 %v4082
    %4175 = vmatprep.subr.bf16.mxu0 0
    %4176 = vmatpush1.bf16.msra.mxu0 %v4083
    %4177 = vmatprep.subr.bf16.mxu0 0
    %4178 = vmatpush1.bf16.msra.mxu0 %v4084
    %4179 = vmatprep.subr.bf16.mxu0 0
    %4180 = vmatpush1.bf16.msra.mxu0 %v4085
    %4181 = vmatprep.mubr.bf16.mxu0 %v4062
    %4182 = vmatmul.mubr.bf16.gmra.mrb[0].mxu0 %v4061
    %v4183 = vpop.f32.mrb[0].mxu0
    %v4184 = vadd.f32 %v4147, %v4183
    %v4185 = vpop.f32.mrb[0].mxu0
    %v4186 = vpop.f32.mrb[0].mxu0
    %v4187 = vpop.f32.mrb[0].mxu0
    %4188 = vdwg.mxu0
    %4189 = vmatprep.subr.bf16.mxu0 0
    %4190 = vmatpush1.bf16.msra.mxu0 %v4086
    %4191 = vmatprep.subr.bf16.mxu0 0
    %4192 = vmatpush1.bf16.msra.mxu0 %v4087
    %4193 = vmatprep.subr.bf16.mxu0 0
    %4194 = vmatpush1.bf16.msra.mxu0 %v4088
    %4195 = vmatprep.subr.bf16.mxu0 0
    %4196 = vmatpush1.bf16.msra.mxu0 %v4089
    %4197 = vmatprep.subr.bf16.mxu0 0
    %4198 = vmatpush1.bf16.msra.mxu0 %v4090
    %4199 = vmatprep.subr.bf16.mxu0 0
    %4200 = vmatpush1.bf16.msra.mxu0 %v4091
    %4201 = vmatprep.subr.bf16.mxu0 0
    %4202 = vmatpush1.bf16.msra.mxu0 %v4092
    %4203 = vmatprep.subr.bf16.mxu0 0
    %4204 = vmatpush1.bf16.msra.mxu0 %v4093
    %4205 = vmatprep.subr.bf16.mxu0 0
    %4206 = vmatpush1.bf16.msra.mxu0 %v4094
    %4207 = vmatprep.subr.bf16.mxu0 0
    %4208 = vmatpush1.bf16.msra.mxu0 %v4095
    %4209 = vmatprep.subr.bf16.mxu0 0
    %4210 = vmatpush1.bf16.msra.mxu0 %v4096
    %4211 = vmatprep.subr.bf16.mxu0 0
    %4212 = vmatpush1.bf16.msra.mxu0 %v4097
    %4213 = vmatprep.subr.bf16.mxu0 0
    %4214 = vmatpush1.bf16.msra.mxu0 %v4098
    %4215 = vmatprep.subr.bf16.mxu0 0
    %4216 = vmatpush1.bf16.msra.mxu0 %v4099
    %4217 = vmatprep.subr.bf16.mxu0 0
    %4218 = vmatpush1.bf16.msra.mxu0 %v4100
    %4219 = vmatprep.subr.bf16.mxu0 0
    %4220 = vmatpush1.bf16.msra.mxu0 %v4101
    %4221 = vmatprep.mubr.bf16.mxu0 %v4064
    %4222 = vmatmul.mubr.bf16.gmra.mrb[0].mxu0 %v4063
    %v4223 = vpop.f32.mrb[0].mxu0
    %v4224 = vadd.f32 %v4184, %v4223
    %v4225 = vpop.f32.mrb[0].mxu0
    %v4226 = vpop.f32.mrb[0].mxu0
    %v4227 = vpop.f32.mrb[0].mxu0
    %4228 = vdwg.mxu0
    %4229 = vmatprep.subr.bf16.mxu0 0
    %4230 = vmatpush1.bf16.msra.mxu0 %v4102
    %4231 = vmatprep.subr.bf16.mxu0 0
    %4232 = vmatpush1.bf16.msra.mxu0 %v4103
    %4233 = vmatprep.subr.bf16.mxu0 0
    %4234 = vmatpush1.bf16.msra.mxu0 %v4104
    %4235 = vmatprep.subr.bf16.mxu0 0
    %4236 = vmatpush1.bf16.msra.mxu0 %v4105
    %4237 = vmatprep.subr.bf16.mxu0 0
    %4238 = vmatpush1.bf16.msra.mxu0 %v4106
    %4239 = vmatprep.subr.bf16.mxu0 0
    %4240 = vmatpush1.bf16.msra.mxu0 %v4107
    %4241 = vmatprep.subr.bf16.mxu0 0
    %4242 = vmatpush1.bf16.msra.mxu0 %v4108
    %4243 = vmatprep.subr.bf16.mxu0 0
    %4244 = vmatpush1.bf16.msra.mxu0 %v4109
    %4245 = vmatprep.subr.bf16.mxu0 0
    %4246 = vmatpush1.bf16.msra.mxu0 %v4110
    %4247 = vmatprep.subr.bf16.mxu0 0
    %4248 = vmatpush1.bf16.msra.mxu0 %v4111
    %4249 = vmatprep.subr.bf16.mxu0 0
    %4250 = vmatpush1.bf16.msra.mxu0 %v4112
    %4251 = vmatprep.subr.bf16.mxu0 0
    %4252 = vmatpush1.bf16.msra.mxu0 %v4113
    %4253 = vmatprep.subr.bf16.mxu0 0
    %4254 = vmatpush1.bf16.msra.mxu0 %v4114
    %4255 = vmatprep.subr.bf16.mxu0 0
    %4256 = vmatpush1.bf16.msra.mxu0 %v4115
    %4257 = vmatprep.subr.bf16.mxu0 0
    %4258 = vmatpush1.bf16.msra.mxu0 %v4116
    %4259 = vmatprep.subr.bf16.mxu0 0
    %4260 = vmatpush1.bf16.msra.mxu0 %v4117
    %4261 = vmatprep.mubr.bf16.mxu0 %v4066
    %4262 = vmatmul.mubr.bf16.gmra.mrb[0].mxu0 %v4065
    %v4263 = vpop.f32.mrb[0].mxu0
    %v4264 = vadd.f32 %v4224, %v4263
    %v4265 = vpop.f32.mrb[0].mxu0
    %v4266 = vpop.f32.mrb[0].mxu0
    %v4267 = vpop.f32.mrb[0].mxu0
    %4268 = vdwg.mxu0
    %4269 = vmatprep.subr.bf16.mxu0 0
    %4270 = vmatpush1.bf16.msra.mxu0 %v4118
    %4271 = vmatprep.subr.bf16.mxu0 0
    %4272 = vmatpush1.bf16.msra.mxu0 %v4119
    %4273 = vmatprep.subr.bf16.mxu0 0
    %4274 = vmatpush1.bf16.msra.mxu0 %v4120
    %4275 = vmatprep.subr.bf16.mxu0 0
    %4276 = vmatpush1.bf16.msra.mxu0 %v4121
    %4277 = vmatprep.subr.bf16.mxu0 0
    %4278 = vmatpush1.bf16.msra.mxu0 %v4122
    %4279 = vmatprep.subr.bf16.mxu0 0
    %4280 = vmatpush1.bf16.msra.mxu0 %v4123
    %4281 = vmatprep.subr.bf16.mxu0 0
    %4282 = vmatpush1.bf16.msra.mxu0 %v4124
    %4283 = vmatprep.subr.bf16.mxu0 0
    %4284 = vmatpush1.bf16.msra.mxu0 %v4125
    %4285 = vmatprep.subr.bf16.mxu0 0
    %4286 = vmatpush1.bf16.msra.mxu0 %v4126
    %4287 = vmatprep.subr.bf16.mxu0 0
    %4288 = vmatpush1.bf16.msra.mxu0 %v4127
    %4289 = vmatprep.subr.bf16.mxu0 0
    %4290 = vmatpush1.bf16.msra.mxu0 %v4128
    %4291 = vmatprep.subr.bf16.mxu0 0
    %4292 = vmatpush1.bf16.msra.mxu0 %v4129
    %4293 = vmatprep.subr.bf16.mxu0 0
    %4294 = vmatpush1.bf16.msra.mxu0 %v4130
    %4295 = vmatprep.subr.bf16.mxu0 0
    %4296 = vmatpush1.bf16.msra.mxu0 %v4131
    %4297 = vmatprep.subr.bf16.mxu0 0
    %4298 = vmatpush1.bf16.msra.mxu0 %v4132
    %4299 = vmatprep.subr.bf16.mxu0 0
    %4300 = vmatpush1.bf16.msra.mxu0 %v4133
    %4301 = vmatprep.mubr.bf16.mxu0 %v4068
    %4302 = vmatmul.mubr.bf16.gmra.mrb[0].mxu0 %v4067
    %v4303 = vpop.f32.mrb[0].mxu0
    %v4304 = vadd.f32 %v4264, %v4303
    %v4305 = vpop.f32.mrb[0].mxu0
    %v4306 = vpop.f32.mrb[0].mxu0
    %v4307 = vpop.f32.mrb[0].mxu0
    %4308 = vdwg.mxu0
    %4309 = vmatprep.subr.bf16.mxu0 0
    %4310 = vmatpush1.bf16.msra.mxu0 %v4134
    %4311 = vmatprep.subr.bf16.mxu0 0
    %4312 = vmatpush1.bf16.msra.mxu0 %v4135
    %4313 = vmatprep.subr.bf16.mxu0 0
    %4314 = vmatpush1.bf16.msra.mxu0 %v4136
    %4315 = vmatprep.subr.bf16.mxu0 0
    %4316 = vmatpush1.bf16.msra.mxu0 %v4137
    %4317 = vmatprep.subr.bf16.mxu0 0
    %4318 = vmatpush1.bf16.msra.mxu0 %v4138
    %4319 = vmatprep.subr.bf16.mxu0 0
    %4320 = vmatpush1.bf16.msra.mxu0 %v4139
    %4321 = vmatprep.subr.bf16.mxu0 0
    %4322 = vmatpush1.bf16.msra.mxu0 %v4140
    %4323 = vmatprep.subr.bf16.mxu0 0
    %4324 = vmatpush1.bf16.msra.mxu0 %v4141
    %4325 = vmatprep.subr.bf16.mxu0 0
    %4326 = vmatpush1.bf16.msra.mxu0 0
    %4327 = vmatprep.subr.bf16.mxu0 0
    %4328 = vmatpush1.bf16.msra.mxu0 0
    %4329 = vmatprep.subr.bf16.mxu0 0
    %4330 = vmatpush1.bf16.msra.mxu0 0
    %4331 = vmatprep.subr.bf16.mxu0 0
    %4332 = vmatpush1.bf16.msra.mxu0 0
    %4333 = vmatprep.subr.bf16.mxu0 0
    %4334 = vmatpush1.bf16.msra.mxu0 0
    %4335 = vmatprep.subr.bf16.mxu0 0
    %4336 = vmatpush1.bf16.msra.mxu0 0
    %4337 = vmatprep.subr.bf16.mxu0 0
    %4338 = vmatpush1.bf16.msra.mxu0 0
    %4339 = vmatprep.subr.bf16.mxu0 0
    %4340 = vmatpush1.bf16.msra.mxu0 0
    %4341 = vmatprep.mubr.bf16.mxu0 0
    %4342 = vmatmul.mubr.bf16.gmra.mrb[0].mxu0 %v4069
    %v4343 = vpop.f32.mrb[0].mxu0
    %v4344 = vadd.f32 %v4304, %v4343
    %v4345 = vpop.f32.mrb[0].mxu0
    %v4346 = vpop.f32.mrb[0].mxu0
    %v4347 = vpop.f32.mrb[0].mxu0
    %4348 = vdwg.mxu0
    %v4349 = vsub.f32 0.0, %v4344
    %v4350 = vmul.f32 %v4349, 1.442695
    %v4351 = vpow.pop %v4350
    %v4352 = vadd.f32 %v4351, 1.0
    %v4353 = vrcp.pop %v4352
    %v4354 = vmul.f32 %v4344, %v4353
    %v4355 = vpack.c.bf16 %v4004, %v4004
    %v4356 = vld [vmem:[%s10] sm:$0xf]
    %v4357 = vld [vmem:[%s10 + $0x4] sm:$0xf]
    %v4358 = vld [vmem:[%s10 + $0x8] sm:$0xf]
    %v4359 = vld [vmem:[%s10 + $0xc] sm:$0xf]
    %v4360 = vld [vmem:[%s10 + $0x10] sm:$0xf]
    %v4361 = vld [vmem:[%s10 + $0x14] sm:$0xf]
    %v4362 = vld [vmem:[%s10 + $0x18] sm:$0xf]
    %v4363 = vld [vmem:[%s10 + $0x1c] sm:$0xf]
    %v4364 = vld [vmem:[%s11] sm:$0x1]
    %v4366 = vlaneseq
    %v4367 = vshrl.u32 %v4366, 7
    %v4368 = vsub.s32 0, %v4367
    %v4369 = vrot.slane %v4364, %v4368
    %v4379 = vunpack.c.l.b16 %v4356
    %v4380 = vunpack.c.l.b16 %v4357
    %v4381 = vunpack.c.l.b16 %v4358
    %v4382 = vunpack.c.l.b16 %v4359
    %v4383 = vunpack.c.l.b16 %v4360
    %v4384 = vunpack.c.l.b16 %v4361
    %v4385 = vunpack.c.l.b16 %v4362
    %v4386 = vunpack.c.l.b16 %v4363
    %v4387 = vpack.c.b16 %v4380, %v4379
    %v4388 = vpack.c.b16 %v4382, %v4381
    %v4389 = vpack.c.b16 %v4384, %v4383
    %v4390 = vpack.c.b16 %v4386, %v4385
    %v4396 = vsel %vm81, %v4355, 0
    %4398 = vmatprep.subr.bf16.mxu0 0
    %4399 = vmatpush1.bf16.msra.mxu0 %v4387
    %4400 = vmatprep.subr.bf16.mxu0 0
    %4401 = vmatpush1.bf16.msra.mxu0 %v4388
    %4402 = vmatprep.subr.bf16.mxu0 0
    %4403 = vmatpush1.bf16.msra.mxu0 %v4389
    %4404 = vmatprep.subr.bf16.mxu0 0
    %4405 = vmatpush1.bf16.msra.mxu0 %v4390
    %4406 = vmatprep.subr.bf16.mxu0 0
    %4407 = vmatpush1.bf16.msra.mxu0 0
    %4408 = vmatprep.subr.bf16.mxu0 0
    %4409 = vmatpush1.bf16.msra.mxu0 0
    %4410 = vmatprep.subr.bf16.mxu0 0
    %4411 = vmatpush1.bf16.msra.mxu0 0
    %4412 = vmatprep.subr.bf16.mxu0 0
    %4413 = vmatpush1.bf16.msra.mxu0 0
    %4414 = vmatprep.subr.bf16.mxu0 0
    %4415 = vmatpush1.bf16.msra.mxu0 0
    %4416 = vmatprep.subr.bf16.mxu0 0
    %4417 = vmatpush1.bf16.msra.mxu0 0
    %4418 = vmatprep.subr.bf16.mxu0 0
    %4419 = vmatpush1.bf16.msra.mxu0 0
    %4420 = vmatprep.subr.bf16.mxu0 0
    %4421 = vmatpush1.bf16.msra.mxu0 0
    %4422 = vmatprep.subr.bf16.mxu0 0
    %4423 = vmatpush1.bf16.msra.mxu0 0
    %4424 = vmatprep.subr.bf16.mxu0 0
    %4425 = vmatpush1.bf16.msra.mxu0 0
    %4426 = vmatprep.subr.bf16.mxu0 0
    %4427 = vmatpush1.bf16.msra.mxu0 0
    %4428 = vmatprep.subr.bf16.mxu0 0
    %4429 = vmatpush1.bf16.msra.mxu0 0
    %4430 = vmatprep.mubr.bf16.mxu0 0
    %4431 = vmatmul.mubr.bf16.gmra.mrb[0].mxu0 %v4396
    %v4432 = vpop.f32.mrb[0].mxu0
    %v4433 = vadd.f32 %v4369, %v4432
    %v4434 = vpop.f32.mrb[0].mxu0
    %v4435 = vpop.f32.mrb[0].mxu0
    %v4436 = vpop.f32.mrb[0].mxu0
    %4437 = vdwg.mxu0
    %v4438 = vsub.f32 0.0, %v4433
    %v4439 = vmul.f32 %v4438, 1.442695
    %v4440 = vpow.pop %v4439
    %v4441 = vadd.f32 %v4440, 1.0
    %v4442 = vrcp.pop %v4441
    %v4443 = vmul.f32 %v4433, %v4442
    %v4444 = vpack.c.bf16 %v4354, %v4354
    %v4445 = vld [vmem:[%s12] sm:$0xff]
    %v4446 = vld [vmem:[%s12 + $0x8] sm:$0xff]
    %v4447 = vld [vmem:[%s12 + $0x10] sm:$0xff]
    %v4448 = vld [vmem:[%s12 + $0x18] sm:$0xff]
    %v4449 = vld [vmem:[%s12 + $0x20] sm:$0xff]
    %v4450 = vld [vmem:[%s12 + $0x28] sm:$0xff]
    %v4451 = vld [vmem:[%s12 + $0x30] sm:$0xff]
    %v4452 = vld [vmem:[%s12 + $0x38] sm:$0xff]
    %v4453 = vld [vmem:[%s14] sm:$0x3]
    %v4455 = vlaneseq
    %v4456 = vshrl.u32 %v4455, 7
    %v4457 = vsub.s32 0, %v4456
    %v4458 = vrot.slane %v4453, %v4457
    %v4459 = vlaneseq
    %v4460 = vshrl.u32 %v4459, 7
    %v4461 = vsub.s32 1, %v4460
    %v4462 = vrot.slane %v4453, %v4461
    %v4473 = vunpack.c.l.b16 %v4445
    %v4474 = vunpack.c.h.b16 %v4445
    %v4475 = vunpack.c.l.b16 %v4446
    %v4476 = vunpack.c.h.b16 %v4446
    %v4477 = vunpack.c.l.b16 %v4447
    %v4478 = vunpack.c.h.b16 %v4447
    %v4479 = vunpack.c.l.b16 %v4448
    %v4480 = vunpack.c.h.b16 %v4448
    %v4481 = vunpack.c.l.b16 %v4449
    %v4482 = vunpack.c.h.b16 %v4449
    %v4483 = vunpack.c.l.b16 %v4450
    %v4484 = vunpack.c.h.b16 %v4450
    %v4485 = vunpack.c.l.b16 %v4451
    %v4486 = vunpack.c.h.b16 %v4451
    %v4487 = vunpack.c.l.b16 %v4452
    %v4488 = vunpack.c.h.b16 %v4452
    %v4489 = vpack.c.b16 %v4475, %v4473
    %v4490 = vpack.c.b16 %v4476, %v4474
    %v4491 = vpack.c.b16 %v4479, %v4477
    %v4492 = vpack.c.b16 %v4480, %v4478
    %v4493 = vpack.c.b16 %v4483, %v4481
    %v4494 = vpack.c.b16 %v4484, %v4482
    %v4495 = vpack.c.b16 %v4487, %v4485
    %v4496 = vpack.c.b16 %v4488, %v4486
    %v4506 = vsel %vm81, %v4444, 0
    %4508 = vmatprep.subr.bf16.mxu0 %v4490
    %4509 = vmatpush1.bf16.msra.mxu0 %v4489
    %4510 = vmatprep.subr.bf16.mxu0 %v4492
    %4511 = vmatpush1.bf16.msra.mxu0 %v4491
    %4512 = vmatprep.subr.bf16.mxu0 %v4494
    %4513 = vmatpush1.bf16.msra.mxu0 %v4493
    %4514 = vmatprep.subr.bf16.mxu0 %v4496
    %4515 = vmatpush1.bf16.msra.mxu0 %v4495
    %4516 = vmatprep.subr.bf16.mxu0 0
    %4517 = vmatpush1.bf16.msra.mxu0 0
    %4518 = vmatprep.subr.bf16.mxu0 0
    %4519 = vmatpush1.bf16.msra.mxu0 0
    %4520 = vmatprep.subr.bf16.mxu0 0
    %4521 = vmatpush1.bf16.msra.mxu0 0
    %4522 = vmatprep.subr.bf16.mxu0 0
    %4523 = vmatpush1.bf16.msra.mxu0 0
    %4524 = vmatprep.subr.bf16.mxu0 0
    %4525 = vmatpush1.bf16.msra.mxu0 0
    %4526 = vmatprep.subr.bf16.mxu0 0
    %4527 = vmatpush1.bf16.msra.mxu0 0
    %4528 = vmatprep.subr.bf16.mxu0 0
    %4529 = vmatpush1.bf16.msra.mxu0 0
    %4530 = vmatprep.subr.bf16.mxu0 0
    %4531 = vmatpush1.bf16.msra.mxu0 0
    %4532 = vmatprep.subr.bf16.mxu0 0
    %4533 = vmatpush1.bf16.msra.mxu0 0
    %4534 = vmatprep.subr.bf16.mxu0 0
    %4535 = vmatpush1.bf16.msra.mxu0 0
    %4536 = vmatprep.subr.bf16.mxu0 0
    %4537 = vmatpush1.bf16.msra.mxu0 0
    %4538 = vmatprep.subr.bf16.mxu0 0
    %4539 = vmatpush1.bf16.msra.mxu0 0
    %4540 = vmatprep.mubr.bf16.mxu0 0
    %4541 = vmatmul.mubr.bf16.gmra.mrb[0].mxu0 %v4506
    %v4542 = vpop.f32.mrb[0].mxu0
    %v4543 = vadd.f32 %v4458, %v4542
    %v4544 = vpop.f32.mrb[0].mxu0
    %v4545 = vadd.f32 %v4462, %v4544
    %v4546 = vpop.f32.mrb[0].mxu0
    %v4547 = vpop.f32.mrb[0].mxu0
    %4548 = vdwg.mxu0
    %v4549 = vsub.f32 0.0, %v4543
    %v4550 = vsub.f32 0.0, %v4545
    %v4551 = vmul.f32 %v4549, 1.442695
    %v4552 = vpow.pop %v4551
    %v4553 = vmul.f32 %v4550, 1.442695
    %v4554 = vpow.pop %v4553
    %v4555 = vadd.f32 %v4552, 1.0
    %v4556 = vadd.f32 %v4554, 1.0
    %v4557 = vrcp.pop %v4555
    %v4558 = vrcp.pop %v4556
    %v4559 = vmul.f32 %v4543, %v4557
    %v4560 = vmul.f32 %v4545, %v4558
    %v4561 = vld [vmem:[%s13] sm:$0xff]
    %v4562 = vld [vmem:[%s13 + $0x8] sm:$0xff]
    %v4563 = vld [vmem:[%s13 + $0x10] sm:$0xff]
    %v4564 = vld [vmem:[%s13 + $0x18] sm:$0xff]
    %v4565 = vld [vmem:[%s13 + $0x20] sm:$0xff]
    %v4566 = vld [vmem:[%s13 + $0x28] sm:$0xff]
    %v4567 = vld [vmem:[%s13 + $0x30] sm:$0xff]
    %v4568 = vld [vmem:[%s13 + $0x38] sm:$0xff]
    %v4569 = vld [vmem:[%s15] sm:$0x3]
    %v4571 = vlaneseq
    %v4572 = vshrl.u32 %v4571, 7
    %v4573 = vsub.s32 0, %v4572
    %v4574 = vrot.slane %v4569, %v4573
    %v4575 = vlaneseq
    %v4576 = vshrl.u32 %v4575, 7
    %v4577 = vsub.s32 1, %v4576
    %v4578 = vrot.slane %v4569, %v4577
    %4582 = vrot.lane.b32.xlu0 %v4444, 64
    %v4583 = vpop.permute.xlu0 %4582
    %v4592 = vunpack.c.l.b16 %v4561
    %v4593 = vunpack.c.h.b16 %v4561
    %v4594 = vunpack.c.l.b16 %v4562
    %v4595 = vunpack.c.h.b16 %v4562
    %v4596 = vunpack.c.l.b16 %v4563
    %v4597 = vunpack.c.h.b16 %v4563
    %v4598 = vunpack.c.l.b16 %v4564
    %v4599 = vunpack.c.h.b16 %v4564
    %v4600 = vunpack.c.l.b16 %v4565
    %v4601 = vunpack.c.h.b16 %v4565
    %v4602 = vunpack.c.l.b16 %v4566
    %v4603 = vunpack.c.h.b16 %v4566
    %v4604 = vunpack.c.l.b16 %v4567
    %v4605 = vunpack.c.h.b16 %v4567
    %v4606 = vunpack.c.l.b16 %v4568
    %v4607 = vunpack.c.h.b16 %v4568
    %v4608 = vpack.c.b16 %v4594, %v4592
    %v4609 = vpack.c.b16 %v4595, %v4593
    %v4610 = vpack.c.b16 %v4598, %v4596
    %v4611 = vpack.c.b16 %v4599, %v4597
    %v4612 = vpack.c.b16 %v4602, %v4600
    %v4613 = vpack.c.b16 %v4603, %v4601
    %v4614 = vpack.c.b16 %v4606, %v4604
    %v4615 = vpack.c.b16 %v4607, %v4605
    %v4625 = vsel %vm81, %v4583, 0
    %4627 = vmatprep.subr.bf16.mxu0 %v4609
    %4628 = vmatpush1.bf16.msra.mxu0 %v4608
    %4629 = vmatprep.subr.bf16.mxu0 %v4611
    %4630 = vmatpush1.bf16.msra.mxu0 %v4610
    %4631 = vmatprep.subr.bf16.mxu0 %v4613
    %4632 = vmatpush1.bf16.msra.mxu0 %v4612
    %4633 = vmatprep.subr.bf16.mxu0 %v4615
    %4634 = vmatpush1.bf16.msra.mxu0 %v4614
    %4635 = vmatprep.subr.bf16.mxu0 0
    %4636 = vmatpush1.bf16.msra.mxu0 0
    %4637 = vmatprep.subr.bf16.mxu0 0
    %4638 = vmatpush1.bf16.msra.mxu0 0
    %4639 = vmatprep.subr.bf16.mxu0 0
    %4640 = vmatpush1.bf16.msra.mxu0 0
    %4641 = vmatprep.subr.bf16.mxu0 0
    %4642 = vmatpush1.bf16.msra.mxu0 0
    %4643 = vmatprep.subr.bf16.mxu0 0
    %4644 = vmatpush1.bf16.msra.mxu0 0
    %4645 = vmatprep.subr.bf16.mxu0 0
    %4646 = vmatpush1.bf16.msra.mxu0 0
    %4647 = vmatprep.subr.bf16.mxu0 0
    %4648 = vmatpush1.bf16.msra.mxu0 0
    %4649 = vmatprep.subr.bf16.mxu0 0
    %4650 = vmatpush1.bf16.msra.mxu0 0
    %4651 = vmatprep.subr.bf16.mxu0 0
    %4652 = vmatpush1.bf16.msra.mxu0 0
    %4653 = vmatprep.subr.bf16.mxu0 0
    %4654 = vmatpush1.bf16.msra.mxu0 0
    %4655 = vmatprep.subr.bf16.mxu0 0
    %4656 = vmatpush1.bf16.msra.mxu0 0
    %4657 = vmatprep.subr.bf16.mxu0 0
    %4658 = vmatpush1.bf16.msra.mxu0 0
    %4659 = vmatprep.mubr.bf16.mxu0 0
    %4660 = vmatmul.mubr.bf16.gmra.mrb[0].mxu0 %v4625
    %v4661 = vpop.f32.mrb[0].mxu0
    %v4662 = vadd.f32 %v4574, %v4661
    %v4663 = vpop.f32.mrb[0].mxu0
    %v4664 = vadd.f32 %v4578, %v4663
    %v4665 = vpop.f32.mrb[0].mxu0
    %v4666 = vpop.f32.mrb[0].mxu0
    %4667 = vdwg.mxu0
    %v4668 = vsub.f32 0.0, %v4662
    %v4669 = vsub.f32 0.0, %v4664
    %v4670 = vmul.f32 %v4668, 1.442695
    %v4671 = vpow.pop %v4670
    %v4672 = vmul.f32 %v4669, 1.442695
    %v4673 = vpow.pop %v4672
    %v4674 = vadd.f32 %v4671, 1.0
    %v4675 = vadd.f32 %v4673, 1.0
    %v4676 = vrcp.pop %v4674
    %v4677 = vrcp.pop %v4675
    %v4678 = vmul.f32 %v4662, %v4676
    %v4679 = vmul.f32 %v4664, %v4677
    %v4680 = vld [vmem:[%s20] sm:$0x1]
    %v4682 = vlaneseq
    %v4683 = vshrl.u32 %v4682, 7
    %v4684 = vsub.s32 0, %v4683
    %v4685 = vrot.slane %v4680, %v4684
    %v4687 = vmul.f32 %v4443, %v4685
    %vm4688 = vcmask 1041408
    %v4689 = vsel %vm4688, %v4687, 0.0
    %4690 = vadd.xlane.f32.xlu0 %v4689
    %v4691 = vpop.xlane.xlu0 %4690
    %v4692 = vld [vmem:[#allocation8] sm:$0x1]
    %v4694 = vlaneseq
    %v4695 = vshrl.u32 %v4694, 7
    %v4696 = vsub.s32 0, %v4695
    %v4697 = vrot.slane %v4692, %v4696
    %v4699 = vadd.f32 %v4691, %v4697
    %v4700 = vsub.f32 0.0, %v4699
    %v4701 = vmul.f32 %v4700, 1.442695
    %v4702 = vpow.pop %v4701
    %v4703 = vadd.f32 %v4702, 1.0
    %v4704 = vrcp.pop %v4703
    %v4705 = vmul.f32 1.0, %v4704
    %v4706 = vpack.c.bf16 %v4559, %v4559
    %v4707 = vpack.c.bf16 %v4560, %v4560
    %v4708 = vld [vmem:[%s16] sm:$0xf]
    %v4709 = vld [vmem:[%s16 + $0x4] sm:$0xf]
    %v4710 = vld [vmem:[%s16 + $0x8] sm:$0xf]
    %v4711 = vld [vmem:[%s16 + $0xc] sm:$0xf]
    %v4712 = vld [vmem:[%s16 + $0x10] sm:$0xf]
    %v4713 = vld [vmem:[%s16 + $0x14] sm:$0xf]
    %v4714 = vld [vmem:[%s16 + $0x18] sm:$0xf]
    %v4715 = vld [vmem:[%s16 + $0x1c] sm:$0xf]
    %v4716 = vld [vmem:[%s16 + $0x20] sm:$0xf]
    %v4717 = vld [vmem:[%s16 + $0x24] sm:$0xf]
    %v4718 = vld [vmem:[%s16 + $0x28] sm:$0xf]
    %v4719 = vld [vmem:[%s16 + $0x2c] sm:$0xf]
    %v4720 = vld [vmem:[%s16 + $0x30] sm:$0xf]
    %v4721 = vld [vmem:[%s16 + $0x34] sm:$0xf]
    %v4722 = vld [vmem:[%s16 + $0x38] sm:$0xf]
    %v4723 = vld [vmem:[%s16 + $0x3c] sm:$0xf]
    %v4724 = vld [vmem:[%s16 + $0x40] sm:$0xf]
    %v4725 = vld [vmem:[%s16 + $0x44] sm:$0xf]
    %v4726 = vld [vmem:[%s16 + $0x48] sm:$0xf]
    %v4727 = vld [vmem:[%s16 + $0x4c] sm:$0xf]
    %v4728 = vld [vmem:[%s16 + $0x50] sm:$0xf]
    %v4729 = vld [vmem:[%s16 + $0x54] sm:$0xf]
    %v4730 = vld [vmem:[%s16 + $0x58] sm:$0xf]
    %v4731 = vld [vmem:[%s16 + $0x5c] sm:$0xf]
    %v4732 = vld [vmem:[%s16 + $0x60] sm:$0xf]
    %v4733 = vld [vmem:[%s16 + $0x64] sm:$0xf]
    %v4734 = vld [vmem:[%s16 + $0x68] sm:$0xf]
    %v4735 = vld [vmem:[%s16 + $0x6c] sm:$0xf]
    %v4736 = vld [vmem:[%s16 + $0x70] sm:$0xf]
    %v4737 = vld [vmem:[%s16 + $0x74] sm:$0xf]
    %v4738 = vld [vmem:[%s16 + $0x78] sm:$0xf]
    %v4739 = vld [vmem:[%s16 + $0x7c] sm:$0xf]
    %v4740 = vld [vmem:[%s18] sm:$0x1]
    %v4742 = vlaneseq
    %v4743 = vshrl.u32 %v4742, 7
    %v4744 = vsub.s32 0, %v4743
    %v4745 = vrot.slane %v4740, %v4744
    %v4779 = vunpack.c.l.b16 %v4708
    %v4780 = vunpack.c.l.b16 %v4709
    %v4781 = vunpack.c.l.b16 %v4710
    %v4782 = vunpack.c.l.b16 %v4711
    %v4783 = vunpack.c.l.b16 %v4712
    %v4784 = vunpack.c.l.b16 %v4713
    %v4785 = vunpack.c.l.b16 %v4714
    %v4786 = vunpack.c.l.b16 %v4715
    %v4787 = vunpack.c.l.b16 %v4716
    %v4788 = vunpack.c.l.b16 %v4717
    %v4789 = vunpack.c.l.b16 %v4718
    %v4790 = vunpack.c.l.b16 %v4719
    %v4791 = vunpack.c.l.b16 %v4720
    %v4792 = vunpack.c.l.b16 %v4721
    %v4793 = vunpack.c.l.b16 %v4722
    %v4794 = vunpack.c.l.b16 %v4723
    %v4795 = vunpack.c.l.b16 %v4724
    %v4796 = vunpack.c.l.b16 %v4725
    %v4797 = vunpack.c.l.b16 %v4726
    %v4798 = vunpack.c.l.b16 %v4727
    %v4799 = vunpack.c.l.b16 %v4728
    %v4800 = vunpack.c.l.b16 %v4729
    %v4801 = vunpack.c.l.b16 %v4730
    %v4802 = vunpack.c.l.b16 %v4731
    %v4803 = vunpack.c.l.b16 %v4732
    %v4804 = vunpack.c.l.b16 %v4733
    %v4805 = vunpack.c.l.b16 %v4734
    %v4806 = vunpack.c.l.b16 %v4735
    %v4807 = vunpack.c.l.b16 %v4736
    %v4808 = vunpack.c.l.b16 %v4737
    %v4809 = vunpack.c.l.b16 %v4738
    %v4810 = vunpack.c.l.b16 %v4739
    %v4811 = vpack.c.b16 %v4780, %v4779
    %v4812 = vpack.c.b16 %v4782, %v4781
    %v4813 = vpack.c.b16 %v4784, %v4783
    %v4814 = vpack.c.b16 %v4786, %v4785
    %v4815 = vpack.c.b16 %v4788, %v4787
    %v4816 = vpack.c.b16 %v4790, %v4789
    %v4817 = vpack.c.b16 %v4792, %v4791
    %v4818 = vpack.c.b16 %v4794, %v4793
    %v4819 = vpack.c.b16 %v4796, %v4795
    %v4820 = vpack.c.b16 %v4798, %v4797
    %v4821 = vpack.c.b16 %v4800, %v4799
    %v4822 = vpack.c.b16 %v4802, %v4801
    %v4823 = vpack.c.b16 %v4804, %v4803
    %v4824 = vpack.c.b16 %v4806, %v4805
    %v4825 = vpack.c.b16 %v4808, %v4807
    %v4826 = vpack.c.b16 %v4810, %v4809
    %4843 = vmatprep.subr.bf16.mxu0 0
    %4844 = vmatpush1.bf16.msra.mxu0 %v4811
    %4845 = vmatprep.subr.bf16.mxu0 0
    %4846 = vmatpush1.bf16.msra.mxu0 %v4812
    %4847 = vmatprep.subr.bf16.mxu0 0
    %4848 = vmatpush1.bf16.msra.mxu0 %v4813
    %4849 = vmatprep.subr.bf16.mxu0 0
    %4850 = vmatpush1.bf16.msra.mxu0 %v4814
    %4851 = vmatprep.subr.bf16.mxu0 0
    %4852 = vmatpush1.bf16.msra.mxu0 %v4815
    %4853 = vmatprep.subr.bf16.mxu0 0
    %4854 = vmatpush1.bf16.msra.mxu0 %v4816
    %4855 = vmatprep.subr.bf16.mxu0 0
    %4856 = vmatpush1.bf16.msra.mxu0 %v4817
    %4857 = vmatprep.subr.bf16.mxu0 0
    %4858 = vmatpush1.bf16.msra.mxu0 %v4818
    %4859 = vmatprep.subr.bf16.mxu0 0
    %4860 = vmatpush1.bf16.msra.mxu0 %v4819
    %4861 = vmatprep.subr.bf16.mxu0 0
    %4862 = vmatpush1.bf16.msra.mxu0 %v4820
    %4863 = vmatprep.subr.bf16.mxu0 0
    %4864 = vmatpush1.bf16.msra.mxu0 %v4821
    %4865 = vmatprep.subr.bf16.mxu0 0
    %4866 = vmatpush1.bf16.msra.mxu0 %v4822
    %4867 = vmatprep.subr.bf16.mxu0 0
    %4868 = vmatpush1.bf16.msra.mxu0 %v4823
    %4869 = vmatprep.subr.bf16.mxu0 0
    %4870 = vmatpush1.bf16.msra.mxu0 %v4824
    %4871 = vmatprep.subr.bf16.mxu0 0
    %4872 = vmatpush1.bf16.msra.mxu0 %v4825
    %4873 = vmatprep.subr.bf16.mxu0 0
    %4874 = vmatpush1.bf16.msra.mxu0 %v4826
    %4875 = vmatprep.mubr.bf16.mxu0 %v4707
    %4876 = vmatmul.mubr.bf16.gmra.mrb[0].mxu0 %v4706
    %v4877 = vpop.f32.mrb[0].mxu0
    %v4878 = vadd.f32 %v4745, %v4877
    %v4879 = vpop.f32.mrb[0].mxu0
    %v4880 = vpop.f32.mrb[0].mxu0
    %v4881 = vpop.f32.mrb[0].mxu0
    %4882 = vdwg.mxu0
    %v4883 = vpack.c.bf16 %v4678, %v4678
    %v4884 = vpack.c.bf16 %v4679, %v4679
    %v4885 = vld [vmem:[%s17] sm:$0xf]
    %v4886 = vld [vmem:[%s17 + $0x4] sm:$0xf]
    %v4887 = vld [vmem:[%s17 + $0x8] sm:$0xf]
    %v4888 = vld [vmem:[%s17 + $0xc] sm:$0xf]
    %v4889 = vld [vmem:[%s17 + $0x10] sm:$0xf]
    %v4890 = vld [vmem:[%s17 + $0x14] sm:$0xf]
    %v4891 = vld [vmem:[%s17 + $0x18] sm:$0xf]
    %v4892 = vld [vmem:[%s17 + $0x1c] sm:$0xf]
    %v4893 = vld [vmem:[%s17 + $0x20] sm:$0xf]
    %v4894 = vld [vmem:[%s17 + $0x24] sm:$0xf]
    %v4895 = vld [vmem:[%s17 + $0x28] sm:$0xf]
    %v4896 = vld [vmem:[%s17 + $0x2c] sm:$0xf]
    %v4897 = vld [vmem:[%s17 + $0x30] sm:$0xf]
    %v4898 = vld [vmem:[%s17 + $0x34] sm:$0xf]
    %v4899 = vld [vmem:[%s17 + $0x38] sm:$0xf]
    %v4900 = vld [vmem:[%s17 + $0x3c] sm:$0xf]
    %v4901 = vld [vmem:[%s17 + $0x40] sm:$0xf]
    %v4902 = vld [vmem:[%s17 + $0x44] sm:$0xf]
    %v4903 = vld [vmem:[%s17 + $0x48] sm:$0xf]
    %v4904 = vld [vmem:[%s17 + $0x4c] sm:$0xf]
    %v4905 = vld [vmem:[%s17 + $0x50] sm:$0xf]
    %v4906 = vld [vmem:[%s17 + $0x54] sm:$0xf]
    %v4907 = vld [vmem:[%s17 + $0x58] sm:$0xf]
    %v4908 = vld [vmem:[%s17 + $0x5c] sm:$0xf]
    %v4909 = vld [vmem:[%s17 + $0x60] sm:$0xf]
    %v4910 = vld [vmem:[%s17 + $0x64] sm:$0xf]
    %v4911 = vld [vmem:[%s17 + $0x68] sm:$0xf]
    %v4912 = vld [vmem:[%s17 + $0x6c] sm:$0xf]
    %v4913 = vld [vmem:[%s17 + $0x70] sm:$0xf]
    %v4914 = vld [vmem:[%s17 + $0x74] sm:$0xf]
    %v4915 = vld [vmem:[%s17 + $0x78] sm:$0xf]
    %v4916 = vld [vmem:[%s17 + $0x7c] sm:$0xf]
    %v4917 = vld [vmem:[%s19] sm:$0x1]
    %v4919 = vlaneseq
    %v4920 = vshrl.u32 %v4919, 7
    %v4921 = vsub.s32 0, %v4920
    %v4922 = vrot.slane %v4917, %v4921
    %v4956 = vunpack.c.l.b16 %v4885
    %v4957 = vunpack.c.l.b16 %v4886
    %v4958 = vunpack.c.l.b16 %v4887
    %v4959 = vunpack.c.l.b16 %v4888
    %v4960 = vunpack.c.l.b16 %v4889
    %v4961 = vunpack.c.l.b16 %v4890
    %v4962 = vunpack.c.l.b16 %v4891
    %v4963 = vunpack.c.l.b16 %v4892
    %v4964 = vunpack.c.l.b16 %v4893
    %v4965 = vunpack.c.l.b16 %v4894
    %v4966 = vunpack.c.l.b16 %v4895
    %v4967 = vunpack.c.l.b16 %v4896
    %v4968 = vunpack.c.l.b16 %v4897
    %v4969 = vunpack.c.l.b16 %v4898
    %v4970 = vunpack.c.l.b16 %v4899
    %v4971 = vunpack.c.l.b16 %v4900
    %v4972 = vunpack.c.l.b16 %v4901
    %v4973 = vunpack.c.l.b16 %v4902
    %v4974 = vunpack.c.l.b16 %v4903
    %v4975 = vunpack.c.l.b16 %v4904
    %v4976 = vunpack.c.l.b16 %v4905
    %v4977 = vunpack.c.l.b16 %v4906
    %v4978 = vunpack.c.l.b16 %v4907
    %v4979 = vunpack.c.l.b16 %v4908
    %v4980 = vunpack.c.l.b16 %v4909
    %v4981 = vunpack.c.l.b16 %v4910
    %v4982 = vunpack.c.l.b16 %v4911
    %v4983 = vunpack.c.l.b16 %v4912
    %v4984 = vunpack.c.l.b16 %v4913
    %v4985 = vunpack.c.l.b16 %v4914
    %v4986 = vunpack.c.l.b16 %v4915
    %v4987 = vunpack.c.l.b16 %v4916
    %v4988 = vpack.c.b16 %v4957, %v4956
    %v4989 = vpack.c.b16 %v4959, %v4958
    %v4990 = vpack.c.b16 %v4961, %v4960
    %v4991 = vpack.c.b16 %v4963, %v4962
    %v4992 = vpack.c.b16 %v4965, %v4964
    %v4993 = vpack.c.b16 %v4967, %v4966
    %v4994 = vpack.c.b16 %v4969, %v4968
    %v4995 = vpack.c.b16 %v4971, %v4970
    %v4996 = vpack.c.b16 %v4973, %v4972
    %v4997 = vpack.c.b16 %v4975, %v4974
    %v4998 = vpack.c.b16 %v4977, %v4976
    %v4999 = vpack.c.b16 %v4979, %v4978
    %v5000 = vpack.c.b16 %v4981, %v4980
    %v5001 = vpack.c.b16 %v4983, %v4982
    %v5002 = vpack.c.b16 %v4985, %v4984
    %v5003 = vpack.c.b16 %v4987, %v4986
    %5020 = vmatprep.subr.bf16.mxu0 0
    %5021 = vmatpush1.bf16.msra.mxu0 %v4988
    %5022 = vmatprep.subr.bf16.mxu0 0
    %5023 = vmatpush1.bf16.msra.mxu0 %v4989
    %5024 = vmatprep.subr.bf16.mxu0 0
    %5025 = vmatpush1.bf16.msra.mxu0 %v4990
    %5026 = vmatprep.subr.bf16.mxu0 0
    %5027 = vmatpush1.bf16.msra.mxu0 %v4991
    %5028 = vmatprep.subr.bf16.mxu0 0
    %5029 = vmatpush1.bf16.msra.mxu0 %v4992
    %5030 = vmatprep.subr.bf16.mxu0 0
    %5031 = vmatpush1.bf16.msra.mxu0 %v4993
    %5032 = vmatprep.subr.bf16.mxu0 0
    %5033 = vmatpush1.bf16.msra.mxu0 %v4994
    %5034 = vmatprep.subr.bf16.mxu0 0
    %5035 = vmatpush1.bf16.msra.mxu0 %v4995
    %5036 = vmatprep.subr.bf16.mxu0 0
    %5037 = vmatpush1.bf16.msra.mxu0 %v4996
    %5038 = vmatprep.subr.bf16.mxu0 0
    %5039 = vmatpush1.bf16.msra.mxu0 %v4997
    %5040 = vmatprep.subr.bf16.mxu0 0
    %5041 = vmatpush1.bf16.msra.mxu0 %v4998
    %5042 = vmatprep.subr.bf16.mxu0 0
    %5043 = vmatpush1.bf16.msra.mxu0 %v4999
    %5044 = vmatprep.subr.bf16.mxu0 0
    %5045 = vmatpush1.bf16.msra.mxu0 %v5000
    %5046 = vmatprep.subr.bf16.mxu0 0
    %5047 = vmatpush1.bf16.msra.mxu0 %v5001
    %5048 = vmatprep.subr.bf16.mxu0 0
    %5049 = vmatpush1.bf16.msra.mxu0 %v5002
    %5050 = vmatprep.subr.bf16.mxu0 0
    %5051 = vmatpush1.bf16.msra.mxu0 %v5003
    %5052 = vmatprep.mubr.bf16.mxu0 %v4884
    %5053 = vmatmul.mubr.bf16.gmra.mrb[0].mxu0 %v4883
    %v5054 = vpop.f32.mrb[0].mxu0
    %v5055 = vadd.f32 %v4922, %v5054
    %v5056 = vpop.f32.mrb[0].mxu0
    %v5057 = vpop.f32.mrb[0].mxu0
    %v5058 = vpop.f32.mrb[0].mxu0
    %5059 = vdwg.mxu0
    %vm5060 = vcmp.gt.f32.partialorder %v4705, 0.5
    %v5061 = vsel %vm5060, 1, 0
    %5062 = vset.pattern.permute.xlu0 0
    %5063 = vperm.xlu0 %5062, %v5061
    %v5064 = vpop.permute.xlu0 %5063
    %vm5065 = vcmp.eq.s32.totalorder %v5064, 1
    %v5066 = vsel %vm5065, %v4878, %v5055
    %vm5067 = vcmask 9216
    %5068 = vst.msk [vmem:[#allocation9] sm:$0x3] %vm5067, %v5066
    %vm5069 = vcmask 1024
    %5070 = vst.msk [vmem:[%s24] sm:$0x3] %vm5069, %v4705
    // Predicated region
    $region94: #{experts_forward.1} parent=1 // pred_check
      _
    $region95: #{experts_forward.1} parent=1 // pred_check_branch
      %5072 = sbr.rel (0) target = $region97
    $region96: #{experts_forward.1} parent=1 // pred_region
      %s5074 = ssub.s32 32, 32
      %5075 = vsyncadd [#allocation10], %s5074
      %s5077 = sshll.u32 [#allocation9], 4
      %s5078 = int_to_ptr.vmem [resolvable:$true] %s5077
      %5080 = dma.vmem_to_hbm [thread:$0]  %s5078, 32, %s23, [#allocation10]
    $region97: #{experts_forward.1} parent=1 // pred_fallthru
      _
    // Predicated region
    $region98: #{experts_forward.1} parent=1 // pred_check
      _
    $region99: #{experts_forward.1} parent=1 // pred_check_branch
      %5082 = sbr.rel (0) target = $region101
    $region100: #{experts_forward.1} parent=1 // pred_region
      _
    $region101: #{experts_forward.1} parent=1 // pred_fallthru
      _
    // Predicated region
    $region102: #{experts_forward.1} parent=1 // pred_check
      _
    $region103: #{experts_forward.1} parent=1 // pred_check_branch
      %5084 = sbr.rel (0) target = $region105
    $region104: #{experts_forward.1} parent=1 // pred_region
      %5085 = dma.done [#allocation10], 32
    $region105: #{experts_forward.1} parent=1 // pred_fallthru
      _
    // Predicated region
    $region106: #{experts_forward.1} parent=1 // pred_check
      _
    $region107: #{experts_forward.1} parent=1 // pred_check_branch
      %5087 = sbr.rel (0) target = $region109
    $region108: #{experts_forward.1} parent=1 // pred_region
      _
    $region109: #{experts_forward.1} parent=1 // pred_fallthru
      _
    %5088 = vsyncpa [#allocation10], 1

</llo_original>
